<compile_context>
chip_gen: v6e
topology: v6e:2x2x1
jax: 0.10.0
libtpu: 0.0.40
codegen_flags: <defaults>
</compile_context>

<pallas_src>
import functools

import jax
import jax.numpy as jnp
from jax.experimental import pallas as pl
from jax.experimental.pallas import tpu as pltpu

ALPHA = 0.2  # LeakyReLU slope used by the cell (self.alpha = 0.2)


def _mvcvtn_kernel(w_ref, x_ref, env_ref, bias_ref, adjpf_ref, adjpt_ref,
                   wih_ref, whh_ref, bih_ref, bhh_ref,
                   wdx_ref, wdh_ref, bd_ref,
                   wgx_ref, wgh_ref, wgf_ref, asrc_ref, adst_ref,
                   ot_ref, os_ref, oe_ref,
                   *, T, K1, heads, H, N):
    f32 = jnp.float32

    # state-mix weights (already softmaxed in the wrapper); scalars in SMEM
    w0 = w_ref[0]
    w1 = w_ref[1]
    w2 = w_ref[2]

    x_all = x_ref[...]            # (T, N)   time-major -> contiguous per-step rows
    env = env_ref[...]            # (N, F)
    attn_bias = bias_ref[...]     # (N, N)   0 where edge, -1e9 where no edge
    adjpf = adjpf_ref[...]        # (K1*N, N)  rows k*N:(k+1)*N == adj^k
    whh = whh_ref[...]            # (H, 3H)
    bhh = bhh_ref[...]            # (1, 3H)
    wgh = wgh_ref[...]            # (H, heads*H)  head-fused GAT hidden projection
    bd = bd_ref[...]              # (1, H)

    # ---- hoisted, recurrence-independent precompute (once per batch element) ----
    x_col = x_all[:, :, None]                                           # (T, N, 1)
    gi_all = x_col * wih_ref[...] + bih_ref[...]                        # (T, N, 3H)
    xg_all = x_col * wgx_ref[...]                                       # (T, N, heads*H)
    env_proj = jnp.dot(env, wgf_ref[...], preferred_element_type=f32)   # (N, heads*H)

    # DGCN input-diffusion term sum_k (A^k x_t) * wdx[k], for all steps at once
    x_diff_all = jnp.zeros((T, N, H), f32)
    for k in range(K1):
        xk = jnp.dot(x_all, adjpt_ref[k], preferred_element_type=f32)   # (T, N)
        x_diff_all = x_diff_all + xk[:, :, None] * wdx_ref[k]

    # ---- fused recurrence over the whole sequence (weights stay resident) ----
    s_t = jnp.zeros((N, H), f32)
    s_s = jnp.zeros((N, H), f32)
    s_e = jnp.zeros((N, H), f32)

    for t in range(T):
        # 1) softmax-weighted mix of the three previous states
        h_prev = w0 * s_t + w1 * s_s + w2 * s_e

        # 2) GRUCell (PyTorch gate order r, z, n), input_dim = 1
        gi = gi_all[t]                                                  # (N, 3H)
        gh = jnp.dot(h_prev, whh, preferred_element_type=f32) + bhh
        r = jax.nn.sigmoid(gi[:, :H] + gh[:, :H])
        z = jax.nn.sigmoid(gi[:, H:2 * H] + gh[:, H:2 * H])
        n_ = jnp.tanh(gi[:, 2 * H:] + r * gh[:, 2 * H:])
        h_t = (1.0 - z) * n_ + z * h_prev                               # (N, H)

        # 3) DGCN: K-step diffusion graph convolution over [x, h_t]
        h_stack = jnp.dot(adjpf, h_t, preferred_element_type=f32)       # (K1*N, H) = [A^k h_t]
        s_acc = x_diff_all[t]
        for k in range(K1):
            s_acc = s_acc + jnp.dot(h_stack[k * N:(k + 1) * N, :], wdh_ref[k],
                                    preferred_element_type=f32)
        h_s = jnp.tanh(s_acc + bd)

        # 4) GAT: multi-head graph attention over [x, h_t, env] (heads fused)
        p_all = xg_all[t] + env_proj + jnp.dot(h_t, wgh, preferred_element_type=f32)
        hacc = jnp.zeros((N, H), f32)
        for hd in range(heads):
            p_h = p_all[:, hd * H:(hd + 1) * H]                          # (N, H)
            e_src = jnp.sum(p_h * asrc_ref[hd], axis=-1, keepdims=True)  # (N, 1)
            e_dst = jnp.sum(p_h * adst_ref[hd], axis=-1)                 # (N,)
            e = e_src + e_dst[None, :]                                   # (N, N)
            e = jnp.where(e > 0.0, e, ALPHA * e)                         # LeakyReLU(0.2)
            e = e + attn_bias                                            # mask non-edges
            # masked softmax (denominator divide goes to the EUP via vrcp)
            e = e - jnp.max(e, axis=-1, keepdims=True)
            p = jnp.exp(e)
            a = p * pl.reciprocal(jnp.sum(p, axis=-1, keepdims=True), approx=True)
            hacc = hacc + jnp.dot(a, p_h, preferred_element_type=f32)
        h_e = jnp.tanh(hacc * (1.0 / float(heads)))

        s_t, s_s, s_e = h_t, h_s, h_e

    ot_ref[...] = s_t
    os_ref[...] = s_s
    oe_ref[...] = s_e


def _const_spec(shape):
    """Full-array block with a constant index_map -> DMA'd once, kept in VMEM."""
    zeros = (0,) * len(shape)
    return pl.BlockSpec(shape, lambda b, _z=zeros: _z)


def init_params(key, H, F, K, heads):
    ks = jax.random.split(key, 12)
    s = 0.1
    return dict(
        h_t_weights=jnp.full((3,), 1.0 / 3.0, jnp.float32),       # reset_parameters()
        wih=jax.random.normal(ks[0], (1, 3 * H), jnp.float32) * s,
        whh=jax.random.normal(ks[1], (H, 3 * H), jnp.float32) * s,
        bih=jax.random.normal(ks[2], (1, 3 * H), jnp.float32) * s,
        bhh=jax.random.normal(ks[3], (1, 3 * H), jnp.float32) * s,
        wdx=jax.random.normal(ks[4], (K + 1, H), jnp.float32) * s,
        wdh=jax.random.normal(ks[5], (K + 1, H, H), jnp.float32) * s,
        bd=jax.random.normal(ks[6], (1, H), jnp.float32) * s,
        wgx=jax.random.normal(ks[7], (heads, H), jnp.float32) * s,
        wgh=jax.random.normal(ks[8], (heads, H, H), jnp.float32) * s,
        wgf=jax.random.normal(ks[9], (heads, F, H), jnp.float32) * s,
        asrc=jax.random.normal(ks[10], (heads, H), jnp.float32) * s,
        adst=jax.random.normal(ks[11], (heads, H), jnp.float32) * s,
    )


def mvcvtn1_forward(inputs, envs_feat, adj, params):
    B, N, T = inputs.shape                     # T = seq_len + 1
    F = envs_feat.shape[-1]
    H = params['whh'].shape[0]
    K1 = params['wdh'].shape[0]                # max_diffusion_step + 1
    heads = params['wgh'].shape[0]

    # softmax over the 3 state-mixing weights (nn.Softmax(dim=0))
    w = jax.nn.softmax(params['h_t_weights']).astype(jnp.float32)

    # time-major input: per-step slices are contiguous (no strided lane gather)
    x_tbn = jnp.transpose(inputs, (0, 2, 1)).astype(jnp.float32)        # (B, T, N)

    adjf = adj.astype(jnp.float32)
    # GAT adjacency mask as an additive bias (batch-independent, computed once here)
    attn_bias = jnp.where(adjf > 0.0, 0.0, -1e9).astype(jnp.float32)    # (N, N)

    # adjacency powers adj^0..adj^K (constant over time -> computed once here)
    pows = [jnp.eye(N, dtype=jnp.float32)]
    for _ in range(K1 - 1):
        pows.append(pows[-1] @ adjf)
    adj_pows = jnp.stack(pows)                                          # (K1, N, N)
    adjp_flat = adj_pows.reshape(K1 * N, N)                             # stacked -> 1 matmul/step
    adjp_T = jnp.transpose(adj_pows, (0, 2, 1))                         # for x-diffusion

    # fuse the GAT heads along the output-column dimension (one matmul per step)
    wgh_flat = jnp.transpose(params['wgh'], (1, 0, 2)).reshape(H, heads * H)
    wgf_flat = jnp.transpose(params['wgf'], (1, 0, 2)).reshape(F, heads * H)
    wgx_flat = params['wgx'].reshape(1, heads * H)

    kernel = functools.partial(_mvcvtn_kernel, T=T, K1=K1, heads=heads, H=H, N=N)

    out_sd = jax.ShapeDtypeStruct((B, N, H), jnp.float32)
    smem_spec = pl.BlockSpec(memory_space=pltpu.MemorySpace.SMEM)
    x_spec = pl.BlockSpec((None, T, N), lambda b: (b, 0, 0))
    env_spec = pl.BlockSpec((None, N, F), lambda b: (b, 0, 0))
    out_spec = pl.BlockSpec((None, N, H), lambda b: (b, 0, 0))

    return pl.pallas_call(
        kernel,
        grid=(B,),
        in_specs=[
            smem_spec, x_spec, env_spec,
            _const_spec((N, N)), _const_spec((K1 * N, N)), _const_spec((K1, N, N)),
            _const_spec(params['wih'].shape), _const_spec(params['whh'].shape),
            _const_spec(params['bih'].shape), _const_spec(params['bhh'].shape),
            _const_spec(params['wdx'].shape), _const_spec(params['wdh'].shape),
            _const_spec(params['bd'].shape),
            _const_spec(wgx_flat.shape), _const_spec(wgh_flat.shape),
            _const_spec(wgf_flat.shape),
            _const_spec(params['asrc'].shape), _const_spec(params['adst'].shape),
        ],
        out_specs=(out_spec, out_spec, out_spec),
        out_shape=(out_sd, out_sd, out_sd),
        compiler_params=pltpu.CompilerParams(
            dimension_semantics=("parallel",)),     # batch axis -> both TCs on v7x
    )(w, x_tbn, envs_feat.astype(jnp.float32), attn_bias, adjp_flat, adjp_T,
      params['wih'], params['whh'], params['bih'], params['bhh'],
      params['wdx'], params['wdh'], params['bd'],
      wgx_flat, wgh_flat, wgf_flat, params['asrc'], params['adst'])


if __name__ == "__main__":
    B, N, H, F = 2, 8, 32, 16          # batch, num_nodes, hidden_dim, feat_dim
    seq_len = 7                        # loop runs seq_len + 1 = 8 steps
    K = 2                              # max_diffusion_step
    heads = 2                          # num_heads

    key = jax.random.PRNGKey(0)
    k_in, k_env, k_par = jax.random.split(key, 3)

    inputs = jax.random.normal(k_in, (B, N, seq_len + 1), jnp.float32)
    envs_feat = jax.random.normal(k_env, (B, N, F), jnp.float32)

    # deterministic ring adjacency with self loops, row-normalized
    eye = jnp.eye(N, dtype=jnp.float32)
    ring = jnp.roll(eye, 1, axis=1) + jnp.roll(eye, -1, axis=1)
    adj = eye + ring
    adj = adj / jnp.sum(adj, axis=1, keepdims=True)

    params = init_params(k_par, H, F, K, heads)

    fwd = jax.jit(mvcvtn1_forward)
    out_t, out_s, out_e = jax.block_until_ready(fwd(inputs, envs_feat, adj, params))

    assert out_t.shape == (B, N, H)
    assert out_s.shape == (B, N, H)
    assert out_e.shape == (B, N, H)
    assert bool(jnp.all(jnp.isfinite(out_t)))
    assert bool(jnp.all(jnp.isfinite(out_s)))
    assert bool(jnp.all(jnp.isfinite(out_e)))
    print("KERNEL_OK")
</pallas_src>

<mosaic_0001>
module attributes {stable_mosaic.version = 11 : i64} {
  func.func @_mvcvtn_kernel(%arg0: i32, %arg1: memref<3xf32, #tpu.memory_space<smem>>, %arg2: memref<1x8x8xf32, #tpu.memory_space<vmem>>, %arg3: memref<1x8x16xf32, #tpu.memory_space<vmem>>, %arg4: memref<8x8xf32, #tpu.memory_space<vmem>>, %arg5: memref<24x8xf32, #tpu.memory_space<vmem>>, %arg6: memref<3x8x8xf32, #tpu.memory_space<vmem>>, %arg7: memref<1x96xf32, #tpu.memory_space<vmem>>, %arg8: memref<32x96xf32, #tpu.memory_space<vmem>>, %arg9: memref<1x96xf32, #tpu.memory_space<vmem>>, %arg10: memref<1x96xf32, #tpu.memory_space<vmem>>, %arg11: memref<3x32xf32, #tpu.memory_space<vmem>>, %arg12: memref<3x32x32xf32, #tpu.memory_space<vmem>>, %arg13: memref<1x32xf32, #tpu.memory_space<vmem>>, %arg14: memref<1x64xf32, #tpu.memory_space<vmem>>, %arg15: memref<32x64xf32, #tpu.memory_space<vmem>>, %arg16: memref<16x64xf32, #tpu.memory_space<vmem>>, %arg17: memref<2x32xf32, #tpu.memory_space<vmem>>, %arg18: memref<2x32xf32, #tpu.memory_space<vmem>>, %arg19: memref<1x8x32xf32, #tpu.memory_space<vmem>>, %arg20: memref<1x8x32xf32, #tpu.memory_space<vmem>>, %arg21: memref<1x8x32xf32, #tpu.memory_space<vmem>>) attributes {dimension_semantics = [#tpu.dimension_semantics<parallel>], iteration_bounds = array<i64: 2>, scalar_prefetch = 0 : i64, scratch_operands = 0 : i64, tpu.core_type = #tpu.core_type<tc>, window_params = [{transform_indices = @transform_0, window_bounds = array<i64: 3>}, {transform_indices = @transform_1, window_bounds = array<i64: 1, 8, 8>}, {transform_indices = @transform_2, window_bounds = array<i64: 1, 8, 16>}, {pipeline_mode = #tpu.pipeline_mode<synchronous>, transform_indices = @transform_3, window_bounds = array<i64: 8, 8>}, {pipeline_mode = #tpu.pipeline_mode<synchronous>, transform_indices = @transform_4, window_bounds = array<i64: 24, 8>}, {pipeline_mode = #tpu.pipeline_mode<synchronous>, transform_indices = @transform_5, window_bounds = array<i64: 3, 8, 8>}, {pipeline_mode = #tpu.pipeline_mode<synchronous>, transform_indices = @transform_6, window_bounds = array<i64: 1, 96>}, {pipeline_mode = #tpu.pipeline_mode<synchronous>, transform_indices = @transform_7, window_bounds = array<i64: 32, 96>}, {pipeline_mode = #tpu.pipeline_mode<synchronous>, transform_indices = @transform_8, window_bounds = array<i64: 1, 96>}, {pipeline_mode = #tpu.pipeline_mode<synchronous>, transform_indices = @transform_9, window_bounds = array<i64: 1, 96>}, {pipeline_mode = #tpu.pipeline_mode<synchronous>, transform_indices = @transform_10, window_bounds = array<i64: 3, 32>}, {pipeline_mode = #tpu.pipeline_mode<synchronous>, transform_indices = @transform_11, window_bounds = array<i64: 3, 32, 32>}, {pipeline_mode = #tpu.pipeline_mode<synchronous>, transform_indices = @transform_12, window_bounds = array<i64: 1, 32>}, {pipeline_mode = #tpu.pipeline_mode<synchronous>, transform_indices = @transform_13, window_bounds = array<i64: 1, 64>}, {pipeline_mode = #tpu.pipeline_mode<synchronous>, transform_indices = @transform_14, window_bounds = array<i64: 32, 64>}, {pipeline_mode = #tpu.pipeline_mode<synchronous>, transform_indices = @transform_15, window_bounds = array<i64: 16, 64>}, {pipeline_mode = #tpu.pipeline_mode<synchronous>, transform_indices = @transform_16, window_bounds = array<i64: 2, 32>}, {pipeline_mode = #tpu.pipeline_mode<synchronous>, transform_indices = @transform_17, window_bounds = array<i64: 2, 32>}, {transform_indices = @transform_18, window_bounds = array<i64: 1, 8, 32>}, {transform_indices = @transform_19, window_bounds = array<i64: 1, 8, 32>}, {transform_indices = @transform_20, window_bounds = array<i64: 1, 8, 32>}]} {
    %c0 = arith.constant 0 : index
    %0 = memref.load %arg1[%c0] : memref<3xf32, #tpu.memory_space<smem>>
    %c1 = arith.constant 1 : index
    %1 = memref.load %arg1[%c1] : memref<3xf32, #tpu.memory_space<smem>>
    %c2 = arith.constant 2 : index
    %2 = memref.load %arg1[%c2] : memref<3xf32, #tpu.memory_space<smem>>
    %c0_0 = arith.constant 0 : index
    %c0_1 = arith.constant 0 : index
    %c0_2 = arith.constant 0 : index
    %3 = vector.load %arg2[%c0_0, %c0_1, %c0_2] : memref<1x8x8xf32, #tpu.memory_space<vmem>>, vector<1x8x8xf32>
    %4 = vector.shape_cast %3 : vector<1x8x8xf32> to vector<8x8xf32>
    %c0_3 = arith.constant 0 : index
    %c0_4 = arith.constant 0 : index
    %c0_5 = arith.constant 0 : index
    %5 = vector.load %arg3[%c0_3, %c0_4, %c0_5] : memref<1x8x16xf32, #tpu.memory_space<vmem>>, vector<1x8x16xf32>
    %6 = vector.shape_cast %5 : vector<1x8x16xf32> to vector<8x16xf32>
    %c0_6 = arith.constant 0 : index
    %c0_7 = arith.constant 0 : index
    %7 = vector.load %arg4[%c0_6, %c0_7] : memref<8x8xf32, #tpu.memory_space<vmem>>, vector<8x8xf32>
    %c0_8 = arith.constant 0 : index
    %c0_9 = arith.constant 0 : index
    %8 = vector.load %arg5[%c0_8, %c0_9] : memref<24x8xf32, #tpu.memory_space<vmem>>, vector<24x8xf32>
    %c0_10 = arith.constant 0 : index
    %c0_11 = arith.constant 0 : index
    %9 = vector.load %arg8[%c0_10, %c0_11] : memref<32x96xf32, #tpu.memory_space<vmem>>, vector<32x96xf32>
    %c0_12 = arith.constant 0 : index
    %c0_13 = arith.constant 0 : index
    %10 = vector.load %arg10[%c0_12, %c0_13] : memref<1x96xf32, #tpu.memory_space<vmem>>, vector<1x96xf32>
    %c0_14 = arith.constant 0 : index
    %c0_15 = arith.constant 0 : index
    %11 = vector.load %arg15[%c0_14, %c0_15] : memref<32x64xf32, #tpu.memory_space<vmem>>, vector<32x64xf32>
    %c0_16 = arith.constant 0 : index
    %c0_17 = arith.constant 0 : index
    %12 = vector.load %arg13[%c0_16, %c0_17] : memref<1x32xf32, #tpu.memory_space<vmem>>, vector<1x32xf32>
    %13 = vector.shape_cast %4 : vector<8x8xf32> to vector<8x8x1xf32>
    %c0_18 = arith.constant 0 : index
    %c0_19 = arith.constant 0 : index
    %14 = vector.load %arg7[%c0_18, %c0_19] : memref<1x96xf32, #tpu.memory_space<vmem>>, vector<1x96xf32>
    %15 = vector.shape_cast %14 : vector<1x96xf32> to vector<1x1x96xf32>
    %16 = vector.broadcast %13 : vector<8x8x1xf32> to vector<8x8x96xf32>
    %17 = vector.broadcast %15 : vector<1x1x96xf32> to vector<8x8x96xf32>
    %18 = arith.mulf %16, %17 : vector<8x8x96xf32>
    %c0_20 = arith.constant 0 : index
    %c0_21 = arith.constant 0 : index
    %19 = vector.load %arg9[%c0_20, %c0_21] : memref<1x96xf32, #tpu.memory_space<vmem>>, vector<1x96xf32>
    %20 = vector.shape_cast %19 : vector<1x96xf32> to vector<1x1x96xf32>
    %21 = vector.broadcast %20 : vector<1x1x96xf32> to vector<8x8x96xf32>
    %22 = arith.addf %18, %21 : vector<8x8x96xf32>
    %c0_22 = arith.constant 0 : index
    %c0_23 = arith.constant 0 : index
    %23 = vector.load %arg14[%c0_22, %c0_23] : memref<1x64xf32, #tpu.memory_space<vmem>>, vector<1x64xf32>
    %24 = vector.shape_cast %23 : vector<1x64xf32> to vector<1x1x64xf32>
    %25 = vector.broadcast %13 : vector<8x8x1xf32> to vector<8x8x64xf32>
    %26 = vector.broadcast %24 : vector<1x1x64xf32> to vector<8x8x64xf32>
    %27 = arith.mulf %25, %26 : vector<8x8x64xf32>
    %c0_24 = arith.constant 0 : index
    %c0_25 = arith.constant 0 : index
    %28 = vector.load %arg16[%c0_24, %c0_25] : memref<16x64xf32, #tpu.memory_space<vmem>>, vector<16x64xf32>
    %cst = arith.constant dense<0.000000e+00> : vector<8x64xf32>
    %29 = tpu.matmul %6, %28, %cst {dimension_numbers = #tpu.dot_dimension_numbers<[1], [0], [0], [1], [0, 0, 1, 1], [], []>} : vector<8x16xf32>, vector<16x64xf32>, vector<8x64xf32> -> vector<8x64xf32>
    %cst_26 = arith.constant 0.000000e+00 : f32
    %30 = vector.broadcast %cst_26 : f32 to vector<8x8x32xf32>
    %c0_27 = arith.constant 0 : index
    %c0_28 = arith.constant 0 : index
    %c0_29 = arith.constant 0 : index
    %31 = vector.load %arg6[%c0_27, %c0_28, %c0_29] : memref<3x8x8xf32, #tpu.memory_space<vmem>>, vector<1x8x8xf32>
    %32 = vector.shape_cast %31 : vector<1x8x8xf32> to vector<8x8xf32>
    %cst_30 = arith.constant dense<0.000000e+00> : vector<8x8xf32>
    %33 = tpu.matmul %4, %32, %cst_30 {dimension_numbers = #tpu.dot_dimension_numbers<[1], [0], [0], [1], [0, 0, 1, 1], [], []>} : vector<8x8xf32>, vector<8x8xf32>, vector<8x8xf32> -> vector<8x8xf32>
    %34 = vector.shape_cast %33 : vector<8x8xf32> to vector<8x8x1xf32>
    %c0_31 = arith.constant 0 : index
    %c0_32 = arith.constant 0 : index
    %35 = vector.load %arg11[%c0_31, %c0_32] : memref<3x32xf32, #tpu.memory_space<vmem>>, vector<1x32xf32>
    %36 = vector.shape_cast %35 : vector<1x32xf32> to vector<32xf32>
    %37 = vector.shape_cast %36 : vector<32xf32> to vector<1x1x32xf32>
    %38 = vector.broadcast %34 : vector<8x8x1xf32> to vector<8x8x32xf32>
    %39 = vector.broadcast %37 : vector<1x1x32xf32> to vector<8x8x32xf32>
    %40 = arith.mulf %38, %39 : vector<8x8x32xf32>
    %41 = arith.addf %30, %40 : vector<8x8x32xf32>
    %c1_33 = arith.constant 1 : index
    %c0_34 = arith.constant 0 : index
    %c0_35 = arith.constant 0 : index
    %42 = vector.load %arg6[%c1_33, %c0_34, %c0_35] : memref<3x8x8xf32, #tpu.memory_space<vmem>>, vector<1x8x8xf32>
    %43 = vector.shape_cast %42 : vector<1x8x8xf32> to vector<8x8xf32>
    %cst_36 = arith.constant dense<0.000000e+00> : vector<8x8xf32>
    %44 = tpu.matmul %4, %43, %cst_36 {dimension_numbers = #tpu.dot_dimension_numbers<[1], [0], [0], [1], [0, 0, 1, 1], [], []>} : vector<8x8xf32>, vector<8x8xf32>, vector<8x8xf32> -> vector<8x8xf32>
    %45 = vector.shape_cast %44 : vector<8x8xf32> to vector<8x8x1xf32>
    %c1_37 = arith.constant 1 : index
    %c0_38 = arith.constant 0 : index
    %46 = vector.load %arg11[%c1_37, %c0_38] : memref<3x32xf32, #tpu.memory_space<vmem>>, vector<1x32xf32>
    %47 = vector.shape_cast %46 : vector<1x32xf32> to vector<32xf32>
    %48 = vector.shape_cast %47 : vector<32xf32> to vector<1x1x32xf32>
    %49 = vector.broadcast %45 : vector<8x8x1xf32> to vector<8x8x32xf32>
    %50 = vector.broadcast %48 : vector<1x1x32xf32> to vector<8x8x32xf32>
    %51 = arith.mulf %49, %50 : vector<8x8x32xf32>
    %52 = arith.addf %41, %51 : vector<8x8x32xf32>
    %c2_39 = arith.constant 2 : index
    %c0_40 = arith.constant 0 : index
    %c0_41 = arith.constant 0 : index
    %53 = vector.load %arg6[%c2_39, %c0_40, %c0_41] : memref<3x8x8xf32, #tpu.memory_space<vmem>>, vector<1x8x8xf32>
    %54 = vector.shape_cast %53 : vector<1x8x8xf32> to vector<8x8xf32>
    %cst_42 = arith.constant dense<0.000000e+00> : vector<8x8xf32>
    %55 = tpu.matmul %4, %54, %cst_42 {dimension_numbers = #tpu.dot_dimension_numbers<[1], [0], [0], [1], [0, 0, 1, 1], [], []>} : vector<8x8xf32>, vector<8x8xf32>, vector<8x8xf32> -> vector<8x8xf32>
    %56 = vector.shape_cast %55 : vector<8x8xf32> to vector<8x8x1xf32>
    %c2_43 = arith.constant 2 : index
    %c0_44 = arith.constant 0 : index
    %57 = vector.load %arg11[%c2_43, %c0_44] : memref<3x32xf32, #tpu.memory_space<vmem>>, vector<1x32xf32>
    %58 = vector.shape_cast %57 : vector<1x32xf32> to vector<32xf32>
    %59 = vector.shape_cast %58 : vector<32xf32> to vector<1x1x32xf32>
    %60 = vector.broadcast %56 : vector<8x8x1xf32> to vector<8x8x32xf32>
    %61 = vector.broadcast %59 : vector<1x1x32xf32> to vector<8x8x32xf32>
    %62 = arith.mulf %60, %61 : vector<8x8x32xf32>
    %63 = arith.addf %52, %62 : vector<8x8x32xf32>
    %cst_45 = arith.constant 0.000000e+00 : f32
    %64 = vector.broadcast %cst_45 : f32 to vector<8x32xf32>
    %cst_46 = arith.constant 0.000000e+00 : f32
    %65 = vector.broadcast %cst_46 : f32 to vector<8x32xf32>
    %cst_47 = arith.constant 0.000000e+00 : f32
    %66 = vector.broadcast %cst_47 : f32 to vector<8x32xf32>
    %67 = vector.broadcast %0 : f32 to vector<8x32xf32>
    %68 = arith.mulf %67, %64 : vector<8x32xf32>
    %69 = vector.broadcast %1 : f32 to vector<8x32xf32>
    %70 = arith.mulf %69, %65 : vector<8x32xf32>
    %71 = arith.addf %68, %70 : vector<8x32xf32>
    %72 = vector.broadcast %2 : f32 to vector<8x32xf32>
    %73 = arith.mulf %72, %66 : vector<8x32xf32>
    %74 = arith.addf %71, %73 : vector<8x32xf32>
    %75 = vector.extract_strided_slice %22 {offsets = [0, 0, 0], sizes = [1, 8, 96], strides = [1, 1, 1]} : vector<8x8x96xf32> to vector<1x8x96xf32>
    %76 = vector.shape_cast %75 : vector<1x8x96xf32> to vector<8x96xf32>
    %cst_48 = arith.constant dense<0.000000e+00> : vector<8x96xf32>
    %77 = tpu.matmul %74, %9, %cst_48 {dimension_numbers = #tpu.dot_dimension_numbers<[1], [0], [0], [1], [0, 0, 1, 1], [], []>} : vector<8x32xf32>, vector<32x96xf32>, vector<8x96xf32> -> vector<8x96xf32>
    %78 = vector.broadcast %10 : vector<1x96xf32> to vector<8x96xf32>
    %79 = arith.addf %77, %78 : vector<8x96xf32>
    %80 = vector.extract_strided_slice %76 {offsets = [0, 0], sizes = [8, 32], strides = [1, 1]} : vector<8x96xf32> to vector<8x32xf32>
    %81 = vector.extract_strided_slice %79 {offsets = [0, 0], sizes = [8, 32], strides = [1, 1]} : vector<8x96xf32> to vector<8x32xf32>
    %82 = arith.addf %80, %81 : vector<8x32xf32>
    %83 = arith.negf %82 : vector<8x32xf32>
    %84 = math.exp %83 : vector<8x32xf32>
    %cst_49 = arith.constant 1.000000e+00 : f32
    %85 = vector.broadcast %cst_49 : f32 to vector<8x32xf32>
    %86 = arith.addf %85, %84 : vector<8x32xf32>
    %87 = arith.divf %85, %86 : vector<8x32xf32>
    %88 = vector.extract_strided_slice %76 {offsets = [0, 32], sizes = [8, 32], strides = [1, 1]} : vector<8x96xf32> to vector<8x32xf32>
    %89 = vector.extract_strided_slice %79 {offsets = [0, 32], sizes = [8, 32], strides = [1, 1]} : vector<8x96xf32> to vector<8x32xf32>
    %90 = arith.addf %88, %89 : vector<8x32xf32>
    %91 = arith.negf %90 : vector<8x32xf32>
    %92 = math.exp %91 : vector<8x32xf32>
    %cst_50 = arith.constant 1.000000e+00 : f32
    %93 = vector.broadcast %cst_50 : f32 to vector<8x32xf32>
    %94 = arith.addf %93, %92 : vector<8x32xf32>
    %95 = arith.divf %93, %94 : vector<8x32xf32>
    %96 = vector.extract_strided_slice %76 {offsets = [0, 64], sizes = [8, 32], strides = [1, 1]} : vector<8x96xf32> to vector<8x32xf32>
    %97 = vector.extract_strided_slice %79 {offsets = [0, 64], sizes = [8, 32], strides = [1, 1]} : vector<8x96xf32> to vector<8x32xf32>
    %98 = arith.mulf %87, %97 : vector<8x32xf32>
    %99 = arith.addf %96, %98 : vector<8x32xf32>
    %100 = math.tanh %99 : vector<8x32xf32>
    %cst_51 = arith.constant 1.000000e+00 : f32
    %101 = vector.broadcast %cst_51 : f32 to vector<8x32xf32>
    %102 = arith.subf %101, %95 : vector<8x32xf32>
    %103 = arith.mulf %102, %100 : vector<8x32xf32>
    %104 = arith.mulf %95, %74 : vector<8x32xf32>
    %105 = arith.addf %103, %104 : vector<8x32xf32>
    %cst_52 = arith.constant dense<0.000000e+00> : vector<24x32xf32>
    %106 = tpu.matmul %8, %105, %cst_52 {dimension_numbers = #tpu.dot_dimension_numbers<[1], [0], [0], [1], [0, 0, 1, 1], [], []>} : vector<24x8xf32>, vector<8x32xf32>, vector<24x32xf32> -> vector<24x32xf32>
    %107 = vector.extract_strided_slice %63 {offsets = [0, 0, 0], sizes = [1, 8, 32], strides = [1, 1, 1]} : vector<8x8x32xf32> to vector<1x8x32xf32>
    %108 = vector.shape_cast %107 : vector<1x8x32xf32> to vector<8x32xf32>
    %109 = vector.extract_strided_slice %106 {offsets = [0, 0], sizes = [8, 32], strides = [1, 1]} : vector<24x32xf32> to vector<8x32xf32>
    %c0_53 = arith.constant 0 : index
    %c0_54 = arith.constant 0 : index
    %c0_55 = arith.constant 0 : index
    %110 = vector.load %arg12[%c0_53, %c0_54, %c0_55] : memref<3x32x32xf32, #tpu.memory_space<vmem>>, vector<1x32x32xf32>
    %111 = vector.shape_cast %110 : vector<1x32x32xf32> to vector<32x32xf32>
    %cst_56 = arith.constant dense<0.000000e+00> : vector<8x32xf32>
    %112 = tpu.matmul %109, %111, %cst_56 {dimension_numbers = #tpu.dot_dimension_numbers<[1], [0], [0], [1], [0, 0, 1, 1], [], []>} : vector<8x32xf32>, vector<32x32xf32>, vector<8x32xf32> -> vector<8x32xf32>
    %113 = arith.addf %108, %112 : vector<8x32xf32>
    %114 = vector.extract_strided_slice %106 {offsets = [8, 0], sizes = [8, 32], strides = [1, 1]} : vector<24x32xf32> to vector<8x32xf32>
    %c1_57 = arith.constant 1 : index
    %c0_58 = arith.constant 0 : index
    %c0_59 = arith.constant 0 : index
    %115 = vector.load %arg12[%c1_57, %c0_58, %c0_59] : memref<3x32x32xf32, #tpu.memory_space<vmem>>, vector<1x32x32xf32>
    %116 = vector.shape_cast %115 : vector<1x32x32xf32> to vector<32x32xf32>
    %cst_60 = arith.constant dense<0.000000e+00> : vector<8x32xf32>
    %117 = tpu.matmul %114, %116, %cst_60 {dimension_numbers = #tpu.dot_dimension_numbers<[1], [0], [0], [1], [0, 0, 1, 1], [], []>} : vector<8x32xf32>, vector<32x32xf32>, vector<8x32xf32> -> vector<8x32xf32>
    %118 = arith.addf %113, %117 : vector<8x32xf32>
    %119 = vector.extract_strided_slice %106 {offsets = [16, 0], sizes = [8, 32], strides = [1, 1]} : vector<24x32xf32> to vector<8x32xf32>
    %c2_61 = arith.constant 2 : index
    %c0_62 = arith.constant 0 : index
    %c0_63 = arith.constant 0 : index
    %120 = vector.load %arg12[%c2_61, %c0_62, %c0_63] : memref<3x32x32xf32, #tpu.memory_space<vmem>>, vector<1x32x32xf32>
    %121 = vector.shape_cast %120 : vector<1x32x32xf32> to vector<32x32xf32>
    %cst_64 = arith.constant dense<0.000000e+00> : vector<8x32xf32>
    %122 = tpu.matmul %119, %121, %cst_64 {dimension_numbers = #tpu.dot_dimension_numbers<[1], [0], [0], [1], [0, 0, 1, 1], [], []>} : vector<8x32xf32>, vector<32x32xf32>, vector<8x32xf32> -> vector<8x32xf32>
    %123 = arith.addf %118, %122 : vector<8x32xf32>
    %124 = vector.broadcast %12 : vector<1x32xf32> to vector<8x32xf32>
    %125 = arith.addf %123, %124 : vector<8x32xf32>
    %126 = math.tanh %125 : vector<8x32xf32>
    %127 = vector.extract_strided_slice %27 {offsets = [0, 0, 0], sizes = [1, 8, 64], strides = [1, 1, 1]} : vector<8x8x64xf32> to vector<1x8x64xf32>
    %128 = vector.shape_cast %127 : vector<1x8x64xf32> to vector<8x64xf32>
    %129 = arith.addf %128, %29 : vector<8x64xf32>
    %cst_65 = arith.constant dense<0.000000e+00> : vector<8x64xf32>
    %130 = tpu.matmul %105, %11, %cst_65 {dimension_numbers = #tpu.dot_dimension_numbers<[1], [0], [0], [1], [0, 0, 1, 1], [], []>} : vector<8x32xf32>, vector<32x64xf32>, vector<8x64xf32> -> vector<8x64xf32>
    %131 = arith.addf %129, %130 : vector<8x64xf32>
    %cst_66 = arith.constant 0.000000e+00 : f32
    %132 = vector.broadcast %cst_66 : f32 to vector<8x32xf32>
    %133 = vector.extract_strided_slice %131 {offsets = [0, 0], sizes = [8, 32], strides = [1, 1]} : vector<8x64xf32> to vector<8x32xf32>
    %c0_67 = arith.constant 0 : index
    %c0_68 = arith.constant 0 : index
    %134 = vector.load %arg17[%c0_67, %c0_68] : memref<2x32xf32, #tpu.memory_space<vmem>>, vector<1x32xf32>
    %135 = vector.shape_cast %134 : vector<1x32xf32> to vector<32xf32>
    %136 = vector.shape_cast %135 : vector<32xf32> to vector<1x32xf32>
    %137 = vector.broadcast %136 : vector<1x32xf32> to vector<8x32xf32>
    %138 = arith.mulf %133, %137 : vector<8x32xf32>
    %cst_69 = arith.constant dense<0.000000e+00> : vector<8xf32>
    %139 = vector.multi_reduction <add>, %138, %cst_69 [1] : vector<8x32xf32> to vector<8xf32>
    %140 = vector.shape_cast %139 : vector<8xf32> to vector<8x1xf32>
    %c0_70 = arith.constant 0 : index
    %c0_71 = arith.constant 0 : index
    %141 = vector.load %arg18[%c0_70, %c0_71] : memref<2x32xf32, #tpu.memory_space<vmem>>, vector<1x32xf32>
    %142 = vector.shape_cast %141 : vector<1x32xf32> to vector<32xf32>
    %143 = vector.shape_cast %142 : vector<32xf32> to vector<1x32xf32>
    %144 = vector.broadcast %143 : vector<1x32xf32> to vector<8x32xf32>
    %145 = arith.mulf %133, %144 : vector<8x32xf32>
    %cst_72 = arith.constant dense<0.000000e+00> : vector<8xf32>
    %146 = vector.multi_reduction <add>, %145, %cst_72 [1] : vector<8x32xf32> to vector<8xf32>
    %147 = vector.shape_cast %146 : vector<8xf32> to vector<1x8xf32>
    %148 = vector.broadcast %140 : vector<8x1xf32> to vector<8x8xf32>
    %149 = vector.broadcast %147 : vector<1x8xf32> to vector<8x8xf32>
    %150 = arith.addf %148, %149 : vector<8x8xf32>
    %cst_73 = arith.constant 0.000000e+00 : f32
    %151 = vector.broadcast %cst_73 : f32 to vector<8x8xf32>
    %152 = arith.cmpf ogt, %150, %151 : vector<8x8xf32>
    %cst_74 = arith.constant 2.000000e-01 : f32
    %153 = vector.broadcast %cst_74 : f32 to vector<8x8xf32>
    %154 = arith.mulf %153, %150 : vector<8x8xf32>
    %155 = arith.select %152, %150, %154 : vector<8x8xi1>, vector<8x8xf32>
    %156 = arith.addf %155, %7 : vector<8x8xf32>
    %cst_75 = arith.constant dense<0xFF800000> : vector<8xf32>
    %157 = vector.multi_reduction <maximumf>, %156, %cst_75 [1] : vector<8x8xf32> to vector<8xf32>
    %158 = vector.shape_cast %157 : vector<8xf32> to vector<8x1xf32>
    %159 = vector.broadcast %158 : vector<8x1xf32> to vector<8x8xf32>
    %160 = arith.subf %156, %159 : vector<8x8xf32>
    %161 = math.exp %160 : vector<8x8xf32>
    %cst_76 = arith.constant dense<0.000000e+00> : vector<8xf32>
    %162 = vector.multi_reduction <add>, %161, %cst_76 [1] : vector<8x8xf32> to vector<8xf32>
    %163 = vector.shape_cast %162 : vector<8xf32> to vector<8x1xf32>
    %164 = tpu.reciprocal %163 {approx = true} : vector<8x1xf32> -> vector<8x1xf32>
    %165 = vector.broadcast %164 : vector<8x1xf32> to vector<8x8xf32>
    %166 = arith.mulf %161, %165 : vector<8x8xf32>
    %cst_77 = arith.constant dense<0.000000e+00> : vector<8x32xf32>
    %167 = tpu.matmul %166, %133, %cst_77 {dimension_numbers = #tpu.dot_dimension_numbers<[1], [0], [0], [1], [0, 0, 1, 1], [], []>} : vector<8x8xf32>, vector<8x32xf32>, vector<8x32xf32> -> vector<8x32xf32>
    %168 = arith.addf %132, %167 : vector<8x32xf32>
    %169 = vector.extract_strided_slice %131 {offsets = [0, 32], sizes = [8, 32], strides = [1, 1]} : vector<8x64xf32> to vector<8x32xf32>
    %c1_78 = arith.constant 1 : index
    %c0_79 = arith.constant 0 : index
    %170 = vector.load %arg17[%c1_78, %c0_79] : memref<2x32xf32, #tpu.memory_space<vmem>>, vector<1x32xf32>
    %171 = vector.shape_cast %170 : vector<1x32xf32> to vector<32xf32>
    %172 = vector.shape_cast %171 : vector<32xf32> to vector<1x32xf32>
    %173 = vector.broadcast %172 : vector<1x32xf32> to vector<8x32xf32>
    %174 = arith.mulf %169, %173 : vector<8x32xf32>
    %cst_80 = arith.constant dense<0.000000e+00> : vector<8xf32>
    %175 = vector.multi_reduction <add>, %174, %cst_80 [1] : vector<8x32xf32> to vector<8xf32>
    %176 = vector.shape_cast %175 : vector<8xf32> to vector<8x1xf32>
    %c1_81 = arith.constant 1 : index
    %c0_82 = arith.constant 0 : index
    %177 = vector.load %arg18[%c1_81, %c0_82] : memref<2x32xf32, #tpu.memory_space<vmem>>, vector<1x32xf32>
    %178 = vector.shape_cast %177 : vector<1x32xf32> to vector<32xf32>
    %179 = vector.shape_cast %178 : vector<32xf32> to vector<1x32xf32>
    %180 = vector.broadcast %179 : vector<1x32xf32> to vector<8x32xf32>
    %181 = arith.mulf %169, %180 : vector<8x32xf32>
    %cst_83 = arith.constant dense<0.000000e+00> : vector<8xf32>
    %182 = vector.multi_reduction <add>, %181, %cst_83 [1] : vector<8x32xf32> to vector<8xf32>
    %183 = vector.shape_cast %182 : vector<8xf32> to vector<1x8xf32>
    %184 = vector.broadcast %176 : vector<8x1xf32> to vector<8x8xf32>
    %185 = vector.broadcast %183 : vector<1x8xf32> to vector<8x8xf32>
    %186 = arith.addf %184, %185 : vector<8x8xf32>
    %cst_84 = arith.constant 0.000000e+00 : f32
    %187 = vector.broadcast %cst_84 : f32 to vector<8x8xf32>
    %188 = arith.cmpf ogt, %186, %187 : vector<8x8xf32>
    %cst_85 = arith.constant 2.000000e-01 : f32
    %189 = vector.broadcast %cst_85 : f32 to vector<8x8xf32>
    %190 = arith.mulf %189, %186 : vector<8x8xf32>
    %191 = arith.select %188, %186, %190 : vector<8x8xi1>, vector<8x8xf32>
    %192 = arith.addf %191, %7 : vector<8x8xf32>
    %cst_86 = arith.constant dense<0xFF800000> : vector<8xf32>
    %193 = vector.multi_reduction <maximumf>, %192, %cst_86 [1] : vector<8x8xf32> to vector<8xf32>
    %194 = vector.shape_cast %193 : vector<8xf32> to vector<8x1xf32>
    %195 = vector.broadcast %194 : vector<8x1xf32> to vector<8x8xf32>
    %196 = arith.subf %192, %195 : vector<8x8xf32>
    %197 = math.exp %196 : vector<8x8xf32>
    %cst_87 = arith.constant dense<0.000000e+00> : vector<8xf32>
    %198 = vector.multi_reduction <add>, %197, %cst_87 [1] : vector<8x8xf32> to vector<8xf32>
    %199 = vector.shape_cast %198 : vector<8xf32> to vector<8x1xf32>
    %200 = tpu.reciprocal %199 {approx = true} : vector<8x1xf32> -> vector<8x1xf32>
    %201 = vector.broadcast %200 : vector<8x1xf32> to vector<8x8xf32>
    %202 = arith.mulf %197, %201 : vector<8x8xf32>
    %cst_88 = arith.constant dense<0.000000e+00> : vector<8x32xf32>
    %203 = tpu.matmul %202, %169, %cst_88 {dimension_numbers = #tpu.dot_dimension_numbers<[1], [0], [0], [1], [0, 0, 1, 1], [], []>} : vector<8x8xf32>, vector<8x32xf32>, vector<8x32xf32> -> vector<8x32xf32>
    %204 = arith.addf %168, %203 : vector<8x32xf32>
    %cst_89 = arith.constant 5.000000e-01 : f32
    %205 = vector.broadcast %cst_89 : f32 to vector<8x32xf32>
    %206 = arith.mulf %204, %205 : vector<8x32xf32>
    %207 = math.tanh %206 : vector<8x32xf32>
    %208 = vector.broadcast %0 : f32 to vector<8x32xf32>
    %209 = arith.mulf %208, %105 : vector<8x32xf32>
    %210 = vector.broadcast %1 : f32 to vector<8x32xf32>
    %211 = arith.mulf %210, %126 : vector<8x32xf32>
    %212 = arith.addf %209, %211 : vector<8x32xf32>
    %213 = vector.broadcast %2 : f32 to vector<8x32xf32>
    %214 = arith.mulf %213, %207 : vector<8x32xf32>
    %215 = arith.addf %212, %214 : vector<8x32xf32>
    %216 = vector.extract_strided_slice %22 {offsets = [1, 0, 0], sizes = [1, 8, 96], strides = [1, 1, 1]} : vector<8x8x96xf32> to vector<1x8x96xf32>
    %217 = vector.shape_cast %216 : vector<1x8x96xf32> to vector<8x96xf32>
    %cst_90 = arith.constant dense<0.000000e+00> : vector<8x96xf32>
    %218 = tpu.matmul %215, %9, %cst_90 {dimension_numbers = #tpu.dot_dimension_numbers<[1], [0], [0], [1], [0, 0, 1, 1], [], []>} : vector<8x32xf32>, vector<32x96xf32>, vector<8x96xf32> -> vector<8x96xf32>
    %219 = vector.broadcast %10 : vector<1x96xf32> to vector<8x96xf32>
    %220 = arith.addf %218, %219 : vector<8x96xf32>
    %221 = vector.extract_strided_slice %217 {offsets = [0, 0], sizes = [8, 32], strides = [1, 1]} : vector<8x96xf32> to vector<8x32xf32>
    %222 = vector.extract_strided_slice %220 {offsets = [0, 0], sizes = [8, 32], strides = [1, 1]} : vector<8x96xf32> to vector<8x32xf32>
    %223 = arith.addf %221, %222 : vector<8x32xf32>
    %224 = arith.negf %223 : vector<8x32xf32>
    %225 = math.exp %224 : vector<8x32xf32>
    %cst_91 = arith.constant 1.000000e+00 : f32
    %226 = vector.broadcast %cst_91 : f32 to vector<8x32xf32>
    %227 = arith.addf %226, %225 : vector<8x32xf32>
    %228 = arith.divf %226, %227 : vector<8x32xf32>
    %229 = vector.extract_strided_slice %217 {offsets = [0, 32], sizes = [8, 32], strides = [1, 1]} : vector<8x96xf32> to vector<8x32xf32>
    %230 = vector.extract_strided_slice %220 {offsets = [0, 32], sizes = [8, 32], strides = [1, 1]} : vector<8x96xf32> to vector<8x32xf32>
    %231 = arith.addf %229, %230 : vector<8x32xf32>
    %232 = arith.negf %231 : vector<8x32xf32>
    %233 = math.exp %232 : vector<8x32xf32>
    %cst_92 = arith.constant 1.000000e+00 : f32
    %234 = vector.broadcast %cst_92 : f32 to vector<8x32xf32>
    %235 = arith.addf %234, %233 : vector<8x32xf32>
    %236 = arith.divf %234, %235 : vector<8x32xf32>
    %237 = vector.extract_strided_slice %217 {offsets = [0, 64], sizes = [8, 32], strides = [1, 1]} : vector<8x96xf32> to vector<8x32xf32>
    %238 = vector.extract_strided_slice %220 {offsets = [0, 64], sizes = [8, 32], strides = [1, 1]} : vector<8x96xf32> to vector<8x32xf32>
    %239 = arith.mulf %228, %238 : vector<8x32xf32>
    %240 = arith.addf %237, %239 : vector<8x32xf32>
    %241 = math.tanh %240 : vector<8x32xf32>
    %cst_93 = arith.constant 1.000000e+00 : f32
    %242 = vector.broadcast %cst_93 : f32 to vector<8x32xf32>
    %243 = arith.subf %242, %236 : vector<8x32xf32>
    %244 = arith.mulf %243, %241 : vector<8x32xf32>
    %245 = arith.mulf %236, %215 : vector<8x32xf32>
    %246 = arith.addf %244, %245 : vector<8x32xf32>
    %cst_94 = arith.constant dense<0.000000e+00> : vector<24x32xf32>
    %247 = tpu.matmul %8, %246, %cst_94 {dimension_numbers = #tpu.dot_dimension_numbers<[1], [0], [0], [1], [0, 0, 1, 1], [], []>} : vector<24x8xf32>, vector<8x32xf32>, vector<24x32xf32> -> vector<24x32xf32>
    %248 = vector.extract_strided_slice %63 {offsets = [1, 0, 0], sizes = [1, 8, 32], strides = [1, 1, 1]} : vector<8x8x32xf32> to vector<1x8x32xf32>
    %249 = vector.shape_cast %248 : vector<1x8x32xf32> to vector<8x32xf32>
    %250 = vector.extract_strided_slice %247 {offsets = [0, 0], sizes = [8, 32], strides = [1, 1]} : vector<24x32xf32> to vector<8x32xf32>
    %c0_95 = arith.constant 0 : index
    %c0_96 = arith.constant 0 : index
    %c0_97 = arith.constant 0 : index
    %251 = vector.load %arg12[%c0_95, %c0_96, %c0_97] : memref<3x32x32xf32, #tpu.memory_space<vmem>>, vector<1x32x32xf32>
    %252 = vector.shape_cast %251 : vector<1x32x32xf32> to vector<32x32xf32>
    %cst_98 = arith.constant dense<0.000000e+00> : vector<8x32xf32>
    %253 = tpu.matmul %250, %252, %cst_98 {dimension_numbers = #tpu.dot_dimension_numbers<[1], [0], [0], [1], [0, 0, 1, 1], [], []>} : vector<8x32xf32>, vector<32x32xf32>, vector<8x32xf32> -> vector<8x32xf32>
    %254 = arith.addf %249, %253 : vector<8x32xf32>
    %255 = vector.extract_strided_slice %247 {offsets = [8, 0], sizes = [8, 32], strides = [1, 1]} : vector<24x32xf32> to vector<8x32xf32>
    %c1_99 = arith.constant 1 : index
    %c0_100 = arith.constant 0 : index
    %c0_101 = arith.constant 0 : index
    %256 = vector.load %arg12[%c1_99, %c0_100, %c0_101] : memref<3x32x32xf32, #tpu.memory_space<vmem>>, vector<1x32x32xf32>
    %257 = vector.shape_cast %256 : vector<1x32x32xf32> to vector<32x32xf32>
    %cst_102 = arith.constant dense<0.000000e+00> : vector<8x32xf32>
    %258 = tpu.matmul %255, %257, %cst_102 {dimension_numbers = #tpu.dot_dimension_numbers<[1], [0], [0], [1], [0, 0, 1, 1], [], []>} : vector<8x32xf32>, vector<32x32xf32>, vector<8x32xf32> -> vector<8x32xf32>
    %259 = arith.addf %254, %258 : vector<8x32xf32>
    %260 = vector.extract_strided_slice %247 {offsets = [16, 0], sizes = [8, 32], strides = [1, 1]} : vector<24x32xf32> to vector<8x32xf32>
    %c2_103 = arith.constant 2 : index
    %c0_104 = arith.constant 0 : index
    %c0_105 = arith.constant 0 : index
    %261 = vector.load %arg12[%c2_103, %c0_104, %c0_105] : memref<3x32x32xf32, #tpu.memory_space<vmem>>, vector<1x32x32xf32>
    %262 = vector.shape_cast %261 : vector<1x32x32xf32> to vector<32x32xf32>
    %cst_106 = arith.constant dense<0.000000e+00> : vector<8x32xf32>
    %263 = tpu.matmul %260, %262, %cst_106 {dimension_numbers = #tpu.dot_dimension_numbers<[1], [0], [0], [1], [0, 0, 1, 1], [], []>} : vector<8x32xf32>, vector<32x32xf32>, vector<8x32xf32> -> vector<8x32xf32>
    %264 = arith.addf %259, %263 : vector<8x32xf32>
    %265 = vector.broadcast %12 : vector<1x32xf32> to vector<8x32xf32>
    %266 = arith.addf %264, %265 : vector<8x32xf32>
    %267 = math.tanh %266 : vector<8x32xf32>
    %268 = vector.extract_strided_slice %27 {offsets = [1, 0, 0], sizes = [1, 8, 64], strides = [1, 1, 1]} : vector<8x8x64xf32> to vector<1x8x64xf32>
    %269 = vector.shape_cast %268 : vector<1x8x64xf32> to vector<8x64xf32>
    %270 = arith.addf %269, %29 : vector<8x64xf32>
    %cst_107 = arith.constant dense<0.000000e+00> : vector<8x64xf32>
    %271 = tpu.matmul %246, %11, %cst_107 {dimension_numbers = #tpu.dot_dimension_numbers<[1], [0], [0], [1], [0, 0, 1, 1], [], []>} : vector<8x32xf32>, vector<32x64xf32>, vector<8x64xf32> -> vector<8x64xf32>
    %272 = arith.addf %270, %271 : vector<8x64xf32>
    %cst_108 = arith.constant 0.000000e+00 : f32
    %273 = vector.broadcast %cst_108 : f32 to vector<8x32xf32>
    %274 = vector.extract_strided_slice %272 {offsets = [0, 0], sizes = [8, 32], strides = [1, 1]} : vector<8x64xf32> to vector<8x32xf32>
    %c0_109 = arith.constant 0 : index
    %c0_110 = arith.constant 0 : index
    %275 = vector.load %arg17[%c0_109, %c0_110] : memref<2x32xf32, #tpu.memory_space<vmem>>, vector<1x32xf32>
    %276 = vector.shape_cast %275 : vector<1x32xf32> to vector<32xf32>
    %277 = vector.shape_cast %276 : vector<32xf32> to vector<1x32xf32>
    %278 = vector.broadcast %277 : vector<1x32xf32> to vector<8x32xf32>
    %279 = arith.mulf %274, %278 : vector<8x32xf32>
    %cst_111 = arith.constant dense<0.000000e+00> : vector<8xf32>
    %280 = vector.multi_reduction <add>, %279, %cst_111 [1] : vector<8x32xf32> to vector<8xf32>
    %281 = vector.shape_cast %280 : vector<8xf32> to vector<8x1xf32>
    %c0_112 = arith.constant 0 : index
    %c0_113 = arith.constant 0 : index
    %282 = vector.load %arg18[%c0_112, %c0_113] : memref<2x32xf32, #tpu.memory_space<vmem>>, vector<1x32xf32>
    %283 = vector.shape_cast %282 : vector<1x32xf32> to vector<32xf32>
    %284 = vector.shape_cast %283 : vector<32xf32> to vector<1x32xf32>
    %285 = vector.broadcast %284 : vector<1x32xf32> to vector<8x32xf32>
    %286 = arith.mulf %274, %285 : vector<8x32xf32>
    %cst_114 = arith.constant dense<0.000000e+00> : vector<8xf32>
    %287 = vector.multi_reduction <add>, %286, %cst_114 [1] : vector<8x32xf32> to vector<8xf32>
    %288 = vector.shape_cast %287 : vector<8xf32> to vector<1x8xf32>
    %289 = vector.broadcast %281 : vector<8x1xf32> to vector<8x8xf32>
    %290 = vector.broadcast %288 : vector<1x8xf32> to vector<8x8xf32>
    %291 = arith.addf %289, %290 : vector<8x8xf32>
    %cst_115 = arith.constant 0.000000e+00 : f32
    %292 = vector.broadcast %cst_115 : f32 to vector<8x8xf32>
    %293 = arith.cmpf ogt, %291, %292 : vector<8x8xf32>
    %cst_116 = arith.constant 2.000000e-01 : f32
    %294 = vector.broadcast %cst_116 : f32 to vector<8x8xf32>
    %295 = arith.mulf %294, %291 : vector<8x8xf32>
    %296 = arith.select %293, %291, %295 : vector<8x8xi1>, vector<8x8xf32>
    %297 = arith.addf %296, %7 : vector<8x8xf32>
    %cst_117 = arith.constant dense<0xFF800000> : vector<8xf32>
    %298 = vector.multi_reduction <maximumf>, %297, %cst_117 [1] : vector<8x8xf32> to vector<8xf32>
    %299 = vector.shape_cast %298 : vector<8xf32> to vector<8x1xf32>
    %300 = vector.broadcast %299 : vector<8x1xf32> to vector<8x8xf32>
    %301 = arith.subf %297, %300 : vector<8x8xf32>
    %302 = math.exp %301 : vector<8x8xf32>
    %cst_118 = arith.constant dense<0.000000e+00> : vector<8xf32>
    %303 = vector.multi_reduction <add>, %302, %cst_118 [1] : vector<8x8xf32> to vector<8xf32>
    %304 = vector.shape_cast %303 : vector<8xf32> to vector<8x1xf32>
    %305 = tpu.reciprocal %304 {approx = true} : vector<8x1xf32> -> vector<8x1xf32>
    %306 = vector.broadcast %305 : vector<8x1xf32> to vector<8x8xf32>
    %307 = arith.mulf %302, %306 : vector<8x8xf32>
    %cst_119 = arith.constant dense<0.000000e+00> : vector<8x32xf32>
    %308 = tpu.matmul %307, %274, %cst_119 {dimension_numbers = #tpu.dot_dimension_numbers<[1], [0], [0], [1], [0, 0, 1, 1], [], []>} : vector<8x8xf32>, vector<8x32xf32>, vector<8x32xf32> -> vector<8x32xf32>
    %309 = arith.addf %273, %308 : vector<8x32xf32>
    %310 = vector.extract_strided_slice %272 {offsets = [0, 32], sizes = [8, 32], strides = [1, 1]} : vector<8x64xf32> to vector<8x32xf32>
    %c1_120 = arith.constant 1 : index
    %c0_121 = arith.constant 0 : index
    %311 = vector.load %arg17[%c1_120, %c0_121] : memref<2x32xf32, #tpu.memory_space<vmem>>, vector<1x32xf32>
    %312 = vector.shape_cast %311 : vector<1x32xf32> to vector<32xf32>
    %313 = vector.shape_cast %312 : vector<32xf32> to vector<1x32xf32>
    %314 = vector.broadcast %313 : vector<1x32xf32> to vector<8x32xf32>
    %315 = arith.mulf %310, %314 : vector<8x32xf32>
    %cst_122 = arith.constant dense<0.000000e+00> : vector<8xf32>
    %316 = vector.multi_reduction <add>, %315, %cst_122 [1] : vector<8x32xf32> to vector<8xf32>
    %317 = vector.shape_cast %316 : vector<8xf32> to vector<8x1xf32>
    %c1_123 = arith.constant 1 : index
    %c0_124 = arith.constant 0 : index
    %318 = vector.load %arg18[%c1_123, %c0_124] : memref<2x32xf32, #tpu.memory_space<vmem>>, vector<1x32xf32>
    %319 = vector.shape_cast %318 : vector<1x32xf32> to vector<32xf32>
    %320 = vector.shape_cast %319 : vector<32xf32> to vector<1x32xf32>
    %321 = vector.broadcast %320 : vector<1x32xf32> to vector<8x32xf32>
    %322 = arith.mulf %310, %321 : vector<8x32xf32>
    %cst_125 = arith.constant dense<0.000000e+00> : vector<8xf32>
    %323 = vector.multi_reduction <add>, %322, %cst_125 [1] : vector<8x32xf32> to vector<8xf32>
    %324 = vector.shape_cast %323 : vector<8xf32> to vector<1x8xf32>
    %325 = vector.broadcast %317 : vector<8x1xf32> to vector<8x8xf32>
    %326 = vector.broadcast %324 : vector<1x8xf32> to vector<8x8xf32>
    %327 = arith.addf %325, %326 : vector<8x8xf32>
    %cst_126 = arith.constant 0.000000e+00 : f32
    %328 = vector.broadcast %cst_126 : f32 to vector<8x8xf32>
    %329 = arith.cmpf ogt, %327, %328 : vector<8x8xf32>
    %cst_127 = arith.constant 2.000000e-01 : f32
    %330 = vector.broadcast %cst_127 : f32 to vector<8x8xf32>
    %331 = arith.mulf %330, %327 : vector<8x8xf32>
    %332 = arith.select %329, %327, %331 : vector<8x8xi1>, vector<8x8xf32>
    %333 = arith.addf %332, %7 : vector<8x8xf32>
    %cst_128 = arith.constant dense<0xFF800000> : vector<8xf32>
    %334 = vector.multi_reduction <maximumf>, %333, %cst_128 [1] : vector<8x8xf32> to vector<8xf32>
    %335 = vector.shape_cast %334 : vector<8xf32> to vector<8x1xf32>
    %336 = vector.broadcast %335 : vector<8x1xf32> to vector<8x8xf32>
    %337 = arith.subf %333, %336 : vector<8x8xf32>
    %338 = math.exp %337 : vector<8x8xf32>
    %cst_129 = arith.constant dense<0.000000e+00> : vector<8xf32>
    %339 = vector.multi_reduction <add>, %338, %cst_129 [1] : vector<8x8xf32> to vector<8xf32>
    %340 = vector.shape_cast %339 : vector<8xf32> to vector<8x1xf32>
    %341 = tpu.reciprocal %340 {approx = true} : vector<8x1xf32> -> vector<8x1xf32>
    %342 = vector.broadcast %341 : vector<8x1xf32> to vector<8x8xf32>
    %343 = arith.mulf %338, %342 : vector<8x8xf32>
    %cst_130 = arith.constant dense<0.000000e+00> : vector<8x32xf32>
    %344 = tpu.matmul %343, %310, %cst_130 {dimension_numbers = #tpu.dot_dimension_numbers<[1], [0], [0], [1], [0, 0, 1, 1], [], []>} : vector<8x8xf32>, vector<8x32xf32>, vector<8x32xf32> -> vector<8x32xf32>
    %345 = arith.addf %309, %344 : vector<8x32xf32>
    %cst_131 = arith.constant 5.000000e-01 : f32
    %346 = vector.broadcast %cst_131 : f32 to vector<8x32xf32>
    %347 = arith.mulf %345, %346 : vector<8x32xf32>
    %348 = math.tanh %347 : vector<8x32xf32>
    %349 = vector.broadcast %0 : f32 to vector<8x32xf32>
    %350 = arith.mulf %349, %246 : vector<8x32xf32>
    %351 = vector.broadcast %1 : f32 to vector<8x32xf32>
    %352 = arith.mulf %351, %267 : vector<8x32xf32>
    %353 = arith.addf %350, %352 : vector<8x32xf32>
    %354 = vector.broadcast %2 : f32 to vector<8x32xf32>
    %355 = arith.mulf %354, %348 : vector<8x32xf32>
    %356 = arith.addf %353, %355 : vector<8x32xf32>
    %357 = vector.extract_strided_slice %22 {offsets = [2, 0, 0], sizes = [1, 8, 96], strides = [1, 1, 1]} : vector<8x8x96xf32> to vector<1x8x96xf32>
    %358 = vector.shape_cast %357 : vector<1x8x96xf32> to vector<8x96xf32>
    %cst_132 = arith.constant dense<0.000000e+00> : vector<8x96xf32>
    %359 = tpu.matmul %356, %9, %cst_132 {dimension_numbers = #tpu.dot_dimension_numbers<[1], [0], [0], [1], [0, 0, 1, 1], [], []>} : vector<8x32xf32>, vector<32x96xf32>, vector<8x96xf32> -> vector<8x96xf32>
    %360 = vector.broadcast %10 : vector<1x96xf32> to vector<8x96xf32>
    %361 = arith.addf %359, %360 : vector<8x96xf32>
    %362 = vector.extract_strided_slice %358 {offsets = [0, 0], sizes = [8, 32], strides = [1, 1]} : vector<8x96xf32> to vector<8x32xf32>
    %363 = vector.extract_strided_slice %361 {offsets = [0, 0], sizes = [8, 32], strides = [1, 1]} : vector<8x96xf32> to vector<8x32xf32>
    %364 = arith.addf %362, %363 : vector<8x32xf32>
    %365 = arith.negf %364 : vector<8x32xf32>
    %366 = math.exp %365 : vector<8x32xf32>
    %cst_133 = arith.constant 1.000000e+00 : f32
    %367 = vector.broadcast %cst_133 : f32 to vector<8x32xf32>
    %368 = arith.addf %367, %366 : vector<8x32xf32>
    %369 = arith.divf %367, %368 : vector<8x32xf32>
    %370 = vector.extract_strided_slice %358 {offsets = [0, 32], sizes = [8, 32], strides = [1, 1]} : vector<8x96xf32> to vector<8x32xf32>
    %371 = vector.extract_strided_slice %361 {offsets = [0, 32], sizes = [8, 32], strides = [1, 1]} : vector<8x96xf32> to vector<8x32xf32>
    %372 = arith.addf %370, %371 : vector<8x32xf32>
    %373 = arith.negf %372 : vector<8x32xf32>
    %374 = math.exp %373 : vector<8x32xf32>
    %cst_134 = arith.constant 1.000000e+00 : f32
    %375 = vector.broadcast %cst_134 : f32 to vector<8x32xf32>
    %376 = arith.addf %375, %374 : vector<8x32xf32>
    %377 = arith.divf %375, %376 : vector<8x32xf32>
    %378 = vector.extract_strided_slice %358 {offsets = [0, 64], sizes = [8, 32], strides = [1, 1]} : vector<8x96xf32> to vector<8x32xf32>
    %379 = vector.extract_strided_slice %361 {offsets = [0, 64], sizes = [8, 32], strides = [1, 1]} : vector<8x96xf32> to vector<8x32xf32>
    %380 = arith.mulf %369, %379 : vector<8x32xf32>
    %381 = arith.addf %378, %380 : vector<8x32xf32>
    %382 = math.tanh %381 : vector<8x32xf32>
    %cst_135 = arith.constant 1.000000e+00 : f32
    %383 = vector.broadcast %cst_135 : f32 to vector<8x32xf32>
    %384 = arith.subf %383, %377 : vector<8x32xf32>
    %385 = arith.mulf %384, %382 : vector<8x32xf32>
    %386 = arith.mulf %377, %356 : vector<8x32xf32>
    %387 = arith.addf %385, %386 : vector<8x32xf32>
    %cst_136 = arith.constant dense<0.000000e+00> : vector<24x32xf32>
    %388 = tpu.matmul %8, %387, %cst_136 {dimension_numbers = #tpu.dot_dimension_numbers<[1], [0], [0], [1], [0, 0, 1, 1], [], []>} : vector<24x8xf32>, vector<8x32xf32>, vector<24x32xf32> -> vector<24x32xf32>
    %389 = vector.extract_strided_slice %63 {offsets = [2, 0, 0], sizes = [1, 8, 32], strides = [1, 1, 1]} : vector<8x8x32xf32> to vector<1x8x32xf32>
    %390 = vector.shape_cast %389 : vector<1x8x32xf32> to vector<8x32xf32>
    %391 = vector.extract_strided_slice %388 {offsets = [0, 0], sizes = [8, 32], strides = [1, 1]} : vector<24x32xf32> to vector<8x32xf32>
    %c0_137 = arith.constant 0 : index
    %c0_138 = arith.constant 0 : index
    %c0_139 = arith.constant 0 : index
    %392 = vector.load %arg12[%c0_137, %c0_138, %c0_139] : memref<3x32x32xf32, #tpu.memory_space<vmem>>, vector<1x32x32xf32>
    %393 = vector.shape_cast %392 : vector<1x32x32xf32> to vector<32x32xf32>
    %cst_140 = arith.constant dense<0.000000e+00> : vector<8x32xf32>
    %394 = tpu.matmul %391, %393, %cst_140 {dimension_numbers = #tpu.dot_dimension_numbers<[1], [0], [0], [1], [0, 0, 1, 1], [], []>} : vector<8x32xf32>, vector<32x32xf32>, vector<8x32xf32> -> vector<8x32xf32>
    %395 = arith.addf %390, %394 : vector<8x32xf32>
    %396 = vector.extract_strided_slice %388 {offsets = [8, 0], sizes = [8, 32], strides = [1, 1]} : vector<24x32xf32> to vector<8x32xf32>
    %c1_141 = arith.constant 1 : index
    %c0_142 = arith.constant 0 : index
    %c0_143 = arith.constant 0 : index
    %397 = vector.load %arg12[%c1_141, %c0_142, %c0_143] : memref<3x32x32xf32, #tpu.memory_space<vmem>>, vector<1x32x32xf32>
    %398 = vector.shape_cast %397 : vector<1x32x32xf32> to vector<32x32xf32>
    %cst_144 = arith.constant dense<0.000000e+00> : vector<8x32xf32>
    %399 = tpu.matmul %396, %398, %cst_144 {dimension_numbers = #tpu.dot_dimension_numbers<[1], [0], [0], [1], [0, 0, 1, 1], [], []>} : vector<8x32xf32>, vector<32x32xf32>, vector<8x32xf32> -> vector<8x32xf32>
    %400 = arith.addf %395, %399 : vector<8x32xf32>
    %401 = vector.extract_strided_slice %388 {offsets = [16, 0], sizes = [8, 32], strides = [1, 1]} : vector<24x32xf32> to vector<8x32xf32>
    %c2_145 = arith.constant 2 : index
    %c0_146 = arith.constant 0 : index
    %c0_147 = arith.constant 0 : index
    %402 = vector.load %arg12[%c2_145, %c0_146, %c0_147] : memref<3x32x32xf32, #tpu.memory_space<vmem>>, vector<1x32x32xf32>
    %403 = vector.shape_cast %402 : vector<1x32x32xf32> to vector<32x32xf32>
    %cst_148 = arith.constant dense<0.000000e+00> : vector<8x32xf32>
    %404 = tpu.matmul %401, %403, %cst_148 {dimension_numbers = #tpu.dot_dimension_numbers<[1], [0], [0], [1], [0, 0, 1, 1], [], []>} : vector<8x32xf32>, vector<32x32xf32>, vector<8x32xf32> -> vector<8x32xf32>
    %405 = arith.addf %400, %404 : vector<8x32xf32>
    %406 = vector.broadcast %12 : vector<1x32xf32> to vector<8x32xf32>
    %407 = arith.addf %405, %406 : vector<8x32xf32>
    %408 = math.tanh %407 : vector<8x32xf32>
    %409 = vector.extract_strided_slice %27 {offsets = [2, 0, 0], sizes = [1, 8, 64], strides = [1, 1, 1]} : vector<8x8x64xf32> to vector<1x8x64xf32>
    %410 = vector.shape_cast %409 : vector<1x8x64xf32> to vector<8x64xf32>
    %411 = arith.addf %410, %29 : vector<8x64xf32>
    %cst_149 = arith.constant dense<0.000000e+00> : vector<8x64xf32>
    %412 = tpu.matmul %387, %11, %cst_149 {dimension_numbers = #tpu.dot_dimension_numbers<[1], [0], [0], [1], [0, 0, 1, 1], [], []>} : vector<8x32xf32>, vector<32x64xf32>, vector<8x64xf32> -> vector<8x64xf32>
    %413 = arith.addf %411, %412 : vector<8x64xf32>
    %cst_150 = arith.constant 0.000000e+00 : f32
    %414 = vector.broadcast %cst_150 : f32 to vector<8x32xf32>
    %415 = vector.extract_strided_slice %413 {offsets = [0, 0], sizes = [8, 32], strides = [1, 1]} : vector<8x64xf32> to vector<8x32xf32>
    %c0_151 = arith.constant 0 : index
    %c0_152 = arith.constant 0 : index
    %416 = vector.load %arg17[%c0_151, %c0_152] : memref<2x32xf32, #tpu.memory_space<vmem>>, vector<1x32xf32>
    %417 = vector.shape_cast %416 : vector<1x32xf32> to vector<32xf32>
    %418 = vector.shape_cast %417 : vector<32xf32> to vector<1x32xf32>
    %419 = vector.broadcast %418 : vector<1x32xf32> to vector<8x32xf32>
    %420 = arith.mulf %415, %419 : vector<8x32xf32>
    %cst_153 = arith.constant dense<0.000000e+00> : vector<8xf32>
    %421 = vector.multi_reduction <add>, %420, %cst_153 [1] : vector<8x32xf32> to vector<8xf32>
    %422 = vector.shape_cast %421 : vector<8xf32> to vector<8x1xf32>
    %c0_154 = arith.constant 0 : index
    %c0_155 = arith.constant 0 : index
    %423 = vector.load %arg18[%c0_154, %c0_155] : memref<2x32xf32, #tpu.memory_space<vmem>>, vector<1x32xf32>
    %424 = vector.shape_cast %423 : vector<1x32xf32> to vector<32xf32>
    %425 = vector.shape_cast %424 : vector<32xf32> to vector<1x32xf32>
    %426 = vector.broadcast %425 : vector<1x32xf32> to vector<8x32xf32>
    %427 = arith.mulf %415, %426 : vector<8x32xf32>
    %cst_156 = arith.constant dense<0.000000e+00> : vector<8xf32>
    %428 = vector.multi_reduction <add>, %427, %cst_156 [1] : vector<8x32xf32> to vector<8xf32>
    %429 = vector.shape_cast %428 : vector<8xf32> to vector<1x8xf32>
    %430 = vector.broadcast %422 : vector<8x1xf32> to vector<8x8xf32>
    %431 = vector.broadcast %429 : vector<1x8xf32> to vector<8x8xf32>
    %432 = arith.addf %430, %431 : vector<8x8xf32>
    %cst_157 = arith.constant 0.000000e+00 : f32
    %433 = vector.broadcast %cst_157 : f32 to vector<8x8xf32>
    %434 = arith.cmpf ogt, %432, %433 : vector<8x8xf32>
    %cst_158 = arith.constant 2.000000e-01 : f32
    %435 = vector.broadcast %cst_158 : f32 to vector<8x8xf32>
    %436 = arith.mulf %435, %432 : vector<8x8xf32>
    %437 = arith.select %434, %432, %436 : vector<8x8xi1>, vector<8x8xf32>
    %438 = arith.addf %437, %7 : vector<8x8xf32>
    %cst_159 = arith.constant dense<0xFF800000> : vector<8xf32>
    %439 = vector.multi_reduction <maximumf>, %438, %cst_159 [1] : vector<8x8xf32> to vector<8xf32>
    %440 = vector.shape_cast %439 : vector<8xf32> to vector<8x1xf32>
    %441 = vector.broadcast %440 : vector<8x1xf32> to vector<8x8xf32>
    %442 = arith.subf %438, %441 : vector<8x8xf32>
    %443 = math.exp %442 : vector<8x8xf32>
    %cst_160 = arith.constant dense<0.000000e+00> : vector<8xf32>
    %444 = vector.multi_reduction <add>, %443, %cst_160 [1] : vector<8x8xf32> to vector<8xf32>
    %445 = vector.shape_cast %444 : vector<8xf32> to vector<8x1xf32>
    %446 = tpu.reciprocal %445 {approx = true} : vector<8x1xf32> -> vector<8x1xf32>
    %447 = vector.broadcast %446 : vector<8x1xf32> to vector<8x8xf32>
    %448 = arith.mulf %443, %447 : vector<8x8xf32>
    %cst_161 = arith.constant dense<0.000000e+00> : vector<8x32xf32>
    %449 = tpu.matmul %448, %415, %cst_161 {dimension_numbers = #tpu.dot_dimension_numbers<[1], [0], [0], [1], [0, 0, 1, 1], [], []>} : vector<8x8xf32>, vector<8x32xf32>, vector<8x32xf32> -> vector<8x32xf32>
    %450 = arith.addf %414, %449 : vector<8x32xf32>
    %451 = vector.extract_strided_slice %413 {offsets = [0, 32], sizes = [8, 32], strides = [1, 1]} : vector<8x64xf32> to vector<8x32xf32>
    %c1_162 = arith.constant 1 : index
    %c0_163 = arith.constant 0 : index
    %452 = vector.load %arg17[%c1_162, %c0_163] : memref<2x32xf32, #tpu.memory_space<vmem>>, vector<1x32xf32>
    %453 = vector.shape_cast %452 : vector<1x32xf32> to vector<32xf32>
    %454 = vector.shape_cast %453 : vector<32xf32> to vector<1x32xf32>
    %455 = vector.broadcast %454 : vector<1x32xf32> to vector<8x32xf32>
    %456 = arith.mulf %451, %455 : vector<8x32xf32>
    %cst_164 = arith.constant dense<0.000000e+00> : vector<8xf32>
    %457 = vector.multi_reduction <add>, %456, %cst_164 [1] : vector<8x32xf32> to vector<8xf32>
    %458 = vector.shape_cast %457 : vector<8xf32> to vector<8x1xf32>
    %c1_165 = arith.constant 1 : index
    %c0_166 = arith.constant 0 : index
    %459 = vector.load %arg18[%c1_165, %c0_166] : memref<2x32xf32, #tpu.memory_space<vmem>>, vector<1x32xf32>
    %460 = vector.shape_cast %459 : vector<1x32xf32> to vector<32xf32>
    %461 = vector.shape_cast %460 : vector<32xf32> to vector<1x32xf32>
    %462 = vector.broadcast %461 : vector<1x32xf32> to vector<8x32xf32>
    %463 = arith.mulf %451, %462 : vector<8x32xf32>
    %cst_167 = arith.constant dense<0.000000e+00> : vector<8xf32>
    %464 = vector.multi_reduction <add>, %463, %cst_167 [1] : vector<8x32xf32> to vector<8xf32>
    %465 = vector.shape_cast %464 : vector<8xf32> to vector<1x8xf32>
    %466 = vector.broadcast %458 : vector<8x1xf32> to vector<8x8xf32>
    %467 = vector.broadcast %465 : vector<1x8xf32> to vector<8x8xf32>
    %468 = arith.addf %466, %467 : vector<8x8xf32>
    %cst_168 = arith.constant 0.000000e+00 : f32
    %469 = vector.broadcast %cst_168 : f32 to vector<8x8xf32>
    %470 = arith.cmpf ogt, %468, %469 : vector<8x8xf32>
    %cst_169 = arith.constant 2.000000e-01 : f32
    %471 = vector.broadcast %cst_169 : f32 to vector<8x8xf32>
    %472 = arith.mulf %471, %468 : vector<8x8xf32>
    %473 = arith.select %470, %468, %472 : vector<8x8xi1>, vector<8x8xf32>
    %474 = arith.addf %473, %7 : vector<8x8xf32>
    %cst_170 = arith.constant dense<0xFF800000> : vector<8xf32>
    %475 = vector.multi_reduction <maximumf>, %474, %cst_170 [1] : vector<8x8xf32> to vector<8xf32>
    %476 = vector.shape_cast %475 : vector<8xf32> to vector<8x1xf32>
    %477 = vector.broadcast %476 : vector<8x1xf32> to vector<8x8xf32>
    %478 = arith.subf %474, %477 : vector<8x8xf32>
    %479 = math.exp %478 : vector<8x8xf32>
    %cst_171 = arith.constant dense<0.000000e+00> : vector<8xf32>
    %480 = vector.multi_reduction <add>, %479, %cst_171 [1] : vector<8x8xf32> to vector<8xf32>
    %481 = vector.shape_cast %480 : vector<8xf32> to vector<8x1xf32>
    %482 = tpu.reciprocal %481 {approx = true} : vector<8x1xf32> -> vector<8x1xf32>
    %483 = vector.broadcast %482 : vector<8x1xf32> to vector<8x8xf32>
    %484 = arith.mulf %479, %483 : vector<8x8xf32>
    %cst_172 = arith.constant dense<0.000000e+00> : vector<8x32xf32>
    %485 = tpu.matmul %484, %451, %cst_172 {dimension_numbers = #tpu.dot_dimension_numbers<[1], [0], [0], [1], [0, 0, 1, 1], [], []>} : vector<8x8xf32>, vector<8x32xf32>, vector<8x32xf32> -> vector<8x32xf32>
    %486 = arith.addf %450, %485 : vector<8x32xf32>
    %cst_173 = arith.constant 5.000000e-01 : f32
    %487 = vector.broadcast %cst_173 : f32 to vector<8x32xf32>
    %488 = arith.mulf %486, %487 : vector<8x32xf32>
    %489 = math.tanh %488 : vector<8x32xf32>
    %490 = vector.broadcast %0 : f32 to vector<8x32xf32>
    %491 = arith.mulf %490, %387 : vector<8x32xf32>
    %492 = vector.broadcast %1 : f32 to vector<8x32xf32>
    %493 = arith.mulf %492, %408 : vector<8x32xf32>
    %494 = arith.addf %491, %493 : vector<8x32xf32>
    %495 = vector.broadcast %2 : f32 to vector<8x32xf32>
    %496 = arith.mulf %495, %489 : vector<8x32xf32>
    %497 = arith.addf %494, %496 : vector<8x32xf32>
    %498 = vector.extract_strided_slice %22 {offsets = [3, 0, 0], sizes = [1, 8, 96], strides = [1, 1, 1]} : vector<8x8x96xf32> to vector<1x8x96xf32>
    %499 = vector.shape_cast %498 : vector<1x8x96xf32> to vector<8x96xf32>
    %cst_174 = arith.constant dense<0.000000e+00> : vector<8x96xf32>
    %500 = tpu.matmul %497, %9, %cst_174 {dimension_numbers = #tpu.dot_dimension_numbers<[1], [0], [0], [1], [0, 0, 1, 1], [], []>} : vector<8x32xf32>, vector<32x96xf32>, vector<8x96xf32> -> vector<8x96xf32>
    %501 = vector.broadcast %10 : vector<1x96xf32> to vector<8x96xf32>
    %502 = arith.addf %500, %501 : vector<8x96xf32>
    %503 = vector.extract_strided_slice %499 {offsets = [0, 0], sizes = [8, 32], strides = [1, 1]} : vector<8x96xf32> to vector<8x32xf32>
    %504 = vector.extract_strided_slice %502 {offsets = [0, 0], sizes = [8, 32], strides = [1, 1]} : vector<8x96xf32> to vector<8x32xf32>
    %505 = arith.addf %503, %504 : vector<8x32xf32>
    %506 = arith.negf %505 : vector<8x32xf32>
    %507 = math.exp %506 : vector<8x32xf32>
    %cst_175 = arith.constant 1.000000e+00 : f32
    %508 = vector.broadcast %cst_175 : f32 to vector<8x32xf32>
    %509 = arith.addf %508, %507 : vector<8x32xf32>
    %510 = arith.divf %508, %509 : vector<8x32xf32>
    %511 = vector.extract_strided_slice %499 {offsets = [0, 32], sizes = [8, 32], strides = [1, 1]} : vector<8x96xf32> to vector<8x32xf32>
    %512 = vector.extract_strided_slice %502 {offsets = [0, 32], sizes = [8, 32], strides = [1, 1]} : vector<8x96xf32> to vector<8x32xf32>
    %513 = arith.addf %511, %512 : vector<8x32xf32>
    %514 = arith.negf %513 : vector<8x32xf32>
    %515 = math.exp %514 : vector<8x32xf32>
    %cst_176 = arith.constant 1.000000e+00 : f32
    %516 = vector.broadcast %cst_176 : f32 to vector<8x32xf32>
    %517 = arith.addf %516, %515 : vector<8x32xf32>
    %518 = arith.divf %516, %517 : vector<8x32xf32>
    %519 = vector.extract_strided_slice %499 {offsets = [0, 64], sizes = [8, 32], strides = [1, 1]} : vector<8x96xf32> to vector<8x32xf32>
    %520 = vector.extract_strided_slice %502 {offsets = [0, 64], sizes = [8, 32], strides = [1, 1]} : vector<8x96xf32> to vector<8x32xf32>
    %521 = arith.mulf %510, %520 : vector<8x32xf32>
    %522 = arith.addf %519, %521 : vector<8x32xf32>
    %523 = math.tanh %522 : vector<8x32xf32>
    %cst_177 = arith.constant 1.000000e+00 : f32
    %524 = vector.broadcast %cst_177 : f32 to vector<8x32xf32>
    %525 = arith.subf %524, %518 : vector<8x32xf32>
    %526 = arith.mulf %525, %523 : vector<8x32xf32>
    %527 = arith.mulf %518, %497 : vector<8x32xf32>
    %528 = arith.addf %526, %527 : vector<8x32xf32>
    %cst_178 = arith.constant dense<0.000000e+00> : vector<24x32xf32>
    %529 = tpu.matmul %8, %528, %cst_178 {dimension_numbers = #tpu.dot_dimension_numbers<[1], [0], [0], [1], [0, 0, 1, 1], [], []>} : vector<24x8xf32>, vector<8x32xf32>, vector<24x32xf32> -> vector<24x32xf32>
    %530 = vector.extract_strided_slice %63 {offsets = [3, 0, 0], sizes = [1, 8, 32], strides = [1, 1, 1]} : vector<8x8x32xf32> to vector<1x8x32xf32>
    %531 = vector.shape_cast %530 : vector<1x8x32xf32> to vector<8x32xf32>
    %532 = vector.extract_strided_slice %529 {offsets = [0, 0], sizes = [8, 32], strides = [1, 1]} : vector<24x32xf32> to vector<8x32xf32>
    %c0_179 = arith.constant 0 : index
    %c0_180 = arith.constant 0 : index
    %c0_181 = arith.constant 0 : index
    %533 = vector.load %arg12[%c0_179, %c0_180, %c0_181] : memref<3x32x32xf32, #tpu.memory_space<vmem>>, vector<1x32x32xf32>
    %534 = vector.shape_cast %533 : vector<1x32x32xf32> to vector<32x32xf32>
    %cst_182 = arith.constant dense<0.000000e+00> : vector<8x32xf32>
    %535 = tpu.matmul %532, %534, %cst_182 {dimension_numbers = #tpu.dot_dimension_numbers<[1], [0], [0], [1], [0, 0, 1, 1], [], []>} : vector<8x32xf32>, vector<32x32xf32>, vector<8x32xf32> -> vector<8x32xf32>
    %536 = arith.addf %531, %535 : vector<8x32xf32>
    %537 = vector.extract_strided_slice %529 {offsets = [8, 0], sizes = [8, 32], strides = [1, 1]} : vector<24x32xf32> to vector<8x32xf32>
    %c1_183 = arith.constant 1 : index
    %c0_184 = arith.constant 0 : index
    %c0_185 = arith.constant 0 : index
    %538 = vector.load %arg12[%c1_183, %c0_184, %c0_185] : memref<3x32x32xf32, #tpu.memory_space<vmem>>, vector<1x32x32xf32>
    %539 = vector.shape_cast %538 : vector<1x32x32xf32> to vector<32x32xf32>
    %cst_186 = arith.constant dense<0.000000e+00> : vector<8x32xf32>
    %540 = tpu.matmul %537, %539, %cst_186 {dimension_numbers = #tpu.dot_dimension_numbers<[1], [0], [0], [1], [0, 0, 1, 1], [], []>} : vector<8x32xf32>, vector<32x32xf32>, vector<8x32xf32> -> vector<8x32xf32>
    %541 = arith.addf %536, %540 : vector<8x32xf32>
    %542 = vector.extract_strided_slice %529 {offsets = [16, 0], sizes = [8, 32], strides = [1, 1]} : vector<24x32xf32> to vector<8x32xf32>
    %c2_187 = arith.constant 2 : index
    %c0_188 = arith.constant 0 : index
    %c0_189 = arith.constant 0 : index
    %543 = vector.load %arg12[%c2_187, %c0_188, %c0_189] : memref<3x32x32xf32, #tpu.memory_space<vmem>>, vector<1x32x32xf32>
    %544 = vector.shape_cast %543 : vector<1x32x32xf32> to vector<32x32xf32>
    %cst_190 = arith.constant dense<0.000000e+00> : vector<8x32xf32>
    %545 = tpu.matmul %542, %544, %cst_190 {dimension_numbers = #tpu.dot_dimension_numbers<[1], [0], [0], [1], [0, 0, 1, 1], [], []>} : vector<8x32xf32>, vector<32x32xf32>, vector<8x32xf32> -> vector<8x32xf32>
    %546 = arith.addf %541, %545 : vector<8x32xf32>
    %547 = vector.broadcast %12 : vector<1x32xf32> to vector<8x32xf32>
    %548 = arith.addf %546, %547 : vector<8x32xf32>
    %549 = math.tanh %548 : vector<8x32xf32>
    %550 = vector.extract_strided_slice %27 {offsets = [3, 0, 0], sizes = [1, 8, 64], strides = [1, 1, 1]} : vector<8x8x64xf32> to vector<1x8x64xf32>
    %551 = vector.shape_cast %550 : vector<1x8x64xf32> to vector<8x64xf32>
    %552 = arith.addf %551, %29 : vector<8x64xf32>
    %cst_191 = arith.constant dense<0.000000e+00> : vector<8x64xf32>
    %553 = tpu.matmul %528, %11, %cst_191 {dimension_numbers = #tpu.dot_dimension_numbers<[1], [0], [0], [1], [0, 0, 1, 1], [], []>} : vector<8x32xf32>, vector<32x64xf32>, vector<8x64xf32> -> vector<8x64xf32>
    %554 = arith.addf %552, %553 : vector<8x64xf32>
    %cst_192 = arith.constant 0.000000e+00 : f32
    %555 = vector.broadcast %cst_192 : f32 to vector<8x32xf32>
    %556 = vector.extract_strided_slice %554 {offsets = [0, 0], sizes = [8, 32], strides = [1, 1]} : vector<8x64xf32> to vector<8x32xf32>
    %c0_193 = arith.constant 0 : index
    %c0_194 = arith.constant 0 : index
    %557 = vector.load %arg17[%c0_193, %c0_194] : memref<2x32xf32, #tpu.memory_space<vmem>>, vector<1x32xf32>
    %558 = vector.shape_cast %557 : vector<1x32xf32> to vector<32xf32>
    %559 = vector.shape_cast %558 : vector<32xf32> to vector<1x32xf32>
    %560 = vector.broadcast %559 : vector<1x32xf32> to vector<8x32xf32>
    %561 = arith.mulf %556, %560 : vector<8x32xf32>
    %cst_195 = arith.constant dense<0.000000e+00> : vector<8xf32>
    %562 = vector.multi_reduction <add>, %561, %cst_195 [1] : vector<8x32xf32> to vector<8xf32>
    %563 = vector.shape_cast %562 : vector<8xf32> to vector<8x1xf32>
    %c0_196 = arith.constant 0 : index
    %c0_197 = arith.constant 0 : index
    %564 = vector.load %arg18[%c0_196, %c0_197] : memref<2x32xf32, #tpu.memory_space<vmem>>, vector<1x32xf32>
    %565 = vector.shape_cast %564 : vector<1x32xf32> to vector<32xf32>
    %566 = vector.shape_cast %565 : vector<32xf32> to vector<1x32xf32>
    %567 = vector.broadcast %566 : vector<1x32xf32> to vector<8x32xf32>
    %568 = arith.mulf %556, %567 : vector<8x32xf32>
    %cst_198 = arith.constant dense<0.000000e+00> : vector<8xf32>
    %569 = vector.multi_reduction <add>, %568, %cst_198 [1] : vector<8x32xf32> to vector<8xf32>
    %570 = vector.shape_cast %569 : vector<8xf32> to vector<1x8xf32>
    %571 = vector.broadcast %563 : vector<8x1xf32> to vector<8x8xf32>
    %572 = vector.broadcast %570 : vector<1x8xf32> to vector<8x8xf32>
    %573 = arith.addf %571, %572 : vector<8x8xf32>
    %cst_199 = arith.constant 0.000000e+00 : f32
    %574 = vector.broadcast %cst_199 : f32 to vector<8x8xf32>
    %575 = arith.cmpf ogt, %573, %574 : vector<8x8xf32>
    %cst_200 = arith.constant 2.000000e-01 : f32
    %576 = vector.broadcast %cst_200 : f32 to vector<8x8xf32>
    %577 = arith.mulf %576, %573 : vector<8x8xf32>
    %578 = arith.select %575, %573, %577 : vector<8x8xi1>, vector<8x8xf32>
    %579 = arith.addf %578, %7 : vector<8x8xf32>
    %cst_201 = arith.constant dense<0xFF800000> : vector<8xf32>
    %580 = vector.multi_reduction <maximumf>, %579, %cst_201 [1] : vector<8x8xf32> to vector<8xf32>
    %581 = vector.shape_cast %580 : vector<8xf32> to vector<8x1xf32>
    %582 = vector.broadcast %581 : vector<8x1xf32> to vector<8x8xf32>
    %583 = arith.subf %579, %582 : vector<8x8xf32>
    %584 = math.exp %583 : vector<8x8xf32>
    %cst_202 = arith.constant dense<0.000000e+00> : vector<8xf32>
    %585 = vector.multi_reduction <add>, %584, %cst_202 [1] : vector<8x8xf32> to vector<8xf32>
    %586 = vector.shape_cast %585 : vector<8xf32> to vector<8x1xf32>
    %587 = tpu.reciprocal %586 {approx = true} : vector<8x1xf32> -> vector<8x1xf32>
    %588 = vector.broadcast %587 : vector<8x1xf32> to vector<8x8xf32>
    %589 = arith.mulf %584, %588 : vector<8x8xf32>
    %cst_203 = arith.constant dense<0.000000e+00> : vector<8x32xf32>
    %590 = tpu.matmul %589, %556, %cst_203 {dimension_numbers = #tpu.dot_dimension_numbers<[1], [0], [0], [1], [0, 0, 1, 1], [], []>} : vector<8x8xf32>, vector<8x32xf32>, vector<8x32xf32> -> vector<8x32xf32>
    %591 = arith.addf %555, %590 : vector<8x32xf32>
    %592 = vector.extract_strided_slice %554 {offsets = [0, 32], sizes = [8, 32], strides = [1, 1]} : vector<8x64xf32> to vector<8x32xf32>
    %c1_204 = arith.constant 1 : index
    %c0_205 = arith.constant 0 : index
    %593 = vector.load %arg17[%c1_204, %c0_205] : memref<2x32xf32, #tpu.memory_space<vmem>>, vector<1x32xf32>
    %594 = vector.shape_cast %593 : vector<1x32xf32> to vector<32xf32>
    %595 = vector.shape_cast %594 : vector<32xf32> to vector<1x32xf32>
    %596 = vector.broadcast %595 : vector<1x32xf32> to vector<8x32xf32>
    %597 = arith.mulf %592, %596 : vector<8x32xf32>
    %cst_206 = arith.constant dense<0.000000e+00> : vector<8xf32>
    %598 = vector.multi_reduction <add>, %597, %cst_206 [1] : vector<8x32xf32> to vector<8xf32>
    %599 = vector.shape_cast %598 : vector<8xf32> to vector<8x1xf32>
    %c1_207 = arith.constant 1 : index
    %c0_208 = arith.constant 0 : index
    %600 = vector.load %arg18[%c1_207, %c0_208] : memref<2x32xf32, #tpu.memory_space<vmem>>, vector<1x32xf32>
    %601 = vector.shape_cast %600 : vector<1x32xf32> to vector<32xf32>
    %602 = vector.shape_cast %601 : vector<32xf32> to vector<1x32xf32>
    %603 = vector.broadcast %602 : vector<1x32xf32> to vector<8x32xf32>
    %604 = arith.mulf %592, %603 : vector<8x32xf32>
    %cst_209 = arith.constant dense<0.000000e+00> : vector<8xf32>
    %605 = vector.multi_reduction <add>, %604, %cst_209 [1] : vector<8x32xf32> to vector<8xf32>
    %606 = vector.shape_cast %605 : vector<8xf32> to vector<1x8xf32>
    %607 = vector.broadcast %599 : vector<8x1xf32> to vector<8x8xf32>
    %608 = vector.broadcast %606 : vector<1x8xf32> to vector<8x8xf32>
    %609 = arith.addf %607, %608 : vector<8x8xf32>
    %cst_210 = arith.constant 0.000000e+00 : f32
    %610 = vector.broadcast %cst_210 : f32 to vector<8x8xf32>
    %611 = arith.cmpf ogt, %609, %610 : vector<8x8xf32>
    %cst_211 = arith.constant 2.000000e-01 : f32
    %612 = vector.broadcast %cst_211 : f32 to vector<8x8xf32>
    %613 = arith.mulf %612, %609 : vector<8x8xf32>
    %614 = arith.select %611, %609, %613 : vector<8x8xi1>, vector<8x8xf32>
    %615 = arith.addf %614, %7 : vector<8x8xf32>
    %cst_212 = arith.constant dense<0xFF800000> : vector<8xf32>
    %616 = vector.multi_reduction <maximumf>, %615, %cst_212 [1] : vector<8x8xf32> to vector<8xf32>
    %617 = vector.shape_cast %616 : vector<8xf32> to vector<8x1xf32>
    %618 = vector.broadcast %617 : vector<8x1xf32> to vector<8x8xf32>
    %619 = arith.subf %615, %618 : vector<8x8xf32>
    %620 = math.exp %619 : vector<8x8xf32>
    %cst_213 = arith.constant dense<0.000000e+00> : vector<8xf32>
    %621 = vector.multi_reduction <add>, %620, %cst_213 [1] : vector<8x8xf32> to vector<8xf32>
    %622 = vector.shape_cast %621 : vector<8xf32> to vector<8x1xf32>
    %623 = tpu.reciprocal %622 {approx = true} : vector<8x1xf32> -> vector<8x1xf32>
    %624 = vector.broadcast %623 : vector<8x1xf32> to vector<8x8xf32>
    %625 = arith.mulf %620, %624 : vector<8x8xf32>
    %cst_214 = arith.constant dense<0.000000e+00> : vector<8x32xf32>
    %626 = tpu.matmul %625, %592, %cst_214 {dimension_numbers = #tpu.dot_dimension_numbers<[1], [0], [0], [1], [0, 0, 1, 1], [], []>} : vector<8x8xf32>, vector<8x32xf32>, vector<8x32xf32> -> vector<8x32xf32>
    %627 = arith.addf %591, %626 : vector<8x32xf32>
    %cst_215 = arith.constant 5.000000e-01 : f32
    %628 = vector.broadcast %cst_215 : f32 to vector<8x32xf32>
    %629 = arith.mulf %627, %628 : vector<8x32xf32>
    %630 = math.tanh %629 : vector<8x32xf32>
    %631 = vector.broadcast %0 : f32 to vector<8x32xf32>
    %632 = arith.mulf %631, %528 : vector<8x32xf32>
    %633 = vector.broadcast %1 : f32 to vector<8x32xf32>
    %634 = arith.mulf %633, %549 : vector<8x32xf32>
    %635 = arith.addf %632, %634 : vector<8x32xf32>
    %636 = vector.broadcast %2 : f32 to vector<8x32xf32>
    %637 = arith.mulf %636, %630 : vector<8x32xf32>
    %638 = arith.addf %635, %637 : vector<8x32xf32>
    %639 = vector.extract_strided_slice %22 {offsets = [4, 0, 0], sizes = [1, 8, 96], strides = [1, 1, 1]} : vector<8x8x96xf32> to vector<1x8x96xf32>
    %640 = vector.shape_cast %639 : vector<1x8x96xf32> to vector<8x96xf32>
    %cst_216 = arith.constant dense<0.000000e+00> : vector<8x96xf32>
    %641 = tpu.matmul %638, %9, %cst_216 {dimension_numbers = #tpu.dot_dimension_numbers<[1], [0], [0], [1], [0, 0, 1, 1], [], []>} : vector<8x32xf32>, vector<32x96xf32>, vector<8x96xf32> -> vector<8x96xf32>
    %642 = vector.broadcast %10 : vector<1x96xf32> to vector<8x96xf32>
    %643 = arith.addf %641, %642 : vector<8x96xf32>
    %644 = vector.extract_strided_slice %640 {offsets = [0, 0], sizes = [8, 32], strides = [1, 1]} : vector<8x96xf32> to vector<8x32xf32>
    %645 = vector.extract_strided_slice %643 {offsets = [0, 0], sizes = [8, 32], strides = [1, 1]} : vector<8x96xf32> to vector<8x32xf32>
    %646 = arith.addf %644, %645 : vector<8x32xf32>
    %647 = arith.negf %646 : vector<8x32xf32>
    %648 = math.exp %647 : vector<8x32xf32>
    %cst_217 = arith.constant 1.000000e+00 : f32
    %649 = vector.broadcast %cst_217 : f32 to vector<8x32xf32>
    %650 = arith.addf %649, %648 : vector<8x32xf32>
    %651 = arith.divf %649, %650 : vector<8x32xf32>
    %652 = vector.extract_strided_slice %640 {offsets = [0, 32], sizes = [8, 32], strides = [1, 1]} : vector<8x96xf32> to vector<8x32xf32>
    %653 = vector.extract_strided_slice %643 {offsets = [0, 32], sizes = [8, 32], strides = [1, 1]} : vector<8x96xf32> to vector<8x32xf32>
    %654 = arith.addf %652, %653 : vector<8x32xf32>
    %655 = arith.negf %654 : vector<8x32xf32>
    %656 = math.exp %655 : vector<8x32xf32>
    %cst_218 = arith.constant 1.000000e+00 : f32
    %657 = vector.broadcast %cst_218 : f32 to vector<8x32xf32>
    %658 = arith.addf %657, %656 : vector<8x32xf32>
    %659 = arith.divf %657, %658 : vector<8x32xf32>
    %660 = vector.extract_strided_slice %640 {offsets = [0, 64], sizes = [8, 32], strides = [1, 1]} : vector<8x96xf32> to vector<8x32xf32>
    %661 = vector.extract_strided_slice %643 {offsets = [0, 64], sizes = [8, 32], strides = [1, 1]} : vector<8x96xf32> to vector<8x32xf32>
    %662 = arith.mulf %651, %661 : vector<8x32xf32>
    %663 = arith.addf %660, %662 : vector<8x32xf32>
    %664 = math.tanh %663 : vector<8x32xf32>
    %cst_219 = arith.constant 1.000000e+00 : f32
    %665 = vector.broadcast %cst_219 : f32 to vector<8x32xf32>
    %666 = arith.subf %665, %659 : vector<8x32xf32>
    %667 = arith.mulf %666, %664 : vector<8x32xf32>
    %668 = arith.mulf %659, %638 : vector<8x32xf32>
    %669 = arith.addf %667, %668 : vector<8x32xf32>
    %cst_220 = arith.constant dense<0.000000e+00> : vector<24x32xf32>
    %670 = tpu.matmul %8, %669, %cst_220 {dimension_numbers = #tpu.dot_dimension_numbers<[1], [0], [0], [1], [0, 0, 1, 1], [], []>} : vector<24x8xf32>, vector<8x32xf32>, vector<24x32xf32> -> vector<24x32xf32>
    %671 = vector.extract_strided_slice %63 {offsets = [4, 0, 0], sizes = [1, 8, 32], strides = [1, 1, 1]} : vector<8x8x32xf32> to vector<1x8x32xf32>
    %672 = vector.shape_cast %671 : vector<1x8x32xf32> to vector<8x32xf32>
    %673 = vector.extract_strided_slice %670 {offsets = [0, 0], sizes = [8, 32], strides = [1, 1]} : vector<24x32xf32> to vector<8x32xf32>
    %c0_221 = arith.constant 0 : index
    %c0_222 = arith.constant 0 : index
    %c0_223 = arith.constant 0 : index
    %674 = vector.load %arg12[%c0_221, %c0_222, %c0_223] : memref<3x32x32xf32, #tpu.memory_space<vmem>>, vector<1x32x32xf32>
    %675 = vector.shape_cast %674 : vector<1x32x32xf32> to vector<32x32xf32>
    %cst_224 = arith.constant dense<0.000000e+00> : vector<8x32xf32>
    %676 = tpu.matmul %673, %675, %cst_224 {dimension_numbers = #tpu.dot_dimension_numbers<[1], [0], [0], [1], [0, 0, 1, 1], [], []>} : vector<8x32xf32>, vector<32x32xf32>, vector<8x32xf32> -> vector<8x32xf32>
    %677 = arith.addf %672, %676 : vector<8x32xf32>
    %678 = vector.extract_strided_slice %670 {offsets = [8, 0], sizes = [8, 32], strides = [1, 1]} : vector<24x32xf32> to vector<8x32xf32>
    %c1_225 = arith.constant 1 : index
    %c0_226 = arith.constant 0 : index
    %c0_227 = arith.constant 0 : index
    %679 = vector.load %arg12[%c1_225, %c0_226, %c0_227] : memref<3x32x32xf32, #tpu.memory_space<vmem>>, vector<1x32x32xf32>
    %680 = vector.shape_cast %679 : vector<1x32x32xf32> to vector<32x32xf32>
    %cst_228 = arith.constant dense<0.000000e+00> : vector<8x32xf32>
    %681 = tpu.matmul %678, %680, %cst_228 {dimension_numbers = #tpu.dot_dimension_numbers<[1], [0], [0], [1], [0, 0, 1, 1], [], []>} : vector<8x32xf32>, vector<32x32xf32>, vector<8x32xf32> -> vector<8x32xf32>
    %682 = arith.addf %677, %681 : vector<8x32xf32>
    %683 = vector.extract_strided_slice %670 {offsets = [16, 0], sizes = [8, 32], strides = [1, 1]} : vector<24x32xf32> to vector<8x32xf32>
    %c2_229 = arith.constant 2 : index
    %c0_230 = arith.constant 0 : index
    %c0_231 = arith.constant 0 : index
    %684 = vector.load %arg12[%c2_229, %c0_230, %c0_231] : memref<3x32x32xf32, #tpu.memory_space<vmem>>, vector<1x32x32xf32>
    %685 = vector.shape_cast %684 : vector<1x32x32xf32> to vector<32x32xf32>
    %cst_232 = arith.constant dense<0.000000e+00> : vector<8x32xf32>
    %686 = tpu.matmul %683, %685, %cst_232 {dimension_numbers = #tpu.dot_dimension_numbers<[1], [0], [0], [1], [0, 0, 1, 1], [], []>} : vector<8x32xf32>, vector<32x32xf32>, vector<8x32xf32> -> vector<8x32xf32>
    %687 = arith.addf %682, %686 : vector<8x32xf32>
    %688 = vector.broadcast %12 : vector<1x32xf32> to vector<8x32xf32>
    %689 = arith.addf %687, %688 : vector<8x32xf32>
    %690 = math.tanh %689 : vector<8x32xf32>
    %691 = vector.extract_strided_slice %27 {offsets = [4, 0, 0], sizes = [1, 8, 64], strides = [1, 1, 1]} : vector<8x8x64xf32> to vector<1x8x64xf32>
    %692 = vector.shape_cast %691 : vector<1x8x64xf32> to vector<8x64xf32>
    %693 = arith.addf %692, %29 : vector<8x64xf32>
    %cst_233 = arith.constant dense<0.000000e+00> : vector<8x64xf32>
    %694 = tpu.matmul %669, %11, %cst_233 {dimension_numbers = #tpu.dot_dimension_numbers<[1], [0], [0], [1], [0, 0, 1, 1], [], []>} : vector<8x32xf32>, vector<32x64xf32>, vector<8x64xf32> -> vector<8x64xf32>
    %695 = arith.addf %693, %694 : vector<8x64xf32>
    %cst_234 = arith.constant 0.000000e+00 : f32
    %696 = vector.broadcast %cst_234 : f32 to vector<8x32xf32>
    %697 = vector.extract_strided_slice %695 {offsets = [0, 0], sizes = [8, 32], strides = [1, 1]} : vector<8x64xf32> to vector<8x32xf32>
    %c0_235 = arith.constant 0 : index
    %c0_236 = arith.constant 0 : index
    %698 = vector.load %arg17[%c0_235, %c0_236] : memref<2x32xf32, #tpu.memory_space<vmem>>, vector<1x32xf32>
    %699 = vector.shape_cast %698 : vector<1x32xf32> to vector<32xf32>
    %700 = vector.shape_cast %699 : vector<32xf32> to vector<1x32xf32>
    %701 = vector.broadcast %700 : vector<1x32xf32> to vector<8x32xf32>
    %702 = arith.mulf %697, %701 : vector<8x32xf32>
    %cst_237 = arith.constant dense<0.000000e+00> : vector<8xf32>
    %703 = vector.multi_reduction <add>, %702, %cst_237 [1] : vector<8x32xf32> to vector<8xf32>
    %704 = vector.shape_cast %703 : vector<8xf32> to vector<8x1xf32>
    %c0_238 = arith.constant 0 : index
    %c0_239 = arith.constant 0 : index
    %705 = vector.load %arg18[%c0_238, %c0_239] : memref<2x32xf32, #tpu.memory_space<vmem>>, vector<1x32xf32>
    %706 = vector.shape_cast %705 : vector<1x32xf32> to vector<32xf32>
    %707 = vector.shape_cast %706 : vector<32xf32> to vector<1x32xf32>
    %708 = vector.broadcast %707 : vector<1x32xf32> to vector<8x32xf32>
    %709 = arith.mulf %697, %708 : vector<8x32xf32>
    %cst_240 = arith.constant dense<0.000000e+00> : vector<8xf32>
    %710 = vector.multi_reduction <add>, %709, %cst_240 [1] : vector<8x32xf32> to vector<8xf32>
    %711 = vector.shape_cast %710 : vector<8xf32> to vector<1x8xf32>
    %712 = vector.broadcast %704 : vector<8x1xf32> to vector<8x8xf32>
    %713 = vector.broadcast %711 : vector<1x8xf32> to vector<8x8xf32>
    %714 = arith.addf %712, %713 : vector<8x8xf32>
    %cst_241 = arith.constant 0.000000e+00 : f32
    %715 = vector.broadcast %cst_241 : f32 to vector<8x8xf32>
    %716 = arith.cmpf ogt, %714, %715 : vector<8x8xf32>
    %cst_242 = arith.constant 2.000000e-01 : f32
    %717 = vector.broadcast %cst_242 : f32 to vector<8x8xf32>
    %718 = arith.mulf %717, %714 : vector<8x8xf32>
    %719 = arith.select %716, %714, %718 : vector<8x8xi1>, vector<8x8xf32>
    %720 = arith.addf %719, %7 : vector<8x8xf32>
    %cst_243 = arith.constant dense<0xFF800000> : vector<8xf32>
    %721 = vector.multi_reduction <maximumf>, %720, %cst_243 [1] : vector<8x8xf32> to vector<8xf32>
    %722 = vector.shape_cast %721 : vector<8xf32> to vector<8x1xf32>
    %723 = vector.broadcast %722 : vector<8x1xf32> to vector<8x8xf32>
    %724 = arith.subf %720, %723 : vector<8x8xf32>
    %725 = math.exp %724 : vector<8x8xf32>
    %cst_244 = arith.constant dense<0.000000e+00> : vector<8xf32>
    %726 = vector.multi_reduction <add>, %725, %cst_244 [1] : vector<8x8xf32> to vector<8xf32>
    %727 = vector.shape_cast %726 : vector<8xf32> to vector<8x1xf32>
    %728 = tpu.reciprocal %727 {approx = true} : vector<8x1xf32> -> vector<8x1xf32>
    %729 = vector.broadcast %728 : vector<8x1xf32> to vector<8x8xf32>
    %730 = arith.mulf %725, %729 : vector<8x8xf32>
    %cst_245 = arith.constant dense<0.000000e+00> : vector<8x32xf32>
    %731 = tpu.matmul %730, %697, %cst_245 {dimension_numbers = #tpu.dot_dimension_numbers<[1], [0], [0], [1], [0, 0, 1, 1], [], []>} : vector<8x8xf32>, vector<8x32xf32>, vector<8x32xf32> -> vector<8x32xf32>
    %732 = arith.addf %696, %731 : vector<8x32xf32>
    %733 = vector.extract_strided_slice %695 {offsets = [0, 32], sizes = [8, 32], strides = [1, 1]} : vector<8x64xf32> to vector<8x32xf32>
    %c1_246 = arith.constant 1 : index
    %c0_247 = arith.constant 0 : index
    %734 = vector.load %arg17[%c1_246, %c0_247] : memref<2x32xf32, #tpu.memory_space<vmem>>, vector<1x32xf32>
    %735 = vector.shape_cast %734 : vector<1x32xf32> to vector<32xf32>
    %736 = vector.shape_cast %735 : vector<32xf32> to vector<1x32xf32>
    %737 = vector.broadcast %736 : vector<1x32xf32> to vector<8x32xf32>
    %738 = arith.mulf %733, %737 : vector<8x32xf32>
    %cst_248 = arith.constant dense<0.000000e+00> : vector<8xf32>
    %739 = vector.multi_reduction <add>, %738, %cst_248 [1] : vector<8x32xf32> to vector<8xf32>
    %740 = vector.shape_cast %739 : vector<8xf32> to vector<8x1xf32>
    %c1_249 = arith.constant 1 : index
    %c0_250 = arith.constant 0 : index
    %741 = vector.load %arg18[%c1_249, %c0_250] : memref<2x32xf32, #tpu.memory_space<vmem>>, vector<1x32xf32>
    %742 = vector.shape_cast %741 : vector<1x32xf32> to vector<32xf32>
    %743 = vector.shape_cast %742 : vector<32xf32> to vector<1x32xf32>
    %744 = vector.broadcast %743 : vector<1x32xf32> to vector<8x32xf32>
    %745 = arith.mulf %733, %744 : vector<8x32xf32>
    %cst_251 = arith.constant dense<0.000000e+00> : vector<8xf32>
    %746 = vector.multi_reduction <add>, %745, %cst_251 [1] : vector<8x32xf32> to vector<8xf32>
    %747 = vector.shape_cast %746 : vector<8xf32> to vector<1x8xf32>
    %748 = vector.broadcast %740 : vector<8x1xf32> to vector<8x8xf32>
    %749 = vector.broadcast %747 : vector<1x8xf32> to vector<8x8xf32>
    %750 = arith.addf %748, %749 : vector<8x8xf32>
    %cst_252 = arith.constant 0.000000e+00 : f32
    %751 = vector.broadcast %cst_252 : f32 to vector<8x8xf32>
    %752 = arith.cmpf ogt, %750, %751 : vector<8x8xf32>
    %cst_253 = arith.constant 2.000000e-01 : f32
    %753 = vector.broadcast %cst_253 : f32 to vector<8x8xf32>
    %754 = arith.mulf %753, %750 : vector<8x8xf32>
    %755 = arith.select %752, %750, %754 : vector<8x8xi1>, vector<8x8xf32>
    %756 = arith.addf %755, %7 : vector<8x8xf32>
    %cst_254 = arith.constant dense<0xFF800000> : vector<8xf32>
    %757 = vector.multi_reduction <maximumf>, %756, %cst_254 [1] : vector<8x8xf32> to vector<8xf32>
    %758 = vector.shape_cast %757 : vector<8xf32> to vector<8x1xf32>
    %759 = vector.broadcast %758 : vector<8x1xf32> to vector<8x8xf32>
    %760 = arith.subf %756, %759 : vector<8x8xf32>
    %761 = math.exp %760 : vector<8x8xf32>
    %cst_255 = arith.constant dense<0.000000e+00> : vector<8xf32>
    %762 = vector.multi_reduction <add>, %761, %cst_255 [1] : vector<8x8xf32> to vector<8xf32>
    %763 = vector.shape_cast %762 : vector<8xf32> to vector<8x1xf32>
    %764 = tpu.reciprocal %763 {approx = true} : vector<8x1xf32> -> vector<8x1xf32>
    %765 = vector.broadcast %764 : vector<8x1xf32> to vector<8x8xf32>
    %766 = arith.mulf %761, %765 : vector<8x8xf32>
    %cst_256 = arith.constant dense<0.000000e+00> : vector<8x32xf32>
    %767 = tpu.matmul %766, %733, %cst_256 {dimension_numbers = #tpu.dot_dimension_numbers<[1], [0], [0], [1], [0, 0, 1, 1], [], []>} : vector<8x8xf32>, vector<8x32xf32>, vector<8x32xf32> -> vector<8x32xf32>
    %768 = arith.addf %732, %767 : vector<8x32xf32>
    %cst_257 = arith.constant 5.000000e-01 : f32
    %769 = vector.broadcast %cst_257 : f32 to vector<8x32xf32>
    %770 = arith.mulf %768, %769 : vector<8x32xf32>
    %771 = math.tanh %770 : vector<8x32xf32>
    %772 = vector.broadcast %0 : f32 to vector<8x32xf32>
    %773 = arith.mulf %772, %669 : vector<8x32xf32>
    %774 = vector.broadcast %1 : f32 to vector<8x32xf32>
    %775 = arith.mulf %774, %690 : vector<8x32xf32>
    %776 = arith.addf %773, %775 : vector<8x32xf32>
    %777 = vector.broadcast %2 : f32 to vector<8x32xf32>
    %778 = arith.mulf %777, %771 : vector<8x32xf32>
    %779 = arith.addf %776, %778 : vector<8x32xf32>
    %780 = vector.extract_strided_slice %22 {offsets = [5, 0, 0], sizes = [1, 8, 96], strides = [1, 1, 1]} : vector<8x8x96xf32> to vector<1x8x96xf32>
    %781 = vector.shape_cast %780 : vector<1x8x96xf32> to vector<8x96xf32>
    %cst_258 = arith.constant dense<0.000000e+00> : vector<8x96xf32>
    %782 = tpu.matmul %779, %9, %cst_258 {dimension_numbers = #tpu.dot_dimension_numbers<[1], [0], [0], [1], [0, 0, 1, 1], [], []>} : vector<8x32xf32>, vector<32x96xf32>, vector<8x96xf32> -> vector<8x96xf32>
    %783 = vector.broadcast %10 : vector<1x96xf32> to vector<8x96xf32>
    %784 = arith.addf %782, %783 : vector<8x96xf32>
    %785 = vector.extract_strided_slice %781 {offsets = [0, 0], sizes = [8, 32], strides = [1, 1]} : vector<8x96xf32> to vector<8x32xf32>
    %786 = vector.extract_strided_slice %784 {offsets = [0, 0], sizes = [8, 32], strides = [1, 1]} : vector<8x96xf32> to vector<8x32xf32>
    %787 = arith.addf %785, %786 : vector<8x32xf32>
    %788 = arith.negf %787 : vector<8x32xf32>
    %789 = math.exp %788 : vector<8x32xf32>
    %cst_259 = arith.constant 1.000000e+00 : f32
    %790 = vector.broadcast %cst_259 : f32 to vector<8x32xf32>
    %791 = arith.addf %790, %789 : vector<8x32xf32>
    %792 = arith.divf %790, %791 : vector<8x32xf32>
    %793 = vector.extract_strided_slice %781 {offsets = [0, 32], sizes = [8, 32], strides = [1, 1]} : vector<8x96xf32> to vector<8x32xf32>
    %794 = vector.extract_strided_slice %784 {offsets = [0, 32], sizes = [8, 32], strides = [1, 1]} : vector<8x96xf32> to vector<8x32xf32>
    %795 = arith.addf %793, %794 : vector<8x32xf32>
    %796 = arith.negf %795 : vector<8x32xf32>
    %797 = math.exp %796 : vector<8x32xf32>
    %cst_260 = arith.constant 1.000000e+00 : f32
    %798 = vector.broadcast %cst_260 : f32 to vector<8x32xf32>
    %799 = arith.addf %798, %797 : vector<8x32xf32>
    %800 = arith.divf %798, %799 : vector<8x32xf32>
    %801 = vector.extract_strided_slice %781 {offsets = [0, 64], sizes = [8, 32], strides = [1, 1]} : vector<8x96xf32> to vector<8x32xf32>
    %802 = vector.extract_strided_slice %784 {offsets = [0, 64], sizes = [8, 32], strides = [1, 1]} : vector<8x96xf32> to vector<8x32xf32>
    %803 = arith.mulf %792, %802 : vector<8x32xf32>
    %804 = arith.addf %801, %803 : vector<8x32xf32>
    %805 = math.tanh %804 : vector<8x32xf32>
    %cst_261 = arith.constant 1.000000e+00 : f32
    %806 = vector.broadcast %cst_261 : f32 to vector<8x32xf32>
    %807 = arith.subf %806, %800 : vector<8x32xf32>
    %808 = arith.mulf %807, %805 : vector<8x32xf32>
    %809 = arith.mulf %800, %779 : vector<8x32xf32>
    %810 = arith.addf %808, %809 : vector<8x32xf32>
    %cst_262 = arith.constant dense<0.000000e+00> : vector<24x32xf32>
    %811 = tpu.matmul %8, %810, %cst_262 {dimension_numbers = #tpu.dot_dimension_numbers<[1], [0], [0], [1], [0, 0, 1, 1], [], []>} : vector<24x8xf32>, vector<8x32xf32>, vector<24x32xf32> -> vector<24x32xf32>
    %812 = vector.extract_strided_slice %63 {offsets = [5, 0, 0], sizes = [1, 8, 32], strides = [1, 1, 1]} : vector<8x8x32xf32> to vector<1x8x32xf32>
    %813 = vector.shape_cast %812 : vector<1x8x32xf32> to vector<8x32xf32>
    %814 = vector.extract_strided_slice %811 {offsets = [0, 0], sizes = [8, 32], strides = [1, 1]} : vector<24x32xf32> to vector<8x32xf32>
    %c0_263 = arith.constant 0 : index
    %c0_264 = arith.constant 0 : index
    %c0_265 = arith.constant 0 : index
    %815 = vector.load %arg12[%c0_263, %c0_264, %c0_265] : memref<3x32x32xf32, #tpu.memory_space<vmem>>, vector<1x32x32xf32>
    %816 = vector.shape_cast %815 : vector<1x32x32xf32> to vector<32x32xf32>
    %cst_266 = arith.constant dense<0.000000e+00> : vector<8x32xf32>
    %817 = tpu.matmul %814, %816, %cst_266 {dimension_numbers = #tpu.dot_dimension_numbers<[1], [0], [0], [1], [0, 0, 1, 1], [], []>} : vector<8x32xf32>, vector<32x32xf32>, vector<8x32xf32> -> vector<8x32xf32>
    %818 = arith.addf %813, %817 : vector<8x32xf32>
    %819 = vector.extract_strided_slice %811 {offsets = [8, 0], sizes = [8, 32], strides = [1, 1]} : vector<24x32xf32> to vector<8x32xf32>
    %c1_267 = arith.constant 1 : index
    %c0_268 = arith.constant 0 : index
    %c0_269 = arith.constant 0 : index
    %820 = vector.load %arg12[%c1_267, %c0_268, %c0_269] : memref<3x32x32xf32, #tpu.memory_space<vmem>>, vector<1x32x32xf32>
    %821 = vector.shape_cast %820 : vector<1x32x32xf32> to vector<32x32xf32>
    %cst_270 = arith.constant dense<0.000000e+00> : vector<8x32xf32>
    %822 = tpu.matmul %819, %821, %cst_270 {dimension_numbers = #tpu.dot_dimension_numbers<[1], [0], [0], [1], [0, 0, 1, 1], [], []>} : vector<8x32xf32>, vector<32x32xf32>, vector<8x32xf32> -> vector<8x32xf32>
    %823 = arith.addf %818, %822 : vector<8x32xf32>
    %824 = vector.extract_strided_slice %811 {offsets = [16, 0], sizes = [8, 32], strides = [1, 1]} : vector<24x32xf32> to vector<8x32xf32>
    %c2_271 = arith.constant 2 : index
    %c0_272 = arith.constant 0 : index
    %c0_273 = arith.constant 0 : index
    %825 = vector.load %arg12[%c2_271, %c0_272, %c0_273] : memref<3x32x32xf32, #tpu.memory_space<vmem>>, vector<1x32x32xf32>
    %826 = vector.shape_cast %825 : vector<1x32x32xf32> to vector<32x32xf32>
    %cst_274 = arith.constant dense<0.000000e+00> : vector<8x32xf32>
    %827 = tpu.matmul %824, %826, %cst_274 {dimension_numbers = #tpu.dot_dimension_numbers<[1], [0], [0], [1], [0, 0, 1, 1], [], []>} : vector<8x32xf32>, vector<32x32xf32>, vector<8x32xf32> -> vector<8x32xf32>
    %828 = arith.addf %823, %827 : vector<8x32xf32>
    %829 = vector.broadcast %12 : vector<1x32xf32> to vector<8x32xf32>
    %830 = arith.addf %828, %829 : vector<8x32xf32>
    %831 = math.tanh %830 : vector<8x32xf32>
    %832 = vector.extract_strided_slice %27 {offsets = [5, 0, 0], sizes = [1, 8, 64], strides = [1, 1, 1]} : vector<8x8x64xf32> to vector<1x8x64xf32>
    %833 = vector.shape_cast %832 : vector<1x8x64xf32> to vector<8x64xf32>
    %834 = arith.addf %833, %29 : vector<8x64xf32>
    %cst_275 = arith.constant dense<0.000000e+00> : vector<8x64xf32>
    %835 = tpu.matmul %810, %11, %cst_275 {dimension_numbers = #tpu.dot_dimension_numbers<[1], [0], [0], [1], [0, 0, 1, 1], [], []>} : vector<8x32xf32>, vector<32x64xf32>, vector<8x64xf32> -> vector<8x64xf32>
    %836 = arith.addf %834, %835 : vector<8x64xf32>
    %cst_276 = arith.constant 0.000000e+00 : f32
    %837 = vector.broadcast %cst_276 : f32 to vector<8x32xf32>
    %838 = vector.extract_strided_slice %836 {offsets = [0, 0], sizes = [8, 32], strides = [1, 1]} : vector<8x64xf32> to vector<8x32xf32>
    %c0_277 = arith.constant 0 : index
    %c0_278 = arith.constant 0 : index
    %839 = vector.load %arg17[%c0_277, %c0_278] : memref<2x32xf32, #tpu.memory_space<vmem>>, vector<1x32xf32>
    %840 = vector.shape_cast %839 : vector<1x32xf32> to vector<32xf32>
    %841 = vector.shape_cast %840 : vector<32xf32> to vector<1x32xf32>
    %842 = vector.broadcast %841 : vector<1x32xf32> to vector<8x32xf32>
    %843 = arith.mulf %838, %842 : vector<8x32xf32>
    %cst_279 = arith.constant dense<0.000000e+00> : vector<8xf32>
    %844 = vector.multi_reduction <add>, %843, %cst_279 [1] : vector<8x32xf32> to vector<8xf32>
    %845 = vector.shape_cast %844 : vector<8xf32> to vector<8x1xf32>
    %c0_280 = arith.constant 0 : index
    %c0_281 = arith.constant 0 : index
    %846 = vector.load %arg18[%c0_280, %c0_281] : memref<2x32xf32, #tpu.memory_space<vmem>>, vector<1x32xf32>
    %847 = vector.shape_cast %846 : vector<1x32xf32> to vector<32xf32>
    %848 = vector.shape_cast %847 : vector<32xf32> to vector<1x32xf32>
    %849 = vector.broadcast %848 : vector<1x32xf32> to vector<8x32xf32>
    %850 = arith.mulf %838, %849 : vector<8x32xf32>
    %cst_282 = arith.constant dense<0.000000e+00> : vector<8xf32>
    %851 = vector.multi_reduction <add>, %850, %cst_282 [1] : vector<8x32xf32> to vector<8xf32>
    %852 = vector.shape_cast %851 : vector<8xf32> to vector<1x8xf32>
    %853 = vector.broadcast %845 : vector<8x1xf32> to vector<8x8xf32>
    %854 = vector.broadcast %852 : vector<1x8xf32> to vector<8x8xf32>
    %855 = arith.addf %853, %854 : vector<8x8xf32>
    %cst_283 = arith.constant 0.000000e+00 : f32
    %856 = vector.broadcast %cst_283 : f32 to vector<8x8xf32>
    %857 = arith.cmpf ogt, %855, %856 : vector<8x8xf32>
    %cst_284 = arith.constant 2.000000e-01 : f32
    %858 = vector.broadcast %cst_284 : f32 to vector<8x8xf32>
    %859 = arith.mulf %858, %855 : vector<8x8xf32>
    %860 = arith.select %857, %855, %859 : vector<8x8xi1>, vector<8x8xf32>
    %861 = arith.addf %860, %7 : vector<8x8xf32>
    %cst_285 = arith.constant dense<0xFF800000> : vector<8xf32>
    %862 = vector.multi_reduction <maximumf>, %861, %cst_285 [1] : vector<8x8xf32> to vector<8xf32>
    %863 = vector.shape_cast %862 : vector<8xf32> to vector<8x1xf32>
    %864 = vector.broadcast %863 : vector<8x1xf32> to vector<8x8xf32>
    %865 = arith.subf %861, %864 : vector<8x8xf32>
    %866 = math.exp %865 : vector<8x8xf32>
    %cst_286 = arith.constant dense<0.000000e+00> : vector<8xf32>
    %867 = vector.multi_reduction <add>, %866, %cst_286 [1] : vector<8x8xf32> to vector<8xf32>
    %868 = vector.shape_cast %867 : vector<8xf32> to vector<8x1xf32>
    %869 = tpu.reciprocal %868 {approx = true} : vector<8x1xf32> -> vector<8x1xf32>
    %870 = vector.broadcast %869 : vector<8x1xf32> to vector<8x8xf32>
    %871 = arith.mulf %866, %870 : vector<8x8xf32>
    %cst_287 = arith.constant dense<0.000000e+00> : vector<8x32xf32>
    %872 = tpu.matmul %871, %838, %cst_287 {dimension_numbers = #tpu.dot_dimension_numbers<[1], [0], [0], [1], [0, 0, 1, 1], [], []>} : vector<8x8xf32>, vector<8x32xf32>, vector<8x32xf32> -> vector<8x32xf32>
    %873 = arith.addf %837, %872 : vector<8x32xf32>
    %874 = vector.extract_strided_slice %836 {offsets = [0, 32], sizes = [8, 32], strides = [1, 1]} : vector<8x64xf32> to vector<8x32xf32>
    %c1_288 = arith.constant 1 : index
    %c0_289 = arith.constant 0 : index
    %875 = vector.load %arg17[%c1_288, %c0_289] : memref<2x32xf32, #tpu.memory_space<vmem>>, vector<1x32xf32>
    %876 = vector.shape_cast %875 : vector<1x32xf32> to vector<32xf32>
    %877 = vector.shape_cast %876 : vector<32xf32> to vector<1x32xf32>
    %878 = vector.broadcast %877 : vector<1x32xf32> to vector<8x32xf32>
    %879 = arith.mulf %874, %878 : vector<8x32xf32>
    %cst_290 = arith.constant dense<0.000000e+00> : vector<8xf32>
    %880 = vector.multi_reduction <add>, %879, %cst_290 [1] : vector<8x32xf32> to vector<8xf32>
    %881 = vector.shape_cast %880 : vector<8xf32> to vector<8x1xf32>
    %c1_291 = arith.constant 1 : index
    %c0_292 = arith.constant 0 : index
    %882 = vector.load %arg18[%c1_291, %c0_292] : memref<2x32xf32, #tpu.memory_space<vmem>>, vector<1x32xf32>
    %883 = vector.shape_cast %882 : vector<1x32xf32> to vector<32xf32>
    %884 = vector.shape_cast %883 : vector<32xf32> to vector<1x32xf32>
    %885 = vector.broadcast %884 : vector<1x32xf32> to vector<8x32xf32>
    %886 = arith.mulf %874, %885 : vector<8x32xf32>
    %cst_293 = arith.constant dense<0.000000e+00> : vector<8xf32>
    %887 = vector.multi_reduction <add>, %886, %cst_293 [1] : vector<8x32xf32> to vector<8xf32>
    %888 = vector.shape_cast %887 : vector<8xf32> to vector<1x8xf32>
    %889 = vector.broadcast %881 : vector<8x1xf32> to vector<8x8xf32>
    %890 = vector.broadcast %888 : vector<1x8xf32> to vector<8x8xf32>
    %891 = arith.addf %889, %890 : vector<8x8xf32>
    %cst_294 = arith.constant 0.000000e+00 : f32
    %892 = vector.broadcast %cst_294 : f32 to vector<8x8xf32>
    %893 = arith.cmpf ogt, %891, %892 : vector<8x8xf32>
    %cst_295 = arith.constant 2.000000e-01 : f32
    %894 = vector.broadcast %cst_295 : f32 to vector<8x8xf32>
    %895 = arith.mulf %894, %891 : vector<8x8xf32>
    %896 = arith.select %893, %891, %895 : vector<8x8xi1>, vector<8x8xf32>
    %897 = arith.addf %896, %7 : vector<8x8xf32>
    %cst_296 = arith.constant dense<0xFF800000> : vector<8xf32>
    %898 = vector.multi_reduction <maximumf>, %897, %cst_296 [1] : vector<8x8xf32> to vector<8xf32>
    %899 = vector.shape_cast %898 : vector<8xf32> to vector<8x1xf32>
    %900 = vector.broadcast %899 : vector<8x1xf32> to vector<8x8xf32>
    %901 = arith.subf %897, %900 : vector<8x8xf32>
    %902 = math.exp %901 : vector<8x8xf32>
    %cst_297 = arith.constant dense<0.000000e+00> : vector<8xf32>
    %903 = vector.multi_reduction <add>, %902, %cst_297 [1] : vector<8x8xf32> to vector<8xf32>
    %904 = vector.shape_cast %903 : vector<8xf32> to vector<8x1xf32>
    %905 = tpu.reciprocal %904 {approx = true} : vector<8x1xf32> -> vector<8x1xf32>
    %906 = vector.broadcast %905 : vector<8x1xf32> to vector<8x8xf32>
    %907 = arith.mulf %902, %906 : vector<8x8xf32>
    %cst_298 = arith.constant dense<0.000000e+00> : vector<8x32xf32>
    %908 = tpu.matmul %907, %874, %cst_298 {dimension_numbers = #tpu.dot_dimension_numbers<[1], [0], [0], [1], [0, 0, 1, 1], [], []>} : vector<8x8xf32>, vector<8x32xf32>, vector<8x32xf32> -> vector<8x32xf32>
    %909 = arith.addf %873, %908 : vector<8x32xf32>
    %cst_299 = arith.constant 5.000000e-01 : f32
    %910 = vector.broadcast %cst_299 : f32 to vector<8x32xf32>
    %911 = arith.mulf %909, %910 : vector<8x32xf32>
    %912 = math.tanh %911 : vector<8x32xf32>
    %913 = vector.broadcast %0 : f32 to vector<8x32xf32>
    %914 = arith.mulf %913, %810 : vector<8x32xf32>
    %915 = vector.broadcast %1 : f32 to vector<8x32xf32>
    %916 = arith.mulf %915, %831 : vector<8x32xf32>
    %917 = arith.addf %914, %916 : vector<8x32xf32>
    %918 = vector.broadcast %2 : f32 to vector<8x32xf32>
    %919 = arith.mulf %918, %912 : vector<8x32xf32>
    %920 = arith.addf %917, %919 : vector<8x32xf32>
    %921 = vector.extract_strided_slice %22 {offsets = [6, 0, 0], sizes = [1, 8, 96], strides = [1, 1, 1]} : vector<8x8x96xf32> to vector<1x8x96xf32>
    %922 = vector.shape_cast %921 : vector<1x8x96xf32> to vector<8x96xf32>
    %cst_300 = arith.constant dense<0.000000e+00> : vector<8x96xf32>
    %923 = tpu.matmul %920, %9, %cst_300 {dimension_numbers = #tpu.dot_dimension_numbers<[1], [0], [0], [1], [0, 0, 1, 1], [], []>} : vector<8x32xf32>, vector<32x96xf32>, vector<8x96xf32> -> vector<8x96xf32>
    %924 = vector.broadcast %10 : vector<1x96xf32> to vector<8x96xf32>
    %925 = arith.addf %923, %924 : vector<8x96xf32>
    %926 = vector.extract_strided_slice %922 {offsets = [0, 0], sizes = [8, 32], strides = [1, 1]} : vector<8x96xf32> to vector<8x32xf32>
    %927 = vector.extract_strided_slice %925 {offsets = [0, 0], sizes = [8, 32], strides = [1, 1]} : vector<8x96xf32> to vector<8x32xf32>
    %928 = arith.addf %926, %927 : vector<8x32xf32>
    %929 = arith.negf %928 : vector<8x32xf32>
    %930 = math.exp %929 : vector<8x32xf32>
    %cst_301 = arith.constant 1.000000e+00 : f32
    %931 = vector.broadcast %cst_301 : f32 to vector<8x32xf32>
    %932 = arith.addf %931, %930 : vector<8x32xf32>
    %933 = arith.divf %931, %932 : vector<8x32xf32>
    %934 = vector.extract_strided_slice %922 {offsets = [0, 32], sizes = [8, 32], strides = [1, 1]} : vector<8x96xf32> to vector<8x32xf32>
    %935 = vector.extract_strided_slice %925 {offsets = [0, 32], sizes = [8, 32], strides = [1, 1]} : vector<8x96xf32> to vector<8x32xf32>
    %936 = arith.addf %934, %935 : vector<8x32xf32>
    %937 = arith.negf %936 : vector<8x32xf32>
    %938 = math.exp %937 : vector<8x32xf32>
    %cst_302 = arith.constant 1.000000e+00 : f32
    %939 = vector.broadcast %cst_302 : f32 to vector<8x32xf32>
    %940 = arith.addf %939, %938 : vector<8x32xf32>
    %941 = arith.divf %939, %940 : vector<8x32xf32>
    %942 = vector.extract_strided_slice %922 {offsets = [0, 64], sizes = [8, 32], strides = [1, 1]} : vector<8x96xf32> to vector<8x32xf32>
    %943 = vector.extract_strided_slice %925 {offsets = [0, 64], sizes = [8, 32], strides = [1, 1]} : vector<8x96xf32> to vector<8x32xf32>
    %944 = arith.mulf %933, %943 : vector<8x32xf32>
    %945 = arith.addf %942, %944 : vector<8x32xf32>
    %946 = math.tanh %945 : vector<8x32xf32>
    %cst_303 = arith.constant 1.000000e+00 : f32
    %947 = vector.broadcast %cst_303 : f32 to vector<8x32xf32>
    %948 = arith.subf %947, %941 : vector<8x32xf32>
    %949 = arith.mulf %948, %946 : vector<8x32xf32>
    %950 = arith.mulf %941, %920 : vector<8x32xf32>
    %951 = arith.addf %949, %950 : vector<8x32xf32>
    %cst_304 = arith.constant dense<0.000000e+00> : vector<24x32xf32>
    %952 = tpu.matmul %8, %951, %cst_304 {dimension_numbers = #tpu.dot_dimension_numbers<[1], [0], [0], [1], [0, 0, 1, 1], [], []>} : vector<24x8xf32>, vector<8x32xf32>, vector<24x32xf32> -> vector<24x32xf32>
    %953 = vector.extract_strided_slice %63 {offsets = [6, 0, 0], sizes = [1, 8, 32], strides = [1, 1, 1]} : vector<8x8x32xf32> to vector<1x8x32xf32>
    %954 = vector.shape_cast %953 : vector<1x8x32xf32> to vector<8x32xf32>
    %955 = vector.extract_strided_slice %952 {offsets = [0, 0], sizes = [8, 32], strides = [1, 1]} : vector<24x32xf32> to vector<8x32xf32>
    %c0_305 = arith.constant 0 : index
    %c0_306 = arith.constant 0 : index
    %c0_307 = arith.constant 0 : index
    %956 = vector.load %arg12[%c0_305, %c0_306, %c0_307] : memref<3x32x32xf32, #tpu.memory_space<vmem>>, vector<1x32x32xf32>
    %957 = vector.shape_cast %956 : vector<1x32x32xf32> to vector<32x32xf32>
    %cst_308 = arith.constant dense<0.000000e+00> : vector<8x32xf32>
    %958 = tpu.matmul %955, %957, %cst_308 {dimension_numbers = #tpu.dot_dimension_numbers<[1], [0], [0], [1], [0, 0, 1, 1], [], []>} : vector<8x32xf32>, vector<32x32xf32>, vector<8x32xf32> -> vector<8x32xf32>
    %959 = arith.addf %954, %958 : vector<8x32xf32>
    %960 = vector.extract_strided_slice %952 {offsets = [8, 0], sizes = [8, 32], strides = [1, 1]} : vector<24x32xf32> to vector<8x32xf32>
    %c1_309 = arith.constant 1 : index
    %c0_310 = arith.constant 0 : index
    %c0_311 = arith.constant 0 : index
    %961 = vector.load %arg12[%c1_309, %c0_310, %c0_311] : memref<3x32x32xf32, #tpu.memory_space<vmem>>, vector<1x32x32xf32>
    %962 = vector.shape_cast %961 : vector<1x32x32xf32> to vector<32x32xf32>
    %cst_312 = arith.constant dense<0.000000e+00> : vector<8x32xf32>
    %963 = tpu.matmul %960, %962, %cst_312 {dimension_numbers = #tpu.dot_dimension_numbers<[1], [0], [0], [1], [0, 0, 1, 1], [], []>} : vector<8x32xf32>, vector<32x32xf32>, vector<8x32xf32> -> vector<8x32xf32>
    %964 = arith.addf %959, %963 : vector<8x32xf32>
    %965 = vector.extract_strided_slice %952 {offsets = [16, 0], sizes = [8, 32], strides = [1, 1]} : vector<24x32xf32> to vector<8x32xf32>
    %c2_313 = arith.constant 2 : index
    %c0_314 = arith.constant 0 : index
    %c0_315 = arith.constant 0 : index
    %966 = vector.load %arg12[%c2_313, %c0_314, %c0_315] : memref<3x32x32xf32, #tpu.memory_space<vmem>>, vector<1x32x32xf32>
    %967 = vector.shape_cast %966 : vector<1x32x32xf32> to vector<32x32xf32>
    %cst_316 = arith.constant dense<0.000000e+00> : vector<8x32xf32>
    %968 = tpu.matmul %965, %967, %cst_316 {dimension_numbers = #tpu.dot_dimension_numbers<[1], [0], [0], [1], [0, 0, 1, 1], [], []>} : vector<8x32xf32>, vector<32x32xf32>, vector<8x32xf32> -> vector<8x32xf32>
    %969 = arith.addf %964, %968 : vector<8x32xf32>
    %970 = vector.broadcast %12 : vector<1x32xf32> to vector<8x32xf32>
    %971 = arith.addf %969, %970 : vector<8x32xf32>
    %972 = math.tanh %971 : vector<8x32xf32>
    %973 = vector.extract_strided_slice %27 {offsets = [6, 0, 0], sizes = [1, 8, 64], strides = [1, 1, 1]} : vector<8x8x64xf32> to vector<1x8x64xf32>
    %974 = vector.shape_cast %973 : vector<1x8x64xf32> to vector<8x64xf32>
    %975 = arith.addf %974, %29 : vector<8x64xf32>
    %cst_317 = arith.constant dense<0.000000e+00> : vector<8x64xf32>
    %976 = tpu.matmul %951, %11, %cst_317 {dimension_numbers = #tpu.dot_dimension_numbers<[1], [0], [0], [1], [0, 0, 1, 1], [], []>} : vector<8x32xf32>, vector<32x64xf32>, vector<8x64xf32> -> vector<8x64xf32>
    %977 = arith.addf %975, %976 : vector<8x64xf32>
    %cst_318 = arith.constant 0.000000e+00 : f32
    %978 = vector.broadcast %cst_318 : f32 to vector<8x32xf32>
    %979 = vector.extract_strided_slice %977 {offsets = [0, 0], sizes = [8, 32], strides = [1, 1]} : vector<8x64xf32> to vector<8x32xf32>
    %c0_319 = arith.constant 0 : index
    %c0_320 = arith.constant 0 : index
    %980 = vector.load %arg17[%c0_319, %c0_320] : memref<2x32xf32, #tpu.memory_space<vmem>>, vector<1x32xf32>
    %981 = vector.shape_cast %980 : vector<1x32xf32> to vector<32xf32>
    %982 = vector.shape_cast %981 : vector<32xf32> to vector<1x32xf32>
    %983 = vector.broadcast %982 : vector<1x32xf32> to vector<8x32xf32>
    %984 = arith.mulf %979, %983 : vector<8x32xf32>
    %cst_321 = arith.constant dense<0.000000e+00> : vector<8xf32>
    %985 = vector.multi_reduction <add>, %984, %cst_321 [1] : vector<8x32xf32> to vector<8xf32>
    %986 = vector.shape_cast %985 : vector<8xf32> to vector<8x1xf32>
    %c0_322 = arith.constant 0 : index
    %c0_323 = arith.constant 0 : index
    %987 = vector.load %arg18[%c0_322, %c0_323] : memref<2x32xf32, #tpu.memory_space<vmem>>, vector<1x32xf32>
    %988 = vector.shape_cast %987 : vector<1x32xf32> to vector<32xf32>
    %989 = vector.shape_cast %988 : vector<32xf32> to vector<1x32xf32>
    %990 = vector.broadcast %989 : vector<1x32xf32> to vector<8x32xf32>
    %991 = arith.mulf %979, %990 : vector<8x32xf32>
    %cst_324 = arith.constant dense<0.000000e+00> : vector<8xf32>
    %992 = vector.multi_reduction <add>, %991, %cst_324 [1] : vector<8x32xf32> to vector<8xf32>
    %993 = vector.shape_cast %992 : vector<8xf32> to vector<1x8xf32>
    %994 = vector.broadcast %986 : vector<8x1xf32> to vector<8x8xf32>
    %995 = vector.broadcast %993 : vector<1x8xf32> to vector<8x8xf32>
    %996 = arith.addf %994, %995 : vector<8x8xf32>
    %cst_325 = arith.constant 0.000000e+00 : f32
    %997 = vector.broadcast %cst_325 : f32 to vector<8x8xf32>
    %998 = arith.cmpf ogt, %996, %997 : vector<8x8xf32>
    %cst_326 = arith.constant 2.000000e-01 : f32
    %999 = vector.broadcast %cst_326 : f32 to vector<8x8xf32>
    %1000 = arith.mulf %999, %996 : vector<8x8xf32>
    %1001 = arith.select %998, %996, %1000 : vector<8x8xi1>, vector<8x8xf32>
    %1002 = arith.addf %1001, %7 : vector<8x8xf32>
    %cst_327 = arith.constant dense<0xFF800000> : vector<8xf32>
    %1003 = vector.multi_reduction <maximumf>, %1002, %cst_327 [1] : vector<8x8xf32> to vector<8xf32>
    %1004 = vector.shape_cast %1003 : vector<8xf32> to vector<8x1xf32>
    %1005 = vector.broadcast %1004 : vector<8x1xf32> to vector<8x8xf32>
    %1006 = arith.subf %1002, %1005 : vector<8x8xf32>
    %1007 = math.exp %1006 : vector<8x8xf32>
    %cst_328 = arith.constant dense<0.000000e+00> : vector<8xf32>
    %1008 = vector.multi_reduction <add>, %1007, %cst_328 [1] : vector<8x8xf32> to vector<8xf32>
    %1009 = vector.shape_cast %1008 : vector<8xf32> to vector<8x1xf32>
    %1010 = tpu.reciprocal %1009 {approx = true} : vector<8x1xf32> -> vector<8x1xf32>
    %1011 = vector.broadcast %1010 : vector<8x1xf32> to vector<8x8xf32>
    %1012 = arith.mulf %1007, %1011 : vector<8x8xf32>
    %cst_329 = arith.constant dense<0.000000e+00> : vector<8x32xf32>
    %1013 = tpu.matmul %1012, %979, %cst_329 {dimension_numbers = #tpu.dot_dimension_numbers<[1], [0], [0], [1], [0, 0, 1, 1], [], []>} : vector<8x8xf32>, vector<8x32xf32>, vector<8x32xf32> -> vector<8x32xf32>
    %1014 = arith.addf %978, %1013 : vector<8x32xf32>
    %1015 = vector.extract_strided_slice %977 {offsets = [0, 32], sizes = [8, 32], strides = [1, 1]} : vector<8x64xf32> to vector<8x32xf32>
    %c1_330 = arith.constant 1 : index
    %c0_331 = arith.constant 0 : index
    %1016 = vector.load %arg17[%c1_330, %c0_331] : memref<2x32xf32, #tpu.memory_space<vmem>>, vector<1x32xf32>
    %1017 = vector.shape_cast %1016 : vector<1x32xf32> to vector<32xf32>
    %1018 = vector.shape_cast %1017 : vector<32xf32> to vector<1x32xf32>
    %1019 = vector.broadcast %1018 : vector<1x32xf32> to vector<8x32xf32>
    %1020 = arith.mulf %1015, %1019 : vector<8x32xf32>
    %cst_332 = arith.constant dense<0.000000e+00> : vector<8xf32>
    %1021 = vector.multi_reduction <add>, %1020, %cst_332 [1] : vector<8x32xf32> to vector<8xf32>
    %1022 = vector.shape_cast %1021 : vector<8xf32> to vector<8x1xf32>
    %c1_333 = arith.constant 1 : index
    %c0_334 = arith.constant 0 : index
    %1023 = vector.load %arg18[%c1_333, %c0_334] : memref<2x32xf32, #tpu.memory_space<vmem>>, vector<1x32xf32>
    %1024 = vector.shape_cast %1023 : vector<1x32xf32> to vector<32xf32>
    %1025 = vector.shape_cast %1024 : vector<32xf32> to vector<1x32xf32>
    %1026 = vector.broadcast %1025 : vector<1x32xf32> to vector<8x32xf32>
    %1027 = arith.mulf %1015, %1026 : vector<8x32xf32>
    %cst_335 = arith.constant dense<0.000000e+00> : vector<8xf32>
    %1028 = vector.multi_reduction <add>, %1027, %cst_335 [1] : vector<8x32xf32> to vector<8xf32>
    %1029 = vector.shape_cast %1028 : vector<8xf32> to vector<1x8xf32>
    %1030 = vector.broadcast %1022 : vector<8x1xf32> to vector<8x8xf32>
    %1031 = vector.broadcast %1029 : vector<1x8xf32> to vector<8x8xf32>
    %1032 = arith.addf %1030, %1031 : vector<8x8xf32>
    %cst_336 = arith.constant 0.000000e+00 : f32
    %1033 = vector.broadcast %cst_336 : f32 to vector<8x8xf32>
    %1034 = arith.cmpf ogt, %1032, %1033 : vector<8x8xf32>
    %cst_337 = arith.constant 2.000000e-01 : f32
    %1035 = vector.broadcast %cst_337 : f32 to vector<8x8xf32>
    %1036 = arith.mulf %1035, %1032 : vector<8x8xf32>
    %1037 = arith.select %1034, %1032, %1036 : vector<8x8xi1>, vector<8x8xf32>
    %1038 = arith.addf %1037, %7 : vector<8x8xf32>
    %cst_338 = arith.constant dense<0xFF800000> : vector<8xf32>
    %1039 = vector.multi_reduction <maximumf>, %1038, %cst_338 [1] : vector<8x8xf32> to vector<8xf32>
    %1040 = vector.shape_cast %1039 : vector<8xf32> to vector<8x1xf32>
    %1041 = vector.broadcast %1040 : vector<8x1xf32> to vector<8x8xf32>
    %1042 = arith.subf %1038, %1041 : vector<8x8xf32>
    %1043 = math.exp %1042 : vector<8x8xf32>
    %cst_339 = arith.constant dense<0.000000e+00> : vector<8xf32>
    %1044 = vector.multi_reduction <add>, %1043, %cst_339 [1] : vector<8x8xf32> to vector<8xf32>
    %1045 = vector.shape_cast %1044 : vector<8xf32> to vector<8x1xf32>
    %1046 = tpu.reciprocal %1045 {approx = true} : vector<8x1xf32> -> vector<8x1xf32>
    %1047 = vector.broadcast %1046 : vector<8x1xf32> to vector<8x8xf32>
    %1048 = arith.mulf %1043, %1047 : vector<8x8xf32>
    %cst_340 = arith.constant dense<0.000000e+00> : vector<8x32xf32>
    %1049 = tpu.matmul %1048, %1015, %cst_340 {dimension_numbers = #tpu.dot_dimension_numbers<[1], [0], [0], [1], [0, 0, 1, 1], [], []>} : vector<8x8xf32>, vector<8x32xf32>, vector<8x32xf32> -> vector<8x32xf32>
    %1050 = arith.addf %1014, %1049 : vector<8x32xf32>
    %cst_341 = arith.constant 5.000000e-01 : f32
    %1051 = vector.broadcast %cst_341 : f32 to vector<8x32xf32>
    %1052 = arith.mulf %1050, %1051 : vector<8x32xf32>
    %1053 = math.tanh %1052 : vector<8x32xf32>
    %1054 = vector.broadcast %0 : f32 to vector<8x32xf32>
    %1055 = arith.mulf %1054, %951 : vector<8x32xf32>
    %1056 = vector.broadcast %1 : f32 to vector<8x32xf32>
    %1057 = arith.mulf %1056, %972 : vector<8x32xf32>
    %1058 = arith.addf %1055, %1057 : vector<8x32xf32>
    %1059 = vector.broadcast %2 : f32 to vector<8x32xf32>
    %1060 = arith.mulf %1059, %1053 : vector<8x32xf32>
    %1061 = arith.addf %1058, %1060 : vector<8x32xf32>
    %1062 = vector.extract_strided_slice %22 {offsets = [7, 0, 0], sizes = [1, 8, 96], strides = [1, 1, 1]} : vector<8x8x96xf32> to vector<1x8x96xf32>
    %1063 = vector.shape_cast %1062 : vector<1x8x96xf32> to vector<8x96xf32>
    %cst_342 = arith.constant dense<0.000000e+00> : vector<8x96xf32>
    %1064 = tpu.matmul %1061, %9, %cst_342 {dimension_numbers = #tpu.dot_dimension_numbers<[1], [0], [0], [1], [0, 0, 1, 1], [], []>} : vector<8x32xf32>, vector<32x96xf32>, vector<8x96xf32> -> vector<8x96xf32>
    %1065 = vector.broadcast %10 : vector<1x96xf32> to vector<8x96xf32>
    %1066 = arith.addf %1064, %1065 : vector<8x96xf32>
    %1067 = vector.extract_strided_slice %1063 {offsets = [0, 0], sizes = [8, 32], strides = [1, 1]} : vector<8x96xf32> to vector<8x32xf32>
    %1068 = vector.extract_strided_slice %1066 {offsets = [0, 0], sizes = [8, 32], strides = [1, 1]} : vector<8x96xf32> to vector<8x32xf32>
    %1069 = arith.addf %1067, %1068 : vector<8x32xf32>
    %1070 = arith.negf %1069 : vector<8x32xf32>
    %1071 = math.exp %1070 : vector<8x32xf32>
    %cst_343 = arith.constant 1.000000e+00 : f32
    %1072 = vector.broadcast %cst_343 : f32 to vector<8x32xf32>
    %1073 = arith.addf %1072, %1071 : vector<8x32xf32>
    %1074 = arith.divf %1072, %1073 : vector<8x32xf32>
    %1075 = vector.extract_strided_slice %1063 {offsets = [0, 32], sizes = [8, 32], strides = [1, 1]} : vector<8x96xf32> to vector<8x32xf32>
    %1076 = vector.extract_strided_slice %1066 {offsets = [0, 32], sizes = [8, 32], strides = [1, 1]} : vector<8x96xf32> to vector<8x32xf32>
    %1077 = arith.addf %1075, %1076 : vector<8x32xf32>
    %1078 = arith.negf %1077 : vector<8x32xf32>
    %1079 = math.exp %1078 : vector<8x32xf32>
    %cst_344 = arith.constant 1.000000e+00 : f32
    %1080 = vector.broadcast %cst_344 : f32 to vector<8x32xf32>
    %1081 = arith.addf %1080, %1079 : vector<8x32xf32>
    %1082 = arith.divf %1080, %1081 : vector<8x32xf32>
    %1083 = vector.extract_strided_slice %1063 {offsets = [0, 64], sizes = [8, 32], strides = [1, 1]} : vector<8x96xf32> to vector<8x32xf32>
    %1084 = vector.extract_strided_slice %1066 {offsets = [0, 64], sizes = [8, 32], strides = [1, 1]} : vector<8x96xf32> to vector<8x32xf32>
    %1085 = arith.mulf %1074, %1084 : vector<8x32xf32>
    %1086 = arith.addf %1083, %1085 : vector<8x32xf32>
    %1087 = math.tanh %1086 : vector<8x32xf32>
    %cst_345 = arith.constant 1.000000e+00 : f32
    %1088 = vector.broadcast %cst_345 : f32 to vector<8x32xf32>
    %1089 = arith.subf %1088, %1082 : vector<8x32xf32>
    %1090 = arith.mulf %1089, %1087 : vector<8x32xf32>
    %1091 = arith.mulf %1082, %1061 : vector<8x32xf32>
    %1092 = arith.addf %1090, %1091 : vector<8x32xf32>
    %cst_346 = arith.constant dense<0.000000e+00> : vector<24x32xf32>
    %1093 = tpu.matmul %8, %1092, %cst_346 {dimension_numbers = #tpu.dot_dimension_numbers<[1], [0], [0], [1], [0, 0, 1, 1], [], []>} : vector<24x8xf32>, vector<8x32xf32>, vector<24x32xf32> -> vector<24x32xf32>
    %1094 = vector.extract_strided_slice %63 {offsets = [7, 0, 0], sizes = [1, 8, 32], strides = [1, 1, 1]} : vector<8x8x32xf32> to vector<1x8x32xf32>
    %1095 = vector.shape_cast %1094 : vector<1x8x32xf32> to vector<8x32xf32>
    %1096 = vector.extract_strided_slice %1093 {offsets = [0, 0], sizes = [8, 32], strides = [1, 1]} : vector<24x32xf32> to vector<8x32xf32>
    %c0_347 = arith.constant 0 : index
    %c0_348 = arith.constant 0 : index
    %c0_349 = arith.constant 0 : index
    %1097 = vector.load %arg12[%c0_347, %c0_348, %c0_349] : memref<3x32x32xf32, #tpu.memory_space<vmem>>, vector<1x32x32xf32>
    %1098 = vector.shape_cast %1097 : vector<1x32x32xf32> to vector<32x32xf32>
    %cst_350 = arith.constant dense<0.000000e+00> : vector<8x32xf32>
    %1099 = tpu.matmul %1096, %1098, %cst_350 {dimension_numbers = #tpu.dot_dimension_numbers<[1], [0], [0], [1], [0, 0, 1, 1], [], []>} : vector<8x32xf32>, vector<32x32xf32>, vector<8x32xf32> -> vector<8x32xf32>
    %1100 = arith.addf %1095, %1099 : vector<8x32xf32>
    %1101 = vector.extract_strided_slice %1093 {offsets = [8, 0], sizes = [8, 32], strides = [1, 1]} : vector<24x32xf32> to vector<8x32xf32>
    %c1_351 = arith.constant 1 : index
    %c0_352 = arith.constant 0 : index
    %c0_353 = arith.constant 0 : index
    %1102 = vector.load %arg12[%c1_351, %c0_352, %c0_353] : memref<3x32x32xf32, #tpu.memory_space<vmem>>, vector<1x32x32xf32>
    %1103 = vector.shape_cast %1102 : vector<1x32x32xf32> to vector<32x32xf32>
    %cst_354 = arith.constant dense<0.000000e+00> : vector<8x32xf32>
    %1104 = tpu.matmul %1101, %1103, %cst_354 {dimension_numbers = #tpu.dot_dimension_numbers<[1], [0], [0], [1], [0, 0, 1, 1], [], []>} : vector<8x32xf32>, vector<32x32xf32>, vector<8x32xf32> -> vector<8x32xf32>
    %1105 = arith.addf %1100, %1104 : vector<8x32xf32>
    %1106 = vector.extract_strided_slice %1093 {offsets = [16, 0], sizes = [8, 32], strides = [1, 1]} : vector<24x32xf32> to vector<8x32xf32>
    %c2_355 = arith.constant 2 : index
    %c0_356 = arith.constant 0 : index
    %c0_357 = arith.constant 0 : index
    %1107 = vector.load %arg12[%c2_355, %c0_356, %c0_357] : memref<3x32x32xf32, #tpu.memory_space<vmem>>, vector<1x32x32xf32>
    %1108 = vector.shape_cast %1107 : vector<1x32x32xf32> to vector<32x32xf32>
    %cst_358 = arith.constant dense<0.000000e+00> : vector<8x32xf32>
    %1109 = tpu.matmul %1106, %1108, %cst_358 {dimension_numbers = #tpu.dot_dimension_numbers<[1], [0], [0], [1], [0, 0, 1, 1], [], []>} : vector<8x32xf32>, vector<32x32xf32>, vector<8x32xf32> -> vector<8x32xf32>
    %1110 = arith.addf %1105, %1109 : vector<8x32xf32>
    %1111 = vector.broadcast %12 : vector<1x32xf32> to vector<8x32xf32>
    %1112 = arith.addf %1110, %1111 : vector<8x32xf32>
    %1113 = math.tanh %1112 : vector<8x32xf32>
    %1114 = vector.extract_strided_slice %27 {offsets = [7, 0, 0], sizes = [1, 8, 64], strides = [1, 1, 1]} : vector<8x8x64xf32> to vector<1x8x64xf32>
    %1115 = vector.shape_cast %1114 : vector<1x8x64xf32> to vector<8x64xf32>
    %1116 = arith.addf %1115, %29 : vector<8x64xf32>
    %cst_359 = arith.constant dense<0.000000e+00> : vector<8x64xf32>
    %1117 = tpu.matmul %1092, %11, %cst_359 {dimension_numbers = #tpu.dot_dimension_numbers<[1], [0], [0], [1], [0, 0, 1, 1], [], []>} : vector<8x32xf32>, vector<32x64xf32>, vector<8x64xf32> -> vector<8x64xf32>
    %1118 = arith.addf %1116, %1117 : vector<8x64xf32>
    %cst_360 = arith.constant 0.000000e+00 : f32
    %1119 = vector.broadcast %cst_360 : f32 to vector<8x32xf32>
    %1120 = vector.extract_strided_slice %1118 {offsets = [0, 0], sizes = [8, 32], strides = [1, 1]} : vector<8x64xf32> to vector<8x32xf32>
    %c0_361 = arith.constant 0 : index
    %c0_362 = arith.constant 0 : index
    %1121 = vector.load %arg17[%c0_361, %c0_362] : memref<2x32xf32, #tpu.memory_space<vmem>>, vector<1x32xf32>
    %1122 = vector.shape_cast %1121 : vector<1x32xf32> to vector<32xf32>
    %1123 = vector.shape_cast %1122 : vector<32xf32> to vector<1x32xf32>
    %1124 = vector.broadcast %1123 : vector<1x32xf32> to vector<8x32xf32>
    %1125 = arith.mulf %1120, %1124 : vector<8x32xf32>
    %cst_363 = arith.constant dense<0.000000e+00> : vector<8xf32>
    %1126 = vector.multi_reduction <add>, %1125, %cst_363 [1] : vector<8x32xf32> to vector<8xf32>
    %1127 = vector.shape_cast %1126 : vector<8xf32> to vector<8x1xf32>
    %c0_364 = arith.constant 0 : index
    %c0_365 = arith.constant 0 : index
    %1128 = vector.load %arg18[%c0_364, %c0_365] : memref<2x32xf32, #tpu.memory_space<vmem>>, vector<1x32xf32>
    %1129 = vector.shape_cast %1128 : vector<1x32xf32> to vector<32xf32>
    %1130 = vector.shape_cast %1129 : vector<32xf32> to vector<1x32xf32>
    %1131 = vector.broadcast %1130 : vector<1x32xf32> to vector<8x32xf32>
    %1132 = arith.mulf %1120, %1131 : vector<8x32xf32>
    %cst_366 = arith.constant dense<0.000000e+00> : vector<8xf32>
    %1133 = vector.multi_reduction <add>, %1132, %cst_366 [1] : vector<8x32xf32> to vector<8xf32>
    %1134 = vector.shape_cast %1133 : vector<8xf32> to vector<1x8xf32>
    %1135 = vector.broadcast %1127 : vector<8x1xf32> to vector<8x8xf32>
    %1136 = vector.broadcast %1134 : vector<1x8xf32> to vector<8x8xf32>
    %1137 = arith.addf %1135, %1136 : vector<8x8xf32>
    %cst_367 = arith.constant 0.000000e+00 : f32
    %1138 = vector.broadcast %cst_367 : f32 to vector<8x8xf32>
    %1139 = arith.cmpf ogt, %1137, %1138 : vector<8x8xf32>
    %cst_368 = arith.constant 2.000000e-01 : f32
    %1140 = vector.broadcast %cst_368 : f32 to vector<8x8xf32>
    %1141 = arith.mulf %1140, %1137 : vector<8x8xf32>
    %1142 = arith.select %1139, %1137, %1141 : vector<8x8xi1>, vector<8x8xf32>
    %1143 = arith.addf %1142, %7 : vector<8x8xf32>
    %cst_369 = arith.constant dense<0xFF800000> : vector<8xf32>
    %1144 = vector.multi_reduction <maximumf>, %1143, %cst_369 [1] : vector<8x8xf32> to vector<8xf32>
    %1145 = vector.shape_cast %1144 : vector<8xf32> to vector<8x1xf32>
    %1146 = vector.broadcast %1145 : vector<8x1xf32> to vector<8x8xf32>
    %1147 = arith.subf %1143, %1146 : vector<8x8xf32>
    %1148 = math.exp %1147 : vector<8x8xf32>
    %cst_370 = arith.constant dense<0.000000e+00> : vector<8xf32>
    %1149 = vector.multi_reduction <add>, %1148, %cst_370 [1] : vector<8x8xf32> to vector<8xf32>
    %1150 = vector.shape_cast %1149 : vector<8xf32> to vector<8x1xf32>
    %1151 = tpu.reciprocal %1150 {approx = true} : vector<8x1xf32> -> vector<8x1xf32>
    %1152 = vector.broadcast %1151 : vector<8x1xf32> to vector<8x8xf32>
    %1153 = arith.mulf %1148, %1152 : vector<8x8xf32>
    %cst_371 = arith.constant dense<0.000000e+00> : vector<8x32xf32>
    %1154 = tpu.matmul %1153, %1120, %cst_371 {dimension_numbers = #tpu.dot_dimension_numbers<[1], [0], [0], [1], [0, 0, 1, 1], [], []>} : vector<8x8xf32>, vector<8x32xf32>, vector<8x32xf32> -> vector<8x32xf32>
    %1155 = arith.addf %1119, %1154 : vector<8x32xf32>
    %1156 = vector.extract_strided_slice %1118 {offsets = [0, 32], sizes = [8, 32], strides = [1, 1]} : vector<8x64xf32> to vector<8x32xf32>
    %c1_372 = arith.constant 1 : index
    %c0_373 = arith.constant 0 : index
    %1157 = vector.load %arg17[%c1_372, %c0_373] : memref<2x32xf32, #tpu.memory_space<vmem>>, vector<1x32xf32>
    %1158 = vector.shape_cast %1157 : vector<1x32xf32> to vector<32xf32>
    %1159 = vector.shape_cast %1158 : vector<32xf32> to vector<1x32xf32>
    %1160 = vector.broadcast %1159 : vector<1x32xf32> to vector<8x32xf32>
    %1161 = arith.mulf %1156, %1160 : vector<8x32xf32>
    %cst_374 = arith.constant dense<0.000000e+00> : vector<8xf32>
    %1162 = vector.multi_reduction <add>, %1161, %cst_374 [1] : vector<8x32xf32> to vector<8xf32>
    %1163 = vector.shape_cast %1162 : vector<8xf32> to vector<8x1xf32>
    %c1_375 = arith.constant 1 : index
    %c0_376 = arith.constant 0 : index
    %1164 = vector.load %arg18[%c1_375, %c0_376] : memref<2x32xf32, #tpu.memory_space<vmem>>, vector<1x32xf32>
    %1165 = vector.shape_cast %1164 : vector<1x32xf32> to vector<32xf32>
    %1166 = vector.shape_cast %1165 : vector<32xf32> to vector<1x32xf32>
    %1167 = vector.broadcast %1166 : vector<1x32xf32> to vector<8x32xf32>
    %1168 = arith.mulf %1156, %1167 : vector<8x32xf32>
    %cst_377 = arith.constant dense<0.000000e+00> : vector<8xf32>
    %1169 = vector.multi_reduction <add>, %1168, %cst_377 [1] : vector<8x32xf32> to vector<8xf32>
    %1170 = vector.shape_cast %1169 : vector<8xf32> to vector<1x8xf32>
    %1171 = vector.broadcast %1163 : vector<8x1xf32> to vector<8x8xf32>
    %1172 = vector.broadcast %1170 : vector<1x8xf32> to vector<8x8xf32>
    %1173 = arith.addf %1171, %1172 : vector<8x8xf32>
    %cst_378 = arith.constant 0.000000e+00 : f32
    %1174 = vector.broadcast %cst_378 : f32 to vector<8x8xf32>
    %1175 = arith.cmpf ogt, %1173, %1174 : vector<8x8xf32>
    %cst_379 = arith.constant 2.000000e-01 : f32
    %1176 = vector.broadcast %cst_379 : f32 to vector<8x8xf32>
    %1177 = arith.mulf %1176, %1173 : vector<8x8xf32>
    %1178 = arith.select %1175, %1173, %1177 : vector<8x8xi1>, vector<8x8xf32>
    %1179 = arith.addf %1178, %7 : vector<8x8xf32>
    %cst_380 = arith.constant dense<0xFF800000> : vector<8xf32>
    %1180 = vector.multi_reduction <maximumf>, %1179, %cst_380 [1] : vector<8x8xf32> to vector<8xf32>
    %1181 = vector.shape_cast %1180 : vector<8xf32> to vector<8x1xf32>
    %1182 = vector.broadcast %1181 : vector<8x1xf32> to vector<8x8xf32>
    %1183 = arith.subf %1179, %1182 : vector<8x8xf32>
    %1184 = math.exp %1183 : vector<8x8xf32>
    %cst_381 = arith.constant dense<0.000000e+00> : vector<8xf32>
    %1185 = vector.multi_reduction <add>, %1184, %cst_381 [1] : vector<8x8xf32> to vector<8xf32>
    %1186 = vector.shape_cast %1185 : vector<8xf32> to vector<8x1xf32>
    %1187 = tpu.reciprocal %1186 {approx = true} : vector<8x1xf32> -> vector<8x1xf32>
    %1188 = vector.broadcast %1187 : vector<8x1xf32> to vector<8x8xf32>
    %1189 = arith.mulf %1184, %1188 : vector<8x8xf32>
    %cst_382 = arith.constant dense<0.000000e+00> : vector<8x32xf32>
    %1190 = tpu.matmul %1189, %1156, %cst_382 {dimension_numbers = #tpu.dot_dimension_numbers<[1], [0], [0], [1], [0, 0, 1, 1], [], []>} : vector<8x8xf32>, vector<8x32xf32>, vector<8x32xf32> -> vector<8x32xf32>
    %1191 = arith.addf %1155, %1190 : vector<8x32xf32>
    %cst_383 = arith.constant 5.000000e-01 : f32
    %1192 = vector.broadcast %cst_383 : f32 to vector<8x32xf32>
    %1193 = arith.mulf %1191, %1192 : vector<8x32xf32>
    %1194 = math.tanh %1193 : vector<8x32xf32>
    %c0_384 = arith.constant 0 : index
    %c0_385 = arith.constant 0 : index
    %c0_386 = arith.constant 0 : index
    %1195 = vector.load %arg19[%c0_384, %c0_385, %c0_386] : memref<1x8x32xf32, #tpu.memory_space<vmem>>, vector<1x8x32xf32>
    %1196 = vector.shape_cast %1195 : vector<1x8x32xf32> to vector<8x32xf32>
    %1197 = vector.shape_cast %1092 : vector<8x32xf32> to vector<1x8x32xf32>
    tpu.vector_store %arg19[%c0_384, %c0_385, %c0_386], %1197 {strides = array<i32>} : memref<1x8x32xf32, #tpu.memory_space<vmem>>, vector<1x8x32xf32>,
    %c0_387 = arith.constant 0 : index
    %c0_388 = arith.constant 0 : index
    %c0_389 = arith.constant 0 : index
    %1198 = vector.load %arg20[%c0_387, %c0_388, %c0_389] : memref<1x8x32xf32, #tpu.memory_space<vmem>>, vector<1x8x32xf32>
    %1199 = vector.shape_cast %1198 : vector<1x8x32xf32> to vector<8x32xf32>
    %1200 = vector.shape_cast %1113 : vector<8x32xf32> to vector<1x8x32xf32>
    tpu.vector_store %arg20[%c0_387, %c0_388, %c0_389], %1200 {strides = array<i32>} : memref<1x8x32xf32, #tpu.memory_space<vmem>>, vector<1x8x32xf32>,
    %c0_390 = arith.constant 0 : index
    %c0_391 = arith.constant 0 : index
    %c0_392 = arith.constant 0 : index
    %1201 = vector.load %arg21[%c0_390, %c0_391, %c0_392] : memref<1x8x32xf32, #tpu.memory_space<vmem>>, vector<1x8x32xf32>
    %1202 = vector.shape_cast %1201 : vector<1x8x32xf32> to vector<8x32xf32>
    %1203 = vector.shape_cast %1194 : vector<8x32xf32> to vector<1x8x32xf32>
    tpu.vector_store %arg21[%c0_390, %c0_391, %c0_392], %1203 {strides = array<i32>} : memref<1x8x32xf32, #tpu.memory_space<vmem>>, vector<1x8x32xf32>,
    return
  }
  func.func @transform_0(%arg0: i32) -> i32 {
    %c0_i32 = arith.constant 0 : i32
    %c0_i32_0 = arith.constant 0 : i32
    return %c0_i32 : i32
  }
  func.func @transform_1(%arg0: i32) -> (i32, i32, i32) {
    %c0_i32 = arith.constant 0 : i32
    %c0_i32_0 = arith.constant 0 : i32
    %c0_i32_1 = arith.constant 0 : i32
    return %arg0, %c0_i32, %c0_i32_0 : i32, i32, i32
  }
  func.func @transform_2(%arg0: i32) -> (i32, i32, i32) {
    %c0_i32 = arith.constant 0 : i32
    %c0_i32_0 = arith.constant 0 : i32
    %c0_i32_1 = arith.constant 0 : i32
    return %arg0, %c0_i32, %c0_i32_0 : i32, i32, i32
  }
  func.func @transform_3(%arg0: i32) -> (i32, i32) {
    %c0_i32 = arith.constant 0 : i32
    %c0_i32_0 = arith.constant 0 : i32
    %c0_i32_1 = arith.constant 0 : i32
    return %c0_i32, %c0_i32_0 : i32, i32
  }
  func.func @transform_4(%arg0: i32) -> (i32, i32) {
    %c0_i32 = arith.constant 0 : i32
    %c0_i32_0 = arith.constant 0 : i32
    %c0_i32_1 = arith.constant 0 : i32
    return %c0_i32, %c0_i32_0 : i32, i32
  }
  func.func @transform_5(%arg0: i32) -> (i32, i32, i32) {
    %c0_i32 = arith.constant 0 : i32
    %c0_i32_0 = arith.constant 0 : i32
    %c0_i32_1 = arith.constant 0 : i32
    %c0_i32_2 = arith.constant 0 : i32
    return %c0_i32, %c0_i32_0, %c0_i32_1 : i32, i32, i32
  }
  func.func @transform_6(%arg0: i32) -> (i32, i32) {
    %c0_i32 = arith.constant 0 : i32
    %c0_i32_0 = arith.constant 0 : i32
    %c0_i32_1 = arith.constant 0 : i32
    return %c0_i32, %c0_i32_0 : i32, i32
  }
  func.func @transform_7(%arg0: i32) -> (i32, i32) {
    %c0_i32 = arith.constant 0 : i32
    %c0_i32_0 = arith.constant 0 : i32
    %c0_i32_1 = arith.constant 0 : i32
    return %c0_i32, %c0_i32_0 : i32, i32
  }
  func.func @transform_8(%arg0: i32) -> (i32, i32) {
    %c0_i32 = arith.constant 0 : i32
    %c0_i32_0 = arith.constant 0 : i32
    %c0_i32_1 = arith.constant 0 : i32
    return %c0_i32, %c0_i32_0 : i32, i32
  }
  func.func @transform_9(%arg0: i32) -> (i32, i32) {
    %c0_i32 = arith.constant 0 : i32
    %c0_i32_0 = arith.constant 0 : i32
    %c0_i32_1 = arith.constant 0 : i32
    return %c0_i32, %c0_i32_0 : i32, i32
  }
  func.func @transform_10(%arg0: i32) -> (i32, i32) {
    %c0_i32 = arith.constant 0 : i32
    %c0_i32_0 = arith.constant 0 : i32
    %c0_i32_1 = arith.constant 0 : i32
    return %c0_i32, %c0_i32_0 : i32, i32
  }
  func.func @transform_11(%arg0: i32) -> (i32, i32, i32) {
    %c0_i32 = arith.constant 0 : i32
    %c0_i32_0 = arith.constant 0 : i32
    %c0_i32_1 = arith.constant 0 : i32
    %c0_i32_2 = arith.constant 0 : i32
    return %c0_i32, %c0_i32_0, %c0_i32_1 : i32, i32, i32
  }
  func.func @transform_12(%arg0: i32) -> (i32, i32) {
    %c0_i32 = arith.constant 0 : i32
    %c0_i32_0 = arith.constant 0 : i32
    %c0_i32_1 = arith.constant 0 : i32
    return %c0_i32, %c0_i32_0 : i32, i32
  }
  func.func @transform_13(%arg0: i32) -> (i32, i32) {
    %c0_i32 = arith.constant 0 : i32
    %c0_i32_0 = arith.constant 0 : i32
    %c0_i32_1 = arith.constant 0 : i32
    return %c0_i32, %c0_i32_0 : i32, i32
  }
  func.func @transform_14(%arg0: i32) -> (i32, i32) {
    %c0_i32 = arith.constant 0 : i32
    %c0_i32_0 = arith.constant 0 : i32
    %c0_i32_1 = arith.constant 0 : i32
    return %c0_i32, %c0_i32_0 : i32, i32
  }
  func.func @transform_15(%arg0: i32) -> (i32, i32) {
    %c0_i32 = arith.constant 0 : i32
    %c0_i32_0 = arith.constant 0 : i32
    %c0_i32_1 = arith.constant 0 : i32
    return %c0_i32, %c0_i32_0 : i32, i32
  }
  func.func @transform_16(%arg0: i32) -> (i32, i32) {
    %c0_i32 = arith.constant 0 : i32
    %c0_i32_0 = arith.constant 0 : i32
    %c0_i32_1 = arith.constant 0 : i32
    return %c0_i32, %c0_i32_0 : i32, i32
  }
  func.func @transform_17(%arg0: i32) -> (i32, i32) {
    %c0_i32 = arith.constant 0 : i32
    %c0_i32_0 = arith.constant 0 : i32
    %c0_i32_1 = arith.constant 0 : i32
    return %c0_i32, %c0_i32_0 : i32, i32
  }
  func.func @transform_18(%arg0: i32) -> (i32, i32, i32) {
    %c0_i32 = arith.constant 0 : i32
    %c0_i32_0 = arith.constant 0 : i32
    %c0_i32_1 = arith.constant 0 : i32
    return %arg0, %c0_i32, %c0_i32_0 : i32, i32, i32
  }
  func.func @transform_19(%arg0: i32) -> (i32, i32, i32) {
    %c0_i32 = arith.constant 0 : i32
    %c0_i32_0 = arith.constant 0 : i32
    %c0_i32_1 = arith.constant 0 : i32
    return %arg0, %c0_i32, %c0_i32_0 : i32, i32, i32
  }
  func.func @transform_20(%arg0: i32) -> (i32, i32, i32) {
    %c0_i32 = arith.constant 0 : i32
    %c0_i32_0 = arith.constant 0 : i32
    %c0_i32_1 = arith.constant 0 : i32
    return %arg0, %c0_i32, %c0_i32_0 : i32, i32, i32
  }
}

</mosaic_0001>

<llo_original>
// kernel: mvcvtn1_forward.1
$region0: #{mvcvtn1_forward.1}
  #allocation0 [shape = 'u32[]', space=smem, size = 0x4, offset = 0x4, fixed_abs, tag = 'smem constant byte address 0x4 - core index']
  #allocation1 [shape = 'u32[144,128]{1,0:T(1,128)}', space=vmem, size = 0x12000, scoped, tag = 'internal scratch']
  %s0 = inlined_call_operand.vmem [shape: f32[3], index: 0, kind: input, shape index: {}]
  %s1 = inlined_call_operand.vmem [shape: f32[2,8,8], index: 1, kind: input, shape index: {}]
  %s2 = inlined_call_operand.vmem [shape: f32[2,8,16], index: 2, kind: input, shape index: {}]
  %s3 = inlined_call_operand.vmem [shape: f32[8,8], index: 3, kind: input, shape index: {}]
  %s4 = inlined_call_operand.vmem [shape: f32[24,8], index: 4, kind: input, shape index: {}]
  %s5 = inlined_call_operand.vmem [shape: f32[3,8,8], index: 5, kind: input, shape index: {}]
  %s6 = inlined_call_operand.vmem [shape: f32[1,96], index: 6, kind: input, shape index: {}]
  %s7 = inlined_call_operand.vmem [shape: f32[32,96], index: 7, kind: input, shape index: {}]
  %s8 = inlined_call_operand.vmem [shape: f32[1,96], index: 8, kind: input, shape index: {}]
  %s9 = inlined_call_operand.vmem [shape: f32[1,96], index: 9, kind: input, shape index: {}]
  %s10 = inlined_call_operand.vmem [shape: f32[3,32], index: 10, kind: input, shape index: {}]
  %s11 = inlined_call_operand.vmem [shape: f32[3,32,32], index: 11, kind: input, shape index: {}]
  %s12 = inlined_call_operand.vmem [shape: f32[1,32], index: 12, kind: input, shape index: {}]
  %s13 = inlined_call_operand.vmem [shape: f32[1,64], index: 13, kind: input, shape index: {}]
  %s14 = inlined_call_operand.vmem [shape: f32[32,64], index: 14, kind: input, shape index: {}]
  %s15 = inlined_call_operand.vmem [shape: f32[16,64], index: 15, kind: input, shape index: {}]
  %s16 = inlined_call_operand.vmem [shape: f32[2,32], index: 16, kind: input, shape index: {}]
  %s17 = inlined_call_operand.vmem [shape: f32[2,32], index: 17, kind: input, shape index: {}]
  %s18 = inlined_call_operand.hbm [shape: f32[2,8,32], index: 18, kind: output, shape index: {0}]
  %s19 = inlined_call_operand.hbm [shape: f32[2,8,32], index: 19, kind: output, shape index: {1}]
  %s20 = inlined_call_operand.hbm [shape: f32[2,8,32], index: 20, kind: output, shape index: {2}]
  %21 = xla_tuple %s18, %s19, %s20
  %s22 = sld [smem:[#allocation0]]
  $region125: #{mvcvtn1_forward.1} parent=0
    _
  %s24 = ssub.s32 1, %s22
  %s25 = scalar_select 0, %s24, %s22
  $region1: #{mvcvtn1_forward.1} parent=0
    #allocation2 [shape = 'u8[512]{0}', space=smem, size = 0x200, scoped, tag = 'input window, operand 0, single buffered']
    #allocation3 [shape = 's32[2]{0}', space=sflag, size = 0x8, scoped, tag = 'scoped memory for mvcvtn1_forward.1']
    #allocation4 [shape = 's32[2]{0}', space=sflag, size = 0x8, scoped, tag = 'scoped memory for mvcvtn1_forward.1']
    #allocation5 [shape = 'u8[8192]{0}', space=vmem, size = 0x2000, scoped, tag = 'output window, operand 0']
    #allocation6 [shape = 'u8[8192]{0}', space=vmem, size = 0x2000, scoped, tag = 'output window, operand 1']
    #allocation7 [shape = 's32[2]{0}', space=sflag, size = 0x8, scoped, tag = 'scoped memory for mvcvtn1_forward.1']
    #allocation8 [shape = 'u8[8192]{0}', space=vmem, size = 0x2000, scoped, tag = 'output window, operand 2']
    %26 = vsyncpa [#allocation4], 0
    %27 = vsyncpa [#allocation3], 0
    %s28 = scalar_lea.sflag [#allocation3], 1
    %29 = vsyncpa %s28, 0
    %30 = vsyncpa [#allocation7], 0
    %s31 = scalar_lea.sflag [#allocation7], 1
    %32 = vsyncpa %s31, 0
    loop: start=0, step=1, limit=4
    $region2: #{mvcvtn1_forward.1} parent=1 // loop_pre_header
      _
    $region3: #{mvcvtn1_forward.1} parent=1 // loop_header
      %s34 = sphi 0, %s38
      %p35 = scmp.ge.s32.totalorder %s34, 4
      %s42 = sphi 0, %s42
      %s44 = sphi 0, %s42
      %s45 = sphi 0, %s44
      %s59 = sphi 0, %s45
      %s65 = sphi 0, %s67
      %s68 = sphi 0, %s65
      %s69 = sphi 0, %s68
      %s85 = sphi 0, %s69
      %s91 = sphi 0, %s93
      %s94 = sphi 0, %s91
      %s95 = sphi 0, %s94
      %s111 = sphi 0, %s95
      %s115 = sphi 0, %s115
      %s117 = sphi 0, %s115
      %s118 = sphi 0, %s117
      %s132 = sphi 0, %s118
      %s136 = sphi 0, %s136
      %s138 = sphi 0, %s136
      %s139 = sphi 0, %s138
      %s153 = sphi 0, %s139
      %s157 = sphi 0, %s157
      %s159 = sphi 0, %s157
      %s160 = sphi 0, %s159
      %s174 = sphi 0, %s160
      %s178 = sphi 0, %s178
      %s180 = sphi 0, %s178
      %s181 = sphi 0, %s180
      %s195 = sphi 0, %s181
      %s199 = sphi 0, %s199
      %s201 = sphi 0, %s199
      %s202 = sphi 0, %s201
      %s216 = sphi 0, %s202
      %s220 = sphi 0, %s220
      %s222 = sphi 0, %s220
      %s223 = sphi 0, %s222
      %s237 = sphi 0, %s223
      %s241 = sphi 0, %s241
      %s243 = sphi 0, %s241
      %s244 = sphi 0, %s243
      %s258 = sphi 0, %s244
      %s262 = sphi 0, %s262
      %s264 = sphi 0, %s262
      %s265 = sphi 0, %s264
      %s279 = sphi 0, %s265
      %s283 = sphi 0, %s283
      %s285 = sphi 0, %s283
      %s286 = sphi 0, %s285
      %s300 = sphi 0, %s286
      %s304 = sphi 0, %s304
      %s306 = sphi 0, %s304
      %s307 = sphi 0, %s306
      %s321 = sphi 0, %s307
      %s325 = sphi 0, %s325
      %s327 = sphi 0, %s325
      %s328 = sphi 0, %s327
      %s342 = sphi 0, %s328
      %s346 = sphi 0, %s346
      %s348 = sphi 0, %s346
      %s349 = sphi 0, %s348
      %s363 = sphi 0, %s349
      %s367 = sphi 0, %s367
      %s369 = sphi 0, %s367
      %s370 = sphi 0, %s369
      %s384 = sphi 0, %s370
      %s388 = sphi 0, %s388
      %s390 = sphi 0, %s388
      %s391 = sphi 0, %s390
      %s405 = sphi 0, %s391
      %s409 = sphi 0, %s409
      %s411 = sphi 0, %s409
      %s412 = sphi 0, %s411
      %s426 = sphi 0, %s412
      %s432 = sphi 0, %s434
      %s435 = sphi 0, %s432
      %s436 = sphi 0, %s435
      %s452 = sphi 0, %s436
      %s458 = sphi 0, %s460
      %s461 = sphi 0, %s458
      %s462 = sphi 0, %s461
      %s478 = sphi 0, %s462
      %s484 = sphi 0, %s486
      %s487 = sphi 0, %s484
      %s488 = sphi 0, %s487
      %s504 = sphi 0, %s488
    $region4: #{mvcvtn1_forward.1} parent=1 // loop_header_branch
      %37 = sbr.rel (%p35) target = $region8
    $region5: #{mvcvtn1_forward.1} parent=1 // loop_body
      %s39 = ssub.s32 %s34, 1
      %s40 = ssub.s32 %s34, 2
      %s41 = sadd.s32 %s34, 1
      %s43 = sadd.s32 %s42, 1
      %p46 = scmp.eq.s32.totalorder %s34, 1
      %p47 = scmp.ne.s32.totalorder %s42, %s44
      %p48 = scmp.eq.s32.totalorder %s34, 0
      %p49 = por %p47, %p48
      %p50 = scmp.ne.s32.totalorder %s42, %s44
      %p51 = scmp.eq.s32.totalorder %s39, 1
      %p52 = por %p50, %p51
      %p53 = scmp.ne.s32.totalorder %s44, %s45
      %p54 = scmp.eq.s32.totalorder %s39, 0
      %p55 = por %p53, %p54
      %p56 = scmp.ne.s32.totalorder %s44, %s45
      %p57 = scmp.eq.s32.totalorder %s40, 1
      %p58 = por %p56, %p57
      %p60 = scmp.ne.s32.totalorder %s45, %s59
      %p61 = scmp.eq.s32.totalorder %s40, 0
      %p62 = por %p60, %p61
      %s63 = ssub.s32 %s34, %s41
      %p64 = scmp.eq.s32.totalorder %s63, 0
      %s66 = sadd.s32 %s65, 1
      %s67 = scalar_select %p64, %s65, %s66
      %p70 = pneg %p64
      %p71 = scmp.eq.s32.totalorder %s34, 1
      %p72 = por %p70, %p71
      %p73 = scmp.ne.s32.totalorder %s65, %s68
      %p74 = scmp.eq.s32.totalorder %s34, 0
      %p75 = por %p73, %p74
      %p76 = scmp.ne.s32.totalorder %s65, %s68
      %p77 = scmp.eq.s32.totalorder %s39, 1
      %p78 = por %p76, %p77
      %p79 = scmp.ne.s32.totalorder %s68, %s69
      %p80 = scmp.eq.s32.totalorder %s39, 0
      %p81 = por %p79, %p80
      %p82 = scmp.ne.s32.totalorder %s68, %s69
      %p83 = scmp.eq.s32.totalorder %s40, 1
      %p84 = por %p82, %p83
      %p86 = scmp.ne.s32.totalorder %s69, %s85
      %p87 = scmp.eq.s32.totalorder %s40, 0
      %p88 = por %p86, %p87
      %s89 = ssub.s32 %s34, %s41
      %p90 = scmp.eq.s32.totalorder %s89, 0
      %s92 = sadd.s32 %s91, 1
      %s93 = scalar_select %p90, %s91, %s92
      %p96 = pneg %p90
      %p97 = scmp.eq.s32.totalorder %s34, 1
      %p98 = por %p96, %p97
      %p99 = scmp.ne.s32.totalorder %s91, %s94
      %p100 = scmp.eq.s32.totalorder %s34, 0
      %p101 = por %p99, %p100
      %p102 = scmp.ne.s32.totalorder %s91, %s94
      %p103 = scmp.eq.s32.totalorder %s39, 1
      %p104 = por %p102, %p103
      %p105 = scmp.ne.s32.totalorder %s94, %s95
      %p106 = scmp.eq.s32.totalorder %s39, 0
      %p107 = por %p105, %p106
      %p108 = scmp.ne.s32.totalorder %s94, %s95
      %p109 = scmp.eq.s32.totalorder %s40, 1
      %p110 = por %p108, %p109
      %p112 = scmp.ne.s32.totalorder %s95, %s111
      %p113 = scmp.eq.s32.totalorder %s40, 0
      %p114 = por %p112, %p113
      %s116 = sadd.s32 %s115, 1
      %p119 = scmp.eq.s32.totalorder %s34, 1
      %p120 = scmp.ne.s32.totalorder %s115, %s117
      %p121 = scmp.eq.s32.totalorder %s34, 0
      %p122 = por %p120, %p121
      %p123 = scmp.ne.s32.totalorder %s115, %s117
      %p124 = scmp.eq.s32.totalorder %s39, 1
      %p125 = por %p123, %p124
      %p126 = scmp.ne.s32.totalorder %s117, %s118
      %p127 = scmp.eq.s32.totalorder %s39, 0
      %p128 = por %p126, %p127
      %p129 = scmp.ne.s32.totalorder %s117, %s118
      %p130 = scmp.eq.s32.totalorder %s40, 1
      %p131 = por %p129, %p130
      %p133 = scmp.ne.s32.totalorder %s118, %s132
      %p134 = scmp.eq.s32.totalorder %s40, 0
      %p135 = por %p133, %p134
      %s137 = sadd.s32 %s136, 1
      %p140 = scmp.eq.s32.totalorder %s34, 1
      %p141 = scmp.ne.s32.totalorder %s136, %s138
      %p142 = scmp.eq.s32.totalorder %s34, 0
      %p143 = por %p141, %p142
      %p144 = scmp.ne.s32.totalorder %s136, %s138
      %p145 = scmp.eq.s32.totalorder %s39, 1
      %p146 = por %p144, %p145
      %p147 = scmp.ne.s32.totalorder %s138, %s139
      %p148 = scmp.eq.s32.totalorder %s39, 0
      %p149 = por %p147, %p148
      %p150 = scmp.ne.s32.totalorder %s138, %s139
      %p151 = scmp.eq.s32.totalorder %s40, 1
      %p152 = por %p150, %p151
      %p154 = scmp.ne.s32.totalorder %s139, %s153
      %p155 = scmp.eq.s32.totalorder %s40, 0
      %p156 = por %p154, %p155
      %s158 = sadd.s32 %s157, 1
      %p161 = scmp.eq.s32.totalorder %s34, 1
      %p162 = scmp.ne.s32.totalorder %s157, %s159
      %p163 = scmp.eq.s32.totalorder %s34, 0
      %p164 = por %p162, %p163
      %p165 = scmp.ne.s32.totalorder %s157, %s159
      %p166 = scmp.eq.s32.totalorder %s39, 1
      %p167 = por %p165, %p166
      %p168 = scmp.ne.s32.totalorder %s159, %s160
      %p169 = scmp.eq.s32.totalorder %s39, 0
      %p170 = por %p168, %p169
      %p171 = scmp.ne.s32.totalorder %s159, %s160
      %p172 = scmp.eq.s32.totalorder %s40, 1
      %p173 = por %p171, %p172
      %p175 = scmp.ne.s32.totalorder %s160, %s174
      %p176 = scmp.eq.s32.totalorder %s40, 0
      %p177 = por %p175, %p176
      %s179 = sadd.s32 %s178, 1
      %p182 = scmp.eq.s32.totalorder %s34, 1
      %p183 = scmp.ne.s32.totalorder %s178, %s180
      %p184 = scmp.eq.s32.totalorder %s34, 0
      %p185 = por %p183, %p184
      %p186 = scmp.ne.s32.totalorder %s178, %s180
      %p187 = scmp.eq.s32.totalorder %s39, 1
      %p188 = por %p186, %p187
      %p189 = scmp.ne.s32.totalorder %s180, %s181
      %p190 = scmp.eq.s32.totalorder %s39, 0
      %p191 = por %p189, %p190
      %p192 = scmp.ne.s32.totalorder %s180, %s181
      %p193 = scmp.eq.s32.totalorder %s40, 1
      %p194 = por %p192, %p193
      %p196 = scmp.ne.s32.totalorder %s181, %s195
      %p197 = scmp.eq.s32.totalorder %s40, 0
      %p198 = por %p196, %p197
      %s200 = sadd.s32 %s199, 1
      %p203 = scmp.eq.s32.totalorder %s34, 1
      %p204 = scmp.ne.s32.totalorder %s199, %s201
      %p205 = scmp.eq.s32.totalorder %s34, 0
      %p206 = por %p204, %p205
      %p207 = scmp.ne.s32.totalorder %s199, %s201
      %p208 = scmp.eq.s32.totalorder %s39, 1
      %p209 = por %p207, %p208
      %p210 = scmp.ne.s32.totalorder %s201, %s202
      %p211 = scmp.eq.s32.totalorder %s39, 0
      %p212 = por %p210, %p211
      %p213 = scmp.ne.s32.totalorder %s201, %s202
      %p214 = scmp.eq.s32.totalorder %s40, 1
      %p215 = por %p213, %p214
      %p217 = scmp.ne.s32.totalorder %s202, %s216
      %p218 = scmp.eq.s32.totalorder %s40, 0
      %p219 = por %p217, %p218
      %s221 = sadd.s32 %s220, 1
      %p224 = scmp.eq.s32.totalorder %s34, 1
      %p225 = scmp.ne.s32.totalorder %s220, %s222
      %p226 = scmp.eq.s32.totalorder %s34, 0
      %p227 = por %p225, %p226
      %p228 = scmp.ne.s32.totalorder %s220, %s222
      %p229 = scmp.eq.s32.totalorder %s39, 1
      %p230 = por %p228, %p229
      %p231 = scmp.ne.s32.totalorder %s222, %s223
      %p232 = scmp.eq.s32.totalorder %s39, 0
      %p233 = por %p231, %p232
      %p234 = scmp.ne.s32.totalorder %s222, %s223
      %p235 = scmp.eq.s32.totalorder %s40, 1
      %p236 = por %p234, %p235
      %p238 = scmp.ne.s32.totalorder %s223, %s237
      %p239 = scmp.eq.s32.totalorder %s40, 0
      %p240 = por %p238, %p239
      %s242 = sadd.s32 %s241, 1
      %p245 = scmp.eq.s32.totalorder %s34, 1
      %p246 = scmp.ne.s32.totalorder %s241, %s243
      %p247 = scmp.eq.s32.totalorder %s34, 0
      %p248 = por %p246, %p247
      %p249 = scmp.ne.s32.totalorder %s241, %s243
      %p250 = scmp.eq.s32.totalorder %s39, 1
      %p251 = por %p249, %p250
      %p252 = scmp.ne.s32.totalorder %s243, %s244
      %p253 = scmp.eq.s32.totalorder %s39, 0
      %p254 = por %p252, %p253
      %p255 = scmp.ne.s32.totalorder %s243, %s244
      %p256 = scmp.eq.s32.totalorder %s40, 1
      %p257 = por %p255, %p256
      %p259 = scmp.ne.s32.totalorder %s244, %s258
      %p260 = scmp.eq.s32.totalorder %s40, 0
      %p261 = por %p259, %p260
      %s263 = sadd.s32 %s262, 1
      %p266 = scmp.eq.s32.totalorder %s34, 1
      %p267 = scmp.ne.s32.totalorder %s262, %s264
      %p268 = scmp.eq.s32.totalorder %s34, 0
      %p269 = por %p267, %p268
      %p270 = scmp.ne.s32.totalorder %s262, %s264
      %p271 = scmp.eq.s32.totalorder %s39, 1
      %p272 = por %p270, %p271
      %p273 = scmp.ne.s32.totalorder %s264, %s265
      %p274 = scmp.eq.s32.totalorder %s39, 0
      %p275 = por %p273, %p274
      %p276 = scmp.ne.s32.totalorder %s264, %s265
      %p277 = scmp.eq.s32.totalorder %s40, 1
      %p278 = por %p276, %p277
      %p280 = scmp.ne.s32.totalorder %s265, %s279
      %p281 = scmp.eq.s32.totalorder %s40, 0
      %p282 = por %p280, %p281
      %s284 = sadd.s32 %s283, 1
      %p287 = scmp.eq.s32.totalorder %s34, 1
      %p288 = scmp.ne.s32.totalorder %s283, %s285
      %p289 = scmp.eq.s32.totalorder %s34, 0
      %p290 = por %p288, %p289
      %p291 = scmp.ne.s32.totalorder %s283, %s285
      %p292 = scmp.eq.s32.totalorder %s39, 1
      %p293 = por %p291, %p292
      %p294 = scmp.ne.s32.totalorder %s285, %s286
      %p295 = scmp.eq.s32.totalorder %s39, 0
      %p296 = por %p294, %p295
      %p297 = scmp.ne.s32.totalorder %s285, %s286
      %p298 = scmp.eq.s32.totalorder %s40, 1
      %p299 = por %p297, %p298
      %p301 = scmp.ne.s32.totalorder %s286, %s300
      %p302 = scmp.eq.s32.totalorder %s40, 0
      %p303 = por %p301, %p302
      %s305 = sadd.s32 %s304, 1
      %p308 = scmp.eq.s32.totalorder %s34, 1
      %p309 = scmp.ne.s32.totalorder %s304, %s306
      %p310 = scmp.eq.s32.totalorder %s34, 0
      %p311 = por %p309, %p310
      %p312 = scmp.ne.s32.totalorder %s304, %s306
      %p313 = scmp.eq.s32.totalorder %s39, 1
      %p314 = por %p312, %p313
      %p315 = scmp.ne.s32.totalorder %s306, %s307
      %p316 = scmp.eq.s32.totalorder %s39, 0
      %p317 = por %p315, %p316
      %p318 = scmp.ne.s32.totalorder %s306, %s307
      %p319 = scmp.eq.s32.totalorder %s40, 1
      %p320 = por %p318, %p319
      %p322 = scmp.ne.s32.totalorder %s307, %s321
      %p323 = scmp.eq.s32.totalorder %s40, 0
      %p324 = por %p322, %p323
      %s326 = sadd.s32 %s325, 1
      %p329 = scmp.eq.s32.totalorder %s34, 1
      %p330 = scmp.ne.s32.totalorder %s325, %s327
      %p331 = scmp.eq.s32.totalorder %s34, 0
      %p332 = por %p330, %p331
      %p333 = scmp.ne.s32.totalorder %s325, %s327
      %p334 = scmp.eq.s32.totalorder %s39, 1
      %p335 = por %p333, %p334
      %p336 = scmp.ne.s32.totalorder %s327, %s328
      %p337 = scmp.eq.s32.totalorder %s39, 0
      %p338 = por %p336, %p337
      %p339 = scmp.ne.s32.totalorder %s327, %s328
      %p340 = scmp.eq.s32.totalorder %s40, 1
      %p341 = por %p339, %p340
      %p343 = scmp.ne.s32.totalorder %s328, %s342
      %p344 = scmp.eq.s32.totalorder %s40, 0
      %p345 = por %p343, %p344
      %s347 = sadd.s32 %s346, 1
      %p350 = scmp.eq.s32.totalorder %s34, 1
      %p351 = scmp.ne.s32.totalorder %s346, %s348
      %p352 = scmp.eq.s32.totalorder %s34, 0
      %p353 = por %p351, %p352
      %p354 = scmp.ne.s32.totalorder %s346, %s348
      %p355 = scmp.eq.s32.totalorder %s39, 1
      %p356 = por %p354, %p355
      %p357 = scmp.ne.s32.totalorder %s348, %s349
      %p358 = scmp.eq.s32.totalorder %s39, 0
      %p359 = por %p357, %p358
      %p360 = scmp.ne.s32.totalorder %s348, %s349
      %p361 = scmp.eq.s32.totalorder %s40, 1
      %p362 = por %p360, %p361
      %p364 = scmp.ne.s32.totalorder %s349, %s363
      %p365 = scmp.eq.s32.totalorder %s40, 0
      %p366 = por %p364, %p365
      %s368 = sadd.s32 %s367, 1
      %p371 = scmp.eq.s32.totalorder %s34, 1
      %p372 = scmp.ne.s32.totalorder %s367, %s369
      %p373 = scmp.eq.s32.totalorder %s34, 0
      %p374 = por %p372, %p373
      %p375 = scmp.ne.s32.totalorder %s367, %s369
      %p376 = scmp.eq.s32.totalorder %s39, 1
      %p377 = por %p375, %p376
      %p378 = scmp.ne.s32.totalorder %s369, %s370
      %p379 = scmp.eq.s32.totalorder %s39, 0
      %p380 = por %p378, %p379
      %p381 = scmp.ne.s32.totalorder %s369, %s370
      %p382 = scmp.eq.s32.totalorder %s40, 1
      %p383 = por %p381, %p382
      %p385 = scmp.ne.s32.totalorder %s370, %s384
      %p386 = scmp.eq.s32.totalorder %s40, 0
      %p387 = por %p385, %p386
      %s389 = sadd.s32 %s388, 1
      %p392 = scmp.eq.s32.totalorder %s34, 1
      %p393 = scmp.ne.s32.totalorder %s388, %s390
      %p394 = scmp.eq.s32.totalorder %s34, 0
      %p395 = por %p393, %p394
      %p396 = scmp.ne.s32.totalorder %s388, %s390
      %p397 = scmp.eq.s32.totalorder %s39, 1
      %p398 = por %p396, %p397
      %p399 = scmp.ne.s32.totalorder %s390, %s391
      %p400 = scmp.eq.s32.totalorder %s39, 0
      %p401 = por %p399, %p400
      %p402 = scmp.ne.s32.totalorder %s390, %s391
      %p403 = scmp.eq.s32.totalorder %s40, 1
      %p404 = por %p402, %p403
      %p406 = scmp.ne.s32.totalorder %s391, %s405
      %p407 = scmp.eq.s32.totalorder %s40, 0
      %p408 = por %p406, %p407
      %s410 = sadd.s32 %s409, 1
      %p413 = scmp.eq.s32.totalorder %s34, 1
      %p414 = scmp.ne.s32.totalorder %s409, %s411
      %p415 = scmp.eq.s32.totalorder %s34, 0
      %p416 = por %p414, %p415
      %p417 = scmp.ne.s32.totalorder %s409, %s411
      %p418 = scmp.eq.s32.totalorder %s39, 1
      %p419 = por %p417, %p418
      %p420 = scmp.ne.s32.totalorder %s411, %s412
      %p421 = scmp.eq.s32.totalorder %s39, 0
      %p422 = por %p420, %p421
      %p423 = scmp.ne.s32.totalorder %s411, %s412
      %p424 = scmp.eq.s32.totalorder %s40, 1
      %p425 = por %p423, %p424
      %p427 = scmp.ne.s32.totalorder %s412, %s426
      %p428 = scmp.eq.s32.totalorder %s40, 0
      %p429 = por %p427, %p428
      %s430 = ssub.s32 %s34, %s41
      %p431 = scmp.eq.s32.totalorder %s430, 0
      %s433 = sadd.s32 %s432, 1
      %s434 = scalar_select %p431, %s432, %s433
      %p437 = pneg %p431
      %p438 = scmp.eq.s32.totalorder %s34, 1
      %p439 = por %p437, %p438
      %p440 = scmp.ne.s32.totalorder %s432, %s435
      %p441 = scmp.eq.s32.totalorder %s34, 0
      %p442 = por %p440, %p441
      %p443 = scmp.ne.s32.totalorder %s432, %s435
      %p444 = scmp.eq.s32.totalorder %s39, 1
      %p445 = por %p443, %p444
      %p446 = scmp.ne.s32.totalorder %s435, %s436
      %p447 = scmp.eq.s32.totalorder %s39, 0
      %p448 = por %p446, %p447
      %p449 = scmp.ne.s32.totalorder %s435, %s436
      %p450 = scmp.eq.s32.totalorder %s40, 1
      %p451 = por %p449, %p450
      %p453 = scmp.ne.s32.totalorder %s436, %s452
      %p454 = scmp.eq.s32.totalorder %s40, 0
      %p455 = por %p453, %p454
      %s456 = ssub.s32 %s34, %s41
      %p457 = scmp.eq.s32.totalorder %s456, 0
      %s459 = sadd.s32 %s458, 1
      %s460 = scalar_select %p457, %s458, %s459
      %p463 = pneg %p457
      %p464 = scmp.eq.s32.totalorder %s34, 1
      %p465 = por %p463, %p464
      %p466 = scmp.ne.s32.totalorder %s458, %s461
      %p467 = scmp.eq.s32.totalorder %s34, 0
      %p468 = por %p466, %p467
      %p469 = scmp.ne.s32.totalorder %s458, %s461
      %p470 = scmp.eq.s32.totalorder %s39, 1
      %p471 = por %p469, %p470
      %p472 = scmp.ne.s32.totalorder %s461, %s462
      %p473 = scmp.eq.s32.totalorder %s39, 0
      %p474 = por %p472, %p473
      %p475 = scmp.ne.s32.totalorder %s461, %s462
      %p476 = scmp.eq.s32.totalorder %s40, 1
      %p477 = por %p475, %p476
      %p479 = scmp.ne.s32.totalorder %s462, %s478
      %p480 = scmp.eq.s32.totalorder %s40, 0
      %p481 = por %p479, %p480
      %s482 = ssub.s32 %s34, %s41
      %p483 = scmp.eq.s32.totalorder %s482, 0
      %s485 = sadd.s32 %s484, 1
      %s486 = scalar_select %p483, %s484, %s485
      %p489 = pneg %p483
      %p490 = scmp.eq.s32.totalorder %s34, 1
      %p491 = por %p489, %p490
      %p492 = scmp.ne.s32.totalorder %s484, %s487
      %p493 = scmp.eq.s32.totalorder %s34, 0
      %p494 = por %p492, %p493
      %p495 = scmp.ne.s32.totalorder %s484, %s487
      %p496 = scmp.eq.s32.totalorder %s39, 1
      %p497 = por %p495, %p496
      %p498 = scmp.ne.s32.totalorder %s487, %s488
      %p499 = scmp.eq.s32.totalorder %s39, 0
      %p500 = por %p498, %p499
      %p501 = scmp.ne.s32.totalorder %s487, %s488
      %p502 = scmp.eq.s32.totalorder %s40, 1
      %p503 = por %p501, %p502
      %p505 = scmp.ne.s32.totalorder %s488, %s504
      %p506 = scmp.eq.s32.totalorder %s40, 0
      %p507 = por %p505, %p506
      %p508 = scmp.le.s32.totalorder 1, %s34
      %p509 = scmp.lt.s32.totalorder %s34, 3
      %p510 = pnand %p508, %p509
      %p511 = pneg %p510
      // Predicated region
      $region9: #{mvcvtn1_forward.1} parent=5 // pred_check
        _
      $region10: #{mvcvtn1_forward.1} parent=5 // pred_check_branch
        %513 = sbr.rel (%p510) target = $region12
      $region11: #{mvcvtn1_forward.1} parent=5 // pred_region
        %s514 = ssub.s32 %s34, 1
        // Predicated region
        $region13: #{mvcvtn1_forward.1} parent=11 // pred_check
          %p515 = pneg %p55
        $region14: #{mvcvtn1_forward.1} parent=11 // pred_check_branch
          %517 = sbr.rel (%p515) target = $region16
        $region15: #{mvcvtn1_forward.1} parent=11 // pred_region
          %s519 = ssub.s32 16, 16
          %520 = vsyncadd [#allocation4], %s519
          %s522 = sshll.u32 %s0, 4
          %s523 = int_to_ptr.vmem [resolvable:$true] %s522
          %525 = dma.vmem_to_smem %s523, 16, [#allocation2], [#allocation4]
        $region16: #{mvcvtn1_forward.1} parent=11 // pred_fallthru
          _
        // Predicated region
        $region17: #{mvcvtn1_forward.1} parent=11 // pred_check
          %p526 = pneg %p128
        $region18: #{mvcvtn1_forward.1} parent=11 // pred_check_branch
          %528 = sbr.rel (%p526) target = $region20
        $region19: #{mvcvtn1_forward.1} parent=11 // pred_region
          _
        $region20: #{mvcvtn1_forward.1} parent=11 // pred_fallthru
          _
        // Predicated region
        $region21: #{mvcvtn1_forward.1} parent=11 // pred_check
          %p529 = pneg %p149
        $region22: #{mvcvtn1_forward.1} parent=11 // pred_check_branch
          %531 = sbr.rel (%p529) target = $region24
        $region23: #{mvcvtn1_forward.1} parent=11 // pred_region
          _
        $region24: #{mvcvtn1_forward.1} parent=11 // pred_fallthru
          _
        // Predicated region
        $region25: #{mvcvtn1_forward.1} parent=11 // pred_check
          %p532 = pneg %p170
        $region26: #{mvcvtn1_forward.1} parent=11 // pred_check_branch
          %534 = sbr.rel (%p532) target = $region28
        $region27: #{mvcvtn1_forward.1} parent=11 // pred_region
          _
        $region28: #{mvcvtn1_forward.1} parent=11 // pred_fallthru
          _
        // Predicated region
        $region29: #{mvcvtn1_forward.1} parent=11 // pred_check
          %p535 = pneg %p191
        $region30: #{mvcvtn1_forward.1} parent=11 // pred_check_branch
          %537 = sbr.rel (%p535) target = $region32
        $region31: #{mvcvtn1_forward.1} parent=11 // pred_region
          _
        $region32: #{mvcvtn1_forward.1} parent=11 // pred_fallthru
          _
        // Predicated region
        $region33: #{mvcvtn1_forward.1} parent=11 // pred_check
          %p538 = pneg %p212
        $region34: #{mvcvtn1_forward.1} parent=11 // pred_check_branch
          %540 = sbr.rel (%p538) target = $region36
        $region35: #{mvcvtn1_forward.1} parent=11 // pred_region
          _
        $region36: #{mvcvtn1_forward.1} parent=11 // pred_fallthru
          _
        // Predicated region
        $region37: #{mvcvtn1_forward.1} parent=11 // pred_check
          %p541 = pneg %p233
        $region38: #{mvcvtn1_forward.1} parent=11 // pred_check_branch
          %543 = sbr.rel (%p541) target = $region40
        $region39: #{mvcvtn1_forward.1} parent=11 // pred_region
          _
        $region40: #{mvcvtn1_forward.1} parent=11 // pred_fallthru
          _
        // Predicated region
        $region41: #{mvcvtn1_forward.1} parent=11 // pred_check
          %p544 = pneg %p254
        $region42: #{mvcvtn1_forward.1} parent=11 // pred_check_branch
          %546 = sbr.rel (%p544) target = $region44
        $region43: #{mvcvtn1_forward.1} parent=11 // pred_region
          _
        $region44: #{mvcvtn1_forward.1} parent=11 // pred_fallthru
          _
        // Predicated region
        $region45: #{mvcvtn1_forward.1} parent=11 // pred_check
          %p547 = pneg %p275
        $region46: #{mvcvtn1_forward.1} parent=11 // pred_check_branch
          %549 = sbr.rel (%p547) target = $region48
        $region47: #{mvcvtn1_forward.1} parent=11 // pred_region
          _
        $region48: #{mvcvtn1_forward.1} parent=11 // pred_fallthru
          _
        // Predicated region
        $region49: #{mvcvtn1_forward.1} parent=11 // pred_check
          %p550 = pneg %p296
        $region50: #{mvcvtn1_forward.1} parent=11 // pred_check_branch
          %552 = sbr.rel (%p550) target = $region52
        $region51: #{mvcvtn1_forward.1} parent=11 // pred_region
          _
        $region52: #{mvcvtn1_forward.1} parent=11 // pred_fallthru
          _
        // Predicated region
        $region53: #{mvcvtn1_forward.1} parent=11 // pred_check
          %p553 = pneg %p317
        $region54: #{mvcvtn1_forward.1} parent=11 // pred_check_branch
          %555 = sbr.rel (%p553) target = $region56
        $region55: #{mvcvtn1_forward.1} parent=11 // pred_region
          _
        $region56: #{mvcvtn1_forward.1} parent=11 // pred_fallthru
          _
        // Predicated region
        $region57: #{mvcvtn1_forward.1} parent=11 // pred_check
          %p556 = pneg %p338
        $region58: #{mvcvtn1_forward.1} parent=11 // pred_check_branch
          %558 = sbr.rel (%p556) target = $region60
        $region59: #{mvcvtn1_forward.1} parent=11 // pred_region
          _
        $region60: #{mvcvtn1_forward.1} parent=11 // pred_fallthru
          _
        // Predicated region
        $region61: #{mvcvtn1_forward.1} parent=11 // pred_check
          %p559 = pneg %p359
        $region62: #{mvcvtn1_forward.1} parent=11 // pred_check_branch
          %561 = sbr.rel (%p559) target = $region64
        $region63: #{mvcvtn1_forward.1} parent=11 // pred_region
          _
        $region64: #{mvcvtn1_forward.1} parent=11 // pred_fallthru
          _
        // Predicated region
        $region65: #{mvcvtn1_forward.1} parent=11 // pred_check
          %p562 = pneg %p380
        $region66: #{mvcvtn1_forward.1} parent=11 // pred_check_branch
          %564 = sbr.rel (%p562) target = $region68
        $region67: #{mvcvtn1_forward.1} parent=11 // pred_region
          _
        $region68: #{mvcvtn1_forward.1} parent=11 // pred_fallthru
          _
        // Predicated region
        $region69: #{mvcvtn1_forward.1} parent=11 // pred_check
          %p565 = pneg %p401
        $region70: #{mvcvtn1_forward.1} parent=11 // pred_check_branch
          %567 = sbr.rel (%p565) target = $region72
        $region71: #{mvcvtn1_forward.1} parent=11 // pred_region
          _
        $region72: #{mvcvtn1_forward.1} parent=11 // pred_fallthru
          _
        // Predicated region
        $region73: #{mvcvtn1_forward.1} parent=11 // pred_check
          %p568 = pneg %p422
        $region74: #{mvcvtn1_forward.1} parent=11 // pred_check_branch
          %570 = sbr.rel (%p568) target = $region76
        $region75: #{mvcvtn1_forward.1} parent=11 // pred_region
          _
        $region76: #{mvcvtn1_forward.1} parent=11 // pred_fallthru
          _
      $region12: #{mvcvtn1_forward.1} parent=5 // pred_fallthru
        _
      %p571 = scmp.lt.s32.totalorder %s34, 2
      // Predicated region
      $region77: #{mvcvtn1_forward.1} parent=5 // pred_check
        %p572 = pneg %p571
      $region78: #{mvcvtn1_forward.1} parent=5 // pred_check_branch
        %574 = sbr.rel (%p572) target = $region80
      $region79: #{mvcvtn1_forward.1} parent=5 // pred_region
        // Predicated region
        $region81: #{mvcvtn1_forward.1} parent=79 // pred_check
          %p575 = pneg %p75
        $region82: #{mvcvtn1_forward.1} parent=79 // pred_check_branch
          %577 = sbr.rel (%p575) target = $region84
        $region83: #{mvcvtn1_forward.1} parent=79 // pred_region
          %p578 = scmp.lt.s32.totalorder %s34, 1
          %s579 = scalar_select %p578, %s34, 1
          %s580 = smul.addr %s579, 8
          %s581 = scalar_lea.vmem %s1, %s580
        $region84: #{mvcvtn1_forward.1} parent=79 // pred_fallthru
          _
        // Predicated region
        $region85: #{mvcvtn1_forward.1} parent=79 // pred_check
          %p582 = pneg %p101
        $region86: #{mvcvtn1_forward.1} parent=79 // pred_check_branch
          %584 = sbr.rel (%p582) target = $region88
        $region87: #{mvcvtn1_forward.1} parent=79 // pred_region
          %p585 = scmp.lt.s32.totalorder %s34, 1
          %s586 = scalar_select %p585, %s34, 1
          %s587 = smul.addr %s586, 8
          %s588 = scalar_lea.vmem %s2, %s587
        $region88: #{mvcvtn1_forward.1} parent=79 // pred_fallthru
          _
      $region80: #{mvcvtn1_forward.1} parent=5 // pred_fallthru
        _
      %p589 = scmp.le.s32.totalorder 1, %s34
      %p590 = scmp.lt.s32.totalorder %s34, 3
      %p591 = pnand %p589, %p590
      %p592 = pneg %p591
      // Predicated region
      $region89: #{mvcvtn1_forward.1} parent=5 // pred_check
        _
      $region90: #{mvcvtn1_forward.1} parent=5 // pred_check_branch
        %594 = sbr.rel (%p591) target = $region92
      $region91: #{mvcvtn1_forward.1} parent=5 // pred_region
        %s595 = ssub.s32 %s34, 1
        // Predicated region
        $region93: #{mvcvtn1_forward.1} parent=91 // pred_check
          %p596 = pneg %p55
        $region94: #{mvcvtn1_forward.1} parent=91 // pred_check_branch
          %598 = sbr.rel (%p596) target = $region96
        $region95: #{mvcvtn1_forward.1} parent=91 // pred_region
          %599 = dma.done [#allocation4], 16
        $region96: #{mvcvtn1_forward.1} parent=91 // pred_fallthru
          _
        %600 = sfence
        %p601 = pneg %p55
        %p602 = pneg %p52
        %p603 = scmp.lt.s32.totalorder %s39, 1
        %s604 = scalar_select %p603, %s39, 1
        %s605 = smul.addr %s604, 8
        %s606 = scalar_lea.vmem %s1, %s605
        %p607 = pneg %p81
        %p608 = pneg %p78
        %p609 = scmp.lt.s32.totalorder %s39, 1
        %s610 = scalar_select %p609, %s39, 1
        %s611 = smul.addr %s610, 8
        %s612 = scalar_lea.vmem %s2, %s611
        %p613 = pneg %p107
        %p614 = pneg %p104
        %p615 = pneg %p128
        %p616 = pneg %p125
        %p617 = pneg %p149
        %p618 = pneg %p146
        %p619 = pneg %p170
        %p620 = pneg %p167
        %p621 = pneg %p191
        %p622 = pneg %p188
        %p623 = pneg %p212
        %p624 = pneg %p209
        %p625 = pneg %p233
        %p626 = pneg %p230
        %p627 = pneg %p254
        %p628 = pneg %p251
        %p629 = pneg %p275
        %p630 = pneg %p272
        %p631 = pneg %p296
        %p632 = pneg %p293
        %p633 = pneg %p317
        %p634 = pneg %p314
        %p635 = pneg %p338
        %p636 = pneg %p335
        %p637 = pneg %p359
        %p638 = pneg %p356
        %p639 = pneg %p380
        %p640 = pneg %p377
        %p641 = pneg %p401
        %p642 = pneg %p398
        %p643 = pneg %p422
        %p644 = pneg %p419
        %p645 = pneg %p448
        %p646 = pneg %p445
        %s647 = sand.u32 %s435, 1
        %s648 = scalar_lea.sflag [#allocation3], %s647
        %s649 = sand.u32 %s435, 1
        %s650 = smul.addr %s649, 8
        %s651 = scalar_lea.vmem [#allocation5], %s650
        %p652 = pneg %p474
        %p653 = pneg %p471
        %s654 = sand.u32 %s39, 1
        %s655 = scalar_lea.sflag [#allocation7], %s654
        %s656 = sand.u32 %s461, 1
        %s657 = smul.addr %s656, 8
        %s658 = scalar_lea.vmem [#allocation6], %s657
        %p659 = pneg %p500
        %p660 = pneg %p497
        %s661 = sand.u32 %s39, 1
        %s662 = scalar_lea.sflag [#allocation7], %s661
        %s663 = sand.u32 %s487, 1
        %s664 = smul.addr %s663, 8
        %s665 = scalar_lea.vmem [#allocation8], %s664
        %p666 = scmp.lt.s32.totalorder %s39, 1
        %s667 = scalar_select %p666, %s39, 1
        %s668 = smul.addr %s667, 8
        %s669 = scalar_lea.vmem %s1, %s668
        %p670 = scmp.lt.s32.totalorder %s39, 1
        %s671 = scalar_select %p670, %s39, 1
        %s672 = smul.addr %s671, 8
        %s673 = scalar_lea.vmem %s2, %s672
        %s674 = sld [smem:[#allocation2]]
        %s675 = sld [smem:[#allocation2 + $0x1]]
        %s676 = sld [smem:[#allocation2 + $0x2]]
        %v677 = vld [vmem:[%s669] sm:$0xff]
        %v678 = vld [vmem:[%s673] sm:$0xff]
        %v679 = vld [vmem:[%s3] sm:$0xff]
        %v680 = vld [vmem:[%s4] sm:$0xff]
        %v681 = vld [vmem:[%s4 + $0x8] sm:$0xff]
        %v682 = vld [vmem:[%s4 + $0x10] sm:$0xff]
        %v683 = vld [vmem:[%s7] sm:$0xff]
        %v684 = vld [vmem:[%s7 + $0x8] sm:$0xff]
        %v685 = vld [vmem:[%s7 + $0x10] sm:$0xff]
        %v686 = vld [vmem:[%s7 + $0x18] sm:$0xff]
        %v687 = vld [vmem:[%s9] sm:$0x1]
        %v688 = vld [vmem:[%s14] sm:$0xff]
        %v689 = vld [vmem:[%s14 + $0x8] sm:$0xff]
        %v690 = vld [vmem:[%s14 + $0x10] sm:$0xff]
        %v691 = vld [vmem:[%s14 + $0x18] sm:$0xff]
        %v692 = vld [vmem:[%s12] sm:$0x1]
        %v693 = vlaneseq
        %v694 = vshrl.u32 %v693, 7
        %v695 = vsub.s32 0, %v694
        %v696 = vrot.slane %v677, %v695
        %698 = vbcast.lane.b32.xlu0 %v696, 256
        %v699 = vpop.permute.xlu0 %698
        %v700 = vlaneseq
        %v701 = vshrl.u32 %v700, 7
        %v702 = vsub.s32 1, %v701
        %v703 = vrot.slane %v677, %v702
        %705 = vbcast.lane.b32.xlu0 %v703, 256
        %v706 = vpop.permute.xlu0 %705
        %v707 = vlaneseq
        %v708 = vshrl.u32 %v707, 7
        %v709 = vsub.s32 2, %v708
        %v710 = vrot.slane %v677, %v709
        %712 = vbcast.lane.b32.xlu0 %v710, 256
        %v713 = vpop.permute.xlu0 %712
        %v714 = vlaneseq
        %v715 = vshrl.u32 %v714, 7
        %v716 = vsub.s32 3, %v715
        %v717 = vrot.slane %v677, %v716
        %719 = vbcast.lane.b32.xlu0 %v717, 256
        %v720 = vpop.permute.xlu0 %719
        %v721 = vlaneseq
        %v722 = vshrl.u32 %v721, 7
        %v723 = vsub.s32 4, %v722
        %v724 = vrot.slane %v677, %v723
        %726 = vbcast.lane.b32.xlu0 %v724, 256
        %v727 = vpop.permute.xlu0 %726
        %v728 = vlaneseq
        %v729 = vshrl.u32 %v728, 7
        %v730 = vsub.s32 5, %v729
        %v731 = vrot.slane %v677, %v730
        %733 = vbcast.lane.b32.xlu0 %v731, 256
        %v734 = vpop.permute.xlu0 %733
        %v735 = vlaneseq
        %v736 = vshrl.u32 %v735, 7
        %v737 = vsub.s32 6, %v736
        %v738 = vrot.slane %v677, %v737
        %740 = vbcast.lane.b32.xlu0 %v738, 256
        %v741 = vpop.permute.xlu0 %740
        %v742 = vlaneseq
        %v743 = vshrl.u32 %v742, 7
        %v744 = vsub.s32 7, %v743
        %v745 = vrot.slane %v677, %v744
        %747 = vbcast.lane.b32.xlu0 %v745, 256
        %v748 = vpop.permute.xlu0 %747
        %v749 = vld [vmem:[%s6] sm:$0x1]
        %v751 = vlaneseq
        %v752 = vshrl.u32 %v751, 7
        %v753 = vsub.s32 0, %v752
        %v754 = vrot.slane %v749, %v753
        %v756 = vmul.f32 %v699, %v754
        %v757 = vmul.f32 %v706, %v754
        %v758 = vmul.f32 %v713, %v754
        %v759 = vmul.f32 %v720, %v754
        %v760 = vmul.f32 %v727, %v754
        %v761 = vmul.f32 %v734, %v754
        %v762 = vmul.f32 %v741, %v754
        %v763 = vmul.f32 %v748, %v754
        %v764 = vld [vmem:[%s8] sm:$0x1]
        %v766 = vlaneseq
        %v767 = vshrl.u32 %v766, 7
        %v768 = vsub.s32 0, %v767
        %v769 = vrot.slane %v764, %v768
        %v771 = vadd.f32 %v756, %v769
        %v772 = vadd.f32 %v757, %v769
        %v773 = vadd.f32 %v758, %v769
        %v774 = vadd.f32 %v759, %v769
        %v775 = vadd.f32 %v760, %v769
        %v776 = vadd.f32 %v761, %v769
        %v777 = vadd.f32 %v762, %v769
        %v778 = vadd.f32 %v763, %v769
        %v779 = vld [vmem:[%s13] sm:$0x1]
        %v781 = vlaneseq
        %v782 = vshrl.u32 %v781, 7
        %v783 = vsub.s32 0, %v782
        %v784 = vrot.slane %v779, %v783
        %v786 = vmul.f32 %v699, %v784
        %v787 = vmul.f32 %v706, %v784
        %v788 = vmul.f32 %v713, %v784
        %v789 = vmul.f32 %v720, %v784
        %v790 = vmul.f32 %v727, %v784
        %v791 = vmul.f32 %v734, %v784
        %v792 = vmul.f32 %v741, %v784
        %v793 = vmul.f32 %v748, %v784
        %v794 = vld [vmem:[%s15] sm:$0xff]
        %v795 = vld [vmem:[%s15 + $0x8] sm:$0xff]
        %vm796 = vcmask 130048
        %v798 = vsel %vm796, %v678, 0
        %800 = vmatprep.subr.mxu0 0.0
        %801 = vmatpush1.msra.mxu0 0.0
        %802 = vmatprep.subr.mxu0 0.0
        %803 = vmatpush1.msra.mxu0 0.0
        %804 = vmatprep.subr.mxu0 0.0
        %805 = vmatpush1.msra.mxu0 0.0
        %806 = vmatprep.subr.mxu0 0.0
        %807 = vmatpush1.msra.mxu0 0.0
        %808 = vmatprep.subr.mxu0 0.0
        %809 = vmatpush1.msra.mxu0 0.0
        %810 = vmatprep.subr.mxu0 0.0
        %811 = vmatpush1.msra.mxu0 0.0
        %812 = vmatprep.subr.mxu0 0.0
        %813 = vmatpush1.msra.mxu0 0.0
        %814 = vmatprep.subr.mxu0 0.0
        %815 = vmatpush1.msra.mxu0 0.0
        %816 = vmatprep.subr.mxu0 0.0
        %817 = vmatpush1.msra.mxu0 0.0
        %818 = vmatprep.subr.mxu0 0.0
        %819 = vmatpush1.msra.mxu0 0.0
        %820 = vmatprep.subr.mxu0 0.0
        %821 = vmatpush1.msra.mxu0 0.0
        %822 = vmatprep.subr.mxu0 0.0
        %823 = vmatpush1.msra.mxu0 0.0
        %824 = vmatprep.subr.mxu0 0.0
        %825 = vmatpush1.msra.mxu0 0.0
        %826 = vmatprep.subr.mxu0 0.0
        %827 = vmatpush1.msra.mxu0 0.0
        %828 = vmatprep.subr.mxu0 0.0
        %829 = vmatpush1.msra.mxu0 %v795
        %830 = vmatprep.subr.mxu0 0.0
        %831 = vmatpush1.msra.mxu0 %v794
        %832 = vmatprep.subr.mxu0 0.0
        %833 = vmatpush2.msra.mxu0 0.0
        %834 = vmatprep.subr.mxu0 0.0
        %835 = vmatpush2.msra.mxu0 0.0
        %836 = vmatprep.subr.mxu0 0.0
        %837 = vmatpush2.msra.mxu0 0.0
        %838 = vmatprep.subr.mxu0 0.0
        %839 = vmatpush2.msra.mxu0 0.0
        %840 = vmatprep.subr.mxu0 0.0
        %841 = vmatpush2.msra.mxu0 0.0
        %842 = vmatprep.subr.mxu0 0.0
        %843 = vmatpush2.msra.mxu0 0.0
        %844 = vmatprep.subr.mxu0 0.0
        %845 = vmatpush2.msra.mxu0 0.0
        %846 = vmatprep.subr.mxu0 0.0
        %847 = vmatpush2.msra.mxu0 0.0
        %848 = vmatprep.subr.mxu0 0.0
        %849 = vmatpush2.msra.mxu0 0.0
        %850 = vmatprep.subr.mxu0 0.0
        %851 = vmatpush2.msra.mxu0 0.0
        %852 = vmatprep.subr.mxu0 0.0
        %853 = vmatpush2.msra.mxu0 0.0
        %854 = vmatprep.subr.mxu0 0.0
        %855 = vmatpush2.msra.mxu0 0.0
        %856 = vmatprep.subr.mxu0 0.0
        %857 = vmatpush2.msra.mxu0 0.0
        %858 = vmatprep.subr.mxu0 0.0
        %859 = vmatpush2.msra.mxu0 0.0
        %860 = vmatprep.subr.mxu0 0.0
        %861 = vmatpush2.msra.mxu0 0.0
        %862 = vmatprep.subr.mxu0 0.0
        %863 = vmatpush2.msra.mxu0 0.0
        %864 = vmatprep.mubr.f32.mxu0 0.0
        %865 = vmatmul.mubr.f32.gmra.mxu0 %v798
        %v866 = vpop.f32.mrf.mxu0
        %v867 = vadd.f32 0.0, %v866
        %v868 = vpop.f32.mrf.mxu0
        %869 = vdwg.mxu0
        %v870 = vld [vmem:[%s5] sm:$0xff]
        %vm871 = vcmask 64512
        %v873 = vsel %vm871, %v677, 0
        %875 = vmatprep.subr.mxu0 0.0
        %876 = vmatpush1.msra.mxu0 0.0
        %877 = vmatprep.subr.mxu0 0.0
        %878 = vmatpush1.msra.mxu0 0.0
        %879 = vmatprep.subr.mxu0 0.0
        %880 = vmatpush1.msra.mxu0 0.0
        %881 = vmatprep.subr.mxu0 0.0
        %882 = vmatpush1.msra.mxu0 0.0
        %883 = vmatprep.subr.mxu0 0.0
        %884 = vmatpush1.msra.mxu0 0.0
        %885 = vmatprep.subr.mxu0 0.0
        %886 = vmatpush1.msra.mxu0 0.0
        %887 = vmatprep.subr.mxu0 0.0
        %888 = vmatpush1.msra.mxu0 0.0
        %889 = vmatprep.subr.mxu0 0.0
        %890 = vmatpush1.msra.mxu0 0.0
        %891 = vmatprep.subr.mxu0 0.0
        %892 = vmatpush1.msra.mxu0 0.0
        %893 = vmatprep.subr.mxu0 0.0
        %894 = vmatpush1.msra.mxu0 0.0
        %895 = vmatprep.subr.mxu0 0.0
        %896 = vmatpush1.msra.mxu0 0.0
        %897 = vmatprep.subr.mxu0 0.0
        %898 = vmatpush1.msra.mxu0 0.0
        %899 = vmatprep.subr.mxu0 0.0
        %900 = vmatpush1.msra.mxu0 0.0
        %901 = vmatprep.subr.mxu0 0.0
        %902 = vmatpush1.msra.mxu0 0.0
        %903 = vmatprep.subr.mxu0 0.0
        %904 = vmatpush1.msra.mxu0 0.0
        %905 = vmatprep.subr.mxu0 0.0
        %906 = vmatpush1.msra.mxu0 %v870
        %907 = vmatprep.subr.mxu0 0.0
        %908 = vmatpush2.msra.mxu0 0.0
        %909 = vmatprep.subr.mxu0 0.0
        %910 = vmatpush2.msra.mxu0 0.0
        %911 = vmatprep.subr.mxu0 0.0
        %912 = vmatpush2.msra.mxu0 0.0
        %913 = vmatprep.subr.mxu0 0.0
        %914 = vmatpush2.msra.mxu0 0.0
        %915 = vmatprep.subr.mxu0 0.0
        %916 = vmatpush2.msra.mxu0 0.0
        %917 = vmatprep.subr.mxu0 0.0
        %918 = vmatpush2.msra.mxu0 0.0
        %919 = vmatprep.subr.mxu0 0.0
        %920 = vmatpush2.msra.mxu0 0.0
        %921 = vmatprep.subr.mxu0 0.0
        %922 = vmatpush2.msra.mxu0 0.0
        %923 = vmatprep.subr.mxu0 0.0
        %924 = vmatpush2.msra.mxu0 0.0
        %925 = vmatprep.subr.mxu0 0.0
        %926 = vmatpush2.msra.mxu0 0.0
        %927 = vmatprep.subr.mxu0 0.0
        %928 = vmatpush2.msra.mxu0 0.0
        %929 = vmatprep.subr.mxu0 0.0
        %930 = vmatpush2.msra.mxu0 0.0
        %931 = vmatprep.subr.mxu0 0.0
        %932 = vmatpush2.msra.mxu0 0.0
        %933 = vmatprep.subr.mxu0 0.0
        %934 = vmatpush2.msra.mxu0 0.0
        %935 = vmatprep.subr.mxu0 0.0
        %936 = vmatpush2.msra.mxu0 0.0
        %937 = vmatprep.subr.mxu0 0.0
        %938 = vmatpush2.msra.mxu0 0.0
        %939 = vmatprep.mubr.f32.mxu0 0.0
        %940 = vmatmul.mubr.f32.gmra.mxu0 %v873
        %v941 = vpop.f32.mrf.mxu0
        %v942 = vadd.f32 0.0, %v941
        %v943 = vpop.f32.mrf.mxu0
        %944 = vdwg.mxu0
        %v945 = vlaneseq
        %v946 = vshrl.u32 %v945, 7
        %v947 = vsub.s32 0, %v946
        %v948 = vrot.slane %v942, %v947
        %950 = vbcast.lane.b32.xlu0 %v948, 256
        %v951 = vpop.permute.xlu0 %950
        %v952 = vlaneseq
        %v953 = vshrl.u32 %v952, 7
        %v954 = vsub.s32 1, %v953
        %v955 = vrot.slane %v942, %v954
        %957 = vbcast.lane.b32.xlu0 %v955, 256
        %v958 = vpop.permute.xlu0 %957
        %v959 = vlaneseq
        %v960 = vshrl.u32 %v959, 7
        %v961 = vsub.s32 2, %v960
        %v962 = vrot.slane %v942, %v961
        %964 = vbcast.lane.b32.xlu0 %v962, 256
        %v965 = vpop.permute.xlu0 %964
        %v966 = vlaneseq
        %v967 = vshrl.u32 %v966, 7
        %v968 = vsub.s32 3, %v967
        %v969 = vrot.slane %v942, %v968
        %971 = vbcast.lane.b32.xlu0 %v969, 256
        %v972 = vpop.permute.xlu0 %971
        %v973 = vlaneseq
        %v974 = vshrl.u32 %v973, 7
        %v975 = vsub.s32 4, %v974
        %v976 = vrot.slane %v942, %v975
        %978 = vbcast.lane.b32.xlu0 %v976, 256
        %v979 = vpop.permute.xlu0 %978
        %v980 = vlaneseq
        %v981 = vshrl.u32 %v980, 7
        %v982 = vsub.s32 5, %v981
        %v983 = vrot.slane %v942, %v982
        %985 = vbcast.lane.b32.xlu0 %v983, 256
        %v986 = vpop.permute.xlu0 %985
        %v987 = vlaneseq
        %v988 = vshrl.u32 %v987, 7
        %v989 = vsub.s32 6, %v988
        %v990 = vrot.slane %v942, %v989
        %992 = vbcast.lane.b32.xlu0 %v990, 256
        %v993 = vpop.permute.xlu0 %992
        %v994 = vlaneseq
        %v995 = vshrl.u32 %v994, 7
        %v996 = vsub.s32 7, %v995
        %v997 = vrot.slane %v942, %v996
        %999 = vbcast.lane.b32.xlu0 %v997, 256
        %v1000 = vpop.permute.xlu0 %999
        %v1001 = vld [vmem:[%s10] sm:$0x1]
        %v1002 = vlaneseq
        %v1003 = vshrl.u32 %v1002, 7
        %v1004 = vsub.s32 0, %v1003
        %v1005 = vrot.slane %v1001, %v1004
        %v1006 = vmul.f32 %v951, %v1005
        %v1007 = vmul.f32 %v958, %v1005
        %v1008 = vmul.f32 %v965, %v1005
        %v1009 = vmul.f32 %v972, %v1005
        %v1010 = vmul.f32 %v979, %v1005
        %v1011 = vmul.f32 %v986, %v1005
        %v1012 = vmul.f32 %v993, %v1005
        %v1013 = vmul.f32 %v1000, %v1005
        %v1014 = vadd.f32 %v1006, 0.0
        %v1015 = vadd.f32 %v1007, 0.0
        %v1016 = vadd.f32 %v1008, 0.0
        %v1017 = vadd.f32 %v1009, 0.0
        %v1018 = vadd.f32 %v1010, 0.0
        %v1019 = vadd.f32 %v1011, 0.0
        %v1020 = vadd.f32 %v1012, 0.0
        %v1021 = vadd.f32 %v1013, 0.0
        %s1022 = scalar_lea.vmem %s5, 8
        %v1023 = vld [vmem:[%s1022] sm:$0xff]
        %1024 = vmatprep.subr.mxu0 0.0
        %1025 = vmatpush1.msra.mxu0 0.0
        %1026 = vmatprep.subr.mxu0 0.0
        %1027 = vmatpush1.msra.mxu0 0.0
        %1028 = vmatprep.subr.mxu0 0.0
        %1029 = vmatpush1.msra.mxu0 0.0
        %1030 = vmatprep.subr.mxu0 0.0
        %1031 = vmatpush1.msra.mxu0 0.0
        %1032 = vmatprep.subr.mxu0 0.0
        %1033 = vmatpush1.msra.mxu0 0.0
        %1034 = vmatprep.subr.mxu0 0.0
        %1035 = vmatpush1.msra.mxu0 0.0
        %1036 = vmatprep.subr.mxu0 0.0
        %1037 = vmatpush1.msra.mxu0 0.0
        %1038 = vmatprep.subr.mxu0 0.0
        %1039 = vmatpush1.msra.mxu0 0.0
        %1040 = vmatprep.subr.mxu0 0.0
        %1041 = vmatpush1.msra.mxu0 0.0
        %1042 = vmatprep.subr.mxu0 0.0
        %1043 = vmatpush1.msra.mxu0 0.0
        %1044 = vmatprep.subr.mxu0 0.0
        %1045 = vmatpush1.msra.mxu0 0.0
        %1046 = vmatprep.subr.mxu0 0.0
        %1047 = vmatpush1.msra.mxu0 0.0
        %1048 = vmatprep.subr.mxu0 0.0
        %1049 = vmatpush1.msra.mxu0 0.0
        %1050 = vmatprep.subr.mxu0 0.0
        %1051 = vmatpush1.msra.mxu0 0.0
        %1052 = vmatprep.subr.mxu0 0.0
        %1053 = vmatpush1.msra.mxu0 0.0
        %1054 = vmatprep.subr.mxu0 0.0
        %1055 = vmatpush1.msra.mxu0 %v1023
        %1056 = vmatprep.subr.mxu0 0.0
        %1057 = vmatpush2.msra.mxu0 0.0
        %1058 = vmatprep.subr.mxu0 0.0
        %1059 = vmatpush2.msra.mxu0 0.0
        %1060 = vmatprep.subr.mxu0 0.0
        %1061 = vmatpush2.msra.mxu0 0.0
        %1062 = vmatprep.subr.mxu0 0.0
        %1063 = vmatpush2.msra.mxu0 0.0
        %1064 = vmatprep.subr.mxu0 0.0
        %1065 = vmatpush2.msra.mxu0 0.0
        %1066 = vmatprep.subr.mxu0 0.0
        %1067 = vmatpush2.msra.mxu0 0.0
        %1068 = vmatprep.subr.mxu0 0.0
        %1069 = vmatpush2.msra.mxu0 0.0
        %1070 = vmatprep.subr.mxu0 0.0
        %1071 = vmatpush2.msra.mxu0 0.0
        %1072 = vmatprep.subr.mxu0 0.0
        %1073 = vmatpush2.msra.mxu0 0.0
        %1074 = vmatprep.subr.mxu0 0.0
        %1075 = vmatpush2.msra.mxu0 0.0
        %1076 = vmatprep.subr.mxu0 0.0
        %1077 = vmatpush2.msra.mxu0 0.0
        %1078 = vmatprep.subr.mxu0 0.0
        %1079 = vmatpush2.msra.mxu0 0.0
        %1080 = vmatprep.subr.mxu0 0.0
        %1081 = vmatpush2.msra.mxu0 0.0
        %1082 = vmatprep.subr.mxu0 0.0
        %1083 = vmatpush2.msra.mxu0 0.0
        %1084 = vmatprep.subr.mxu0 0.0
        %1085 = vmatpush2.msra.mxu0 0.0
        %1086 = vmatprep.subr.mxu0 0.0
        %1087 = vmatpush2.msra.mxu0 0.0
        %1088 = vmatprep.mubr.f32.mxu0 0.0
        %1089 = vmatmul.mubr.f32.gmra.mxu0 %v873
        %v1090 = vpop.f32.mrf.mxu0
        %v1091 = vadd.f32 0.0, %v1090
        %v1092 = vpop.f32.mrf.mxu0
        %1093 = vdwg.mxu0
        %v1094 = vlaneseq
        %v1095 = vshrl.u32 %v1094, 7
        %v1096 = vsub.s32 0, %v1095
        %v1097 = vrot.slane %v1091, %v1096
        %1099 = vbcast.lane.b32.xlu0 %v1097, 256
        %v1100 = vpop.permute.xlu0 %1099
        %v1101 = vlaneseq
        %v1102 = vshrl.u32 %v1101, 7
        %v1103 = vsub.s32 1, %v1102
        %v1104 = vrot.slane %v1091, %v1103
        %1106 = vbcast.lane.b32.xlu0 %v1104, 256
        %v1107 = vpop.permute.xlu0 %1106
        %v1108 = vlaneseq
        %v1109 = vshrl.u32 %v1108, 7
        %v1110 = vsub.s32 2, %v1109
        %v1111 = vrot.slane %v1091, %v1110
        %1113 = vbcast.lane.b32.xlu0 %v1111, 256
        %v1114 = vpop.permute.xlu0 %1113
        %v1115 = vlaneseq
        %v1116 = vshrl.u32 %v1115, 7
        %v1117 = vsub.s32 3, %v1116
        %v1118 = vrot.slane %v1091, %v1117
        %1120 = vbcast.lane.b32.xlu0 %v1118, 256
        %v1121 = vpop.permute.xlu0 %1120
        %v1122 = vlaneseq
        %v1123 = vshrl.u32 %v1122, 7
        %v1124 = vsub.s32 4, %v1123
        %v1125 = vrot.slane %v1091, %v1124
        %1127 = vbcast.lane.b32.xlu0 %v1125, 256
        %v1128 = vpop.permute.xlu0 %1127
        %v1129 = vlaneseq
        %v1130 = vshrl.u32 %v1129, 7
        %v1131 = vsub.s32 5, %v1130
        %v1132 = vrot.slane %v1091, %v1131
        %1134 = vbcast.lane.b32.xlu0 %v1132, 256
        %v1135 = vpop.permute.xlu0 %1134
        %v1136 = vlaneseq
        %v1137 = vshrl.u32 %v1136, 7
        %v1138 = vsub.s32 6, %v1137
        %v1139 = vrot.slane %v1091, %v1138
        %1141 = vbcast.lane.b32.xlu0 %v1139, 256
        %v1142 = vpop.permute.xlu0 %1141
        %v1143 = vlaneseq
        %v1144 = vshrl.u32 %v1143, 7
        %v1145 = vsub.s32 7, %v1144
        %v1146 = vrot.slane %v1091, %v1145
        %1148 = vbcast.lane.b32.xlu0 %v1146, 256
        %v1149 = vpop.permute.xlu0 %1148
        %v1150 = vld [vmem:[%s10 + $0x1] sm:$0x1]
        %v1151 = vlaneseq
        %v1152 = vshrl.u32 %v1151, 7
        %v1153 = vsub.s32 0, %v1152
        %v1154 = vrot.slane %v1150, %v1153
        %v1155 = vmul.f32 %v1100, %v1154
        %v1156 = vmul.f32 %v1107, %v1154
        %v1157 = vmul.f32 %v1114, %v1154
        %v1158 = vmul.f32 %v1121, %v1154
        %v1159 = vmul.f32 %v1128, %v1154
        %v1160 = vmul.f32 %v1135, %v1154
        %v1161 = vmul.f32 %v1142, %v1154
        %v1162 = vmul.f32 %v1149, %v1154
        %v1163 = vadd.f32 %v1014, %v1155
        %v1164 = vadd.f32 %v1015, %v1156
        %v1165 = vadd.f32 %v1016, %v1157
        %v1166 = vadd.f32 %v1017, %v1158
        %v1167 = vadd.f32 %v1018, %v1159
        %v1168 = vadd.f32 %v1019, %v1160
        %v1169 = vadd.f32 %v1020, %v1161
        %v1170 = vadd.f32 %v1021, %v1162
        %s1171 = scalar_lea.vmem %s5, 16
        %v1172 = vld [vmem:[%s1171] sm:$0xff]
        %1173 = vmatprep.subr.mxu0 0.0
        %1174 = vmatpush1.msra.mxu0 0.0
        %1175 = vmatprep.subr.mxu0 0.0
        %1176 = vmatpush1.msra.mxu0 0.0
        %1177 = vmatprep.subr.mxu0 0.0
        %1178 = vmatpush1.msra.mxu0 0.0
        %1179 = vmatprep.subr.mxu0 0.0
        %1180 = vmatpush1.msra.mxu0 0.0
        %1181 = vmatprep.subr.mxu0 0.0
        %1182 = vmatpush1.msra.mxu0 0.0
        %1183 = vmatprep.subr.mxu0 0.0
        %1184 = vmatpush1.msra.mxu0 0.0
        %1185 = vmatprep.subr.mxu0 0.0
        %1186 = vmatpush1.msra.mxu0 0.0
        %1187 = vmatprep.subr.mxu0 0.0
        %1188 = vmatpush1.msra.mxu0 0.0
        %1189 = vmatprep.subr.mxu0 0.0
        %1190 = vmatpush1.msra.mxu0 0.0
        %1191 = vmatprep.subr.mxu0 0.0
        %1192 = vmatpush1.msra.mxu0 0.0
        %1193 = vmatprep.subr.mxu0 0.0
        %1194 = vmatpush1.msra.mxu0 0.0
        %1195 = vmatprep.subr.mxu0 0.0
        %1196 = vmatpush1.msra.mxu0 0.0
        %1197 = vmatprep.subr.mxu0 0.0
        %1198 = vmatpush1.msra.mxu0 0.0
        %1199 = vmatprep.subr.mxu0 0.0
        %1200 = vmatpush1.msra.mxu0 0.0
        %1201 = vmatprep.subr.mxu0 0.0
        %1202 = vmatpush1.msra.mxu0 0.0
        %1203 = vmatprep.subr.mxu0 0.0
        %1204 = vmatpush1.msra.mxu0 %v1172
        %1205 = vmatprep.subr.mxu0 0.0
        %1206 = vmatpush2.msra.mxu0 0.0
        %1207 = vmatprep.subr.mxu0 0.0
        %1208 = vmatpush2.msra.mxu0 0.0
        %1209 = vmatprep.subr.mxu0 0.0
        %1210 = vmatpush2.msra.mxu0 0.0
        %1211 = vmatprep.subr.mxu0 0.0
        %1212 = vmatpush2.msra.mxu0 0.0
        %1213 = vmatprep.subr.mxu0 0.0
        %1214 = vmatpush2.msra.mxu0 0.0
        %1215 = vmatprep.subr.mxu0 0.0
        %1216 = vmatpush2.msra.mxu0 0.0
        %1217 = vmatprep.subr.mxu0 0.0
        %1218 = vmatpush2.msra.mxu0 0.0
        %1219 = vmatprep.subr.mxu0 0.0
        %1220 = vmatpush2.msra.mxu0 0.0
        %1221 = vmatprep.subr.mxu0 0.0
        %1222 = vmatpush2.msra.mxu0 0.0
        %1223 = vmatprep.subr.mxu0 0.0
        %1224 = vmatpush2.msra.mxu0 0.0
        %1225 = vmatprep.subr.mxu0 0.0
        %1226 = vmatpush2.msra.mxu0 0.0
        %1227 = vmatprep.subr.mxu0 0.0
        %1228 = vmatpush2.msra.mxu0 0.0
        %1229 = vmatprep.subr.mxu0 0.0
        %1230 = vmatpush2.msra.mxu0 0.0
        %1231 = vmatprep.subr.mxu0 0.0
        %1232 = vmatpush2.msra.mxu0 0.0
        %1233 = vmatprep.subr.mxu0 0.0
        %1234 = vmatpush2.msra.mxu0 0.0
        %1235 = vmatprep.subr.mxu0 0.0
        %1236 = vmatpush2.msra.mxu0 0.0
        %1237 = vmatprep.mubr.f32.mxu0 0.0
        %1238 = vmatmul.mubr.f32.gmra.mxu0 %v873
        %v1239 = vpop.f32.mrf.mxu0
        %v1240 = vadd.f32 0.0, %v1239
        %v1241 = vpop.f32.mrf.mxu0
        %1242 = vdwg.mxu0
        %v1243 = vlaneseq
        %v1244 = vshrl.u32 %v1243, 7
        %v1245 = vsub.s32 0, %v1244
        %v1246 = vrot.slane %v1240, %v1245
        %1248 = vbcast.lane.b32.xlu0 %v1246, 256
        %v1249 = vpop.permute.xlu0 %1248
        %v1250 = vlaneseq
        %v1251 = vshrl.u32 %v1250, 7
        %v1252 = vsub.s32 1, %v1251
        %v1253 = vrot.slane %v1240, %v1252
        %1255 = vbcast.lane.b32.xlu0 %v1253, 256
        %v1256 = vpop.permute.xlu0 %1255
        %v1257 = vlaneseq
        %v1258 = vshrl.u32 %v1257, 7
        %v1259 = vsub.s32 2, %v1258
        %v1260 = vrot.slane %v1240, %v1259
        %1262 = vbcast.lane.b32.xlu0 %v1260, 256
        %v1263 = vpop.permute.xlu0 %1262
        %v1264 = vlaneseq
        %v1265 = vshrl.u32 %v1264, 7
        %v1266 = vsub.s32 3, %v1265
        %v1267 = vrot.slane %v1240, %v1266
        %1269 = vbcast.lane.b32.xlu0 %v1267, 256
        %v1270 = vpop.permute.xlu0 %1269
        %v1271 = vlaneseq
        %v1272 = vshrl.u32 %v1271, 7
        %v1273 = vsub.s32 4, %v1272
        %v1274 = vrot.slane %v1240, %v1273
        %1276 = vbcast.lane.b32.xlu0 %v1274, 256
        %v1277 = vpop.permute.xlu0 %1276
        %v1278 = vlaneseq
        %v1279 = vshrl.u32 %v1278, 7
        %v1280 = vsub.s32 5, %v1279
        %v1281 = vrot.slane %v1240, %v1280
        %1283 = vbcast.lane.b32.xlu0 %v1281, 256
        %v1284 = vpop.permute.xlu0 %1283
        %v1285 = vlaneseq
        %v1286 = vshrl.u32 %v1285, 7
        %v1287 = vsub.s32 6, %v1286
        %v1288 = vrot.slane %v1240, %v1287
        %1290 = vbcast.lane.b32.xlu0 %v1288, 256
        %v1291 = vpop.permute.xlu0 %1290
        %v1292 = vlaneseq
        %v1293 = vshrl.u32 %v1292, 7
        %v1294 = vsub.s32 7, %v1293
        %v1295 = vrot.slane %v1240, %v1294
        %1297 = vbcast.lane.b32.xlu0 %v1295, 256
        %v1298 = vpop.permute.xlu0 %1297
        %v1299 = vld [vmem:[%s10 + $0x2] sm:$0x1]
        %v1300 = vlaneseq
        %v1301 = vshrl.u32 %v1300, 7
        %v1302 = vsub.s32 0, %v1301
        %v1303 = vrot.slane %v1299, %v1302
        %v1304 = vmul.f32 %v1249, %v1303
        %v1305 = vmul.f32 %v1256, %v1303
        %v1306 = vmul.f32 %v1263, %v1303
        %v1307 = vmul.f32 %v1270, %v1303
        %v1308 = vmul.f32 %v1277, %v1303
        %v1309 = vmul.f32 %v1284, %v1303
        %v1310 = vmul.f32 %v1291, %v1303
        %v1311 = vmul.f32 %v1298, %v1303
        %v1312 = vadd.f32 %v1163, %v1304
        %v1313 = vadd.f32 %v1164, %v1305
        %v1314 = vadd.f32 %v1165, %v1306
        %v1315 = vadd.f32 %v1166, %v1307
        %v1316 = vadd.f32 %v1167, %v1308
        %v1317 = vadd.f32 %v1168, %v1309
        %v1318 = vadd.f32 %v1169, %v1310
        %v1319 = vadd.f32 %v1170, %v1311
        %v1320 = vstv %s674
        %v1321 = vmul.f32 %v1320, 0.0
        %v1322 = vstv %s675
        %v1323 = vmul.f32 %v1322, 0.0
        %v1324 = vadd.f32 %v1321, %v1323
        %v1325 = vstv %s676
        %v1326 = vmul.f32 %v1325, 0.0
        %v1327 = vadd.f32 %v1324, %v1326
        %v1329 = vlaneseq
        %v1330 = vshrl.u32 %v1329, 7
        %v1331 = vsub.s32 0, %v1330
        %v1332 = vrot.slane %v687, %v1331
        %vm1334 = vcmask 261120
        %v1336 = vsel %vm1334, %v1327, 0
        %1338 = vmatprep.subr.mxu0 0.0
        %1339 = vmatpush1.msra.mxu0 0.0
        %1340 = vmatprep.subr.mxu0 0.0
        %1341 = vmatpush1.msra.mxu0 0.0
        %1342 = vmatprep.subr.mxu0 0.0
        %1343 = vmatpush1.msra.mxu0 0.0
        %1344 = vmatprep.subr.mxu0 0.0
        %1345 = vmatpush1.msra.mxu0 0.0
        %1346 = vmatprep.subr.mxu0 0.0
        %1347 = vmatpush1.msra.mxu0 0.0
        %1348 = vmatprep.subr.mxu0 0.0
        %1349 = vmatpush1.msra.mxu0 0.0
        %1350 = vmatprep.subr.mxu0 0.0
        %1351 = vmatpush1.msra.mxu0 0.0
        %1352 = vmatprep.subr.mxu0 0.0
        %1353 = vmatpush1.msra.mxu0 0.0
        %1354 = vmatprep.subr.mxu0 0.0
        %1355 = vmatpush1.msra.mxu0 0.0
        %1356 = vmatprep.subr.mxu0 0.0
        %1357 = vmatpush1.msra.mxu0 0.0
        %1358 = vmatprep.subr.mxu0 0.0
        %1359 = vmatpush1.msra.mxu0 0.0
        %1360 = vmatprep.subr.mxu0 0.0
        %1361 = vmatpush1.msra.mxu0 0.0
        %1362 = vmatprep.subr.mxu0 0.0
        %1363 = vmatpush1.msra.mxu0 %v686
        %1364 = vmatprep.subr.mxu0 0.0
        %1365 = vmatpush1.msra.mxu0 %v685
        %1366 = vmatprep.subr.mxu0 0.0
        %1367 = vmatpush1.msra.mxu0 %v684
        %1368 = vmatprep.subr.mxu0 0.0
        %1369 = vmatpush1.msra.mxu0 %v683
        %1370 = vmatprep.subr.mxu0 0.0
        %1371 = vmatpush2.msra.mxu0 0.0
        %1372 = vmatprep.subr.mxu0 0.0
        %1373 = vmatpush2.msra.mxu0 0.0
        %1374 = vmatprep.subr.mxu0 0.0
        %1375 = vmatpush2.msra.mxu0 0.0
        %1376 = vmatprep.subr.mxu0 0.0
        %1377 = vmatpush2.msra.mxu0 0.0
        %1378 = vmatprep.subr.mxu0 0.0
        %1379 = vmatpush2.msra.mxu0 0.0
        %1380 = vmatprep.subr.mxu0 0.0
        %1381 = vmatpush2.msra.mxu0 0.0
        %1382 = vmatprep.subr.mxu0 0.0
        %1383 = vmatpush2.msra.mxu0 0.0
        %1384 = vmatprep.subr.mxu0 0.0
        %1385 = vmatpush2.msra.mxu0 0.0
        %1386 = vmatprep.subr.mxu0 0.0
        %1387 = vmatpush2.msra.mxu0 0.0
        %1388 = vmatprep.subr.mxu0 0.0
        %1389 = vmatpush2.msra.mxu0 0.0
        %1390 = vmatprep.subr.mxu0 0.0
        %1391 = vmatpush2.msra.mxu0 0.0
        %1392 = vmatprep.subr.mxu0 0.0
        %1393 = vmatpush2.msra.mxu0 0.0
        %1394 = vmatprep.subr.mxu0 0.0
        %1395 = vmatpush2.msra.mxu0 0.0
        %1396 = vmatprep.subr.mxu0 0.0
        %1397 = vmatpush2.msra.mxu0 0.0
        %1398 = vmatprep.subr.mxu0 0.0
        %1399 = vmatpush2.msra.mxu0 0.0
        %1400 = vmatprep.subr.mxu0 0.0
        %1401 = vmatpush2.msra.mxu0 0.0
        %1402 = vmatprep.mubr.f32.mxu0 0.0
        %1403 = vmatmul.mubr.f32.gmra.mxu0 %v1336
        %v1404 = vpop.f32.mrf.mxu0
        %v1405 = vadd.f32 %v1332, %v1404
        %v1406 = vpop.f32.mrf.mxu0
        %1407 = vdwg.mxu0
        %v1408 = vadd.f32 %v771, %v1405
        %v1409 = vxor.u32 %v1408, 2147483648
        %v1410 = vmul.f32 %v1409, 1.442695
        %v1411 = vpow.pop %v1410
        %v1412 = vadd.f32 %v1411, 1.0
        %v1413 = vrcp.pop %v1412
        %v1414 = vmul.f32 1.0, %v1413
        %1416 = vrot.lane.b32.xlu0 %v1405, 64
        %v1417 = vpop.permute.xlu0 %1416
        %v1419 = vmul.f32 %v1414, %v1417
        %1421 = vrot.lane.b32.xlu0 %v1419, 64
        %v1422 = vpop.permute.xlu0 %1421
        %v1424 = vadd.f32 %v771, %v1422
        %v1425 = vtanh.pop %v1424
        %v1426 = vsub.f32 1.0, %v1414
        %1428 = vrot.lane.b32.xlu0 %v1425, 96
        %v1429 = vpop.permute.xlu0 %1428
        %v1431 = vmul.f32 %v1426, %v1429
        %v1432 = vmul.f32 %v1414, %v1327
        %v1433 = vadd.f32 %v1431, %v1432
        %1435 = vrot.lane.b32.xlu0 %v1433, 96
        %v1436 = vpop.permute.xlu0 %1435
        %v1439 = vsel %vm871, %v680, 0
        %v1442 = vsel %vm871, %v681, 0
        %v1445 = vsel %vm871, %v682, 0
        %1447 = vmatprep.subr.mxu0 0.0
        %1448 = vmatpush1.msra.mxu0 0.0
        %1449 = vmatprep.subr.mxu0 0.0
        %1450 = vmatpush1.msra.mxu0 0.0
        %1451 = vmatprep.subr.mxu0 0.0
        %1452 = vmatpush1.msra.mxu0 0.0
        %1453 = vmatprep.subr.mxu0 0.0
        %1454 = vmatpush1.msra.mxu0 0.0
        %1455 = vmatprep.subr.mxu0 0.0
        %1456 = vmatpush1.msra.mxu0 0.0
        %1457 = vmatprep.subr.mxu0 0.0
        %1458 = vmatpush1.msra.mxu0 0.0
        %1459 = vmatprep.subr.mxu0 0.0
        %1460 = vmatpush1.msra.mxu0 0.0
        %1461 = vmatprep.subr.mxu0 0.0
        %1462 = vmatpush1.msra.mxu0 0.0
        %1463 = vmatprep.subr.mxu0 0.0
        %1464 = vmatpush1.msra.mxu0 0.0
        %1465 = vmatprep.subr.mxu0 0.0
        %1466 = vmatpush1.msra.mxu0 0.0
        %1467 = vmatprep.subr.mxu0 0.0
        %1468 = vmatpush1.msra.mxu0 0.0
        %1469 = vmatprep.subr.mxu0 0.0
        %1470 = vmatpush1.msra.mxu0 0.0
        %1471 = vmatprep.subr.mxu0 0.0
        %1472 = vmatpush1.msra.mxu0 0.0
        %1473 = vmatprep.subr.mxu0 0.0
        %1474 = vmatpush1.msra.mxu0 0.0
        %1475 = vmatprep.subr.mxu0 0.0
        %1476 = vmatpush1.msra.mxu0 0.0
        %1477 = vmatprep.subr.mxu0 0.0
        %1478 = vmatpush1.msra.mxu0 %v1436
        %1479 = vmatprep.subr.mxu0 0.0
        %1480 = vmatpush2.msra.mxu0 0.0
        %1481 = vmatprep.subr.mxu0 0.0
        %1482 = vmatpush2.msra.mxu0 0.0
        %1483 = vmatprep.subr.mxu0 0.0
        %1484 = vmatpush2.msra.mxu0 0.0
        %1485 = vmatprep.subr.mxu0 0.0
        %1486 = vmatpush2.msra.mxu0 0.0
        %1487 = vmatprep.subr.mxu0 0.0
        %1488 = vmatpush2.msra.mxu0 0.0
        %1489 = vmatprep.subr.mxu0 0.0
        %1490 = vmatpush2.msra.mxu0 0.0
        %1491 = vmatprep.subr.mxu0 0.0
        %1492 = vmatpush2.msra.mxu0 0.0
        %1493 = vmatprep.subr.mxu0 0.0
        %1494 = vmatpush2.msra.mxu0 0.0
        %1495 = vmatprep.subr.mxu0 0.0
        %1496 = vmatpush2.msra.mxu0 0.0
        %1497 = vmatprep.subr.mxu0 0.0
        %1498 = vmatpush2.msra.mxu0 0.0
        %1499 = vmatprep.subr.mxu0 0.0
        %1500 = vmatpush2.msra.mxu0 0.0
        %1501 = vmatprep.subr.mxu0 0.0
        %1502 = vmatpush2.msra.mxu0 0.0
        %1503 = vmatprep.subr.mxu0 0.0
        %1504 = vmatpush2.msra.mxu0 0.0
        %1505 = vmatprep.subr.mxu0 0.0
        %1506 = vmatpush2.msra.mxu0 0.0
        %1507 = vmatprep.subr.mxu0 0.0
        %1508 = vmatpush2.msra.mxu0 0.0
        %1509 = vmatprep.subr.mxu0 0.0
        %1510 = vmatpush2.msra.mxu0 0.0
        %1511 = vmatprep.mubr.f32.mxu0 0.0
        %1512 = vmatmul.mubr.f32.gmra.mxu0 %v1439
        %v1513 = vpop.f32.mrf.mxu0
        %v1514 = vadd.f32 0.0, %v1513
        %v1515 = vpop.f32.mrf.mxu0
        %1516 = vmatprep.mubr.f32.mxu0 0.0
        %1517 = vmatmul.mubr.f32.gmra.mxu0 %v1442
        %v1518 = vpop.f32.mrf.mxu0
        %v1519 = vadd.f32 0.0, %v1518
        %v1520 = vpop.f32.mrf.mxu0
        %1521 = vmatprep.mubr.f32.mxu0 0.0
        %1522 = vmatmul.mubr.f32.gmra.mxu0 %v1445
        %v1523 = vpop.f32.mrf.mxu0
        %v1524 = vadd.f32 0.0, %v1523
        %v1525 = vpop.f32.mrf.mxu0
        %1526 = vdwg.mxu0
        %v1527 = vld [vmem:[%s11] sm:$0xff]
        %v1528 = vld [vmem:[%s11 + $0x8] sm:$0xff]
        %v1529 = vld [vmem:[%s11 + $0x10] sm:$0xff]
        %v1530 = vld [vmem:[%s11 + $0x18] sm:$0xff]
        %v1532 = vsel %vm1334, %v1514, 0
        %1534 = vmatprep.subr.mxu0 0.0
        %1535 = vmatpush1.msra.mxu0 0.0
        %1536 = vmatprep.subr.mxu0 0.0
        %1537 = vmatpush1.msra.mxu0 0.0
        %1538 = vmatprep.subr.mxu0 0.0
        %1539 = vmatpush1.msra.mxu0 0.0
        %1540 = vmatprep.subr.mxu0 0.0
        %1541 = vmatpush1.msra.mxu0 0.0
        %1542 = vmatprep.subr.mxu0 0.0
        %1543 = vmatpush1.msra.mxu0 0.0
        %1544 = vmatprep.subr.mxu0 0.0
        %1545 = vmatpush1.msra.mxu0 0.0
        %1546 = vmatprep.subr.mxu0 0.0
        %1547 = vmatpush1.msra.mxu0 0.0
        %1548 = vmatprep.subr.mxu0 0.0
        %1549 = vmatpush1.msra.mxu0 0.0
        %1550 = vmatprep.subr.mxu0 0.0
        %1551 = vmatpush1.msra.mxu0 0.0
        %1552 = vmatprep.subr.mxu0 0.0
        %1553 = vmatpush1.msra.mxu0 0.0
        %1554 = vmatprep.subr.mxu0 0.0
        %1555 = vmatpush1.msra.mxu0 0.0
        %1556 = vmatprep.subr.mxu0 0.0
        %1557 = vmatpush1.msra.mxu0 0.0
        %1558 = vmatprep.subr.mxu0 0.0
        %1559 = vmatpush1.msra.mxu0 %v1530
        %1560 = vmatprep.subr.mxu0 0.0
        %1561 = vmatpush1.msra.mxu0 %v1529
        %1562 = vmatprep.subr.mxu0 0.0
        %1563 = vmatpush1.msra.mxu0 %v1528
        %1564 = vmatprep.subr.mxu0 0.0
        %1565 = vmatpush1.msra.mxu0 %v1527
        %1566 = vmatprep.subr.mxu0 0.0
        %1567 = vmatpush2.msra.mxu0 0.0
        %1568 = vmatprep.subr.mxu0 0.0
        %1569 = vmatpush2.msra.mxu0 0.0
        %1570 = vmatprep.subr.mxu0 0.0
        %1571 = vmatpush2.msra.mxu0 0.0
        %1572 = vmatprep.subr.mxu0 0.0
        %1573 = vmatpush2.msra.mxu0 0.0
        %1574 = vmatprep.subr.mxu0 0.0
        %1575 = vmatpush2.msra.mxu0 0.0
        %1576 = vmatprep.subr.mxu0 0.0
        %1577 = vmatpush2.msra.mxu0 0.0
        %1578 = vmatprep.subr.mxu0 0.0
        %1579 = vmatpush2.msra.mxu0 0.0
        %1580 = vmatprep.subr.mxu0 0.0
        %1581 = vmatpush2.msra.mxu0 0.0
        %1582 = vmatprep.subr.mxu0 0.0
        %1583 = vmatpush2.msra.mxu0 0.0
        %1584 = vmatprep.subr.mxu0 0.0
        %1585 = vmatpush2.msra.mxu0 0.0
        %1586 = vmatprep.subr.mxu0 0.0
        %1587 = vmatpush2.msra.mxu0 0.0
        %1588 = vmatprep.subr.mxu0 0.0
        %1589 = vmatpush2.msra.mxu0 0.0
        %1590 = vmatprep.subr.mxu0 0.0
        %1591 = vmatpush2.msra.mxu0 0.0
        %1592 = vmatprep.subr.mxu0 0.0
        %1593 = vmatpush2.msra.mxu0 0.0
        %1594 = vmatprep.subr.mxu0 0.0
        %1595 = vmatpush2.msra.mxu0 0.0
        %1596 = vmatprep.subr.mxu0 0.0
        %1597 = vmatpush2.msra.mxu0 0.0
        %1598 = vmatprep.mubr.f32.mxu0 0.0
        %1599 = vmatmul.mubr.f32.gmra.mxu0 %v1532
        %v1600 = vpop.f32.mrf.mxu0
        %v1601 = vadd.f32 0.0, %v1600
        %v1602 = vpop.f32.mrf.mxu0
        %1603 = vdwg.mxu0
        %v1604 = vadd.f32 %v1312, %v1601
        %s1605 = scalar_lea.vmem %s11, 32
        %v1606 = vld [vmem:[%s1605] sm:$0xff]
        %v1607 = vld [vmem:[%s1605 + $0x8] sm:$0xff]
        %v1608 = vld [vmem:[%s1605 + $0x10] sm:$0xff]
        %v1609 = vld [vmem:[%s1605 + $0x18] sm:$0xff]
        %v1611 = vsel %vm1334, %v1519, 0
        %1613 = vmatprep.subr.mxu0 0.0
        %1614 = vmatpush1.msra.mxu0 0.0
        %1615 = vmatprep.subr.mxu0 0.0
        %1616 = vmatpush1.msra.mxu0 0.0
        %1617 = vmatprep.subr.mxu0 0.0
        %1618 = vmatpush1.msra.mxu0 0.0
        %1619 = vmatprep.subr.mxu0 0.0
        %1620 = vmatpush1.msra.mxu0 0.0
        %1621 = vmatprep.subr.mxu0 0.0
        %1622 = vmatpush1.msra.mxu0 0.0
        %1623 = vmatprep.subr.mxu0 0.0
        %1624 = vmatpush1.msra.mxu0 0.0
        %1625 = vmatprep.subr.mxu0 0.0
        %1626 = vmatpush1.msra.mxu0 0.0
        %1627 = vmatprep.subr.mxu0 0.0
        %1628 = vmatpush1.msra.mxu0 0.0
        %1629 = vmatprep.subr.mxu0 0.0
        %1630 = vmatpush1.msra.mxu0 0.0
        %1631 = vmatprep.subr.mxu0 0.0
        %1632 = vmatpush1.msra.mxu0 0.0
        %1633 = vmatprep.subr.mxu0 0.0
        %1634 = vmatpush1.msra.mxu0 0.0
        %1635 = vmatprep.subr.mxu0 0.0
        %1636 = vmatpush1.msra.mxu0 0.0
        %1637 = vmatprep.subr.mxu0 0.0
        %1638 = vmatpush1.msra.mxu0 %v1609
        %1639 = vmatprep.subr.mxu0 0.0
        %1640 = vmatpush1.msra.mxu0 %v1608
        %1641 = vmatprep.subr.mxu0 0.0
        %1642 = vmatpush1.msra.mxu0 %v1607
        %1643 = vmatprep.subr.mxu0 0.0
        %1644 = vmatpush1.msra.mxu0 %v1606
        %1645 = vmatprep.subr.mxu0 0.0
        %1646 = vmatpush2.msra.mxu0 0.0
        %1647 = vmatprep.subr.mxu0 0.0
        %1648 = vmatpush2.msra.mxu0 0.0
        %1649 = vmatprep.subr.mxu0 0.0
        %1650 = vmatpush2.msra.mxu0 0.0
        %1651 = vmatprep.subr.mxu0 0.0
        %1652 = vmatpush2.msra.mxu0 0.0
        %1653 = vmatprep.subr.mxu0 0.0
        %1654 = vmatpush2.msra.mxu0 0.0
        %1655 = vmatprep.subr.mxu0 0.0
        %1656 = vmatpush2.msra.mxu0 0.0
        %1657 = vmatprep.subr.mxu0 0.0
        %1658 = vmatpush2.msra.mxu0 0.0
        %1659 = vmatprep.subr.mxu0 0.0
        %1660 = vmatpush2.msra.mxu0 0.0
        %1661 = vmatprep.subr.mxu0 0.0
        %1662 = vmatpush2.msra.mxu0 0.0
        %1663 = vmatprep.subr.mxu0 0.0
        %1664 = vmatpush2.msra.mxu0 0.0
        %1665 = vmatprep.subr.mxu0 0.0
        %1666 = vmatpush2.msra.mxu0 0.0
        %1667 = vmatprep.subr.mxu0 0.0
        %1668 = vmatpush2.msra.mxu0 0.0
        %1669 = vmatprep.subr.mxu0 0.0
        %1670 = vmatpush2.msra.mxu0 0.0
        %1671 = vmatprep.subr.mxu0 0.0
        %1672 = vmatpush2.msra.mxu0 0.0
        %1673 = vmatprep.subr.mxu0 0.0
        %1674 = vmatpush2.msra.mxu0 0.0
        %1675 = vmatprep.subr.mxu0 0.0
        %1676 = vmatpush2.msra.mxu0 0.0
        %1677 = vmatprep.mubr.f32.mxu0 0.0
        %1678 = vmatmul.mubr.f32.gmra.mxu0 %v1611
        %v1679 = vpop.f32.mrf.mxu0
        %v1680 = vadd.f32 0.0, %v1679
        %v1681 = vpop.f32.mrf.mxu0
        %1682 = vdwg.mxu0
        %v1683 = vadd.f32 %v1604, %v1680
        %s1684 = scalar_lea.vmem %s11, 64
        %v1685 = vld [vmem:[%s1684] sm:$0xff]
        %v1686 = vld [vmem:[%s1684 + $0x8] sm:$0xff]
        %v1687 = vld [vmem:[%s1684 + $0x10] sm:$0xff]
        %v1688 = vld [vmem:[%s1684 + $0x18] sm:$0xff]
        %v1690 = vsel %vm1334, %v1524, 0
        %1692 = vmatprep.subr.mxu0 0.0
        %1693 = vmatpush1.msra.mxu0 0.0
        %1694 = vmatprep.subr.mxu0 0.0
        %1695 = vmatpush1.msra.mxu0 0.0
        %1696 = vmatprep.subr.mxu0 0.0
        %1697 = vmatpush1.msra.mxu0 0.0
        %1698 = vmatprep.subr.mxu0 0.0
        %1699 = vmatpush1.msra.mxu0 0.0
        %1700 = vmatprep.subr.mxu0 0.0
        %1701 = vmatpush1.msra.mxu0 0.0
        %1702 = vmatprep.subr.mxu0 0.0
        %1703 = vmatpush1.msra.mxu0 0.0
        %1704 = vmatprep.subr.mxu0 0.0
        %1705 = vmatpush1.msra.mxu0 0.0
        %1706 = vmatprep.subr.mxu0 0.0
        %1707 = vmatpush1.msra.mxu0 0.0
        %1708 = vmatprep.subr.mxu0 0.0
        %1709 = vmatpush1.msra.mxu0 0.0
        %1710 = vmatprep.subr.mxu0 0.0
        %1711 = vmatpush1.msra.mxu0 0.0
        %1712 = vmatprep.subr.mxu0 0.0
        %1713 = vmatpush1.msra.mxu0 0.0
        %1714 = vmatprep.subr.mxu0 0.0
        %1715 = vmatpush1.msra.mxu0 0.0
        %1716 = vmatprep.subr.mxu0 0.0
        %1717 = vmatpush1.msra.mxu0 %v1688
        %1718 = vmatprep.subr.mxu0 0.0
        %1719 = vmatpush1.msra.mxu0 %v1687
        %1720 = vmatprep.subr.mxu0 0.0
        %1721 = vmatpush1.msra.mxu0 %v1686
        %1722 = vmatprep.subr.mxu0 0.0
        %1723 = vmatpush1.msra.mxu0 %v1685
        %1724 = vmatprep.subr.mxu0 0.0
        %1725 = vmatpush2.msra.mxu0 0.0
        %1726 = vmatprep.subr.mxu0 0.0
        %1727 = vmatpush2.msra.mxu0 0.0
        %1728 = vmatprep.subr.mxu0 0.0
        %1729 = vmatpush2.msra.mxu0 0.0
        %1730 = vmatprep.subr.mxu0 0.0
        %1731 = vmatpush2.msra.mxu0 0.0
        %1732 = vmatprep.subr.mxu0 0.0
        %1733 = vmatpush2.msra.mxu0 0.0
        %1734 = vmatprep.subr.mxu0 0.0
        %1735 = vmatpush2.msra.mxu0 0.0
        %1736 = vmatprep.subr.mxu0 0.0
        %1737 = vmatpush2.msra.mxu0 0.0
        %1738 = vmatprep.subr.mxu0 0.0
        %1739 = vmatpush2.msra.mxu0 0.0
        %1740 = vmatprep.subr.mxu0 0.0
        %1741 = vmatpush2.msra.mxu0 0.0
        %1742 = vmatprep.subr.mxu0 0.0
        %1743 = vmatpush2.msra.mxu0 0.0
        %1744 = vmatprep.subr.mxu0 0.0
        %1745 = vmatpush2.msra.mxu0 0.0
        %1746 = vmatprep.subr.mxu0 0.0
        %1747 = vmatpush2.msra.mxu0 0.0
        %1748 = vmatprep.subr.mxu0 0.0
        %1749 = vmatpush2.msra.mxu0 0.0
        %1750 = vmatprep.subr.mxu0 0.0
        %1751 = vmatpush2.msra.mxu0 0.0
        %1752 = vmatprep.subr.mxu0 0.0
        %1753 = vmatpush2.msra.mxu0 0.0
        %1754 = vmatprep.subr.mxu0 0.0
        %1755 = vmatpush2.msra.mxu0 0.0
        %1756 = vmatprep.mubr.f32.mxu0 0.0
        %1757 = vmatmul.mubr.f32.gmra.mxu0 %v1690
        %v1758 = vpop.f32.mrf.mxu0
        %v1759 = vadd.f32 0.0, %v1758
        %v1760 = vpop.f32.mrf.mxu0
        %1761 = vdwg.mxu0
        %v1762 = vadd.f32 %v1683, %v1759
        %v1764 = vlaneseq
        %v1765 = vshrl.u32 %v1764, 7
        %v1766 = vsub.s32 0, %v1765
        %v1767 = vrot.slane %v692, %v1766
        %v1769 = vadd.f32 %v1762, %v1767
        %v1770 = vtanh.pop %v1769
        %v1771 = vadd.f32 %v786, %v867
        %v1772 = vsel %vm1334, %v1436, 0
        %1774 = vmatprep.subr.mxu0 0.0
        %1775 = vmatpush1.msra.mxu0 0.0
        %1776 = vmatprep.subr.mxu0 0.0
        %1777 = vmatpush1.msra.mxu0 0.0
        %1778 = vmatprep.subr.mxu0 0.0
        %1779 = vmatpush1.msra.mxu0 0.0
        %1780 = vmatprep.subr.mxu0 0.0
        %1781 = vmatpush1.msra.mxu0 0.0
        %1782 = vmatprep.subr.mxu0 0.0
        %1783 = vmatpush1.msra.mxu0 0.0
        %1784 = vmatprep.subr.mxu0 0.0
        %1785 = vmatpush1.msra.mxu0 0.0
        %1786 = vmatprep.subr.mxu0 0.0
        %1787 = vmatpush1.msra.mxu0 0.0
        %1788 = vmatprep.subr.mxu0 0.0
        %1789 = vmatpush1.msra.mxu0 0.0
        %1790 = vmatprep.subr.mxu0 0.0
        %1791 = vmatpush1.msra.mxu0 0.0
        %1792 = vmatprep.subr.mxu0 0.0
        %1793 = vmatpush1.msra.mxu0 0.0
        %1794 = vmatprep.subr.mxu0 0.0
        %1795 = vmatpush1.msra.mxu0 0.0
        %1796 = vmatprep.subr.mxu0 0.0
        %1797 = vmatpush1.msra.mxu0 0.0
        %1798 = vmatprep.subr.mxu0 0.0
        %1799 = vmatpush1.msra.mxu0 %v691
        %1800 = vmatprep.subr.mxu0 0.0
        %1801 = vmatpush1.msra.mxu0 %v690
        %1802 = vmatprep.subr.mxu0 0.0
        %1803 = vmatpush1.msra.mxu0 %v689
        %1804 = vmatprep.subr.mxu0 0.0
        %1805 = vmatpush1.msra.mxu0 %v688
        %1806 = vmatprep.subr.mxu0 0.0
        %1807 = vmatpush2.msra.mxu0 0.0
        %1808 = vmatprep.subr.mxu0 0.0
        %1809 = vmatpush2.msra.mxu0 0.0
        %1810 = vmatprep.subr.mxu0 0.0
        %1811 = vmatpush2.msra.mxu0 0.0
        %1812 = vmatprep.subr.mxu0 0.0
        %1813 = vmatpush2.msra.mxu0 0.0
        %1814 = vmatprep.subr.mxu0 0.0
        %1815 = vmatpush2.msra.mxu0 0.0
        %1816 = vmatprep.subr.mxu0 0.0
        %1817 = vmatpush2.msra.mxu0 0.0
        %1818 = vmatprep.subr.mxu0 0.0
        %1819 = vmatpush2.msra.mxu0 0.0
        %1820 = vmatprep.subr.mxu0 0.0
        %1821 = vmatpush2.msra.mxu0 0.0
        %1822 = vmatprep.subr.mxu0 0.0
        %1823 = vmatpush2.msra.mxu0 0.0
        %1824 = vmatprep.subr.mxu0 0.0
        %1825 = vmatpush2.msra.mxu0 0.0
        %1826 = vmatprep.subr.mxu0 0.0
        %1827 = vmatpush2.msra.mxu0 0.0
        %1828 = vmatprep.subr.mxu0 0.0
        %1829 = vmatpush2.msra.mxu0 0.0
        %1830 = vmatprep.subr.mxu0 0.0
        %1831 = vmatpush2.msra.mxu0 0.0
        %1832 = vmatprep.subr.mxu0 0.0
        %1833 = vmatpush2.msra.mxu0 0.0
        %1834 = vmatprep.subr.mxu0 0.0
        %1835 = vmatpush2.msra.mxu0 0.0
        %1836 = vmatprep.subr.mxu0 0.0
        %1837 = vmatpush2.msra.mxu0 0.0
        %1838 = vmatprep.mubr.f32.mxu0 0.0
        %1839 = vmatmul.mubr.f32.gmra.mxu0 %v1772
        %v1840 = vpop.f32.mrf.mxu0
        %v1841 = vadd.f32 0.0, %v1840
        %v1842 = vpop.f32.mrf.mxu0
        %1843 = vdwg.mxu0
        %v1844 = vadd.f32 %v1771, %v1841
        %v1845 = vld [vmem:[%s16] sm:$0x1]
        %v1846 = vlaneseq
        %v1847 = vshrl.u32 %v1846, 7
        %v1848 = vsub.s32 0, %v1847
        %v1849 = vrot.slane %v1845, %v1848
        %v1850 = vmul.f32 %v1844, %v1849
        %v1851 = vsel %vm1334, %v1850, 0.0
        %1852 = vadd.xlane.f32.xlu0 %v1851
        %v1853 = vpop.xlane.xlu0 %1852
        %v1854 = vld [vmem:[%s17] sm:$0x1]
        %v1855 = vlaneseq
        %v1856 = vshrl.u32 %v1855, 7
        %v1857 = vsub.s32 0, %v1856
        %v1858 = vrot.slane %v1854, %v1857
        %v1859 = vmul.f32 %v1844, %v1858
        %v1860 = vsel %vm1334, %v1859, 0.0
        %1861 = vadd.xlane.f32.xlu0 %v1860
        %v1862 = vpop.xlane.xlu0 %1861
        %v1864 = vlaneseq
        %v1865 = vand.u32 %v1864, 127
        %v1866 = vlaneseq
        %v1867 = vshrl.u32 %v1866, 7
        %v1868 = vsub.s32 %v1865, %v1867
        %v1869 = vrot.slane %v1862, %v1868
        %vm1870 = vcmask 1042434
        %v1871 = vsel %vm1870, %v1869, %v1869
        %vm1872 = vcmask 1043459
        %v1873 = vsel %vm1872, %v1869, %v1871
        %vm1874 = vcmask 1044484
        %v1875 = vsel %vm1874, %v1869, %v1873
        %vm1876 = vcmask 1045509
        %v1877 = vsel %vm1876, %v1869, %v1875
        %vm1878 = vcmask 1046534
        %v1879 = vsel %vm1878, %v1869, %v1877
        %vm1880 = vcmask 1047559
        %v1881 = vsel %vm1880, %v1869, %v1879
        %v1883 = vadd.f32 %v1853, %v1881
        %vm1884 = vcmp.gt.f32.partialorder %v1883, 0.0
        %v1885 = vmul.f32 %v1883, 0.2
        %v1886 = vsel %vm1884, %v1883, %v1885
        %v1887 = vadd.f32 %v1886, %v679
        %v1888 = vsel %vm871, %v1887, -inf
        %1889 = vmax.xlane.f32.xlu0 %v1888
        %v1890 = vpop.xlane.xlu0 %1889
        %v1891 = vsub.f32 %v1887, %v1890
        %v1892 = vmul.f32 %v1891, 1.442695
        %v1893 = vpow.pop %v1892
        %v1894 = vsel %vm871, %v1893, 0.0
        %1895 = vadd.xlane.f32.xlu0 %v1894
        %v1896 = vpop.xlane.xlu0 %1895
        %v1897 = vrcp.pop %v1896
        %v1898 = vmul.f32 %v1893, %v1897
        %v1899 = vld [vmem:[%s16 + $0x1] sm:$0x1]
        %v1900 = vlaneseq
        %v1901 = vshrl.u32 %v1900, 7
        %v1902 = vsub.s32 0, %v1901
        %v1903 = vrot.slane %v1899, %v1902
        %1905 = vrot.lane.b32.xlu0 %v1903, 32
        %v1906 = vpop.permute.xlu0 %1905
        %v1908 = vmul.f32 %v1844, %v1906
        %1910 = vrot.lane.b32.xlu0 %v1908, 96
        %v1911 = vpop.permute.xlu0 %1910
        %v1913 = vsel %vm1334, %v1911, 0.0
        %1914 = vadd.xlane.f32.xlu0 %v1913
        %v1915 = vpop.xlane.xlu0 %1914
        %v1916 = vld [vmem:[%s17 + $0x1] sm:$0x1]
        %v1917 = vlaneseq
        %v1918 = vshrl.u32 %v1917, 7
        %v1919 = vsub.s32 0, %v1918
        %v1920 = vrot.slane %v1916, %v1919
        %1922 = vrot.lane.b32.xlu0 %v1920, 32
        %v1923 = vpop.permute.xlu0 %1922
        %v1925 = vmul.f32 %v1844, %v1923
        %1927 = vrot.lane.b32.xlu0 %v1925, 96
        %v1928 = vpop.permute.xlu0 %1927
        %v1930 = vsel %vm1334, %v1928, 0.0
        %1931 = vadd.xlane.f32.xlu0 %v1930
        %v1932 = vpop.xlane.xlu0 %1931
        %v1934 = vlaneseq
        %v1935 = vshrl.u32 %v1934, 7
        %v1936 = vsub.s32 %v1865, %v1935
        %v1937 = vrot.slane %v1932, %v1936
        %v1938 = vsel %vm1870, %v1937, %v1937
        %v1939 = vsel %vm1872, %v1937, %v1938
        %v1940 = vsel %vm1874, %v1937, %v1939
        %v1941 = vsel %vm1876, %v1937, %v1940
        %v1942 = vsel %vm1878, %v1937, %v1941
        %v1943 = vsel %vm1880, %v1937, %v1942
        %v1945 = vadd.f32 %v1915, %v1943
        %vm1946 = vcmp.gt.f32.partialorder %v1945, 0.0
        %v1947 = vmul.f32 %v1945, 0.2
        %v1948 = vsel %vm1946, %v1945, %v1947
        %v1949 = vadd.f32 %v1948, %v679
        %v1950 = vsel %vm871, %v1949, -inf
        %1951 = vmax.xlane.f32.xlu0 %v1950
        %v1952 = vpop.xlane.xlu0 %1951
        %v1953 = vsub.f32 %v1949, %v1952
        %v1954 = vmul.f32 %v1953, 1.442695
        %v1955 = vpow.pop %v1954
        %v1956 = vsel %vm871, %v1955, 0.0
        %1957 = vadd.xlane.f32.xlu0 %v1956
        %v1958 = vpop.xlane.xlu0 %1957
        %v1959 = vrcp.pop %v1958
        %v1960 = vmul.f32 %v1955, %v1959
        %1962 = vrot.lane.b32.xlu0 %v1844, 96
        %v1963 = vpop.permute.xlu0 %1962
        %v1966 = vsel %vm871, %v1960, 0
        %1968 = vmatprep.subr.mxu0 0.0
        %1969 = vmatpush1.msra.mxu0 0.0
        %1970 = vmatprep.subr.mxu0 0.0
        %1971 = vmatpush1.msra.mxu0 0.0
        %1972 = vmatprep.subr.mxu0 0.0
        %1973 = vmatpush1.msra.mxu0 0.0
        %1974 = vmatprep.subr.mxu0 0.0
        %1975 = vmatpush1.msra.mxu0 0.0
        %1976 = vmatprep.subr.mxu0 0.0
        %1977 = vmatpush1.msra.mxu0 0.0
        %1978 = vmatprep.subr.mxu0 0.0
        %1979 = vmatpush1.msra.mxu0 0.0
        %1980 = vmatprep.subr.mxu0 0.0
        %1981 = vmatpush1.msra.mxu0 0.0
        %1982 = vmatprep.subr.mxu0 0.0
        %1983 = vmatpush1.msra.mxu0 0.0
        %1984 = vmatprep.subr.mxu0 0.0
        %1985 = vmatpush1.msra.mxu0 0.0
        %1986 = vmatprep.subr.mxu0 0.0
        %1987 = vmatpush1.msra.mxu0 0.0
        %1988 = vmatprep.subr.mxu0 0.0
        %1989 = vmatpush1.msra.mxu0 0.0
        %1990 = vmatprep.subr.mxu0 0.0
        %1991 = vmatpush1.msra.mxu0 0.0
        %1992 = vmatprep.subr.mxu0 0.0
        %1993 = vmatpush1.msra.mxu0 0.0
        %1994 = vmatprep.subr.mxu0 0.0
        %1995 = vmatpush1.msra.mxu0 0.0
        %1996 = vmatprep.subr.mxu0 0.0
        %1997 = vmatpush1.msra.mxu0 0.0
        %1998 = vmatprep.subr.mxu0 0.0
        %1999 = vmatpush1.msra.mxu0 %v1963
        %2000 = vmatprep.subr.mxu0 0.0
        %2001 = vmatpush2.msra.mxu0 0.0
        %2002 = vmatprep.subr.mxu0 0.0
        %2003 = vmatpush2.msra.mxu0 0.0
        %2004 = vmatprep.subr.mxu0 0.0
        %2005 = vmatpush2.msra.mxu0 0.0
        %2006 = vmatprep.subr.mxu0 0.0
        %2007 = vmatpush2.msra.mxu0 0.0
        %2008 = vmatprep.subr.mxu0 0.0
        %2009 = vmatpush2.msra.mxu0 0.0
        %2010 = vmatprep.subr.mxu0 0.0
        %2011 = vmatpush2.msra.mxu0 0.0
        %2012 = vmatprep.subr.mxu0 0.0
        %2013 = vmatpush2.msra.mxu0 0.0
        %2014 = vmatprep.subr.mxu0 0.0
        %2015 = vmatpush2.msra.mxu0 0.0
        %2016 = vmatprep.subr.mxu0 0.0
        %2017 = vmatpush2.msra.mxu0 0.0
        %2018 = vmatprep.subr.mxu0 0.0
        %2019 = vmatpush2.msra.mxu0 0.0
        %2020 = vmatprep.subr.mxu0 0.0
        %2021 = vmatpush2.msra.mxu0 0.0
        %2022 = vmatprep.subr.mxu0 0.0
        %2023 = vmatpush2.msra.mxu0 0.0
        %2024 = vmatprep.subr.mxu0 0.0
        %2025 = vmatpush2.msra.mxu0 0.0
        %2026 = vmatprep.subr.mxu0 0.0
        %2027 = vmatpush2.msra.mxu0 0.0
        %2028 = vmatprep.subr.mxu0 0.0
        %2029 = vmatpush2.msra.mxu0 0.0
        %2030 = vmatprep.subr.mxu0 0.0
        %2031 = vmatpush2.msra.mxu0 0.0
        %2032 = vmatprep.mubr.f32.mxu0 0.0
        %2033 = vmatmul.mubr.f32.gmra.mxu0 %v1966
        %v2034 = vpop.f32.mrf.mxu0
        %v2035 = vadd.f32 0.0, %v2034
        %v2036 = vpop.f32.mrf.mxu0
        %2037 = vdwg.mxu0
        %v2039 = vsel %vm871, %v1898, 0
        %2041 = vmatprep.subr.mxu0 0.0
        %2042 = vmatpush1.msra.mxu0 0.0
        %2043 = vmatprep.subr.mxu0 0.0
        %2044 = vmatpush1.msra.mxu0 0.0
        %2045 = vmatprep.subr.mxu0 0.0
        %2046 = vmatpush1.msra.mxu0 0.0
        %2047 = vmatprep.subr.mxu0 0.0
        %2048 = vmatpush1.msra.mxu0 0.0
        %2049 = vmatprep.subr.mxu0 0.0
        %2050 = vmatpush1.msra.mxu0 0.0
        %2051 = vmatprep.subr.mxu0 0.0
        %2052 = vmatpush1.msra.mxu0 0.0
        %2053 = vmatprep.subr.mxu0 0.0
        %2054 = vmatpush1.msra.mxu0 0.0
        %2055 = vmatprep.subr.mxu0 0.0
        %2056 = vmatpush1.msra.mxu0 0.0
        %2057 = vmatprep.subr.mxu0 0.0
        %2058 = vmatpush1.msra.mxu0 0.0
        %2059 = vmatprep.subr.mxu0 0.0
        %2060 = vmatpush1.msra.mxu0 0.0
        %2061 = vmatprep.subr.mxu0 0.0
        %2062 = vmatpush1.msra.mxu0 0.0
        %2063 = vmatprep.subr.mxu0 0.0
        %2064 = vmatpush1.msra.mxu0 0.0
        %2065 = vmatprep.subr.mxu0 0.0
        %2066 = vmatpush1.msra.mxu0 0.0
        %2067 = vmatprep.subr.mxu0 0.0
        %2068 = vmatpush1.msra.mxu0 0.0
        %2069 = vmatprep.subr.mxu0 0.0
        %2070 = vmatpush1.msra.mxu0 0.0
        %2071 = vmatprep.subr.mxu0 0.0
        %2072 = vmatpush1.msra.mxu0 %v1844
        %2073 = vmatprep.subr.mxu0 0.0
        %2074 = vmatpush2.msra.mxu0 0.0
        %2075 = vmatprep.subr.mxu0 0.0
        %2076 = vmatpush2.msra.mxu0 0.0
        %2077 = vmatprep.subr.mxu0 0.0
        %2078 = vmatpush2.msra.mxu0 0.0
        %2079 = vmatprep.subr.mxu0 0.0
        %2080 = vmatpush2.msra.mxu0 0.0
        %2081 = vmatprep.subr.mxu0 0.0
        %2082 = vmatpush2.msra.mxu0 0.0
        %2083 = vmatprep.subr.mxu0 0.0
        %2084 = vmatpush2.msra.mxu0 0.0
        %2085 = vmatprep.subr.mxu0 0.0
        %2086 = vmatpush2.msra.mxu0 0.0
        %2087 = vmatprep.subr.mxu0 0.0
        %2088 = vmatpush2.msra.mxu0 0.0
        %2089 = vmatprep.subr.mxu0 0.0
        %2090 = vmatpush2.msra.mxu0 0.0
        %2091 = vmatprep.subr.mxu0 0.0
        %2092 = vmatpush2.msra.mxu0 0.0
        %2093 = vmatprep.subr.mxu0 0.0
        %2094 = vmatpush2.msra.mxu0 0.0
        %2095 = vmatprep.subr.mxu0 0.0
        %2096 = vmatpush2.msra.mxu0 0.0
        %2097 = vmatprep.subr.mxu0 0.0
        %2098 = vmatpush2.msra.mxu0 0.0
        %2099 = vmatprep.subr.mxu0 0.0
        %2100 = vmatpush2.msra.mxu0 0.0
        %2101 = vmatprep.subr.mxu0 0.0
        %2102 = vmatpush2.msra.mxu0 0.0
        %2103 = vmatprep.subr.mxu0 0.0
        %2104 = vmatpush2.msra.mxu0 0.0
        %2105 = vmatprep.mubr.f32.mxu0 0.0
        %2106 = vmatmul.mubr.f32.gmra.mxu0 %v2039
        %v2107 = vpop.f32.mrf.mxu0
        %v2108 = vadd.f32 %v2035, %v2107
        %v2109 = vpop.f32.mrf.mxu0
        %2110 = vdwg.mxu0
        %v2111 = vmul.f32 %v2108, 0.5
        %v2112 = vtanh.pop %v2111
        %v2113 = vmul.f32 %v1320, %v1433
        %v2114 = vmul.f32 %v1322, %v1770
        %2116 = vrot.lane.b32.xlu0 %v2114, 32
        %v2117 = vpop.permute.xlu0 %2116
        %v2119 = vadd.f32 %v2113, %v2117
        %v2120 = vmul.f32 %v1325, %v2112
        %2122 = vrot.lane.b32.xlu0 %v2120, 32
        %v2123 = vpop.permute.xlu0 %2122
        %v2125 = vadd.f32 %v2119, %v2123
        %2127 = vrot.lane.b32.xlu0 %v2125, 96
        %v2128 = vpop.permute.xlu0 %2127
        %v2129 = vsel %vm1334, %v2128, 0
        %2131 = vmatprep.subr.mxu0 0.0
        %2132 = vmatpush1.msra.mxu0 0.0
        %2133 = vmatprep.subr.mxu0 0.0
        %2134 = vmatpush1.msra.mxu0 0.0
        %2135 = vmatprep.subr.mxu0 0.0
        %2136 = vmatpush1.msra.mxu0 0.0
        %2137 = vmatprep.subr.mxu0 0.0
        %2138 = vmatpush1.msra.mxu0 0.0
        %2139 = vmatprep.subr.mxu0 0.0
        %2140 = vmatpush1.msra.mxu0 0.0
        %2141 = vmatprep.subr.mxu0 0.0
        %2142 = vmatpush1.msra.mxu0 0.0
        %2143 = vmatprep.subr.mxu0 0.0
        %2144 = vmatpush1.msra.mxu0 0.0
        %2145 = vmatprep.subr.mxu0 0.0
        %2146 = vmatpush1.msra.mxu0 0.0
        %2147 = vmatprep.subr.mxu0 0.0
        %2148 = vmatpush1.msra.mxu0 0.0
        %2149 = vmatprep.subr.mxu0 0.0
        %2150 = vmatpush1.msra.mxu0 0.0
        %2151 = vmatprep.subr.mxu0 0.0
        %2152 = vmatpush1.msra.mxu0 0.0
        %2153 = vmatprep.subr.mxu0 0.0
        %2154 = vmatpush1.msra.mxu0 0.0
        %2155 = vmatprep.subr.mxu0 0.0
        %2156 = vmatpush1.msra.mxu0 %v686
        %2157 = vmatprep.subr.mxu0 0.0
        %2158 = vmatpush1.msra.mxu0 %v685
        %2159 = vmatprep.subr.mxu0 0.0
        %2160 = vmatpush1.msra.mxu0 %v684
        %2161 = vmatprep.subr.mxu0 0.0
        %2162 = vmatpush1.msra.mxu0 %v683
        %2163 = vmatprep.subr.mxu0 0.0
        %2164 = vmatpush2.msra.mxu0 0.0
        %2165 = vmatprep.subr.mxu0 0.0
        %2166 = vmatpush2.msra.mxu0 0.0
        %2167 = vmatprep.subr.mxu0 0.0
        %2168 = vmatpush2.msra.mxu0 0.0
        %2169 = vmatprep.subr.mxu0 0.0
        %2170 = vmatpush2.msra.mxu0 0.0
        %2171 = vmatprep.subr.mxu0 0.0
        %2172 = vmatpush2.msra.mxu0 0.0
        %2173 = vmatprep.subr.mxu0 0.0
        %2174 = vmatpush2.msra.mxu0 0.0
        %2175 = vmatprep.subr.mxu0 0.0
        %2176 = vmatpush2.msra.mxu0 0.0
        %2177 = vmatprep.subr.mxu0 0.0
        %2178 = vmatpush2.msra.mxu0 0.0
        %2179 = vmatprep.subr.mxu0 0.0
        %2180 = vmatpush2.msra.mxu0 0.0
        %2181 = vmatprep.subr.mxu0 0.0
        %2182 = vmatpush2.msra.mxu0 0.0
        %2183 = vmatprep.subr.mxu0 0.0
        %2184 = vmatpush2.msra.mxu0 0.0
        %2185 = vmatprep.subr.mxu0 0.0
        %2186 = vmatpush2.msra.mxu0 0.0
        %2187 = vmatprep.subr.mxu0 0.0
        %2188 = vmatpush2.msra.mxu0 0.0
        %2189 = vmatprep.subr.mxu0 0.0
        %2190 = vmatpush2.msra.mxu0 0.0
        %2191 = vmatprep.subr.mxu0 0.0
        %2192 = vmatpush2.msra.mxu0 0.0
        %2193 = vmatprep.subr.mxu0 0.0
        %2194 = vmatpush2.msra.mxu0 0.0
        %2195 = vmatprep.mubr.f32.mxu0 0.0
        %2196 = vmatmul.mubr.f32.gmra.mxu0 %v2129
        %v2197 = vpop.f32.mrf.mxu0
        %v2198 = vadd.f32 %v1332, %v2197
        %v2199 = vpop.f32.mrf.mxu0
        %2200 = vdwg.mxu0
        %v2201 = vadd.f32 %v772, %v2198
        %v2202 = vxor.u32 %v2201, 2147483648
        %v2203 = vmul.f32 %v2202, 1.442695
        %v2204 = vpow.pop %v2203
        %v2205 = vadd.f32 %v2204, 1.0
        %v2206 = vrcp.pop %v2205
        %v2207 = vmul.f32 1.0, %v2206
        %2209 = vrot.lane.b32.xlu0 %v2198, 64
        %v2210 = vpop.permute.xlu0 %2209
        %v2212 = vmul.f32 %v2207, %v2210
        %2214 = vrot.lane.b32.xlu0 %v2212, 64
        %v2215 = vpop.permute.xlu0 %2214
        %v2217 = vadd.f32 %v772, %v2215
        %v2218 = vtanh.pop %v2217
        %v2219 = vsub.f32 1.0, %v2207
        %2221 = vrot.lane.b32.xlu0 %v2218, 96
        %v2222 = vpop.permute.xlu0 %2221
        %v2224 = vmul.f32 %v2219, %v2222
        %v2225 = vmul.f32 %v2207, %v2125
        %v2226 = vadd.f32 %v2224, %v2225
        %2228 = vrot.lane.b32.xlu0 %v2226, 96
        %v2229 = vpop.permute.xlu0 %2228
        %2231 = vmatprep.subr.mxu0 0.0
        %2232 = vmatpush1.msra.mxu0 0.0
        %2233 = vmatprep.subr.mxu0 0.0
        %2234 = vmatpush1.msra.mxu0 0.0
        %2235 = vmatprep.subr.mxu0 0.0
        %2236 = vmatpush1.msra.mxu0 0.0
        %2237 = vmatprep.subr.mxu0 0.0
        %2238 = vmatpush1.msra.mxu0 0.0
        %2239 = vmatprep.subr.mxu0 0.0
        %2240 = vmatpush1.msra.mxu0 0.0
        %2241 = vmatprep.subr.mxu0 0.0
        %2242 = vmatpush1.msra.mxu0 0.0
        %2243 = vmatprep.subr.mxu0 0.0
        %2244 = vmatpush1.msra.mxu0 0.0
        %2245 = vmatprep.subr.mxu0 0.0
        %2246 = vmatpush1.msra.mxu0 0.0
        %2247 = vmatprep.subr.mxu0 0.0
        %2248 = vmatpush1.msra.mxu0 0.0
        %2249 = vmatprep.subr.mxu0 0.0
        %2250 = vmatpush1.msra.mxu0 0.0
        %2251 = vmatprep.subr.mxu0 0.0
        %2252 = vmatpush1.msra.mxu0 0.0
        %2253 = vmatprep.subr.mxu0 0.0
        %2254 = vmatpush1.msra.mxu0 0.0
        %2255 = vmatprep.subr.mxu0 0.0
        %2256 = vmatpush1.msra.mxu0 0.0
        %2257 = vmatprep.subr.mxu0 0.0
        %2258 = vmatpush1.msra.mxu0 0.0
        %2259 = vmatprep.subr.mxu0 0.0
        %2260 = vmatpush1.msra.mxu0 0.0
        %2261 = vmatprep.subr.mxu0 0.0
        %2262 = vmatpush1.msra.mxu0 %v2229
        %2263 = vmatprep.subr.mxu0 0.0
        %2264 = vmatpush2.msra.mxu0 0.0
        %2265 = vmatprep.subr.mxu0 0.0
        %2266 = vmatpush2.msra.mxu0 0.0
        %2267 = vmatprep.subr.mxu0 0.0
        %2268 = vmatpush2.msra.mxu0 0.0
        %2269 = vmatprep.subr.mxu0 0.0
        %2270 = vmatpush2.msra.mxu0 0.0
        %2271 = vmatprep.subr.mxu0 0.0
        %2272 = vmatpush2.msra.mxu0 0.0
        %2273 = vmatprep.subr.mxu0 0.0
        %2274 = vmatpush2.msra.mxu0 0.0
        %2275 = vmatprep.subr.mxu0 0.0
        %2276 = vmatpush2.msra.mxu0 0.0
        %2277 = vmatprep.subr.mxu0 0.0
        %2278 = vmatpush2.msra.mxu0 0.0
        %2279 = vmatprep.subr.mxu0 0.0
        %2280 = vmatpush2.msra.mxu0 0.0
        %2281 = vmatprep.subr.mxu0 0.0
        %2282 = vmatpush2.msra.mxu0 0.0
        %2283 = vmatprep.subr.mxu0 0.0
        %2284 = vmatpush2.msra.mxu0 0.0
        %2285 = vmatprep.subr.mxu0 0.0
        %2286 = vmatpush2.msra.mxu0 0.0
        %2287 = vmatprep.subr.mxu0 0.0
        %2288 = vmatpush2.msra.mxu0 0.0
        %2289 = vmatprep.subr.mxu0 0.0
        %2290 = vmatpush2.msra.mxu0 0.0
        %2291 = vmatprep.subr.mxu0 0.0
        %2292 = vmatpush2.msra.mxu0 0.0
        %2293 = vmatprep.subr.mxu0 0.0
        %2294 = vmatpush2.msra.mxu0 0.0
        %2295 = vmatprep.mubr.f32.mxu0 0.0
        %2296 = vmatmul.mubr.f32.gmra.mxu0 %v1439
        %v2297 = vpop.f32.mrf.mxu0
        %v2298 = vadd.f32 0.0, %v2297
        %v2299 = vpop.f32.mrf.mxu0
        %2300 = vmatprep.mubr.f32.mxu0 0.0
        %2301 = vmatmul.mubr.f32.gmra.mxu0 %v1442
        %v2302 = vpop.f32.mrf.mxu0
        %v2303 = vadd.f32 0.0, %v2302
        %v2304 = vpop.f32.mrf.mxu0
        %2305 = vmatprep.mubr.f32.mxu0 0.0
        %2306 = vmatmul.mubr.f32.gmra.mxu0 %v1445
        %v2307 = vpop.f32.mrf.mxu0
        %v2308 = vadd.f32 0.0, %v2307
        %v2309 = vpop.f32.mrf.mxu0
        %2310 = vdwg.mxu0
        %v2312 = vsel %vm1334, %v2298, 0
        %2314 = vmatprep.subr.mxu0 0.0
        %2315 = vmatpush1.msra.mxu0 0.0
        %2316 = vmatprep.subr.mxu0 0.0
        %2317 = vmatpush1.msra.mxu0 0.0
        %2318 = vmatprep.subr.mxu0 0.0
        %2319 = vmatpush1.msra.mxu0 0.0
        %2320 = vmatprep.subr.mxu0 0.0
        %2321 = vmatpush1.msra.mxu0 0.0
        %2322 = vmatprep.subr.mxu0 0.0
        %2323 = vmatpush1.msra.mxu0 0.0
        %2324 = vmatprep.subr.mxu0 0.0
        %2325 = vmatpush1.msra.mxu0 0.0
        %2326 = vmatprep.subr.mxu0 0.0
        %2327 = vmatpush1.msra.mxu0 0.0
        %2328 = vmatprep.subr.mxu0 0.0
        %2329 = vmatpush1.msra.mxu0 0.0
        %2330 = vmatprep.subr.mxu0 0.0
        %2331 = vmatpush1.msra.mxu0 0.0
        %2332 = vmatprep.subr.mxu0 0.0
        %2333 = vmatpush1.msra.mxu0 0.0
        %2334 = vmatprep.subr.mxu0 0.0
        %2335 = vmatpush1.msra.mxu0 0.0
        %2336 = vmatprep.subr.mxu0 0.0
        %2337 = vmatpush1.msra.mxu0 0.0
        %2338 = vmatprep.subr.mxu0 0.0
        %2339 = vmatpush1.msra.mxu0 %v1530
        %2340 = vmatprep.subr.mxu0 0.0
        %2341 = vmatpush1.msra.mxu0 %v1529
        %2342 = vmatprep.subr.mxu0 0.0
        %2343 = vmatpush1.msra.mxu0 %v1528
        %2344 = vmatprep.subr.mxu0 0.0
        %2345 = vmatpush1.msra.mxu0 %v1527
        %2346 = vmatprep.subr.mxu0 0.0
        %2347 = vmatpush2.msra.mxu0 0.0
        %2348 = vmatprep.subr.mxu0 0.0
        %2349 = vmatpush2.msra.mxu0 0.0
        %2350 = vmatprep.subr.mxu0 0.0
        %2351 = vmatpush2.msra.mxu0 0.0
        %2352 = vmatprep.subr.mxu0 0.0
        %2353 = vmatpush2.msra.mxu0 0.0
        %2354 = vmatprep.subr.mxu0 0.0
        %2355 = vmatpush2.msra.mxu0 0.0
        %2356 = vmatprep.subr.mxu0 0.0
        %2357 = vmatpush2.msra.mxu0 0.0
        %2358 = vmatprep.subr.mxu0 0.0
        %2359 = vmatpush2.msra.mxu0 0.0
        %2360 = vmatprep.subr.mxu0 0.0
        %2361 = vmatpush2.msra.mxu0 0.0
        %2362 = vmatprep.subr.mxu0 0.0
        %2363 = vmatpush2.msra.mxu0 0.0
        %2364 = vmatprep.subr.mxu0 0.0
        %2365 = vmatpush2.msra.mxu0 0.0
        %2366 = vmatprep.subr.mxu0 0.0
        %2367 = vmatpush2.msra.mxu0 0.0
        %2368 = vmatprep.subr.mxu0 0.0
        %2369 = vmatpush2.msra.mxu0 0.0
        %2370 = vmatprep.subr.mxu0 0.0
        %2371 = vmatpush2.msra.mxu0 0.0
        %2372 = vmatprep.subr.mxu0 0.0
        %2373 = vmatpush2.msra.mxu0 0.0
        %2374 = vmatprep.subr.mxu0 0.0
        %2375 = vmatpush2.msra.mxu0 0.0
        %2376 = vmatprep.subr.mxu0 0.0
        %2377 = vmatpush2.msra.mxu0 0.0
        %2378 = vmatprep.mubr.f32.mxu0 0.0
        %2379 = vmatmul.mubr.f32.gmra.mxu0 %v2312
        %v2380 = vpop.f32.mrf.mxu0
        %v2381 = vadd.f32 0.0, %v2380
        %v2382 = vpop.f32.mrf.mxu0
        %2383 = vdwg.mxu0
        %v2384 = vadd.f32 %v1313, %v2381
        %v2386 = vsel %vm1334, %v2303, 0
        %2388 = vmatprep.subr.mxu0 0.0
        %2389 = vmatpush1.msra.mxu0 0.0
        %2390 = vmatprep.subr.mxu0 0.0
        %2391 = vmatpush1.msra.mxu0 0.0
        %2392 = vmatprep.subr.mxu0 0.0
        %2393 = vmatpush1.msra.mxu0 0.0
        %2394 = vmatprep.subr.mxu0 0.0
        %2395 = vmatpush1.msra.mxu0 0.0
        %2396 = vmatprep.subr.mxu0 0.0
        %2397 = vmatpush1.msra.mxu0 0.0
        %2398 = vmatprep.subr.mxu0 0.0
        %2399 = vmatpush1.msra.mxu0 0.0
        %2400 = vmatprep.subr.mxu0 0.0
        %2401 = vmatpush1.msra.mxu0 0.0
        %2402 = vmatprep.subr.mxu0 0.0
        %2403 = vmatpush1.msra.mxu0 0.0
        %2404 = vmatprep.subr.mxu0 0.0
        %2405 = vmatpush1.msra.mxu0 0.0
        %2406 = vmatprep.subr.mxu0 0.0
        %2407 = vmatpush1.msra.mxu0 0.0
        %2408 = vmatprep.subr.mxu0 0.0
        %2409 = vmatpush1.msra.mxu0 0.0
        %2410 = vmatprep.subr.mxu0 0.0
        %2411 = vmatpush1.msra.mxu0 0.0
        %2412 = vmatprep.subr.mxu0 0.0
        %2413 = vmatpush1.msra.mxu0 %v1609
        %2414 = vmatprep.subr.mxu0 0.0
        %2415 = vmatpush1.msra.mxu0 %v1608
        %2416 = vmatprep.subr.mxu0 0.0
        %2417 = vmatpush1.msra.mxu0 %v1607
        %2418 = vmatprep.subr.mxu0 0.0
        %2419 = vmatpush1.msra.mxu0 %v1606
        %2420 = vmatprep.subr.mxu0 0.0
        %2421 = vmatpush2.msra.mxu0 0.0
        %2422 = vmatprep.subr.mxu0 0.0
        %2423 = vmatpush2.msra.mxu0 0.0
        %2424 = vmatprep.subr.mxu0 0.0
        %2425 = vmatpush2.msra.mxu0 0.0
        %2426 = vmatprep.subr.mxu0 0.0
        %2427 = vmatpush2.msra.mxu0 0.0
        %2428 = vmatprep.subr.mxu0 0.0
        %2429 = vmatpush2.msra.mxu0 0.0
        %2430 = vmatprep.subr.mxu0 0.0
        %2431 = vmatpush2.msra.mxu0 0.0
        %2432 = vmatprep.subr.mxu0 0.0
        %2433 = vmatpush2.msra.mxu0 0.0
        %2434 = vmatprep.subr.mxu0 0.0
        %2435 = vmatpush2.msra.mxu0 0.0
        %2436 = vmatprep.subr.mxu0 0.0
        %2437 = vmatpush2.msra.mxu0 0.0
        %2438 = vmatprep.subr.mxu0 0.0
        %2439 = vmatpush2.msra.mxu0 0.0
        %2440 = vmatprep.subr.mxu0 0.0
        %2441 = vmatpush2.msra.mxu0 0.0
        %2442 = vmatprep.subr.mxu0 0.0
        %2443 = vmatpush2.msra.mxu0 0.0
        %2444 = vmatprep.subr.mxu0 0.0
        %2445 = vmatpush2.msra.mxu0 0.0
        %2446 = vmatprep.subr.mxu0 0.0
        %2447 = vmatpush2.msra.mxu0 0.0
        %2448 = vmatprep.subr.mxu0 0.0
        %2449 = vmatpush2.msra.mxu0 0.0
        %2450 = vmatprep.subr.mxu0 0.0
        %2451 = vmatpush2.msra.mxu0 0.0
        %2452 = vmatprep.mubr.f32.mxu0 0.0
        %2453 = vmatmul.mubr.f32.gmra.mxu0 %v2386
        %v2454 = vpop.f32.mrf.mxu0
        %v2455 = vadd.f32 0.0, %v2454
        %v2456 = vpop.f32.mrf.mxu0
        %2457 = vdwg.mxu0
        %v2458 = vadd.f32 %v2384, %v2455
        %v2460 = vsel %vm1334, %v2308, 0
        %2462 = vmatprep.subr.mxu0 0.0
        %2463 = vmatpush1.msra.mxu0 0.0
        %2464 = vmatprep.subr.mxu0 0.0
        %2465 = vmatpush1.msra.mxu0 0.0
        %2466 = vmatprep.subr.mxu0 0.0
        %2467 = vmatpush1.msra.mxu0 0.0
        %2468 = vmatprep.subr.mxu0 0.0
        %2469 = vmatpush1.msra.mxu0 0.0
        %2470 = vmatprep.subr.mxu0 0.0
        %2471 = vmatpush1.msra.mxu0 0.0
        %2472 = vmatprep.subr.mxu0 0.0
        %2473 = vmatpush1.msra.mxu0 0.0
        %2474 = vmatprep.subr.mxu0 0.0
        %2475 = vmatpush1.msra.mxu0 0.0
        %2476 = vmatprep.subr.mxu0 0.0
        %2477 = vmatpush1.msra.mxu0 0.0
        %2478 = vmatprep.subr.mxu0 0.0
        %2479 = vmatpush1.msra.mxu0 0.0
        %2480 = vmatprep.subr.mxu0 0.0
        %2481 = vmatpush1.msra.mxu0 0.0
        %2482 = vmatprep.subr.mxu0 0.0
        %2483 = vmatpush1.msra.mxu0 0.0
        %2484 = vmatprep.subr.mxu0 0.0
        %2485 = vmatpush1.msra.mxu0 0.0
        %2486 = vmatprep.subr.mxu0 0.0
        %2487 = vmatpush1.msra.mxu0 %v1688
        %2488 = vmatprep.subr.mxu0 0.0
        %2489 = vmatpush1.msra.mxu0 %v1687
        %2490 = vmatprep.subr.mxu0 0.0
        %2491 = vmatpush1.msra.mxu0 %v1686
        %2492 = vmatprep.subr.mxu0 0.0
        %2493 = vmatpush1.msra.mxu0 %v1685
        %2494 = vmatprep.subr.mxu0 0.0
        %2495 = vmatpush2.msra.mxu0 0.0
        %2496 = vmatprep.subr.mxu0 0.0
        %2497 = vmatpush2.msra.mxu0 0.0
        %2498 = vmatprep.subr.mxu0 0.0
        %2499 = vmatpush2.msra.mxu0 0.0
        %2500 = vmatprep.subr.mxu0 0.0
        %2501 = vmatpush2.msra.mxu0 0.0
        %2502 = vmatprep.subr.mxu0 0.0
        %2503 = vmatpush2.msra.mxu0 0.0
        %2504 = vmatprep.subr.mxu0 0.0
        %2505 = vmatpush2.msra.mxu0 0.0
        %2506 = vmatprep.subr.mxu0 0.0
        %2507 = vmatpush2.msra.mxu0 0.0
        %2508 = vmatprep.subr.mxu0 0.0
        %2509 = vmatpush2.msra.mxu0 0.0
        %2510 = vmatprep.subr.mxu0 0.0
        %2511 = vmatpush2.msra.mxu0 0.0
        %2512 = vmatprep.subr.mxu0 0.0
        %2513 = vmatpush2.msra.mxu0 0.0
        %2514 = vmatprep.subr.mxu0 0.0
        %2515 = vmatpush2.msra.mxu0 0.0
        %2516 = vmatprep.subr.mxu0 0.0
        %2517 = vmatpush2.msra.mxu0 0.0
        %2518 = vmatprep.subr.mxu0 0.0
        %2519 = vmatpush2.msra.mxu0 0.0
        %2520 = vmatprep.subr.mxu0 0.0
        %2521 = vmatpush2.msra.mxu0 0.0
        %2522 = vmatprep.subr.mxu0 0.0
        %2523 = vmatpush2.msra.mxu0 0.0
        %2524 = vmatprep.subr.mxu0 0.0
        %2525 = vmatpush2.msra.mxu0 0.0
        %2526 = vmatprep.mubr.f32.mxu0 0.0
        %2527 = vmatmul.mubr.f32.gmra.mxu0 %v2460
        %v2528 = vpop.f32.mrf.mxu0
        %v2529 = vadd.f32 0.0, %v2528
        %v2530 = vpop.f32.mrf.mxu0
        %2531 = vdwg.mxu0
        %v2532 = vadd.f32 %v2458, %v2529
        %v2533 = vadd.f32 %v2532, %v1767
        %v2534 = vtanh.pop %v2533
        %v2535 = vadd.f32 %v787, %v867
        %v2536 = vsel %vm1334, %v2229, 0
        %2538 = vmatprep.subr.mxu0 0.0
        %2539 = vmatpush1.msra.mxu0 0.0
        %2540 = vmatprep.subr.mxu0 0.0
        %2541 = vmatpush1.msra.mxu0 0.0
        %2542 = vmatprep.subr.mxu0 0.0
        %2543 = vmatpush1.msra.mxu0 0.0
        %2544 = vmatprep.subr.mxu0 0.0
        %2545 = vmatpush1.msra.mxu0 0.0
        %2546 = vmatprep.subr.mxu0 0.0
        %2547 = vmatpush1.msra.mxu0 0.0
        %2548 = vmatprep.subr.mxu0 0.0
        %2549 = vmatpush1.msra.mxu0 0.0
        %2550 = vmatprep.subr.mxu0 0.0
        %2551 = vmatpush1.msra.mxu0 0.0
        %2552 = vmatprep.subr.mxu0 0.0
        %2553 = vmatpush1.msra.mxu0 0.0
        %2554 = vmatprep.subr.mxu0 0.0
        %2555 = vmatpush1.msra.mxu0 0.0
        %2556 = vmatprep.subr.mxu0 0.0
        %2557 = vmatpush1.msra.mxu0 0.0
        %2558 = vmatprep.subr.mxu0 0.0
        %2559 = vmatpush1.msra.mxu0 0.0
        %2560 = vmatprep.subr.mxu0 0.0
        %2561 = vmatpush1.msra.mxu0 0.0
        %2562 = vmatprep.subr.mxu0 0.0
        %2563 = vmatpush1.msra.mxu0 %v691
        %2564 = vmatprep.subr.mxu0 0.0
        %2565 = vmatpush1.msra.mxu0 %v690
        %2566 = vmatprep.subr.mxu0 0.0
        %2567 = vmatpush1.msra.mxu0 %v689
        %2568 = vmatprep.subr.mxu0 0.0
        %2569 = vmatpush1.msra.mxu0 %v688
        %2570 = vmatprep.subr.mxu0 0.0
        %2571 = vmatpush2.msra.mxu0 0.0
        %2572 = vmatprep.subr.mxu0 0.0
        %2573 = vmatpush2.msra.mxu0 0.0
        %2574 = vmatprep.subr.mxu0 0.0
        %2575 = vmatpush2.msra.mxu0 0.0
        %2576 = vmatprep.subr.mxu0 0.0
        %2577 = vmatpush2.msra.mxu0 0.0
        %2578 = vmatprep.subr.mxu0 0.0
        %2579 = vmatpush2.msra.mxu0 0.0
        %2580 = vmatprep.subr.mxu0 0.0
        %2581 = vmatpush2.msra.mxu0 0.0
        %2582 = vmatprep.subr.mxu0 0.0
        %2583 = vmatpush2.msra.mxu0 0.0
        %2584 = vmatprep.subr.mxu0 0.0
        %2585 = vmatpush2.msra.mxu0 0.0
        %2586 = vmatprep.subr.mxu0 0.0
        %2587 = vmatpush2.msra.mxu0 0.0
        %2588 = vmatprep.subr.mxu0 0.0
        %2589 = vmatpush2.msra.mxu0 0.0
        %2590 = vmatprep.subr.mxu0 0.0
        %2591 = vmatpush2.msra.mxu0 0.0
        %2592 = vmatprep.subr.mxu0 0.0
        %2593 = vmatpush2.msra.mxu0 0.0
        %2594 = vmatprep.subr.mxu0 0.0
        %2595 = vmatpush2.msra.mxu0 0.0
        %2596 = vmatprep.subr.mxu0 0.0
        %2597 = vmatpush2.msra.mxu0 0.0
        %2598 = vmatprep.subr.mxu0 0.0
        %2599 = vmatpush2.msra.mxu0 0.0
        %2600 = vmatprep.subr.mxu0 0.0
        %2601 = vmatpush2.msra.mxu0 0.0
        %2602 = vmatprep.mubr.f32.mxu0 0.0
        %2603 = vmatmul.mubr.f32.gmra.mxu0 %v2536
        %v2604 = vpop.f32.mrf.mxu0
        %v2605 = vadd.f32 0.0, %v2604
        %v2606 = vpop.f32.mrf.mxu0
        %2607 = vdwg.mxu0
        %v2608 = vadd.f32 %v2535, %v2605
        %v2609 = vmul.f32 %v2608, %v1849
        %v2610 = vsel %vm1334, %v2609, 0.0
        %2611 = vadd.xlane.f32.xlu0 %v2610
        %v2612 = vpop.xlane.xlu0 %2611
        %v2613 = vmul.f32 %v2608, %v1858
        %v2614 = vsel %vm1334, %v2613, 0.0
        %2615 = vadd.xlane.f32.xlu0 %v2614
        %v2616 = vpop.xlane.xlu0 %2615
        %v2618 = vlaneseq
        %v2619 = vshrl.u32 %v2618, 7
        %v2620 = vsub.s32 %v1865, %v2619
        %v2621 = vrot.slane %v2616, %v2620
        %v2622 = vsel %vm1870, %v2621, %v2621
        %v2623 = vsel %vm1872, %v2621, %v2622
        %v2624 = vsel %vm1874, %v2621, %v2623
        %v2625 = vsel %vm1876, %v2621, %v2624
        %v2626 = vsel %vm1878, %v2621, %v2625
        %v2627 = vsel %vm1880, %v2621, %v2626
        %v2629 = vadd.f32 %v2612, %v2627
        %vm2630 = vcmp.gt.f32.partialorder %v2629, 0.0
        %v2631 = vmul.f32 %v2629, 0.2
        %v2632 = vsel %vm2630, %v2629, %v2631
        %v2633 = vadd.f32 %v2632, %v679
        %v2634 = vsel %vm871, %v2633, -inf
        %2635 = vmax.xlane.f32.xlu0 %v2634
        %v2636 = vpop.xlane.xlu0 %2635
        %v2637 = vsub.f32 %v2633, %v2636
        %v2638 = vmul.f32 %v2637, 1.442695
        %v2639 = vpow.pop %v2638
        %v2640 = vsel %vm871, %v2639, 0.0
        %2641 = vadd.xlane.f32.xlu0 %v2640
        %v2642 = vpop.xlane.xlu0 %2641
        %v2643 = vrcp.pop %v2642
        %v2644 = vmul.f32 %v2639, %v2643
        %v2645 = vmul.f32 %v2608, %v1906
        %2647 = vrot.lane.b32.xlu0 %v2645, 96
        %v2648 = vpop.permute.xlu0 %2647
        %v2650 = vsel %vm1334, %v2648, 0.0
        %2651 = vadd.xlane.f32.xlu0 %v2650
        %v2652 = vpop.xlane.xlu0 %2651
        %v2653 = vmul.f32 %v2608, %v1923
        %2655 = vrot.lane.b32.xlu0 %v2653, 96
        %v2656 = vpop.permute.xlu0 %2655
        %v2658 = vsel %vm1334, %v2656, 0.0
        %2659 = vadd.xlane.f32.xlu0 %v2658
        %v2660 = vpop.xlane.xlu0 %2659
        %v2662 = vlaneseq
        %v2663 = vshrl.u32 %v2662, 7
        %v2664 = vsub.s32 %v1865, %v2663
        %v2665 = vrot.slane %v2660, %v2664
        %v2666 = vsel %vm1870, %v2665, %v2665
        %v2667 = vsel %vm1872, %v2665, %v2666
        %v2668 = vsel %vm1874, %v2665, %v2667
        %v2669 = vsel %vm1876, %v2665, %v2668
        %v2670 = vsel %vm1878, %v2665, %v2669
        %v2671 = vsel %vm1880, %v2665, %v2670
        %v2673 = vadd.f32 %v2652, %v2671
        %vm2674 = vcmp.gt.f32.partialorder %v2673, 0.0
        %v2675 = vmul.f32 %v2673, 0.2
        %v2676 = vsel %vm2674, %v2673, %v2675
        %v2677 = vadd.f32 %v2676, %v679
        %v2678 = vsel %vm871, %v2677, -inf
        %2679 = vmax.xlane.f32.xlu0 %v2678
        %v2680 = vpop.xlane.xlu0 %2679
        %v2681 = vsub.f32 %v2677, %v2680
        %v2682 = vmul.f32 %v2681, 1.442695
        %v2683 = vpow.pop %v2682
        %v2684 = vsel %vm871, %v2683, 0.0
        %2685 = vadd.xlane.f32.xlu0 %v2684
        %v2686 = vpop.xlane.xlu0 %2685
        %v2687 = vrcp.pop %v2686
        %v2688 = vmul.f32 %v2683, %v2687
        %2690 = vrot.lane.b32.xlu0 %v2608, 96
        %v2691 = vpop.permute.xlu0 %2690
        %v2694 = vsel %vm871, %v2688, 0
        %2696 = vmatprep.subr.mxu0 0.0
        %2697 = vmatpush1.msra.mxu0 0.0
        %2698 = vmatprep.subr.mxu0 0.0
        %2699 = vmatpush1.msra.mxu0 0.0
        %2700 = vmatprep.subr.mxu0 0.0
        %2701 = vmatpush1.msra.mxu0 0.0
        %2702 = vmatprep.subr.mxu0 0.0
        %2703 = vmatpush1.msra.mxu0 0.0
        %2704 = vmatprep.subr.mxu0 0.0
        %2705 = vmatpush1.msra.mxu0 0.0
        %2706 = vmatprep.subr.mxu0 0.0
        %2707 = vmatpush1.msra.mxu0 0.0
        %2708 = vmatprep.subr.mxu0 0.0
        %2709 = vmatpush1.msra.mxu0 0.0
        %2710 = vmatprep.subr.mxu0 0.0
        %2711 = vmatpush1.msra.mxu0 0.0
        %2712 = vmatprep.subr.mxu0 0.0
        %2713 = vmatpush1.msra.mxu0 0.0
        %2714 = vmatprep.subr.mxu0 0.0
        %2715 = vmatpush1.msra.mxu0 0.0
        %2716 = vmatprep.subr.mxu0 0.0
        %2717 = vmatpush1.msra.mxu0 0.0
        %2718 = vmatprep.subr.mxu0 0.0
        %2719 = vmatpush1.msra.mxu0 0.0
        %2720 = vmatprep.subr.mxu0 0.0
        %2721 = vmatpush1.msra.mxu0 0.0
        %2722 = vmatprep.subr.mxu0 0.0
        %2723 = vmatpush1.msra.mxu0 0.0
        %2724 = vmatprep.subr.mxu0 0.0
        %2725 = vmatpush1.msra.mxu0 0.0
        %2726 = vmatprep.subr.mxu0 0.0
        %2727 = vmatpush1.msra.mxu0 %v2691
        %2728 = vmatprep.subr.mxu0 0.0
        %2729 = vmatpush2.msra.mxu0 0.0
        %2730 = vmatprep.subr.mxu0 0.0
        %2731 = vmatpush2.msra.mxu0 0.0
        %2732 = vmatprep.subr.mxu0 0.0
        %2733 = vmatpush2.msra.mxu0 0.0
        %2734 = vmatprep.subr.mxu0 0.0
        %2735 = vmatpush2.msra.mxu0 0.0
        %2736 = vmatprep.subr.mxu0 0.0
        %2737 = vmatpush2.msra.mxu0 0.0
        %2738 = vmatprep.subr.mxu0 0.0
        %2739 = vmatpush2.msra.mxu0 0.0
        %2740 = vmatprep.subr.mxu0 0.0
        %2741 = vmatpush2.msra.mxu0 0.0
        %2742 = vmatprep.subr.mxu0 0.0
        %2743 = vmatpush2.msra.mxu0 0.0
        %2744 = vmatprep.subr.mxu0 0.0
        %2745 = vmatpush2.msra.mxu0 0.0
        %2746 = vmatprep.subr.mxu0 0.0
        %2747 = vmatpush2.msra.mxu0 0.0
        %2748 = vmatprep.subr.mxu0 0.0
        %2749 = vmatpush2.msra.mxu0 0.0
        %2750 = vmatprep.subr.mxu0 0.0
        %2751 = vmatpush2.msra.mxu0 0.0
        %2752 = vmatprep.subr.mxu0 0.0
        %2753 = vmatpush2.msra.mxu0 0.0
        %2754 = vmatprep.subr.mxu0 0.0
        %2755 = vmatpush2.msra.mxu0 0.0
        %2756 = vmatprep.subr.mxu0 0.0
        %2757 = vmatpush2.msra.mxu0 0.0
        %2758 = vmatprep.subr.mxu0 0.0
        %2759 = vmatpush2.msra.mxu0 0.0
        %2760 = vmatprep.mubr.f32.mxu0 0.0
        %2761 = vmatmul.mubr.f32.gmra.mxu0 %v2694
        %v2762 = vpop.f32.mrf.mxu0
        %v2763 = vadd.f32 0.0, %v2762
        %v2764 = vpop.f32.mrf.mxu0
        %2765 = vdwg.mxu0
        %v2767 = vsel %vm871, %v2644, 0
        %2769 = vmatprep.subr.mxu0 0.0
        %2770 = vmatpush1.msra.mxu0 0.0
        %2771 = vmatprep.subr.mxu0 0.0
        %2772 = vmatpush1.msra.mxu0 0.0
        %2773 = vmatprep.subr.mxu0 0.0
        %2774 = vmatpush1.msra.mxu0 0.0
        %2775 = vmatprep.subr.mxu0 0.0
        %2776 = vmatpush1.msra.mxu0 0.0
        %2777 = vmatprep.subr.mxu0 0.0
        %2778 = vmatpush1.msra.mxu0 0.0
        %2779 = vmatprep.subr.mxu0 0.0
        %2780 = vmatpush1.msra.mxu0 0.0
        %2781 = vmatprep.subr.mxu0 0.0
        %2782 = vmatpush1.msra.mxu0 0.0
        %2783 = vmatprep.subr.mxu0 0.0
        %2784 = vmatpush1.msra.mxu0 0.0
        %2785 = vmatprep.subr.mxu0 0.0
        %2786 = vmatpush1.msra.mxu0 0.0
        %2787 = vmatprep.subr.mxu0 0.0
        %2788 = vmatpush1.msra.mxu0 0.0
        %2789 = vmatprep.subr.mxu0 0.0
        %2790 = vmatpush1.msra.mxu0 0.0
        %2791 = vmatprep.subr.mxu0 0.0
        %2792 = vmatpush1.msra.mxu0 0.0
        %2793 = vmatprep.subr.mxu0 0.0
        %2794 = vmatpush1.msra.mxu0 0.0
        %2795 = vmatprep.subr.mxu0 0.0
        %2796 = vmatpush1.msra.mxu0 0.0
        %2797 = vmatprep.subr.mxu0 0.0
        %2798 = vmatpush1.msra.mxu0 0.0
        %2799 = vmatprep.subr.mxu0 0.0
        %2800 = vmatpush1.msra.mxu0 %v2608
        %2801 = vmatprep.subr.mxu0 0.0
        %2802 = vmatpush2.msra.mxu0 0.0
        %2803 = vmatprep.subr.mxu0 0.0
        %2804 = vmatpush2.msra.mxu0 0.0
        %2805 = vmatprep.subr.mxu0 0.0
        %2806 = vmatpush2.msra.mxu0 0.0
        %2807 = vmatprep.subr.mxu0 0.0
        %2808 = vmatpush2.msra.mxu0 0.0
        %2809 = vmatprep.subr.mxu0 0.0
        %2810 = vmatpush2.msra.mxu0 0.0
        %2811 = vmatprep.subr.mxu0 0.0
        %2812 = vmatpush2.msra.mxu0 0.0
        %2813 = vmatprep.subr.mxu0 0.0
        %2814 = vmatpush2.msra.mxu0 0.0
        %2815 = vmatprep.subr.mxu0 0.0
        %2816 = vmatpush2.msra.mxu0 0.0
        %2817 = vmatprep.subr.mxu0 0.0
        %2818 = vmatpush2.msra.mxu0 0.0
        %2819 = vmatprep.subr.mxu0 0.0
        %2820 = vmatpush2.msra.mxu0 0.0
        %2821 = vmatprep.subr.mxu0 0.0
        %2822 = vmatpush2.msra.mxu0 0.0
        %2823 = vmatprep.subr.mxu0 0.0
        %2824 = vmatpush2.msra.mxu0 0.0
        %2825 = vmatprep.subr.mxu0 0.0
        %2826 = vmatpush2.msra.mxu0 0.0
        %2827 = vmatprep.subr.mxu0 0.0
        %2828 = vmatpush2.msra.mxu0 0.0
        %2829 = vmatprep.subr.mxu0 0.0
        %2830 = vmatpush2.msra.mxu0 0.0
        %2831 = vmatprep.subr.mxu0 0.0
        %2832 = vmatpush2.msra.mxu0 0.0
        %2833 = vmatprep.mubr.f32.mxu0 0.0
        %2834 = vmatmul.mubr.f32.gmra.mxu0 %v2767
        %v2835 = vpop.f32.mrf.mxu0
        %v2836 = vadd.f32 %v2763, %v2835
        %v2837 = vpop.f32.mrf.mxu0
        %2838 = vdwg.mxu0
        %v2839 = vmul.f32 %v2836, 0.5
        %v2840 = vtanh.pop %v2839
        %v2841 = vmul.f32 %v1320, %v2226
        %v2842 = vmul.f32 %v1322, %v2534
        %2844 = vrot.lane.b32.xlu0 %v2842, 32
        %v2845 = vpop.permute.xlu0 %2844
        %v2847 = vadd.f32 %v2841, %v2845
        %v2848 = vmul.f32 %v1325, %v2840
        %2850 = vrot.lane.b32.xlu0 %v2848, 32
        %v2851 = vpop.permute.xlu0 %2850
        %v2853 = vadd.f32 %v2847, %v2851
        %2855 = vrot.lane.b32.xlu0 %v2853, 96
        %v2856 = vpop.permute.xlu0 %2855
        %v2857 = vsel %vm1334, %v2856, 0
        %2859 = vmatprep.subr.mxu0 0.0
        %2860 = vmatpush1.msra.mxu0 0.0
        %2861 = vmatprep.subr.mxu0 0.0
        %2862 = vmatpush1.msra.mxu0 0.0
        %2863 = vmatprep.subr.mxu0 0.0
        %2864 = vmatpush1.msra.mxu0 0.0
        %2865 = vmatprep.subr.mxu0 0.0
        %2866 = vmatpush1.msra.mxu0 0.0
        %2867 = vmatprep.subr.mxu0 0.0
        %2868 = vmatpush1.msra.mxu0 0.0
        %2869 = vmatprep.subr.mxu0 0.0
        %2870 = vmatpush1.msra.mxu0 0.0
        %2871 = vmatprep.subr.mxu0 0.0
        %2872 = vmatpush1.msra.mxu0 0.0
        %2873 = vmatprep.subr.mxu0 0.0
        %2874 = vmatpush1.msra.mxu0 0.0
        %2875 = vmatprep.subr.mxu0 0.0
        %2876 = vmatpush1.msra.mxu0 0.0
        %2877 = vmatprep.subr.mxu0 0.0
        %2878 = vmatpush1.msra.mxu0 0.0
        %2879 = vmatprep.subr.mxu0 0.0
        %2880 = vmatpush1.msra.mxu0 0.0
        %2881 = vmatprep.subr.mxu0 0.0
        %2882 = vmatpush1.msra.mxu0 0.0
        %2883 = vmatprep.subr.mxu0 0.0
        %2884 = vmatpush1.msra.mxu0 %v686
        %2885 = vmatprep.subr.mxu0 0.0
        %2886 = vmatpush1.msra.mxu0 %v685
        %2887 = vmatprep.subr.mxu0 0.0
        %2888 = vmatpush1.msra.mxu0 %v684
        %2889 = vmatprep.subr.mxu0 0.0
        %2890 = vmatpush1.msra.mxu0 %v683
        %2891 = vmatprep.subr.mxu0 0.0
        %2892 = vmatpush2.msra.mxu0 0.0
        %2893 = vmatprep.subr.mxu0 0.0
        %2894 = vmatpush2.msra.mxu0 0.0
        %2895 = vmatprep.subr.mxu0 0.0
        %2896 = vmatpush2.msra.mxu0 0.0
        %2897 = vmatprep.subr.mxu0 0.0
        %2898 = vmatpush2.msra.mxu0 0.0
        %2899 = vmatprep.subr.mxu0 0.0
        %2900 = vmatpush2.msra.mxu0 0.0
        %2901 = vmatprep.subr.mxu0 0.0
        %2902 = vmatpush2.msra.mxu0 0.0
        %2903 = vmatprep.subr.mxu0 0.0
        %2904 = vmatpush2.msra.mxu0 0.0
        %2905 = vmatprep.subr.mxu0 0.0
        %2906 = vmatpush2.msra.mxu0 0.0
        %2907 = vmatprep.subr.mxu0 0.0
        %2908 = vmatpush2.msra.mxu0 0.0
        %2909 = vmatprep.subr.mxu0 0.0
        %2910 = vmatpush2.msra.mxu0 0.0
        %2911 = vmatprep.subr.mxu0 0.0
        %2912 = vmatpush2.msra.mxu0 0.0
        %2913 = vmatprep.subr.mxu0 0.0
        %2914 = vmatpush2.msra.mxu0 0.0
        %2915 = vmatprep.subr.mxu0 0.0
        %2916 = vmatpush2.msra.mxu0 0.0
        %2917 = vmatprep.subr.mxu0 0.0
        %2918 = vmatpush2.msra.mxu0 0.0
        %2919 = vmatprep.subr.mxu0 0.0
        %2920 = vmatpush2.msra.mxu0 0.0
        %2921 = vmatprep.subr.mxu0 0.0
        %2922 = vmatpush2.msra.mxu0 0.0
        %2923 = vmatprep.mubr.f32.mxu0 0.0
        %2924 = vmatmul.mubr.f32.gmra.mxu0 %v2857
        %v2925 = vpop.f32.mrf.mxu0
        %v2926 = vadd.f32 %v1332, %v2925
        %v2927 = vpop.f32.mrf.mxu0
        %2928 = vdwg.mxu0
        %v2929 = vadd.f32 %v773, %v2926
        %v2930 = vxor.u32 %v2929, 2147483648
        %v2931 = vmul.f32 %v2930, 1.442695
        %v2932 = vpow.pop %v2931
        %v2933 = vadd.f32 %v2932, 1.0
        %v2934 = vrcp.pop %v2933
        %v2935 = vmul.f32 1.0, %v2934
        %2937 = vrot.lane.b32.xlu0 %v2926, 64
        %v2938 = vpop.permute.xlu0 %2937
        %v2940 = vmul.f32 %v2935, %v2938
        %2942 = vrot.lane.b32.xlu0 %v2940, 64
        %v2943 = vpop.permute.xlu0 %2942
        %v2945 = vadd.f32 %v773, %v2943
        %v2946 = vtanh.pop %v2945
        %v2947 = vsub.f32 1.0, %v2935
        %2949 = vrot.lane.b32.xlu0 %v2946, 96
        %v2950 = vpop.permute.xlu0 %2949
        %v2952 = vmul.f32 %v2947, %v2950
        %v2953 = vmul.f32 %v2935, %v2853
        %v2954 = vadd.f32 %v2952, %v2953
        %2956 = vrot.lane.b32.xlu0 %v2954, 96
        %v2957 = vpop.permute.xlu0 %2956
        %2959 = vmatprep.subr.mxu0 0.0
        %2960 = vmatpush1.msra.mxu0 0.0
        %2961 = vmatprep.subr.mxu0 0.0
        %2962 = vmatpush1.msra.mxu0 0.0
        %2963 = vmatprep.subr.mxu0 0.0
        %2964 = vmatpush1.msra.mxu0 0.0
        %2965 = vmatprep.subr.mxu0 0.0
        %2966 = vmatpush1.msra.mxu0 0.0
        %2967 = vmatprep.subr.mxu0 0.0
        %2968 = vmatpush1.msra.mxu0 0.0
        %2969 = vmatprep.subr.mxu0 0.0
        %2970 = vmatpush1.msra.mxu0 0.0
        %2971 = vmatprep.subr.mxu0 0.0
        %2972 = vmatpush1.msra.mxu0 0.0
        %2973 = vmatprep.subr.mxu0 0.0
        %2974 = vmatpush1.msra.mxu0 0.0
        %2975 = vmatprep.subr.mxu0 0.0
        %2976 = vmatpush1.msra.mxu0 0.0
        %2977 = vmatprep.subr.mxu0 0.0
        %2978 = vmatpush1.msra.mxu0 0.0
        %2979 = vmatprep.subr.mxu0 0.0
        %2980 = vmatpush1.msra.mxu0 0.0
        %2981 = vmatprep.subr.mxu0 0.0
        %2982 = vmatpush1.msra.mxu0 0.0
        %2983 = vmatprep.subr.mxu0 0.0
        %2984 = vmatpush1.msra.mxu0 0.0
        %2985 = vmatprep.subr.mxu0 0.0
        %2986 = vmatpush1.msra.mxu0 0.0
        %2987 = vmatprep.subr.mxu0 0.0
        %2988 = vmatpush1.msra.mxu0 0.0
        %2989 = vmatprep.subr.mxu0 0.0
        %2990 = vmatpush1.msra.mxu0 %v2957
        %2991 = vmatprep.subr.mxu0 0.0
        %2992 = vmatpush2.msra.mxu0 0.0
        %2993 = vmatprep.subr.mxu0 0.0
        %2994 = vmatpush2.msra.mxu0 0.0
        %2995 = vmatprep.subr.mxu0 0.0
        %2996 = vmatpush2.msra.mxu0 0.0
        %2997 = vmatprep.subr.mxu0 0.0
        %2998 = vmatpush2.msra.mxu0 0.0
        %2999 = vmatprep.subr.mxu0 0.0
        %3000 = vmatpush2.msra.mxu0 0.0
        %3001 = vmatprep.subr.mxu0 0.0
        %3002 = vmatpush2.msra.mxu0 0.0
        %3003 = vmatprep.subr.mxu0 0.0
        %3004 = vmatpush2.msra.mxu0 0.0
        %3005 = vmatprep.subr.mxu0 0.0
        %3006 = vmatpush2.msra.mxu0 0.0
        %3007 = vmatprep.subr.mxu0 0.0
        %3008 = vmatpush2.msra.mxu0 0.0
        %3009 = vmatprep.subr.mxu0 0.0
        %3010 = vmatpush2.msra.mxu0 0.0
        %3011 = vmatprep.subr.mxu0 0.0
        %3012 = vmatpush2.msra.mxu0 0.0
        %3013 = vmatprep.subr.mxu0 0.0
        %3014 = vmatpush2.msra.mxu0 0.0
        %3015 = vmatprep.subr.mxu0 0.0
        %3016 = vmatpush2.msra.mxu0 0.0
        %3017 = vmatprep.subr.mxu0 0.0
        %3018 = vmatpush2.msra.mxu0 0.0
        %3019 = vmatprep.subr.mxu0 0.0
        %3020 = vmatpush2.msra.mxu0 0.0
        %3021 = vmatprep.subr.mxu0 0.0
        %3022 = vmatpush2.msra.mxu0 0.0
        %3023 = vmatprep.mubr.f32.mxu0 0.0
        %3024 = vmatmul.mubr.f32.gmra.mxu0 %v1439
        %v3025 = vpop.f32.mrf.mxu0
        %v3026 = vadd.f32 0.0, %v3025
        %v3027 = vpop.f32.mrf.mxu0
        %3028 = vmatprep.mubr.f32.mxu0 0.0
        %3029 = vmatmul.mubr.f32.gmra.mxu0 %v1442
        %v3030 = vpop.f32.mrf.mxu0
        %v3031 = vadd.f32 0.0, %v3030
        %v3032 = vpop.f32.mrf.mxu0
        %3033 = vmatprep.mubr.f32.mxu0 0.0
        %3034 = vmatmul.mubr.f32.gmra.mxu0 %v1445
        %v3035 = vpop.f32.mrf.mxu0
        %v3036 = vadd.f32 0.0, %v3035
        %v3037 = vpop.f32.mrf.mxu0
        %3038 = vdwg.mxu0
        %v3040 = vsel %vm1334, %v3026, 0
        %3042 = vmatprep.subr.mxu0 0.0
        %3043 = vmatpush1.msra.mxu0 0.0
        %3044 = vmatprep.subr.mxu0 0.0
        %3045 = vmatpush1.msra.mxu0 0.0
        %3046 = vmatprep.subr.mxu0 0.0
        %3047 = vmatpush1.msra.mxu0 0.0
        %3048 = vmatprep.subr.mxu0 0.0
        %3049 = vmatpush1.msra.mxu0 0.0
        %3050 = vmatprep.subr.mxu0 0.0
        %3051 = vmatpush1.msra.mxu0 0.0
        %3052 = vmatprep.subr.mxu0 0.0
        %3053 = vmatpush1.msra.mxu0 0.0
        %3054 = vmatprep.subr.mxu0 0.0
        %3055 = vmatpush1.msra.mxu0 0.0
        %3056 = vmatprep.subr.mxu0 0.0
        %3057 = vmatpush1.msra.mxu0 0.0
        %3058 = vmatprep.subr.mxu0 0.0
        %3059 = vmatpush1.msra.mxu0 0.0
        %3060 = vmatprep.subr.mxu0 0.0
        %3061 = vmatpush1.msra.mxu0 0.0
        %3062 = vmatprep.subr.mxu0 0.0
        %3063 = vmatpush1.msra.mxu0 0.0
        %3064 = vmatprep.subr.mxu0 0.0
        %3065 = vmatpush1.msra.mxu0 0.0
        %3066 = vmatprep.subr.mxu0 0.0
        %3067 = vmatpush1.msra.mxu0 %v1530
        %3068 = vmatprep.subr.mxu0 0.0
        %3069 = vmatpush1.msra.mxu0 %v1529
        %3070 = vmatprep.subr.mxu0 0.0
        %3071 = vmatpush1.msra.mxu0 %v1528
        %3072 = vmatprep.subr.mxu0 0.0
        %3073 = vmatpush1.msra.mxu0 %v1527
        %3074 = vmatprep.subr.mxu0 0.0
        %3075 = vmatpush2.msra.mxu0 0.0
        %3076 = vmatprep.subr.mxu0 0.0
        %3077 = vmatpush2.msra.mxu0 0.0
        %3078 = vmatprep.subr.mxu0 0.0
        %3079 = vmatpush2.msra.mxu0 0.0
        %3080 = vmatprep.subr.mxu0 0.0
        %3081 = vmatpush2.msra.mxu0 0.0
        %3082 = vmatprep.subr.mxu0 0.0
        %3083 = vmatpush2.msra.mxu0 0.0
        %3084 = vmatprep.subr.mxu0 0.0
        %3085 = vmatpush2.msra.mxu0 0.0
        %3086 = vmatprep.subr.mxu0 0.0
        %3087 = vmatpush2.msra.mxu0 0.0
        %3088 = vmatprep.subr.mxu0 0.0
        %3089 = vmatpush2.msra.mxu0 0.0
        %3090 = vmatprep.subr.mxu0 0.0
        %3091 = vmatpush2.msra.mxu0 0.0
        %3092 = vmatprep.subr.mxu0 0.0
        %3093 = vmatpush2.msra.mxu0 0.0
        %3094 = vmatprep.subr.mxu0 0.0
        %3095 = vmatpush2.msra.mxu0 0.0
        %3096 = vmatprep.subr.mxu0 0.0
        %3097 = vmatpush2.msra.mxu0 0.0
        %3098 = vmatprep.subr.mxu0 0.0
        %3099 = vmatpush2.msra.mxu0 0.0
        %3100 = vmatprep.subr.mxu0 0.0
        %3101 = vmatpush2.msra.mxu0 0.0
        %3102 = vmatprep.subr.mxu0 0.0
        %3103 = vmatpush2.msra.mxu0 0.0
        %3104 = vmatprep.subr.mxu0 0.0
        %3105 = vmatpush2.msra.mxu0 0.0
        %3106 = vmatprep.mubr.f32.mxu0 0.0
        %3107 = vmatmul.mubr.f32.gmra.mxu0 %v3040
        %v3108 = vpop.f32.mrf.mxu0
        %v3109 = vadd.f32 0.0, %v3108
        %v3110 = vpop.f32.mrf.mxu0
        %3111 = vdwg.mxu0
        %v3112 = vadd.f32 %v1314, %v3109
        %v3114 = vsel %vm1334, %v3031, 0
        %3116 = vmatprep.subr.mxu0 0.0
        %3117 = vmatpush1.msra.mxu0 0.0
        %3118 = vmatprep.subr.mxu0 0.0
        %3119 = vmatpush1.msra.mxu0 0.0
        %3120 = vmatprep.subr.mxu0 0.0
        %3121 = vmatpush1.msra.mxu0 0.0
        %3122 = vmatprep.subr.mxu0 0.0
        %3123 = vmatpush1.msra.mxu0 0.0
        %3124 = vmatprep.subr.mxu0 0.0
        %3125 = vmatpush1.msra.mxu0 0.0
        %3126 = vmatprep.subr.mxu0 0.0
        %3127 = vmatpush1.msra.mxu0 0.0
        %3128 = vmatprep.subr.mxu0 0.0
        %3129 = vmatpush1.msra.mxu0 0.0
        %3130 = vmatprep.subr.mxu0 0.0
        %3131 = vmatpush1.msra.mxu0 0.0
        %3132 = vmatprep.subr.mxu0 0.0
        %3133 = vmatpush1.msra.mxu0 0.0
        %3134 = vmatprep.subr.mxu0 0.0
        %3135 = vmatpush1.msra.mxu0 0.0
        %3136 = vmatprep.subr.mxu0 0.0
        %3137 = vmatpush1.msra.mxu0 0.0
        %3138 = vmatprep.subr.mxu0 0.0
        %3139 = vmatpush1.msra.mxu0 0.0
        %3140 = vmatprep.subr.mxu0 0.0
        %3141 = vmatpush1.msra.mxu0 %v1609
        %3142 = vmatprep.subr.mxu0 0.0
        %3143 = vmatpush1.msra.mxu0 %v1608
        %3144 = vmatprep.subr.mxu0 0.0
        %3145 = vmatpush1.msra.mxu0 %v1607
        %3146 = vmatprep.subr.mxu0 0.0
        %3147 = vmatpush1.msra.mxu0 %v1606
        %3148 = vmatprep.subr.mxu0 0.0
        %3149 = vmatpush2.msra.mxu0 0.0
        %3150 = vmatprep.subr.mxu0 0.0
        %3151 = vmatpush2.msra.mxu0 0.0
        %3152 = vmatprep.subr.mxu0 0.0
        %3153 = vmatpush2.msra.mxu0 0.0
        %3154 = vmatprep.subr.mxu0 0.0
        %3155 = vmatpush2.msra.mxu0 0.0
        %3156 = vmatprep.subr.mxu0 0.0
        %3157 = vmatpush2.msra.mxu0 0.0
        %3158 = vmatprep.subr.mxu0 0.0
        %3159 = vmatpush2.msra.mxu0 0.0
        %3160 = vmatprep.subr.mxu0 0.0
        %3161 = vmatpush2.msra.mxu0 0.0
        %3162 = vmatprep.subr.mxu0 0.0
        %3163 = vmatpush2.msra.mxu0 0.0
        %3164 = vmatprep.subr.mxu0 0.0
        %3165 = vmatpush2.msra.mxu0 0.0
        %3166 = vmatprep.subr.mxu0 0.0
        %3167 = vmatpush2.msra.mxu0 0.0
        %3168 = vmatprep.subr.mxu0 0.0
        %3169 = vmatpush2.msra.mxu0 0.0
        %3170 = vmatprep.subr.mxu0 0.0
        %3171 = vmatpush2.msra.mxu0 0.0
        %3172 = vmatprep.subr.mxu0 0.0
        %3173 = vmatpush2.msra.mxu0 0.0
        %3174 = vmatprep.subr.mxu0 0.0
        %3175 = vmatpush2.msra.mxu0 0.0
        %3176 = vmatprep.subr.mxu0 0.0
        %3177 = vmatpush2.msra.mxu0 0.0
        %3178 = vmatprep.subr.mxu0 0.0
        %3179 = vmatpush2.msra.mxu0 0.0
        %3180 = vmatprep.mubr.f32.mxu0 0.0
        %3181 = vmatmul.mubr.f32.gmra.mxu0 %v3114
        %v3182 = vpop.f32.mrf.mxu0
        %v3183 = vadd.f32 0.0, %v3182
        %v3184 = vpop.f32.mrf.mxu0
        %3185 = vdwg.mxu0
        %v3186 = vadd.f32 %v3112, %v3183
        %v3188 = vsel %vm1334, %v3036, 0
        %3190 = vmatprep.subr.mxu0 0.0
        %3191 = vmatpush1.msra.mxu0 0.0
        %3192 = vmatprep.subr.mxu0 0.0
        %3193 = vmatpush1.msra.mxu0 0.0
        %3194 = vmatprep.subr.mxu0 0.0
        %3195 = vmatpush1.msra.mxu0 0.0
        %3196 = vmatprep.subr.mxu0 0.0
        %3197 = vmatpush1.msra.mxu0 0.0
        %3198 = vmatprep.subr.mxu0 0.0
        %3199 = vmatpush1.msra.mxu0 0.0
        %3200 = vmatprep.subr.mxu0 0.0
        %3201 = vmatpush1.msra.mxu0 0.0
        %3202 = vmatprep.subr.mxu0 0.0
        %3203 = vmatpush1.msra.mxu0 0.0
        %3204 = vmatprep.subr.mxu0 0.0
        %3205 = vmatpush1.msra.mxu0 0.0
        %3206 = vmatprep.subr.mxu0 0.0
        %3207 = vmatpush1.msra.mxu0 0.0
        %3208 = vmatprep.subr.mxu0 0.0
        %3209 = vmatpush1.msra.mxu0 0.0
        %3210 = vmatprep.subr.mxu0 0.0
        %3211 = vmatpush1.msra.mxu0 0.0
        %3212 = vmatprep.subr.mxu0 0.0
        %3213 = vmatpush1.msra.mxu0 0.0
        %3214 = vmatprep.subr.mxu0 0.0
        %3215 = vmatpush1.msra.mxu0 %v1688
        %3216 = vmatprep.subr.mxu0 0.0
        %3217 = vmatpush1.msra.mxu0 %v1687
        %3218 = vmatprep.subr.mxu0 0.0
        %3219 = vmatpush1.msra.mxu0 %v1686
        %3220 = vmatprep.subr.mxu0 0.0
        %3221 = vmatpush1.msra.mxu0 %v1685
        %3222 = vmatprep.subr.mxu0 0.0
        %3223 = vmatpush2.msra.mxu0 0.0
        %3224 = vmatprep.subr.mxu0 0.0
        %3225 = vmatpush2.msra.mxu0 0.0
        %3226 = vmatprep.subr.mxu0 0.0
        %3227 = vmatpush2.msra.mxu0 0.0
        %3228 = vmatprep.subr.mxu0 0.0
        %3229 = vmatpush2.msra.mxu0 0.0
        %3230 = vmatprep.subr.mxu0 0.0
        %3231 = vmatpush2.msra.mxu0 0.0
        %3232 = vmatprep.subr.mxu0 0.0
        %3233 = vmatpush2.msra.mxu0 0.0
        %3234 = vmatprep.subr.mxu0 0.0
        %3235 = vmatpush2.msra.mxu0 0.0
        %3236 = vmatprep.subr.mxu0 0.0
        %3237 = vmatpush2.msra.mxu0 0.0
        %3238 = vmatprep.subr.mxu0 0.0
        %3239 = vmatpush2.msra.mxu0 0.0
        %3240 = vmatprep.subr.mxu0 0.0
        %3241 = vmatpush2.msra.mxu0 0.0
        %3242 = vmatprep.subr.mxu0 0.0
        %3243 = vmatpush2.msra.mxu0 0.0
        %3244 = vmatprep.subr.mxu0 0.0
        %3245 = vmatpush2.msra.mxu0 0.0
        %3246 = vmatprep.subr.mxu0 0.0
        %3247 = vmatpush2.msra.mxu0 0.0
        %3248 = vmatprep.subr.mxu0 0.0
        %3249 = vmatpush2.msra.mxu0 0.0
        %3250 = vmatprep.subr.mxu0 0.0
        %3251 = vmatpush2.msra.mxu0 0.0
        %3252 = vmatprep.subr.mxu0 0.0
        %3253 = vmatpush2.msra.mxu0 0.0
        %3254 = vmatprep.mubr.f32.mxu0 0.0
        %3255 = vmatmul.mubr.f32.gmra.mxu0 %v3188
        %v3256 = vpop.f32.mrf.mxu0
        %v3257 = vadd.f32 0.0, %v3256
        %v3258 = vpop.f32.mrf.mxu0
        %3259 = vdwg.mxu0
        %v3260 = vadd.f32 %v3186, %v3257
        %v3261 = vadd.f32 %v3260, %v1767
        %v3262 = vtanh.pop %v3261
        %v3263 = vadd.f32 %v788, %v867
        %v3264 = vsel %vm1334, %v2957, 0
        %3266 = vmatprep.subr.mxu0 0.0
        %3267 = vmatpush1.msra.mxu0 0.0
        %3268 = vmatprep.subr.mxu0 0.0
        %3269 = vmatpush1.msra.mxu0 0.0
        %3270 = vmatprep.subr.mxu0 0.0
        %3271 = vmatpush1.msra.mxu0 0.0
        %3272 = vmatprep.subr.mxu0 0.0
        %3273 = vmatpush1.msra.mxu0 0.0
        %3274 = vmatprep.subr.mxu0 0.0
        %3275 = vmatpush1.msra.mxu0 0.0
        %3276 = vmatprep.subr.mxu0 0.0
        %3277 = vmatpush1.msra.mxu0 0.0
        %3278 = vmatprep.subr.mxu0 0.0
        %3279 = vmatpush1.msra.mxu0 0.0
        %3280 = vmatprep.subr.mxu0 0.0
        %3281 = vmatpush1.msra.mxu0 0.0
        %3282 = vmatprep.subr.mxu0 0.0
        %3283 = vmatpush1.msra.mxu0 0.0
        %3284 = vmatprep.subr.mxu0 0.0
        %3285 = vmatpush1.msra.mxu0 0.0
        %3286 = vmatprep.subr.mxu0 0.0
        %3287 = vmatpush1.msra.mxu0 0.0
        %3288 = vmatprep.subr.mxu0 0.0
        %3289 = vmatpush1.msra.mxu0 0.0
        %3290 = vmatprep.subr.mxu0 0.0
        %3291 = vmatpush1.msra.mxu0 %v691
        %3292 = vmatprep.subr.mxu0 0.0
        %3293 = vmatpush1.msra.mxu0 %v690
        %3294 = vmatprep.subr.mxu0 0.0
        %3295 = vmatpush1.msra.mxu0 %v689
        %3296 = vmatprep.subr.mxu0 0.0
        %3297 = vmatpush1.msra.mxu0 %v688
        %3298 = vmatprep.subr.mxu0 0.0
        %3299 = vmatpush2.msra.mxu0 0.0
        %3300 = vmatprep.subr.mxu0 0.0
        %3301 = vmatpush2.msra.mxu0 0.0
        %3302 = vmatprep.subr.mxu0 0.0
        %3303 = vmatpush2.msra.mxu0 0.0
        %3304 = vmatprep.subr.mxu0 0.0
        %3305 = vmatpush2.msra.mxu0 0.0
        %3306 = vmatprep.subr.mxu0 0.0
        %3307 = vmatpush2.msra.mxu0 0.0
        %3308 = vmatprep.subr.mxu0 0.0
        %3309 = vmatpush2.msra.mxu0 0.0
        %3310 = vmatprep.subr.mxu0 0.0
        %3311 = vmatpush2.msra.mxu0 0.0
        %3312 = vmatprep.subr.mxu0 0.0
        %3313 = vmatpush2.msra.mxu0 0.0
        %3314 = vmatprep.subr.mxu0 0.0
        %3315 = vmatpush2.msra.mxu0 0.0
        %3316 = vmatprep.subr.mxu0 0.0
        %3317 = vmatpush2.msra.mxu0 0.0
        %3318 = vmatprep.subr.mxu0 0.0
        %3319 = vmatpush2.msra.mxu0 0.0
        %3320 = vmatprep.subr.mxu0 0.0
        %3321 = vmatpush2.msra.mxu0 0.0
        %3322 = vmatprep.subr.mxu0 0.0
        %3323 = vmatpush2.msra.mxu0 0.0
        %3324 = vmatprep.subr.mxu0 0.0
        %3325 = vmatpush2.msra.mxu0 0.0
        %3326 = vmatprep.subr.mxu0 0.0
        %3327 = vmatpush2.msra.mxu0 0.0
        %3328 = vmatprep.subr.mxu0 0.0
        %3329 = vmatpush2.msra.mxu0 0.0
        %3330 = vmatprep.mubr.f32.mxu0 0.0
        %3331 = vmatmul.mubr.f32.gmra.mxu0 %v3264
        %v3332 = vpop.f32.mrf.mxu0
        %v3333 = vadd.f32 0.0, %v3332
        %v3334 = vpop.f32.mrf.mxu0
        %3335 = vdwg.mxu0
        %v3336 = vadd.f32 %v3263, %v3333
        %v3337 = vmul.f32 %v3336, %v1849
        %v3338 = vsel %vm1334, %v3337, 0.0
        %3339 = vadd.xlane.f32.xlu0 %v3338
        %v3340 = vpop.xlane.xlu0 %3339
        %v3341 = vmul.f32 %v3336, %v1858
        %v3342 = vsel %vm1334, %v3341, 0.0
        %3343 = vadd.xlane.f32.xlu0 %v3342
        %v3344 = vpop.xlane.xlu0 %3343
        %v3346 = vlaneseq
        %v3347 = vshrl.u32 %v3346, 7
        %v3348 = vsub.s32 %v1865, %v3347
        %v3349 = vrot.slane %v3344, %v3348
        %v3350 = vsel %vm1870, %v3349, %v3349
        %v3351 = vsel %vm1872, %v3349, %v3350
        %v3352 = vsel %vm1874, %v3349, %v3351
        %v3353 = vsel %vm1876, %v3349, %v3352
        %v3354 = vsel %vm1878, %v3349, %v3353
        %v3355 = vsel %vm1880, %v3349, %v3354
        %v3357 = vadd.f32 %v3340, %v3355
        %vm3358 = vcmp.gt.f32.partialorder %v3357, 0.0
        %v3359 = vmul.f32 %v3357, 0.2
        %v3360 = vsel %vm3358, %v3357, %v3359
        %v3361 = vadd.f32 %v3360, %v679
        %v3362 = vsel %vm871, %v3361, -inf
        %3363 = vmax.xlane.f32.xlu0 %v3362
        %v3364 = vpop.xlane.xlu0 %3363
        %v3365 = vsub.f32 %v3361, %v3364
        %v3366 = vmul.f32 %v3365, 1.442695
        %v3367 = vpow.pop %v3366
        %v3368 = vsel %vm871, %v3367, 0.0
        %3369 = vadd.xlane.f32.xlu0 %v3368
        %v3370 = vpop.xlane.xlu0 %3369
        %v3371 = vrcp.pop %v3370
        %v3372 = vmul.f32 %v3367, %v3371
        %v3373 = vmul.f32 %v3336, %v1906
        %3375 = vrot.lane.b32.xlu0 %v3373, 96
        %v3376 = vpop.permute.xlu0 %3375
        %v3378 = vsel %vm1334, %v3376, 0.0
        %3379 = vadd.xlane.f32.xlu0 %v3378
        %v3380 = vpop.xlane.xlu0 %3379
        %v3381 = vmul.f32 %v3336, %v1923
        %3383 = vrot.lane.b32.xlu0 %v3381, 96
        %v3384 = vpop.permute.xlu0 %3383
        %v3386 = vsel %vm1334, %v3384, 0.0
        %3387 = vadd.xlane.f32.xlu0 %v3386
        %v3388 = vpop.xlane.xlu0 %3387
        %v3390 = vlaneseq
        %v3391 = vshrl.u32 %v3390, 7
        %v3392 = vsub.s32 %v1865, %v3391
        %v3393 = vrot.slane %v3388, %v3392
        %v3394 = vsel %vm1870, %v3393, %v3393
        %v3395 = vsel %vm1872, %v3393, %v3394
        %v3396 = vsel %vm1874, %v3393, %v3395
        %v3397 = vsel %vm1876, %v3393, %v3396
        %v3398 = vsel %vm1878, %v3393, %v3397
        %v3399 = vsel %vm1880, %v3393, %v3398
        %v3401 = vadd.f32 %v3380, %v3399
        %vm3402 = vcmp.gt.f32.partialorder %v3401, 0.0
        %v3403 = vmul.f32 %v3401, 0.2
        %v3404 = vsel %vm3402, %v3401, %v3403
        %v3405 = vadd.f32 %v3404, %v679
        %v3406 = vsel %vm871, %v3405, -inf
        %3407 = vmax.xlane.f32.xlu0 %v3406
        %v3408 = vpop.xlane.xlu0 %3407
        %v3409 = vsub.f32 %v3405, %v3408
        %v3410 = vmul.f32 %v3409, 1.442695
        %v3411 = vpow.pop %v3410
        %v3412 = vsel %vm871, %v3411, 0.0
        %3413 = vadd.xlane.f32.xlu0 %v3412
        %v3414 = vpop.xlane.xlu0 %3413
        %v3415 = vrcp.pop %v3414
        %v3416 = vmul.f32 %v3411, %v3415
        %3418 = vrot.lane.b32.xlu0 %v3336, 96
        %v3419 = vpop.permute.xlu0 %3418
        %v3422 = vsel %vm871, %v3416, 0
        %3424 = vmatprep.subr.mxu0 0.0
        %3425 = vmatpush1.msra.mxu0 0.0
        %3426 = vmatprep.subr.mxu0 0.0
        %3427 = vmatpush1.msra.mxu0 0.0
        %3428 = vmatprep.subr.mxu0 0.0
        %3429 = vmatpush1.msra.mxu0 0.0
        %3430 = vmatprep.subr.mxu0 0.0
        %3431 = vmatpush1.msra.mxu0 0.0
        %3432 = vmatprep.subr.mxu0 0.0
        %3433 = vmatpush1.msra.mxu0 0.0
        %3434 = vmatprep.subr.mxu0 0.0
        %3435 = vmatpush1.msra.mxu0 0.0
        %3436 = vmatprep.subr.mxu0 0.0
        %3437 = vmatpush1.msra.mxu0 0.0
        %3438 = vmatprep.subr.mxu0 0.0
        %3439 = vmatpush1.msra.mxu0 0.0
        %3440 = vmatprep.subr.mxu0 0.0
        %3441 = vmatpush1.msra.mxu0 0.0
        %3442 = vmatprep.subr.mxu0 0.0
        %3443 = vmatpush1.msra.mxu0 0.0
        %3444 = vmatprep.subr.mxu0 0.0
        %3445 = vmatpush1.msra.mxu0 0.0
        %3446 = vmatprep.subr.mxu0 0.0
        %3447 = vmatpush1.msra.mxu0 0.0
        %3448 = vmatprep.subr.mxu0 0.0
        %3449 = vmatpush1.msra.mxu0 0.0
        %3450 = vmatprep.subr.mxu0 0.0
        %3451 = vmatpush1.msra.mxu0 0.0
        %3452 = vmatprep.subr.mxu0 0.0
        %3453 = vmatpush1.msra.mxu0 0.0
        %3454 = vmatprep.subr.mxu0 0.0
        %3455 = vmatpush1.msra.mxu0 %v3419
        %3456 = vmatprep.subr.mxu0 0.0
        %3457 = vmatpush2.msra.mxu0 0.0
        %3458 = vmatprep.subr.mxu0 0.0
        %3459 = vmatpush2.msra.mxu0 0.0
        %3460 = vmatprep.subr.mxu0 0.0
        %3461 = vmatpush2.msra.mxu0 0.0
        %3462 = vmatprep.subr.mxu0 0.0
        %3463 = vmatpush2.msra.mxu0 0.0
        %3464 = vmatprep.subr.mxu0 0.0
        %3465 = vmatpush2.msra.mxu0 0.0
        %3466 = vmatprep.subr.mxu0 0.0
        %3467 = vmatpush2.msra.mxu0 0.0
        %3468 = vmatprep.subr.mxu0 0.0
        %3469 = vmatpush2.msra.mxu0 0.0
        %3470 = vmatprep.subr.mxu0 0.0
        %3471 = vmatpush2.msra.mxu0 0.0
        %3472 = vmatprep.subr.mxu0 0.0
        %3473 = vmatpush2.msra.mxu0 0.0
        %3474 = vmatprep.subr.mxu0 0.0
        %3475 = vmatpush2.msra.mxu0 0.0
        %3476 = vmatprep.subr.mxu0 0.0
        %3477 = vmatpush2.msra.mxu0 0.0
        %3478 = vmatprep.subr.mxu0 0.0
        %3479 = vmatpush2.msra.mxu0 0.0
        %3480 = vmatprep.subr.mxu0 0.0
        %3481 = vmatpush2.msra.mxu0 0.0
        %3482 = vmatprep.subr.mxu0 0.0
        %3483 = vmatpush2.msra.mxu0 0.0
        %3484 = vmatprep.subr.mxu0 0.0
        %3485 = vmatpush2.msra.mxu0 0.0
        %3486 = vmatprep.subr.mxu0 0.0
        %3487 = vmatpush2.msra.mxu0 0.0
        %3488 = vmatprep.mubr.f32.mxu0 0.0
        %3489 = vmatmul.mubr.f32.gmra.mxu0 %v3422
        %v3490 = vpop.f32.mrf.mxu0
        %v3491 = vadd.f32 0.0, %v3490
        %v3492 = vpop.f32.mrf.mxu0
        %3493 = vdwg.mxu0
        %v3495 = vsel %vm871, %v3372, 0
        %3497 = vmatprep.subr.mxu0 0.0
        %3498 = vmatpush1.msra.mxu0 0.0
        %3499 = vmatprep.subr.mxu0 0.0
        %3500 = vmatpush1.msra.mxu0 0.0
        %3501 = vmatprep.subr.mxu0 0.0
        %3502 = vmatpush1.msra.mxu0 0.0
        %3503 = vmatprep.subr.mxu0 0.0
        %3504 = vmatpush1.msra.mxu0 0.0
        %3505 = vmatprep.subr.mxu0 0.0
        %3506 = vmatpush1.msra.mxu0 0.0
        %3507 = vmatprep.subr.mxu0 0.0
        %3508 = vmatpush1.msra.mxu0 0.0
        %3509 = vmatprep.subr.mxu0 0.0
        %3510 = vmatpush1.msra.mxu0 0.0
        %3511 = vmatprep.subr.mxu0 0.0
        %3512 = vmatpush1.msra.mxu0 0.0
        %3513 = vmatprep.subr.mxu0 0.0
        %3514 = vmatpush1.msra.mxu0 0.0
        %3515 = vmatprep.subr.mxu0 0.0
        %3516 = vmatpush1.msra.mxu0 0.0
        %3517 = vmatprep.subr.mxu0 0.0
        %3518 = vmatpush1.msra.mxu0 0.0
        %3519 = vmatprep.subr.mxu0 0.0
        %3520 = vmatpush1.msra.mxu0 0.0
        %3521 = vmatprep.subr.mxu0 0.0
        %3522 = vmatpush1.msra.mxu0 0.0
        %3523 = vmatprep.subr.mxu0 0.0
        %3524 = vmatpush1.msra.mxu0 0.0
        %3525 = vmatprep.subr.mxu0 0.0
        %3526 = vmatpush1.msra.mxu0 0.0
        %3527 = vmatprep.subr.mxu0 0.0
        %3528 = vmatpush1.msra.mxu0 %v3336
        %3529 = vmatprep.subr.mxu0 0.0
        %3530 = vmatpush2.msra.mxu0 0.0
        %3531 = vmatprep.subr.mxu0 0.0
        %3532 = vmatpush2.msra.mxu0 0.0
        %3533 = vmatprep.subr.mxu0 0.0
        %3534 = vmatpush2.msra.mxu0 0.0
        %3535 = vmatprep.subr.mxu0 0.0
        %3536 = vmatpush2.msra.mxu0 0.0
        %3537 = vmatprep.subr.mxu0 0.0
        %3538 = vmatpush2.msra.mxu0 0.0
        %3539 = vmatprep.subr.mxu0 0.0
        %3540 = vmatpush2.msra.mxu0 0.0
        %3541 = vmatprep.subr.mxu0 0.0
        %3542 = vmatpush2.msra.mxu0 0.0
        %3543 = vmatprep.subr.mxu0 0.0
        %3544 = vmatpush2.msra.mxu0 0.0
        %3545 = vmatprep.subr.mxu0 0.0
        %3546 = vmatpush2.msra.mxu0 0.0
        %3547 = vmatprep.subr.mxu0 0.0
        %3548 = vmatpush2.msra.mxu0 0.0
        %3549 = vmatprep.subr.mxu0 0.0
        %3550 = vmatpush2.msra.mxu0 0.0
        %3551 = vmatprep.subr.mxu0 0.0
        %3552 = vmatpush2.msra.mxu0 0.0
        %3553 = vmatprep.subr.mxu0 0.0
        %3554 = vmatpush2.msra.mxu0 0.0
        %3555 = vmatprep.subr.mxu0 0.0
        %3556 = vmatpush2.msra.mxu0 0.0
        %3557 = vmatprep.subr.mxu0 0.0
        %3558 = vmatpush2.msra.mxu0 0.0
        %3559 = vmatprep.subr.mxu0 0.0
        %3560 = vmatpush2.msra.mxu0 0.0
        %3561 = vmatprep.mubr.f32.mxu0 0.0
        %3562 = vmatmul.mubr.f32.gmra.mxu0 %v3495
        %v3563 = vpop.f32.mrf.mxu0
        %v3564 = vadd.f32 %v3491, %v3563
        %v3565 = vpop.f32.mrf.mxu0
        %3566 = vdwg.mxu0
        %v3567 = vmul.f32 %v3564, 0.5
        %v3568 = vtanh.pop %v3567
        %v3569 = vmul.f32 %v1320, %v2954
        %v3570 = vmul.f32 %v1322, %v3262
        %3572 = vrot.lane.b32.xlu0 %v3570, 32
        %v3573 = vpop.permute.xlu0 %3572
        %v3575 = vadd.f32 %v3569, %v3573
        %v3576 = vmul.f32 %v1325, %v3568
        %3578 = vrot.lane.b32.xlu0 %v3576, 32
        %v3579 = vpop.permute.xlu0 %3578
        %v3581 = vadd.f32 %v3575, %v3579
        %3583 = vrot.lane.b32.xlu0 %v3581, 96
        %v3584 = vpop.permute.xlu0 %3583
        %v3585 = vsel %vm1334, %v3584, 0
        %3587 = vmatprep.subr.mxu0 0.0
        %3588 = vmatpush1.msra.mxu0 0.0
        %3589 = vmatprep.subr.mxu0 0.0
        %3590 = vmatpush1.msra.mxu0 0.0
        %3591 = vmatprep.subr.mxu0 0.0
        %3592 = vmatpush1.msra.mxu0 0.0
        %3593 = vmatprep.subr.mxu0 0.0
        %3594 = vmatpush1.msra.mxu0 0.0
        %3595 = vmatprep.subr.mxu0 0.0
        %3596 = vmatpush1.msra.mxu0 0.0
        %3597 = vmatprep.subr.mxu0 0.0
        %3598 = vmatpush1.msra.mxu0 0.0
        %3599 = vmatprep.subr.mxu0 0.0
        %3600 = vmatpush1.msra.mxu0 0.0
        %3601 = vmatprep.subr.mxu0 0.0
        %3602 = vmatpush1.msra.mxu0 0.0
        %3603 = vmatprep.subr.mxu0 0.0
        %3604 = vmatpush1.msra.mxu0 0.0
        %3605 = vmatprep.subr.mxu0 0.0
        %3606 = vmatpush1.msra.mxu0 0.0
        %3607 = vmatprep.subr.mxu0 0.0
        %3608 = vmatpush1.msra.mxu0 0.0
        %3609 = vmatprep.subr.mxu0 0.0
        %3610 = vmatpush1.msra.mxu0 0.0
        %3611 = vmatprep.subr.mxu0 0.0
        %3612 = vmatpush1.msra.mxu0 %v686
        %3613 = vmatprep.subr.mxu0 0.0
        %3614 = vmatpush1.msra.mxu0 %v685
        %3615 = vmatprep.subr.mxu0 0.0
        %3616 = vmatpush1.msra.mxu0 %v684
        %3617 = vmatprep.subr.mxu0 0.0
        %3618 = vmatpush1.msra.mxu0 %v683
        %3619 = vmatprep.subr.mxu0 0.0
        %3620 = vmatpush2.msra.mxu0 0.0
        %3621 = vmatprep.subr.mxu0 0.0
        %3622 = vmatpush2.msra.mxu0 0.0
        %3623 = vmatprep.subr.mxu0 0.0
        %3624 = vmatpush2.msra.mxu0 0.0
        %3625 = vmatprep.subr.mxu0 0.0
        %3626 = vmatpush2.msra.mxu0 0.0
        %3627 = vmatprep.subr.mxu0 0.0
        %3628 = vmatpush2.msra.mxu0 0.0
        %3629 = vmatprep.subr.mxu0 0.0
        %3630 = vmatpush2.msra.mxu0 0.0
        %3631 = vmatprep.subr.mxu0 0.0
        %3632 = vmatpush2.msra.mxu0 0.0
        %3633 = vmatprep.subr.mxu0 0.0
        %3634 = vmatpush2.msra.mxu0 0.0
        %3635 = vmatprep.subr.mxu0 0.0
        %3636 = vmatpush2.msra.mxu0 0.0
        %3637 = vmatprep.subr.mxu0 0.0
        %3638 = vmatpush2.msra.mxu0 0.0
        %3639 = vmatprep.subr.mxu0 0.0
        %3640 = vmatpush2.msra.mxu0 0.0
        %3641 = vmatprep.subr.mxu0 0.0
        %3642 = vmatpush2.msra.mxu0 0.0
        %3643 = vmatprep.subr.mxu0 0.0
        %3644 = vmatpush2.msra.mxu0 0.0
        %3645 = vmatprep.subr.mxu0 0.0
        %3646 = vmatpush2.msra.mxu0 0.0
        %3647 = vmatprep.subr.mxu0 0.0
        %3648 = vmatpush2.msra.mxu0 0.0
        %3649 = vmatprep.subr.mxu0 0.0
        %3650 = vmatpush2.msra.mxu0 0.0
        %3651 = vmatprep.mubr.f32.mxu0 0.0
        %3652 = vmatmul.mubr.f32.gmra.mxu0 %v3585
        %v3653 = vpop.f32.mrf.mxu0
        %v3654 = vadd.f32 %v1332, %v3653
        %v3655 = vpop.f32.mrf.mxu0
        %3656 = vdwg.mxu0
        %v3657 = vadd.f32 %v774, %v3654
        %v3658 = vxor.u32 %v3657, 2147483648
        %v3659 = vmul.f32 %v3658, 1.442695
        %v3660 = vpow.pop %v3659
        %v3661 = vadd.f32 %v3660, 1.0
        %v3662 = vrcp.pop %v3661
        %v3663 = vmul.f32 1.0, %v3662
        %3665 = vrot.lane.b32.xlu0 %v3654, 64
        %v3666 = vpop.permute.xlu0 %3665
        %v3668 = vmul.f32 %v3663, %v3666
        %3670 = vrot.lane.b32.xlu0 %v3668, 64
        %v3671 = vpop.permute.xlu0 %3670
        %v3673 = vadd.f32 %v774, %v3671
        %v3674 = vtanh.pop %v3673
        %v3675 = vsub.f32 1.0, %v3663
        %3677 = vrot.lane.b32.xlu0 %v3674, 96
        %v3678 = vpop.permute.xlu0 %3677
        %v3680 = vmul.f32 %v3675, %v3678
        %v3681 = vmul.f32 %v3663, %v3581
        %v3682 = vadd.f32 %v3680, %v3681
        %3684 = vrot.lane.b32.xlu0 %v3682, 96
        %v3685 = vpop.permute.xlu0 %3684
        %3687 = vmatprep.subr.mxu0 0.0
        %3688 = vmatpush1.msra.mxu0 0.0
        %3689 = vmatprep.subr.mxu0 0.0
        %3690 = vmatpush1.msra.mxu0 0.0
        %3691 = vmatprep.subr.mxu0 0.0
        %3692 = vmatpush1.msra.mxu0 0.0
        %3693 = vmatprep.subr.mxu0 0.0
        %3694 = vmatpush1.msra.mxu0 0.0
        %3695 = vmatprep.subr.mxu0 0.0
        %3696 = vmatpush1.msra.mxu0 0.0
        %3697 = vmatprep.subr.mxu0 0.0
        %3698 = vmatpush1.msra.mxu0 0.0
        %3699 = vmatprep.subr.mxu0 0.0
        %3700 = vmatpush1.msra.mxu0 0.0
        %3701 = vmatprep.subr.mxu0 0.0
        %3702 = vmatpush1.msra.mxu0 0.0
        %3703 = vmatprep.subr.mxu0 0.0
        %3704 = vmatpush1.msra.mxu0 0.0
        %3705 = vmatprep.subr.mxu0 0.0
        %3706 = vmatpush1.msra.mxu0 0.0
        %3707 = vmatprep.subr.mxu0 0.0
        %3708 = vmatpush1.msra.mxu0 0.0
        %3709 = vmatprep.subr.mxu0 0.0
        %3710 = vmatpush1.msra.mxu0 0.0
        %3711 = vmatprep.subr.mxu0 0.0
        %3712 = vmatpush1.msra.mxu0 0.0
        %3713 = vmatprep.subr.mxu0 0.0
        %3714 = vmatpush1.msra.mxu0 0.0
        %3715 = vmatprep.subr.mxu0 0.0
        %3716 = vmatpush1.msra.mxu0 0.0
        %3717 = vmatprep.subr.mxu0 0.0
        %3718 = vmatpush1.msra.mxu0 %v3685
        %3719 = vmatprep.subr.mxu0 0.0
        %3720 = vmatpush2.msra.mxu0 0.0
        %3721 = vmatprep.subr.mxu0 0.0
        %3722 = vmatpush2.msra.mxu0 0.0
        %3723 = vmatprep.subr.mxu0 0.0
        %3724 = vmatpush2.msra.mxu0 0.0
        %3725 = vmatprep.subr.mxu0 0.0
        %3726 = vmatpush2.msra.mxu0 0.0
        %3727 = vmatprep.subr.mxu0 0.0
        %3728 = vmatpush2.msra.mxu0 0.0
        %3729 = vmatprep.subr.mxu0 0.0
        %3730 = vmatpush2.msra.mxu0 0.0
        %3731 = vmatprep.subr.mxu0 0.0
        %3732 = vmatpush2.msra.mxu0 0.0
        %3733 = vmatprep.subr.mxu0 0.0
        %3734 = vmatpush2.msra.mxu0 0.0
        %3735 = vmatprep.subr.mxu0 0.0
        %3736 = vmatpush2.msra.mxu0 0.0
        %3737 = vmatprep.subr.mxu0 0.0
        %3738 = vmatpush2.msra.mxu0 0.0
        %3739 = vmatprep.subr.mxu0 0.0
        %3740 = vmatpush2.msra.mxu0 0.0
        %3741 = vmatprep.subr.mxu0 0.0
        %3742 = vmatpush2.msra.mxu0 0.0
        %3743 = vmatprep.subr.mxu0 0.0
        %3744 = vmatpush2.msra.mxu0 0.0
        %3745 = vmatprep.subr.mxu0 0.0
        %3746 = vmatpush2.msra.mxu0 0.0
        %3747 = vmatprep.subr.mxu0 0.0
        %3748 = vmatpush2.msra.mxu0 0.0
        %3749 = vmatprep.subr.mxu0 0.0
        %3750 = vmatpush2.msra.mxu0 0.0
        %3751 = vmatprep.mubr.f32.mxu0 0.0
        %3752 = vmatmul.mubr.f32.gmra.mxu0 %v1439
        %v3753 = vpop.f32.mrf.mxu0
        %v3754 = vadd.f32 0.0, %v3753
        %v3755 = vpop.f32.mrf.mxu0
        %3756 = vmatprep.mubr.f32.mxu0 0.0
        %3757 = vmatmul.mubr.f32.gmra.mxu0 %v1442
        %v3758 = vpop.f32.mrf.mxu0
        %v3759 = vadd.f32 0.0, %v3758
        %v3760 = vpop.f32.mrf.mxu0
        %3761 = vmatprep.mubr.f32.mxu0 0.0
        %3762 = vmatmul.mubr.f32.gmra.mxu0 %v1445
        %v3763 = vpop.f32.mrf.mxu0
        %v3764 = vadd.f32 0.0, %v3763
        %v3765 = vpop.f32.mrf.mxu0
        %3766 = vdwg.mxu0
        %v3768 = vsel %vm1334, %v3754, 0
        %3770 = vmatprep.subr.mxu0 0.0
        %3771 = vmatpush1.msra.mxu0 0.0
        %3772 = vmatprep.subr.mxu0 0.0
        %3773 = vmatpush1.msra.mxu0 0.0
        %3774 = vmatprep.subr.mxu0 0.0
        %3775 = vmatpush1.msra.mxu0 0.0
        %3776 = vmatprep.subr.mxu0 0.0
        %3777 = vmatpush1.msra.mxu0 0.0
        %3778 = vmatprep.subr.mxu0 0.0
        %3779 = vmatpush1.msra.mxu0 0.0
        %3780 = vmatprep.subr.mxu0 0.0
        %3781 = vmatpush1.msra.mxu0 0.0
        %3782 = vmatprep.subr.mxu0 0.0
        %3783 = vmatpush1.msra.mxu0 0.0
        %3784 = vmatprep.subr.mxu0 0.0
        %3785 = vmatpush1.msra.mxu0 0.0
        %3786 = vmatprep.subr.mxu0 0.0
        %3787 = vmatpush1.msra.mxu0 0.0
        %3788 = vmatprep.subr.mxu0 0.0
        %3789 = vmatpush1.msra.mxu0 0.0
        %3790 = vmatprep.subr.mxu0 0.0
        %3791 = vmatpush1.msra.mxu0 0.0
        %3792 = vmatprep.subr.mxu0 0.0
        %3793 = vmatpush1.msra.mxu0 0.0
        %3794 = vmatprep.subr.mxu0 0.0
        %3795 = vmatpush1.msra.mxu0 %v1530
        %3796 = vmatprep.subr.mxu0 0.0
        %3797 = vmatpush1.msra.mxu0 %v1529
        %3798 = vmatprep.subr.mxu0 0.0
        %3799 = vmatpush1.msra.mxu0 %v1528
        %3800 = vmatprep.subr.mxu0 0.0
        %3801 = vmatpush1.msra.mxu0 %v1527
        %3802 = vmatprep.subr.mxu0 0.0
        %3803 = vmatpush2.msra.mxu0 0.0
        %3804 = vmatprep.subr.mxu0 0.0
        %3805 = vmatpush2.msra.mxu0 0.0
        %3806 = vmatprep.subr.mxu0 0.0
        %3807 = vmatpush2.msra.mxu0 0.0
        %3808 = vmatprep.subr.mxu0 0.0
        %3809 = vmatpush2.msra.mxu0 0.0
        %3810 = vmatprep.subr.mxu0 0.0
        %3811 = vmatpush2.msra.mxu0 0.0
        %3812 = vmatprep.subr.mxu0 0.0
        %3813 = vmatpush2.msra.mxu0 0.0
        %3814 = vmatprep.subr.mxu0 0.0
        %3815 = vmatpush2.msra.mxu0 0.0
        %3816 = vmatprep.subr.mxu0 0.0
        %3817 = vmatpush2.msra.mxu0 0.0
        %3818 = vmatprep.subr.mxu0 0.0
        %3819 = vmatpush2.msra.mxu0 0.0
        %3820 = vmatprep.subr.mxu0 0.0
        %3821 = vmatpush2.msra.mxu0 0.0
        %3822 = vmatprep.subr.mxu0 0.0
        %3823 = vmatpush2.msra.mxu0 0.0
        %3824 = vmatprep.subr.mxu0 0.0
        %3825 = vmatpush2.msra.mxu0 0.0
        %3826 = vmatprep.subr.mxu0 0.0
        %3827 = vmatpush2.msra.mxu0 0.0
        %3828 = vmatprep.subr.mxu0 0.0
        %3829 = vmatpush2.msra.mxu0 0.0
        %3830 = vmatprep.subr.mxu0 0.0
        %3831 = vmatpush2.msra.mxu0 0.0
        %3832 = vmatprep.subr.mxu0 0.0
        %3833 = vmatpush2.msra.mxu0 0.0
        %3834 = vmatprep.mubr.f32.mxu0 0.0
        %3835 = vmatmul.mubr.f32.gmra.mxu0 %v3768
        %v3836 = vpop.f32.mrf.mxu0
        %v3837 = vadd.f32 0.0, %v3836
        %v3838 = vpop.f32.mrf.mxu0
        %3839 = vdwg.mxu0
        %v3840 = vadd.f32 %v1315, %v3837
        %v3842 = vsel %vm1334, %v3759, 0
        %3844 = vmatprep.subr.mxu0 0.0
        %3845 = vmatpush1.msra.mxu0 0.0
        %3846 = vmatprep.subr.mxu0 0.0
        %3847 = vmatpush1.msra.mxu0 0.0
        %3848 = vmatprep.subr.mxu0 0.0
        %3849 = vmatpush1.msra.mxu0 0.0
        %3850 = vmatprep.subr.mxu0 0.0
        %3851 = vmatpush1.msra.mxu0 0.0
        %3852 = vmatprep.subr.mxu0 0.0
        %3853 = vmatpush1.msra.mxu0 0.0
        %3854 = vmatprep.subr.mxu0 0.0
        %3855 = vmatpush1.msra.mxu0 0.0
        %3856 = vmatprep.subr.mxu0 0.0
        %3857 = vmatpush1.msra.mxu0 0.0
        %3858 = vmatprep.subr.mxu0 0.0
        %3859 = vmatpush1.msra.mxu0 0.0
        %3860 = vmatprep.subr.mxu0 0.0
        %3861 = vmatpush1.msra.mxu0 0.0
        %3862 = vmatprep.subr.mxu0 0.0
        %3863 = vmatpush1.msra.mxu0 0.0
        %3864 = vmatprep.subr.mxu0 0.0
        %3865 = vmatpush1.msra.mxu0 0.0
        %3866 = vmatprep.subr.mxu0 0.0
        %3867 = vmatpush1.msra.mxu0 0.0
        %3868 = vmatprep.subr.mxu0 0.0
        %3869 = vmatpush1.msra.mxu0 %v1609
        %3870 = vmatprep.subr.mxu0 0.0
        %3871 = vmatpush1.msra.mxu0 %v1608
        %3872 = vmatprep.subr.mxu0 0.0
        %3873 = vmatpush1.msra.mxu0 %v1607
        %3874 = vmatprep.subr.mxu0 0.0
        %3875 = vmatpush1.msra.mxu0 %v1606
        %3876 = vmatprep.subr.mxu0 0.0
        %3877 = vmatpush2.msra.mxu0 0.0
        %3878 = vmatprep.subr.mxu0 0.0
        %3879 = vmatpush2.msra.mxu0 0.0
        %3880 = vmatprep.subr.mxu0 0.0
        %3881 = vmatpush2.msra.mxu0 0.0
        %3882 = vmatprep.subr.mxu0 0.0
        %3883 = vmatpush2.msra.mxu0 0.0
        %3884 = vmatprep.subr.mxu0 0.0
        %3885 = vmatpush2.msra.mxu0 0.0
        %3886 = vmatprep.subr.mxu0 0.0
        %3887 = vmatpush2.msra.mxu0 0.0
        %3888 = vmatprep.subr.mxu0 0.0
        %3889 = vmatpush2.msra.mxu0 0.0
        %3890 = vmatprep.subr.mxu0 0.0
        %3891 = vmatpush2.msra.mxu0 0.0
        %3892 = vmatprep.subr.mxu0 0.0
        %3893 = vmatpush2.msra.mxu0 0.0
        %3894 = vmatprep.subr.mxu0 0.0
        %3895 = vmatpush2.msra.mxu0 0.0
        %3896 = vmatprep.subr.mxu0 0.0
        %3897 = vmatpush2.msra.mxu0 0.0
        %3898 = vmatprep.subr.mxu0 0.0
        %3899 = vmatpush2.msra.mxu0 0.0
        %3900 = vmatprep.subr.mxu0 0.0
        %3901 = vmatpush2.msra.mxu0 0.0
        %3902 = vmatprep.subr.mxu0 0.0
        %3903 = vmatpush2.msra.mxu0 0.0
        %3904 = vmatprep.subr.mxu0 0.0
        %3905 = vmatpush2.msra.mxu0 0.0
        %3906 = vmatprep.subr.mxu0 0.0
        %3907 = vmatpush2.msra.mxu0 0.0
        %3908 = vmatprep.mubr.f32.mxu0 0.0
        %3909 = vmatmul.mubr.f32.gmra.mxu0 %v3842
        %v3910 = vpop.f32.mrf.mxu0
        %v3911 = vadd.f32 0.0, %v3910
        %v3912 = vpop.f32.mrf.mxu0
        %3913 = vdwg.mxu0
        %v3914 = vadd.f32 %v3840, %v3911
        %v3916 = vsel %vm1334, %v3764, 0
        %3918 = vmatprep.subr.mxu0 0.0
        %3919 = vmatpush1.msra.mxu0 0.0
        %3920 = vmatprep.subr.mxu0 0.0
        %3921 = vmatpush1.msra.mxu0 0.0
        %3922 = vmatprep.subr.mxu0 0.0
        %3923 = vmatpush1.msra.mxu0 0.0
        %3924 = vmatprep.subr.mxu0 0.0
        %3925 = vmatpush1.msra.mxu0 0.0
        %3926 = vmatprep.subr.mxu0 0.0
        %3927 = vmatpush1.msra.mxu0 0.0
        %3928 = vmatprep.subr.mxu0 0.0
        %3929 = vmatpush1.msra.mxu0 0.0
        %3930 = vmatprep.subr.mxu0 0.0
        %3931 = vmatpush1.msra.mxu0 0.0
        %3932 = vmatprep.subr.mxu0 0.0
        %3933 = vmatpush1.msra.mxu0 0.0
        %3934 = vmatprep.subr.mxu0 0.0
        %3935 = vmatpush1.msra.mxu0 0.0
        %3936 = vmatprep.subr.mxu0 0.0
        %3937 = vmatpush1.msra.mxu0 0.0
        %3938 = vmatprep.subr.mxu0 0.0
        %3939 = vmatpush1.msra.mxu0 0.0
        %3940 = vmatprep.subr.mxu0 0.0
        %3941 = vmatpush1.msra.mxu0 0.0
        %3942 = vmatprep.subr.mxu0 0.0
        %3943 = vmatpush1.msra.mxu0 %v1688
        %3944 = vmatprep.subr.mxu0 0.0
        %3945 = vmatpush1.msra.mxu0 %v1687
        %3946 = vmatprep.subr.mxu0 0.0
        %3947 = vmatpush1.msra.mxu0 %v1686
        %3948 = vmatprep.subr.mxu0 0.0
        %3949 = vmatpush1.msra.mxu0 %v1685
        %3950 = vmatprep.subr.mxu0 0.0
        %3951 = vmatpush2.msra.mxu0 0.0
        %3952 = vmatprep.subr.mxu0 0.0
        %3953 = vmatpush2.msra.mxu0 0.0
        %3954 = vmatprep.subr.mxu0 0.0
        %3955 = vmatpush2.msra.mxu0 0.0
        %3956 = vmatprep.subr.mxu0 0.0
        %3957 = vmatpush2.msra.mxu0 0.0
        %3958 = vmatprep.subr.mxu0 0.0
        %3959 = vmatpush2.msra.mxu0 0.0
        %3960 = vmatprep.subr.mxu0 0.0
        %3961 = vmatpush2.msra.mxu0 0.0
        %3962 = vmatprep.subr.mxu0 0.0
        %3963 = vmatpush2.msra.mxu0 0.0
        %3964 = vmatprep.subr.mxu0 0.0
        %3965 = vmatpush2.msra.mxu0 0.0
        %3966 = vmatprep.subr.mxu0 0.0
        %3967 = vmatpush2.msra.mxu0 0.0
        %3968 = vmatprep.subr.mxu0 0.0
        %3969 = vmatpush2.msra.mxu0 0.0
        %3970 = vmatprep.subr.mxu0 0.0
        %3971 = vmatpush2.msra.mxu0 0.0
        %3972 = vmatprep.subr.mxu0 0.0
        %3973 = vmatpush2.msra.mxu0 0.0
        %3974 = vmatprep.subr.mxu0 0.0
        %3975 = vmatpush2.msra.mxu0 0.0
        %3976 = vmatprep.subr.mxu0 0.0
        %3977 = vmatpush2.msra.mxu0 0.0
        %3978 = vmatprep.subr.mxu0 0.0
        %3979 = vmatpush2.msra.mxu0 0.0
        %3980 = vmatprep.subr.mxu0 0.0
        %3981 = vmatpush2.msra.mxu0 0.0
        %3982 = vmatprep.mubr.f32.mxu0 0.0
        %3983 = vmatmul.mubr.f32.gmra.mxu0 %v3916
        %v3984 = vpop.f32.mrf.mxu0
        %v3985 = vadd.f32 0.0, %v3984
        %v3986 = vpop.f32.mrf.mxu0
        %3987 = vdwg.mxu0
        %v3988 = vadd.f32 %v3914, %v3985
        %v3989 = vadd.f32 %v3988, %v1767
        %v3990 = vtanh.pop %v3989
        %v3991 = vadd.f32 %v789, %v867
        %v3992 = vsel %vm1334, %v3685, 0
        %3994 = vmatprep.subr.mxu0 0.0
        %3995 = vmatpush1.msra.mxu0 0.0
        %3996 = vmatprep.subr.mxu0 0.0
        %3997 = vmatpush1.msra.mxu0 0.0
        %3998 = vmatprep.subr.mxu0 0.0
        %3999 = vmatpush1.msra.mxu0 0.0
        %4000 = vmatprep.subr.mxu0 0.0
        %4001 = vmatpush1.msra.mxu0 0.0
        %4002 = vmatprep.subr.mxu0 0.0
        %4003 = vmatpush1.msra.mxu0 0.0
        %4004 = vmatprep.subr.mxu0 0.0
        %4005 = vmatpush1.msra.mxu0 0.0
        %4006 = vmatprep.subr.mxu0 0.0
        %4007 = vmatpush1.msra.mxu0 0.0
        %4008 = vmatprep.subr.mxu0 0.0
        %4009 = vmatpush1.msra.mxu0 0.0
        %4010 = vmatprep.subr.mxu0 0.0
        %4011 = vmatpush1.msra.mxu0 0.0
        %4012 = vmatprep.subr.mxu0 0.0
        %4013 = vmatpush1.msra.mxu0 0.0
        %4014 = vmatprep.subr.mxu0 0.0
        %4015 = vmatpush1.msra.mxu0 0.0
        %4016 = vmatprep.subr.mxu0 0.0
        %4017 = vmatpush1.msra.mxu0 0.0
        %4018 = vmatprep.subr.mxu0 0.0
        %4019 = vmatpush1.msra.mxu0 %v691
        %4020 = vmatprep.subr.mxu0 0.0
        %4021 = vmatpush1.msra.mxu0 %v690
        %4022 = vmatprep.subr.mxu0 0.0
        %4023 = vmatpush1.msra.mxu0 %v689
        %4024 = vmatprep.subr.mxu0 0.0
        %4025 = vmatpush1.msra.mxu0 %v688
        %4026 = vmatprep.subr.mxu0 0.0
        %4027 = vmatpush2.msra.mxu0 0.0
        %4028 = vmatprep.subr.mxu0 0.0
        %4029 = vmatpush2.msra.mxu0 0.0
        %4030 = vmatprep.subr.mxu0 0.0
        %4031 = vmatpush2.msra.mxu0 0.0
        %4032 = vmatprep.subr.mxu0 0.0
        %4033 = vmatpush2.msra.mxu0 0.0
        %4034 = vmatprep.subr.mxu0 0.0
        %4035 = vmatpush2.msra.mxu0 0.0
        %4036 = vmatprep.subr.mxu0 0.0
        %4037 = vmatpush2.msra.mxu0 0.0
        %4038 = vmatprep.subr.mxu0 0.0
        %4039 = vmatpush2.msra.mxu0 0.0
        %4040 = vmatprep.subr.mxu0 0.0
        %4041 = vmatpush2.msra.mxu0 0.0
        %4042 = vmatprep.subr.mxu0 0.0
        %4043 = vmatpush2.msra.mxu0 0.0
        %4044 = vmatprep.subr.mxu0 0.0
        %4045 = vmatpush2.msra.mxu0 0.0
        %4046 = vmatprep.subr.mxu0 0.0
        %4047 = vmatpush2.msra.mxu0 0.0
        %4048 = vmatprep.subr.mxu0 0.0
        %4049 = vmatpush2.msra.mxu0 0.0
        %4050 = vmatprep.subr.mxu0 0.0
        %4051 = vmatpush2.msra.mxu0 0.0
        %4052 = vmatprep.subr.mxu0 0.0
        %4053 = vmatpush2.msra.mxu0 0.0
        %4054 = vmatprep.subr.mxu0 0.0
        %4055 = vmatpush2.msra.mxu0 0.0
        %4056 = vmatprep.subr.mxu0 0.0
        %4057 = vmatpush2.msra.mxu0 0.0
        %4058 = vmatprep.mubr.f32.mxu0 0.0
        %4059 = vmatmul.mubr.f32.gmra.mxu0 %v3992
        %v4060 = vpop.f32.mrf.mxu0
        %v4061 = vadd.f32 0.0, %v4060
        %v4062 = vpop.f32.mrf.mxu0
        %4063 = vdwg.mxu0
        %v4064 = vadd.f32 %v3991, %v4061
        %v4065 = vmul.f32 %v4064, %v1849
        %v4066 = vsel %vm1334, %v4065, 0.0
        %4067 = vadd.xlane.f32.xlu0 %v4066
        %v4068 = vpop.xlane.xlu0 %4067
        %v4069 = vmul.f32 %v4064, %v1858
        %v4070 = vsel %vm1334, %v4069, 0.0
        %4071 = vadd.xlane.f32.xlu0 %v4070
        %v4072 = vpop.xlane.xlu0 %4071
        %v4074 = vlaneseq
        %v4075 = vshrl.u32 %v4074, 7
        %v4076 = vsub.s32 %v1865, %v4075
        %v4077 = vrot.slane %v4072, %v4076
        %v4078 = vsel %vm1870, %v4077, %v4077
        %v4079 = vsel %vm1872, %v4077, %v4078
        %v4080 = vsel %vm1874, %v4077, %v4079
        %v4081 = vsel %vm1876, %v4077, %v4080
        %v4082 = vsel %vm1878, %v4077, %v4081
        %v4083 = vsel %vm1880, %v4077, %v4082
        %v4085 = vadd.f32 %v4068, %v4083
        %vm4086 = vcmp.gt.f32.partialorder %v4085, 0.0
        %v4087 = vmul.f32 %v4085, 0.2
        %v4088 = vsel %vm4086, %v4085, %v4087
        %v4089 = vadd.f32 %v4088, %v679
        %v4090 = vsel %vm871, %v4089, -inf
        %4091 = vmax.xlane.f32.xlu0 %v4090
        %v4092 = vpop.xlane.xlu0 %4091
        %v4093 = vsub.f32 %v4089, %v4092
        %v4094 = vmul.f32 %v4093, 1.442695
        %v4095 = vpow.pop %v4094
        %v4096 = vsel %vm871, %v4095, 0.0
        %4097 = vadd.xlane.f32.xlu0 %v4096
        %v4098 = vpop.xlane.xlu0 %4097
        %v4099 = vrcp.pop %v4098
        %v4100 = vmul.f32 %v4095, %v4099
        %v4101 = vmul.f32 %v4064, %v1906
        %4103 = vrot.lane.b32.xlu0 %v4101, 96
        %v4104 = vpop.permute.xlu0 %4103
        %v4106 = vsel %vm1334, %v4104, 0.0
        %4107 = vadd.xlane.f32.xlu0 %v4106
        %v4108 = vpop.xlane.xlu0 %4107
        %v4109 = vmul.f32 %v4064, %v1923
        %4111 = vrot.lane.b32.xlu0 %v4109, 96
        %v4112 = vpop.permute.xlu0 %4111
        %v4114 = vsel %vm1334, %v4112, 0.0
        %4115 = vadd.xlane.f32.xlu0 %v4114
        %v4116 = vpop.xlane.xlu0 %4115
        %v4118 = vlaneseq
        %v4119 = vshrl.u32 %v4118, 7
        %v4120 = vsub.s32 %v1865, %v4119
        %v4121 = vrot.slane %v4116, %v4120
        %v4122 = vsel %vm1870, %v4121, %v4121
        %v4123 = vsel %vm1872, %v4121, %v4122
        %v4124 = vsel %vm1874, %v4121, %v4123
        %v4125 = vsel %vm1876, %v4121, %v4124
        %v4126 = vsel %vm1878, %v4121, %v4125
        %v4127 = vsel %vm1880, %v4121, %v4126
        %v4129 = vadd.f32 %v4108, %v4127
        %vm4130 = vcmp.gt.f32.partialorder %v4129, 0.0
        %v4131 = vmul.f32 %v4129, 0.2
        %v4132 = vsel %vm4130, %v4129, %v4131
        %v4133 = vadd.f32 %v4132, %v679
        %v4134 = vsel %vm871, %v4133, -inf
        %4135 = vmax.xlane.f32.xlu0 %v4134
        %v4136 = vpop.xlane.xlu0 %4135
        %v4137 = vsub.f32 %v4133, %v4136
        %v4138 = vmul.f32 %v4137, 1.442695
        %v4139 = vpow.pop %v4138
        %v4140 = vsel %vm871, %v4139, 0.0
        %4141 = vadd.xlane.f32.xlu0 %v4140
        %v4142 = vpop.xlane.xlu0 %4141
        %v4143 = vrcp.pop %v4142
        %v4144 = vmul.f32 %v4139, %v4143
        %4146 = vrot.lane.b32.xlu0 %v4064, 96
        %v4147 = vpop.permute.xlu0 %4146
        %v4150 = vsel %vm871, %v4144, 0
        %4152 = vmatprep.subr.mxu0 0.0
        %4153 = vmatpush1.msra.mxu0 0.0
        %4154 = vmatprep.subr.mxu0 0.0
        %4155 = vmatpush1.msra.mxu0 0.0
        %4156 = vmatprep.subr.mxu0 0.0
        %4157 = vmatpush1.msra.mxu0 0.0
        %4158 = vmatprep.subr.mxu0 0.0
        %4159 = vmatpush1.msra.mxu0 0.0
        %4160 = vmatprep.subr.mxu0 0.0
        %4161 = vmatpush1.msra.mxu0 0.0
        %4162 = vmatprep.subr.mxu0 0.0
        %4163 = vmatpush1.msra.mxu0 0.0
        %4164 = vmatprep.subr.mxu0 0.0
        %4165 = vmatpush1.msra.mxu0 0.0
        %4166 = vmatprep.subr.mxu0 0.0
        %4167 = vmatpush1.msra.mxu0 0.0
        %4168 = vmatprep.subr.mxu0 0.0
        %4169 = vmatpush1.msra.mxu0 0.0
        %4170 = vmatprep.subr.mxu0 0.0
        %4171 = vmatpush1.msra.mxu0 0.0
        %4172 = vmatprep.subr.mxu0 0.0
        %4173 = vmatpush1.msra.mxu0 0.0
        %4174 = vmatprep.subr.mxu0 0.0
        %4175 = vmatpush1.msra.mxu0 0.0
        %4176 = vmatprep.subr.mxu0 0.0
        %4177 = vmatpush1.msra.mxu0 0.0
        %4178 = vmatprep.subr.mxu0 0.0
        %4179 = vmatpush1.msra.mxu0 0.0
        %4180 = vmatprep.subr.mxu0 0.0
        %4181 = vmatpush1.msra.mxu0 0.0
        %4182 = vmatprep.subr.mxu0 0.0
        %4183 = vmatpush1.msra.mxu0 %v4147
        %4184 = vmatprep.subr.mxu0 0.0
        %4185 = vmatpush2.msra.mxu0 0.0
        %4186 = vmatprep.subr.mxu0 0.0
        %4187 = vmatpush2.msra.mxu0 0.0
        %4188 = vmatprep.subr.mxu0 0.0
        %4189 = vmatpush2.msra.mxu0 0.0
        %4190 = vmatprep.subr.mxu0 0.0
        %4191 = vmatpush2.msra.mxu0 0.0
        %4192 = vmatprep.subr.mxu0 0.0
        %4193 = vmatpush2.msra.mxu0 0.0
        %4194 = vmatprep.subr.mxu0 0.0
        %4195 = vmatpush2.msra.mxu0 0.0
        %4196 = vmatprep.subr.mxu0 0.0
        %4197 = vmatpush2.msra.mxu0 0.0
        %4198 = vmatprep.subr.mxu0 0.0
        %4199 = vmatpush2.msra.mxu0 0.0
        %4200 = vmatprep.subr.mxu0 0.0
        %4201 = vmatpush2.msra.mxu0 0.0
        %4202 = vmatprep.subr.mxu0 0.0
        %4203 = vmatpush2.msra.mxu0 0.0
        %4204 = vmatprep.subr.mxu0 0.0
        %4205 = vmatpush2.msra.mxu0 0.0
        %4206 = vmatprep.subr.mxu0 0.0
        %4207 = vmatpush2.msra.mxu0 0.0
        %4208 = vmatprep.subr.mxu0 0.0
        %4209 = vmatpush2.msra.mxu0 0.0
        %4210 = vmatprep.subr.mxu0 0.0
        %4211 = vmatpush2.msra.mxu0 0.0
        %4212 = vmatprep.subr.mxu0 0.0
        %4213 = vmatpush2.msra.mxu0 0.0
        %4214 = vmatprep.subr.mxu0 0.0
        %4215 = vmatpush2.msra.mxu0 0.0
        %4216 = vmatprep.mubr.f32.mxu0 0.0
        %4217 = vmatmul.mubr.f32.gmra.mxu0 %v4150
        %v4218 = vpop.f32.mrf.mxu0
        %v4219 = vadd.f32 0.0, %v4218
        %v4220 = vpop.f32.mrf.mxu0
        %4221 = vdwg.mxu0
        %v4223 = vsel %vm871, %v4100, 0
        %4225 = vmatprep.subr.mxu0 0.0
        %4226 = vmatpush1.msra.mxu0 0.0
        %4227 = vmatprep.subr.mxu0 0.0
        %4228 = vmatpush1.msra.mxu0 0.0
        %4229 = vmatprep.subr.mxu0 0.0
        %4230 = vmatpush1.msra.mxu0 0.0
        %4231 = vmatprep.subr.mxu0 0.0
        %4232 = vmatpush1.msra.mxu0 0.0
        %4233 = vmatprep.subr.mxu0 0.0
        %4234 = vmatpush1.msra.mxu0 0.0
        %4235 = vmatprep.subr.mxu0 0.0
        %4236 = vmatpush1.msra.mxu0 0.0
        %4237 = vmatprep.subr.mxu0 0.0
        %4238 = vmatpush1.msra.mxu0 0.0
        %4239 = vmatprep.subr.mxu0 0.0
        %4240 = vmatpush1.msra.mxu0 0.0
        %4241 = vmatprep.subr.mxu0 0.0
        %4242 = vmatpush1.msra.mxu0 0.0
        %4243 = vmatprep.subr.mxu0 0.0
        %4244 = vmatpush1.msra.mxu0 0.0
        %4245 = vmatprep.subr.mxu0 0.0
        %4246 = vmatpush1.msra.mxu0 0.0
        %4247 = vmatprep.subr.mxu0 0.0
        %4248 = vmatpush1.msra.mxu0 0.0
        %4249 = vmatprep.subr.mxu0 0.0
        %4250 = vmatpush1.msra.mxu0 0.0
        %4251 = vmatprep.subr.mxu0 0.0
        %4252 = vmatpush1.msra.mxu0 0.0
        %4253 = vmatprep.subr.mxu0 0.0
        %4254 = vmatpush1.msra.mxu0 0.0
        %4255 = vmatprep.subr.mxu0 0.0
        %4256 = vmatpush1.msra.mxu0 %v4064
        %4257 = vmatprep.subr.mxu0 0.0
        %4258 = vmatpush2.msra.mxu0 0.0
        %4259 = vmatprep.subr.mxu0 0.0
        %4260 = vmatpush2.msra.mxu0 0.0
        %4261 = vmatprep.subr.mxu0 0.0
        %4262 = vmatpush2.msra.mxu0 0.0
        %4263 = vmatprep.subr.mxu0 0.0
        %4264 = vmatpush2.msra.mxu0 0.0
        %4265 = vmatprep.subr.mxu0 0.0
        %4266 = vmatpush2.msra.mxu0 0.0
        %4267 = vmatprep.subr.mxu0 0.0
        %4268 = vmatpush2.msra.mxu0 0.0
        %4269 = vmatprep.subr.mxu0 0.0
        %4270 = vmatpush2.msra.mxu0 0.0
        %4271 = vmatprep.subr.mxu0 0.0
        %4272 = vmatpush2.msra.mxu0 0.0
        %4273 = vmatprep.subr.mxu0 0.0
        %4274 = vmatpush2.msra.mxu0 0.0
        %4275 = vmatprep.subr.mxu0 0.0
        %4276 = vmatpush2.msra.mxu0 0.0
        %4277 = vmatprep.subr.mxu0 0.0
        %4278 = vmatpush2.msra.mxu0 0.0
        %4279 = vmatprep.subr.mxu0 0.0
        %4280 = vmatpush2.msra.mxu0 0.0
        %4281 = vmatprep.subr.mxu0 0.0
        %4282 = vmatpush2.msra.mxu0 0.0
        %4283 = vmatprep.subr.mxu0 0.0
        %4284 = vmatpush2.msra.mxu0 0.0
        %4285 = vmatprep.subr.mxu0 0.0
        %4286 = vmatpush2.msra.mxu0 0.0
        %4287 = vmatprep.subr.mxu0 0.0
        %4288 = vmatpush2.msra.mxu0 0.0
        %4289 = vmatprep.mubr.f32.mxu0 0.0
        %4290 = vmatmul.mubr.f32.gmra.mxu0 %v4223
        %v4291 = vpop.f32.mrf.mxu0
        %v4292 = vadd.f32 %v4219, %v4291
        %v4293 = vpop.f32.mrf.mxu0
        %4294 = vdwg.mxu0
        %v4295 = vmul.f32 %v4292, 0.5
        %v4296 = vtanh.pop %v4295
        %v4297 = vmul.f32 %v1320, %v3682
        %v4298 = vmul.f32 %v1322, %v3990
        %4300 = vrot.lane.b32.xlu0 %v4298, 32
        %v4301 = vpop.permute.xlu0 %4300
        %v4303 = vadd.f32 %v4297, %v4301
        %v4304 = vmul.f32 %v1325, %v4296
        %4306 = vrot.lane.b32.xlu0 %v4304, 32
        %v4307 = vpop.permute.xlu0 %4306
        %v4309 = vadd.f32 %v4303, %v4307
        %4311 = vrot.lane.b32.xlu0 %v4309, 96
        %v4312 = vpop.permute.xlu0 %4311
        %v4313 = vsel %vm1334, %v4312, 0
        %4315 = vmatprep.subr.mxu0 0.0
        %4316 = vmatpush1.msra.mxu0 0.0
        %4317 = vmatprep.subr.mxu0 0.0
        %4318 = vmatpush1.msra.mxu0 0.0
        %4319 = vmatprep.subr.mxu0 0.0
        %4320 = vmatpush1.msra.mxu0 0.0
        %4321 = vmatprep.subr.mxu0 0.0
        %4322 = vmatpush1.msra.mxu0 0.0
        %4323 = vmatprep.subr.mxu0 0.0
        %4324 = vmatpush1.msra.mxu0 0.0
        %4325 = vmatprep.subr.mxu0 0.0
        %4326 = vmatpush1.msra.mxu0 0.0
        %4327 = vmatprep.subr.mxu0 0.0
        %4328 = vmatpush1.msra.mxu0 0.0
        %4329 = vmatprep.subr.mxu0 0.0
        %4330 = vmatpush1.msra.mxu0 0.0
        %4331 = vmatprep.subr.mxu0 0.0
        %4332 = vmatpush1.msra.mxu0 0.0
        %4333 = vmatprep.subr.mxu0 0.0
        %4334 = vmatpush1.msra.mxu0 0.0
        %4335 = vmatprep.subr.mxu0 0.0
        %4336 = vmatpush1.msra.mxu0 0.0
        %4337 = vmatprep.subr.mxu0 0.0
        %4338 = vmatpush1.msra.mxu0 0.0
        %4339 = vmatprep.subr.mxu0 0.0
        %4340 = vmatpush1.msra.mxu0 %v686
        %4341 = vmatprep.subr.mxu0 0.0
        %4342 = vmatpush1.msra.mxu0 %v685
        %4343 = vmatprep.subr.mxu0 0.0
        %4344 = vmatpush1.msra.mxu0 %v684
        %4345 = vmatprep.subr.mxu0 0.0
        %4346 = vmatpush1.msra.mxu0 %v683
        %4347 = vmatprep.subr.mxu0 0.0
        %4348 = vmatpush2.msra.mxu0 0.0
        %4349 = vmatprep.subr.mxu0 0.0
        %4350 = vmatpush2.msra.mxu0 0.0
        %4351 = vmatprep.subr.mxu0 0.0
        %4352 = vmatpush2.msra.mxu0 0.0
        %4353 = vmatprep.subr.mxu0 0.0
        %4354 = vmatpush2.msra.mxu0 0.0
        %4355 = vmatprep.subr.mxu0 0.0
        %4356 = vmatpush2.msra.mxu0 0.0
        %4357 = vmatprep.subr.mxu0 0.0
        %4358 = vmatpush2.msra.mxu0 0.0
        %4359 = vmatprep.subr.mxu0 0.0
        %4360 = vmatpush2.msra.mxu0 0.0
        %4361 = vmatprep.subr.mxu0 0.0
        %4362 = vmatpush2.msra.mxu0 0.0
        %4363 = vmatprep.subr.mxu0 0.0
        %4364 = vmatpush2.msra.mxu0 0.0
        %4365 = vmatprep.subr.mxu0 0.0
        %4366 = vmatpush2.msra.mxu0 0.0
        %4367 = vmatprep.subr.mxu0 0.0
        %4368 = vmatpush2.msra.mxu0 0.0
        %4369 = vmatprep.subr.mxu0 0.0
        %4370 = vmatpush2.msra.mxu0 0.0
        %4371 = vmatprep.subr.mxu0 0.0
        %4372 = vmatpush2.msra.mxu0 0.0
        %4373 = vmatprep.subr.mxu0 0.0
        %4374 = vmatpush2.msra.mxu0 0.0
        %4375 = vmatprep.subr.mxu0 0.0
        %4376 = vmatpush2.msra.mxu0 0.0
        %4377 = vmatprep.subr.mxu0 0.0
        %4378 = vmatpush2.msra.mxu0 0.0
        %4379 = vmatprep.mubr.f32.mxu0 0.0
        %4380 = vmatmul.mubr.f32.gmra.mxu0 %v4313
        %v4381 = vpop.f32.mrf.mxu0
        %v4382 = vadd.f32 %v1332, %v4381
        %v4383 = vpop.f32.mrf.mxu0
        %4384 = vdwg.mxu0
        %v4385 = vadd.f32 %v775, %v4382
        %v4386 = vxor.u32 %v4385, 2147483648
        %v4387 = vmul.f32 %v4386, 1.442695
        %v4388 = vpow.pop %v4387
        %v4389 = vadd.f32 %v4388, 1.0
        %v4390 = vrcp.pop %v4389
        %v4391 = vmul.f32 1.0, %v4390
        %4393 = vrot.lane.b32.xlu0 %v4382, 64
        %v4394 = vpop.permute.xlu0 %4393
        %v4396 = vmul.f32 %v4391, %v4394
        %4398 = vrot.lane.b32.xlu0 %v4396, 64
        %v4399 = vpop.permute.xlu0 %4398
        %v4401 = vadd.f32 %v775, %v4399
        %v4402 = vtanh.pop %v4401
        %v4403 = vsub.f32 1.0, %v4391
        %4405 = vrot.lane.b32.xlu0 %v4402, 96
        %v4406 = vpop.permute.xlu0 %4405
        %v4408 = vmul.f32 %v4403, %v4406
        %v4409 = vmul.f32 %v4391, %v4309
        %v4410 = vadd.f32 %v4408, %v4409
        %4412 = vrot.lane.b32.xlu0 %v4410, 96
        %v4413 = vpop.permute.xlu0 %4412
        %4415 = vmatprep.subr.mxu0 0.0
        %4416 = vmatpush1.msra.mxu0 0.0
        %4417 = vmatprep.subr.mxu0 0.0
        %4418 = vmatpush1.msra.mxu0 0.0
        %4419 = vmatprep.subr.mxu0 0.0
        %4420 = vmatpush1.msra.mxu0 0.0
        %4421 = vmatprep.subr.mxu0 0.0
        %4422 = vmatpush1.msra.mxu0 0.0
        %4423 = vmatprep.subr.mxu0 0.0
        %4424 = vmatpush1.msra.mxu0 0.0
        %4425 = vmatprep.subr.mxu0 0.0
        %4426 = vmatpush1.msra.mxu0 0.0
        %4427 = vmatprep.subr.mxu0 0.0
        %4428 = vmatpush1.msra.mxu0 0.0
        %4429 = vmatprep.subr.mxu0 0.0
        %4430 = vmatpush1.msra.mxu0 0.0
        %4431 = vmatprep.subr.mxu0 0.0
        %4432 = vmatpush1.msra.mxu0 0.0
        %4433 = vmatprep.subr.mxu0 0.0
        %4434 = vmatpush1.msra.mxu0 0.0
        %4435 = vmatprep.subr.mxu0 0.0
        %4436 = vmatpush1.msra.mxu0 0.0
        %4437 = vmatprep.subr.mxu0 0.0
        %4438 = vmatpush1.msra.mxu0 0.0
        %4439 = vmatprep.subr.mxu0 0.0
        %4440 = vmatpush1.msra.mxu0 0.0
        %4441 = vmatprep.subr.mxu0 0.0
        %4442 = vmatpush1.msra.mxu0 0.0
        %4443 = vmatprep.subr.mxu0 0.0
        %4444 = vmatpush1.msra.mxu0 0.0
        %4445 = vmatprep.subr.mxu0 0.0
        %4446 = vmatpush1.msra.mxu0 %v4413
        %4447 = vmatprep.subr.mxu0 0.0
        %4448 = vmatpush2.msra.mxu0 0.0
        %4449 = vmatprep.subr.mxu0 0.0
        %4450 = vmatpush2.msra.mxu0 0.0
        %4451 = vmatprep.subr.mxu0 0.0
        %4452 = vmatpush2.msra.mxu0 0.0
        %4453 = vmatprep.subr.mxu0 0.0
        %4454 = vmatpush2.msra.mxu0 0.0
        %4455 = vmatprep.subr.mxu0 0.0
        %4456 = vmatpush2.msra.mxu0 0.0
        %4457 = vmatprep.subr.mxu0 0.0
        %4458 = vmatpush2.msra.mxu0 0.0
        %4459 = vmatprep.subr.mxu0 0.0
        %4460 = vmatpush2.msra.mxu0 0.0
        %4461 = vmatprep.subr.mxu0 0.0
        %4462 = vmatpush2.msra.mxu0 0.0
        %4463 = vmatprep.subr.mxu0 0.0
        %4464 = vmatpush2.msra.mxu0 0.0
        %4465 = vmatprep.subr.mxu0 0.0
        %4466 = vmatpush2.msra.mxu0 0.0
        %4467 = vmatprep.subr.mxu0 0.0
        %4468 = vmatpush2.msra.mxu0 0.0
        %4469 = vmatprep.subr.mxu0 0.0
        %4470 = vmatpush2.msra.mxu0 0.0
        %4471 = vmatprep.subr.mxu0 0.0
        %4472 = vmatpush2.msra.mxu0 0.0
        %4473 = vmatprep.subr.mxu0 0.0
        %4474 = vmatpush2.msra.mxu0 0.0
        %4475 = vmatprep.subr.mxu0 0.0
        %4476 = vmatpush2.msra.mxu0 0.0
        %4477 = vmatprep.subr.mxu0 0.0
        %4478 = vmatpush2.msra.mxu0 0.0
        %4479 = vmatprep.mubr.f32.mxu0 0.0
        %4480 = vmatmul.mubr.f32.gmra.mxu0 %v1439
        %v4481 = vpop.f32.mrf.mxu0
        %v4482 = vadd.f32 0.0, %v4481
        %v4483 = vpop.f32.mrf.mxu0
        %4484 = vmatprep.mubr.f32.mxu0 0.0
        %4485 = vmatmul.mubr.f32.gmra.mxu0 %v1442
        %v4486 = vpop.f32.mrf.mxu0
        %v4487 = vadd.f32 0.0, %v4486
        %v4488 = vpop.f32.mrf.mxu0
        %4489 = vmatprep.mubr.f32.mxu0 0.0
        %4490 = vmatmul.mubr.f32.gmra.mxu0 %v1445
        %v4491 = vpop.f32.mrf.mxu0
        %v4492 = vadd.f32 0.0, %v4491
        %v4493 = vpop.f32.mrf.mxu0
        %4494 = vdwg.mxu0
        %v4496 = vsel %vm1334, %v4482, 0
        %4498 = vmatprep.subr.mxu0 0.0
        %4499 = vmatpush1.msra.mxu0 0.0
        %4500 = vmatprep.subr.mxu0 0.0
        %4501 = vmatpush1.msra.mxu0 0.0
        %4502 = vmatprep.subr.mxu0 0.0
        %4503 = vmatpush1.msra.mxu0 0.0
        %4504 = vmatprep.subr.mxu0 0.0
        %4505 = vmatpush1.msra.mxu0 0.0
        %4506 = vmatprep.subr.mxu0 0.0
        %4507 = vmatpush1.msra.mxu0 0.0
        %4508 = vmatprep.subr.mxu0 0.0
        %4509 = vmatpush1.msra.mxu0 0.0
        %4510 = vmatprep.subr.mxu0 0.0
        %4511 = vmatpush1.msra.mxu0 0.0
        %4512 = vmatprep.subr.mxu0 0.0
        %4513 = vmatpush1.msra.mxu0 0.0
        %4514 = vmatprep.subr.mxu0 0.0
        %4515 = vmatpush1.msra.mxu0 0.0
        %4516 = vmatprep.subr.mxu0 0.0
        %4517 = vmatpush1.msra.mxu0 0.0
        %4518 = vmatprep.subr.mxu0 0.0
        %4519 = vmatpush1.msra.mxu0 0.0
        %4520 = vmatprep.subr.mxu0 0.0
        %4521 = vmatpush1.msra.mxu0 0.0
        %4522 = vmatprep.subr.mxu0 0.0
        %4523 = vmatpush1.msra.mxu0 %v1530
        %4524 = vmatprep.subr.mxu0 0.0
        %4525 = vmatpush1.msra.mxu0 %v1529
        %4526 = vmatprep.subr.mxu0 0.0
        %4527 = vmatpush1.msra.mxu0 %v1528
        %4528 = vmatprep.subr.mxu0 0.0
        %4529 = vmatpush1.msra.mxu0 %v1527
        %4530 = vmatprep.subr.mxu0 0.0
        %4531 = vmatpush2.msra.mxu0 0.0
        %4532 = vmatprep.subr.mxu0 0.0
        %4533 = vmatpush2.msra.mxu0 0.0
        %4534 = vmatprep.subr.mxu0 0.0
        %4535 = vmatpush2.msra.mxu0 0.0
        %4536 = vmatprep.subr.mxu0 0.0
        %4537 = vmatpush2.msra.mxu0 0.0
        %4538 = vmatprep.subr.mxu0 0.0
        %4539 = vmatpush2.msra.mxu0 0.0
        %4540 = vmatprep.subr.mxu0 0.0
        %4541 = vmatpush2.msra.mxu0 0.0
        %4542 = vmatprep.subr.mxu0 0.0
        %4543 = vmatpush2.msra.mxu0 0.0
        %4544 = vmatprep.subr.mxu0 0.0
        %4545 = vmatpush2.msra.mxu0 0.0
        %4546 = vmatprep.subr.mxu0 0.0
        %4547 = vmatpush2.msra.mxu0 0.0
        %4548 = vmatprep.subr.mxu0 0.0
        %4549 = vmatpush2.msra.mxu0 0.0
        %4550 = vmatprep.subr.mxu0 0.0
        %4551 = vmatpush2.msra.mxu0 0.0
        %4552 = vmatprep.subr.mxu0 0.0
        %4553 = vmatpush2.msra.mxu0 0.0
        %4554 = vmatprep.subr.mxu0 0.0
        %4555 = vmatpush2.msra.mxu0 0.0
        %4556 = vmatprep.subr.mxu0 0.0
        %4557 = vmatpush2.msra.mxu0 0.0
        %4558 = vmatprep.subr.mxu0 0.0
        %4559 = vmatpush2.msra.mxu0 0.0
        %4560 = vmatprep.subr.mxu0 0.0
        %4561 = vmatpush2.msra.mxu0 0.0
        %4562 = vmatprep.mubr.f32.mxu0 0.0
        %4563 = vmatmul.mubr.f32.gmra.mxu0 %v4496
        %v4564 = vpop.f32.mrf.mxu0
        %v4565 = vadd.f32 0.0, %v4564
        %v4566 = vpop.f32.mrf.mxu0
        %4567 = vdwg.mxu0
        %v4568 = vadd.f32 %v1316, %v4565
        %v4570 = vsel %vm1334, %v4487, 0
        %4572 = vmatprep.subr.mxu0 0.0
        %4573 = vmatpush1.msra.mxu0 0.0
        %4574 = vmatprep.subr.mxu0 0.0
        %4575 = vmatpush1.msra.mxu0 0.0
        %4576 = vmatprep.subr.mxu0 0.0
        %4577 = vmatpush1.msra.mxu0 0.0
        %4578 = vmatprep.subr.mxu0 0.0
        %4579 = vmatpush1.msra.mxu0 0.0
        %4580 = vmatprep.subr.mxu0 0.0
        %4581 = vmatpush1.msra.mxu0 0.0
        %4582 = vmatprep.subr.mxu0 0.0
        %4583 = vmatpush1.msra.mxu0 0.0
        %4584 = vmatprep.subr.mxu0 0.0
        %4585 = vmatpush1.msra.mxu0 0.0
        %4586 = vmatprep.subr.mxu0 0.0
        %4587 = vmatpush1.msra.mxu0 0.0
        %4588 = vmatprep.subr.mxu0 0.0
        %4589 = vmatpush1.msra.mxu0 0.0
        %4590 = vmatprep.subr.mxu0 0.0
        %4591 = vmatpush1.msra.mxu0 0.0
        %4592 = vmatprep.subr.mxu0 0.0
        %4593 = vmatpush1.msra.mxu0 0.0
        %4594 = vmatprep.subr.mxu0 0.0
        %4595 = vmatpush1.msra.mxu0 0.0
        %4596 = vmatprep.subr.mxu0 0.0
        %4597 = vmatpush1.msra.mxu0 %v1609
        %4598 = vmatprep.subr.mxu0 0.0
        %4599 = vmatpush1.msra.mxu0 %v1608
        %4600 = vmatprep.subr.mxu0 0.0
        %4601 = vmatpush1.msra.mxu0 %v1607
        %4602 = vmatprep.subr.mxu0 0.0
        %4603 = vmatpush1.msra.mxu0 %v1606
        %4604 = vmatprep.subr.mxu0 0.0
        %4605 = vmatpush2.msra.mxu0 0.0
        %4606 = vmatprep.subr.mxu0 0.0
        %4607 = vmatpush2.msra.mxu0 0.0
        %4608 = vmatprep.subr.mxu0 0.0
        %4609 = vmatpush2.msra.mxu0 0.0
        %4610 = vmatprep.subr.mxu0 0.0
        %4611 = vmatpush2.msra.mxu0 0.0
        %4612 = vmatprep.subr.mxu0 0.0
        %4613 = vmatpush2.msra.mxu0 0.0
        %4614 = vmatprep.subr.mxu0 0.0
        %4615 = vmatpush2.msra.mxu0 0.0
        %4616 = vmatprep.subr.mxu0 0.0
        %4617 = vmatpush2.msra.mxu0 0.0
        %4618 = vmatprep.subr.mxu0 0.0
        %4619 = vmatpush2.msra.mxu0 0.0
        %4620 = vmatprep.subr.mxu0 0.0
        %4621 = vmatpush2.msra.mxu0 0.0
        %4622 = vmatprep.subr.mxu0 0.0
        %4623 = vmatpush2.msra.mxu0 0.0
        %4624 = vmatprep.subr.mxu0 0.0
        %4625 = vmatpush2.msra.mxu0 0.0
        %4626 = vmatprep.subr.mxu0 0.0
        %4627 = vmatpush2.msra.mxu0 0.0
        %4628 = vmatprep.subr.mxu0 0.0
        %4629 = vmatpush2.msra.mxu0 0.0
        %4630 = vmatprep.subr.mxu0 0.0
        %4631 = vmatpush2.msra.mxu0 0.0
        %4632 = vmatprep.subr.mxu0 0.0
        %4633 = vmatpush2.msra.mxu0 0.0
        %4634 = vmatprep.subr.mxu0 0.0
        %4635 = vmatpush2.msra.mxu0 0.0
        %4636 = vmatprep.mubr.f32.mxu0 0.0
        %4637 = vmatmul.mubr.f32.gmra.mxu0 %v4570
        %v4638 = vpop.f32.mrf.mxu0
        %v4639 = vadd.f32 0.0, %v4638
        %v4640 = vpop.f32.mrf.mxu0
        %4641 = vdwg.mxu0
        %v4642 = vadd.f32 %v4568, %v4639
        %v4644 = vsel %vm1334, %v4492, 0
        %4646 = vmatprep.subr.mxu0 0.0
        %4647 = vmatpush1.msra.mxu0 0.0
        %4648 = vmatprep.subr.mxu0 0.0
        %4649 = vmatpush1.msra.mxu0 0.0
        %4650 = vmatprep.subr.mxu0 0.0
        %4651 = vmatpush1.msra.mxu0 0.0
        %4652 = vmatprep.subr.mxu0 0.0
        %4653 = vmatpush1.msra.mxu0 0.0
        %4654 = vmatprep.subr.mxu0 0.0
        %4655 = vmatpush1.msra.mxu0 0.0
        %4656 = vmatprep.subr.mxu0 0.0
        %4657 = vmatpush1.msra.mxu0 0.0
        %4658 = vmatprep.subr.mxu0 0.0
        %4659 = vmatpush1.msra.mxu0 0.0
        %4660 = vmatprep.subr.mxu0 0.0
        %4661 = vmatpush1.msra.mxu0 0.0
        %4662 = vmatprep.subr.mxu0 0.0
        %4663 = vmatpush1.msra.mxu0 0.0
        %4664 = vmatprep.subr.mxu0 0.0
        %4665 = vmatpush1.msra.mxu0 0.0
        %4666 = vmatprep.subr.mxu0 0.0
        %4667 = vmatpush1.msra.mxu0 0.0
        %4668 = vmatprep.subr.mxu0 0.0
        %4669 = vmatpush1.msra.mxu0 0.0
        %4670 = vmatprep.subr.mxu0 0.0
        %4671 = vmatpush1.msra.mxu0 %v1688
        %4672 = vmatprep.subr.mxu0 0.0
        %4673 = vmatpush1.msra.mxu0 %v1687
        %4674 = vmatprep.subr.mxu0 0.0
        %4675 = vmatpush1.msra.mxu0 %v1686
        %4676 = vmatprep.subr.mxu0 0.0
        %4677 = vmatpush1.msra.mxu0 %v1685
        %4678 = vmatprep.subr.mxu0 0.0
        %4679 = vmatpush2.msra.mxu0 0.0
        %4680 = vmatprep.subr.mxu0 0.0
        %4681 = vmatpush2.msra.mxu0 0.0
        %4682 = vmatprep.subr.mxu0 0.0
        %4683 = vmatpush2.msra.mxu0 0.0
        %4684 = vmatprep.subr.mxu0 0.0
        %4685 = vmatpush2.msra.mxu0 0.0
        %4686 = vmatprep.subr.mxu0 0.0
        %4687 = vmatpush2.msra.mxu0 0.0
        %4688 = vmatprep.subr.mxu0 0.0
        %4689 = vmatpush2.msra.mxu0 0.0
        %4690 = vmatprep.subr.mxu0 0.0
        %4691 = vmatpush2.msra.mxu0 0.0
        %4692 = vmatprep.subr.mxu0 0.0
        %4693 = vmatpush2.msra.mxu0 0.0
        %4694 = vmatprep.subr.mxu0 0.0
        %4695 = vmatpush2.msra.mxu0 0.0
        %4696 = vmatprep.subr.mxu0 0.0
        %4697 = vmatpush2.msra.mxu0 0.0
        %4698 = vmatprep.subr.mxu0 0.0
        %4699 = vmatpush2.msra.mxu0 0.0
        %4700 = vmatprep.subr.mxu0 0.0
        %4701 = vmatpush2.msra.mxu0 0.0
        %4702 = vmatprep.subr.mxu0 0.0
        %4703 = vmatpush2.msra.mxu0 0.0
        %4704 = vmatprep.subr.mxu0 0.0
        %4705 = vmatpush2.msra.mxu0 0.0
        %4706 = vmatprep.subr.mxu0 0.0
        %4707 = vmatpush2.msra.mxu0 0.0
        %4708 = vmatprep.subr.mxu0 0.0
        %4709 = vmatpush2.msra.mxu0 0.0
        %4710 = vmatprep.mubr.f32.mxu0 0.0
        %4711 = vmatmul.mubr.f32.gmra.mxu0 %v4644
        %v4712 = vpop.f32.mrf.mxu0
        %v4713 = vadd.f32 0.0, %v4712
        %v4714 = vpop.f32.mrf.mxu0
        %4715 = vdwg.mxu0
        %v4716 = vadd.f32 %v4642, %v4713
        %v4717 = vadd.f32 %v4716, %v1767
        %v4718 = vtanh.pop %v4717
        %v4719 = vadd.f32 %v790, %v867
        %v4720 = vsel %vm1334, %v4413, 0
        %4722 = vmatprep.subr.mxu0 0.0
        %4723 = vmatpush1.msra.mxu0 0.0
        %4724 = vmatprep.subr.mxu0 0.0
        %4725 = vmatpush1.msra.mxu0 0.0
        %4726 = vmatprep.subr.mxu0 0.0
        %4727 = vmatpush1.msra.mxu0 0.0
        %4728 = vmatprep.subr.mxu0 0.0
        %4729 = vmatpush1.msra.mxu0 0.0
        %4730 = vmatprep.subr.mxu0 0.0
        %4731 = vmatpush1.msra.mxu0 0.0
        %4732 = vmatprep.subr.mxu0 0.0
        %4733 = vmatpush1.msra.mxu0 0.0
        %4734 = vmatprep.subr.mxu0 0.0
        %4735 = vmatpush1.msra.mxu0 0.0
        %4736 = vmatprep.subr.mxu0 0.0
        %4737 = vmatpush1.msra.mxu0 0.0
        %4738 = vmatprep.subr.mxu0 0.0
        %4739 = vmatpush1.msra.mxu0 0.0
        %4740 = vmatprep.subr.mxu0 0.0
        %4741 = vmatpush1.msra.mxu0 0.0
        %4742 = vmatprep.subr.mxu0 0.0
        %4743 = vmatpush1.msra.mxu0 0.0
        %4744 = vmatprep.subr.mxu0 0.0
        %4745 = vmatpush1.msra.mxu0 0.0
        %4746 = vmatprep.subr.mxu0 0.0
        %4747 = vmatpush1.msra.mxu0 %v691
        %4748 = vmatprep.subr.mxu0 0.0
        %4749 = vmatpush1.msra.mxu0 %v690
        %4750 = vmatprep.subr.mxu0 0.0
        %4751 = vmatpush1.msra.mxu0 %v689
        %4752 = vmatprep.subr.mxu0 0.0
        %4753 = vmatpush1.msra.mxu0 %v688
        %4754 = vmatprep.subr.mxu0 0.0
        %4755 = vmatpush2.msra.mxu0 0.0
        %4756 = vmatprep.subr.mxu0 0.0
        %4757 = vmatpush2.msra.mxu0 0.0
        %4758 = vmatprep.subr.mxu0 0.0
        %4759 = vmatpush2.msra.mxu0 0.0
        %4760 = vmatprep.subr.mxu0 0.0
        %4761 = vmatpush2.msra.mxu0 0.0
        %4762 = vmatprep.subr.mxu0 0.0
        %4763 = vmatpush2.msra.mxu0 0.0
        %4764 = vmatprep.subr.mxu0 0.0
        %4765 = vmatpush2.msra.mxu0 0.0
        %4766 = vmatprep.subr.mxu0 0.0
        %4767 = vmatpush2.msra.mxu0 0.0
        %4768 = vmatprep.subr.mxu0 0.0
        %4769 = vmatpush2.msra.mxu0 0.0
        %4770 = vmatprep.subr.mxu0 0.0
        %4771 = vmatpush2.msra.mxu0 0.0
        %4772 = vmatprep.subr.mxu0 0.0
        %4773 = vmatpush2.msra.mxu0 0.0
        %4774 = vmatprep.subr.mxu0 0.0
        %4775 = vmatpush2.msra.mxu0 0.0
        %4776 = vmatprep.subr.mxu0 0.0
        %4777 = vmatpush2.msra.mxu0 0.0
        %4778 = vmatprep.subr.mxu0 0.0
        %4779 = vmatpush2.msra.mxu0 0.0
        %4780 = vmatprep.subr.mxu0 0.0
        %4781 = vmatpush2.msra.mxu0 0.0
        %4782 = vmatprep.subr.mxu0 0.0
        %4783 = vmatpush2.msra.mxu0 0.0
        %4784 = vmatprep.subr.mxu0 0.0
        %4785 = vmatpush2.msra.mxu0 0.0
        %4786 = vmatprep.mubr.f32.mxu0 0.0
        %4787 = vmatmul.mubr.f32.gmra.mxu0 %v4720
        %v4788 = vpop.f32.mrf.mxu0
        %v4789 = vadd.f32 0.0, %v4788
        %v4790 = vpop.f32.mrf.mxu0
        %4791 = vdwg.mxu0
        %v4792 = vadd.f32 %v4719, %v4789
        %v4793 = vmul.f32 %v4792, %v1849
        %v4794 = vsel %vm1334, %v4793, 0.0
        %4795 = vadd.xlane.f32.xlu0 %v4794
        %v4796 = vpop.xlane.xlu0 %4795
        %v4797 = vmul.f32 %v4792, %v1858
        %v4798 = vsel %vm1334, %v4797, 0.0
        %4799 = vadd.xlane.f32.xlu0 %v4798
        %v4800 = vpop.xlane.xlu0 %4799
        %v4802 = vlaneseq
        %v4803 = vshrl.u32 %v4802, 7
        %v4804 = vsub.s32 %v1865, %v4803
        %v4805 = vrot.slane %v4800, %v4804
        %v4806 = vsel %vm1870, %v4805, %v4805
        %v4807 = vsel %vm1872, %v4805, %v4806
        %v4808 = vsel %vm1874, %v4805, %v4807
        %v4809 = vsel %vm1876, %v4805, %v4808
        %v4810 = vsel %vm1878, %v4805, %v4809
        %v4811 = vsel %vm1880, %v4805, %v4810
        %v4813 = vadd.f32 %v4796, %v4811
        %vm4814 = vcmp.gt.f32.partialorder %v4813, 0.0
        %v4815 = vmul.f32 %v4813, 0.2
        %v4816 = vsel %vm4814, %v4813, %v4815
        %v4817 = vadd.f32 %v4816, %v679
        %v4818 = vsel %vm871, %v4817, -inf
        %4819 = vmax.xlane.f32.xlu0 %v4818
        %v4820 = vpop.xlane.xlu0 %4819
        %v4821 = vsub.f32 %v4817, %v4820
        %v4822 = vmul.f32 %v4821, 1.442695
        %v4823 = vpow.pop %v4822
        %v4824 = vsel %vm871, %v4823, 0.0
        %4825 = vadd.xlane.f32.xlu0 %v4824
        %v4826 = vpop.xlane.xlu0 %4825
        %v4827 = vrcp.pop %v4826
        %v4828 = vmul.f32 %v4823, %v4827
        %v4829 = vmul.f32 %v4792, %v1906
        %4831 = vrot.lane.b32.xlu0 %v4829, 96
        %v4832 = vpop.permute.xlu0 %4831
        %v4834 = vsel %vm1334, %v4832, 0.0
        %4835 = vadd.xlane.f32.xlu0 %v4834
        %v4836 = vpop.xlane.xlu0 %4835
        %v4837 = vmul.f32 %v4792, %v1923
        %4839 = vrot.lane.b32.xlu0 %v4837, 96
        %v4840 = vpop.permute.xlu0 %4839
        %v4842 = vsel %vm1334, %v4840, 0.0
        %4843 = vadd.xlane.f32.xlu0 %v4842
        %v4844 = vpop.xlane.xlu0 %4843
        %v4846 = vlaneseq
        %v4847 = vshrl.u32 %v4846, 7
        %v4848 = vsub.s32 %v1865, %v4847
        %v4849 = vrot.slane %v4844, %v4848
        %v4850 = vsel %vm1870, %v4849, %v4849
        %v4851 = vsel %vm1872, %v4849, %v4850
        %v4852 = vsel %vm1874, %v4849, %v4851
        %v4853 = vsel %vm1876, %v4849, %v4852
        %v4854 = vsel %vm1878, %v4849, %v4853
        %v4855 = vsel %vm1880, %v4849, %v4854
        %v4857 = vadd.f32 %v4836, %v4855
        %vm4858 = vcmp.gt.f32.partialorder %v4857, 0.0
        %v4859 = vmul.f32 %v4857, 0.2
        %v4860 = vsel %vm4858, %v4857, %v4859
        %v4861 = vadd.f32 %v4860, %v679
        %v4862 = vsel %vm871, %v4861, -inf
        %4863 = vmax.xlane.f32.xlu0 %v4862
        %v4864 = vpop.xlane.xlu0 %4863
        %v4865 = vsub.f32 %v4861, %v4864
        %v4866 = vmul.f32 %v4865, 1.442695
        %v4867 = vpow.pop %v4866
        %v4868 = vsel %vm871, %v4867, 0.0
        %4869 = vadd.xlane.f32.xlu0 %v4868
        %v4870 = vpop.xlane.xlu0 %4869
        %v4871 = vrcp.pop %v4870
        %v4872 = vmul.f32 %v4867, %v4871
        %4874 = vrot.lane.b32.xlu0 %v4792, 96
        %v4875 = vpop.permute.xlu0 %4874
        %v4878 = vsel %vm871, %v4872, 0
        %4880 = vmatprep.subr.mxu0 0.0
        %4881 = vmatpush1.msra.mxu0 0.0
        %4882 = vmatprep.subr.mxu0 0.0
        %4883 = vmatpush1.msra.mxu0 0.0
        %4884 = vmatprep.subr.mxu0 0.0
        %4885 = vmatpush1.msra.mxu0 0.0
        %4886 = vmatprep.subr.mxu0 0.0
        %4887 = vmatpush1.msra.mxu0 0.0
        %4888 = vmatprep.subr.mxu0 0.0
        %4889 = vmatpush1.msra.mxu0 0.0
        %4890 = vmatprep.subr.mxu0 0.0
        %4891 = vmatpush1.msra.mxu0 0.0
        %4892 = vmatprep.subr.mxu0 0.0
        %4893 = vmatpush1.msra.mxu0 0.0
        %4894 = vmatprep.subr.mxu0 0.0
        %4895 = vmatpush1.msra.mxu0 0.0
        %4896 = vmatprep.subr.mxu0 0.0
        %4897 = vmatpush1.msra.mxu0 0.0
        %4898 = vmatprep.subr.mxu0 0.0
        %4899 = vmatpush1.msra.mxu0 0.0
        %4900 = vmatprep.subr.mxu0 0.0
        %4901 = vmatpush1.msra.mxu0 0.0
        %4902 = vmatprep.subr.mxu0 0.0
        %4903 = vmatpush1.msra.mxu0 0.0
        %4904 = vmatprep.subr.mxu0 0.0
        %4905 = vmatpush1.msra.mxu0 0.0
        %4906 = vmatprep.subr.mxu0 0.0
        %4907 = vmatpush1.msra.mxu0 0.0
        %4908 = vmatprep.subr.mxu0 0.0
        %4909 = vmatpush1.msra.mxu0 0.0
        %4910 = vmatprep.subr.mxu0 0.0
        %4911 = vmatpush1.msra.mxu0 %v4875
        %4912 = vmatprep.subr.mxu0 0.0
        %4913 = vmatpush2.msra.mxu0 0.0
        %4914 = vmatprep.subr.mxu0 0.0
        %4915 = vmatpush2.msra.mxu0 0.0
        %4916 = vmatprep.subr.mxu0 0.0
        %4917 = vmatpush2.msra.mxu0 0.0
        %4918 = vmatprep.subr.mxu0 0.0
        %4919 = vmatpush2.msra.mxu0 0.0
        %4920 = vmatprep.subr.mxu0 0.0
        %4921 = vmatpush2.msra.mxu0 0.0
        %4922 = vmatprep.subr.mxu0 0.0
        %4923 = vmatpush2.msra.mxu0 0.0
        %4924 = vmatprep.subr.mxu0 0.0
        %4925 = vmatpush2.msra.mxu0 0.0
        %4926 = vmatprep.subr.mxu0 0.0
        %4927 = vmatpush2.msra.mxu0 0.0
        %4928 = vmatprep.subr.mxu0 0.0
        %4929 = vmatpush2.msra.mxu0 0.0
        %4930 = vmatprep.subr.mxu0 0.0
        %4931 = vmatpush2.msra.mxu0 0.0
        %4932 = vmatprep.subr.mxu0 0.0
        %4933 = vmatpush2.msra.mxu0 0.0
        %4934 = vmatprep.subr.mxu0 0.0
        %4935 = vmatpush2.msra.mxu0 0.0
        %4936 = vmatprep.subr.mxu0 0.0
        %4937 = vmatpush2.msra.mxu0 0.0
        %4938 = vmatprep.subr.mxu0 0.0
        %4939 = vmatpush2.msra.mxu0 0.0
        %4940 = vmatprep.subr.mxu0 0.0
        %4941 = vmatpush2.msra.mxu0 0.0
        %4942 = vmatprep.subr.mxu0 0.0
        %4943 = vmatpush2.msra.mxu0 0.0
        %4944 = vmatprep.mubr.f32.mxu0 0.0
        %4945 = vmatmul.mubr.f32.gmra.mxu0 %v4878
        %v4946 = vpop.f32.mrf.mxu0
        %v4947 = vadd.f32 0.0, %v4946
        %v4948 = vpop.f32.mrf.mxu0
        %4949 = vdwg.mxu0
        %v4951 = vsel %vm871, %v4828, 0
        %4953 = vmatprep.subr.mxu0 0.0
        %4954 = vmatpush1.msra.mxu0 0.0
        %4955 = vmatprep.subr.mxu0 0.0
        %4956 = vmatpush1.msra.mxu0 0.0
        %4957 = vmatprep.subr.mxu0 0.0
        %4958 = vmatpush1.msra.mxu0 0.0
        %4959 = vmatprep.subr.mxu0 0.0
        %4960 = vmatpush1.msra.mxu0 0.0
        %4961 = vmatprep.subr.mxu0 0.0
        %4962 = vmatpush1.msra.mxu0 0.0
        %4963 = vmatprep.subr.mxu0 0.0
        %4964 = vmatpush1.msra.mxu0 0.0
        %4965 = vmatprep.subr.mxu0 0.0
        %4966 = vmatpush1.msra.mxu0 0.0
        %4967 = vmatprep.subr.mxu0 0.0
        %4968 = vmatpush1.msra.mxu0 0.0
        %4969 = vmatprep.subr.mxu0 0.0
        %4970 = vmatpush1.msra.mxu0 0.0
        %4971 = vmatprep.subr.mxu0 0.0
        %4972 = vmatpush1.msra.mxu0 0.0
        %4973 = vmatprep.subr.mxu0 0.0
        %4974 = vmatpush1.msra.mxu0 0.0
        %4975 = vmatprep.subr.mxu0 0.0
        %4976 = vmatpush1.msra.mxu0 0.0
        %4977 = vmatprep.subr.mxu0 0.0
        %4978 = vmatpush1.msra.mxu0 0.0
        %4979 = vmatprep.subr.mxu0 0.0
        %4980 = vmatpush1.msra.mxu0 0.0
        %4981 = vmatprep.subr.mxu0 0.0
        %4982 = vmatpush1.msra.mxu0 0.0
        %4983 = vmatprep.subr.mxu0 0.0
        %4984 = vmatpush1.msra.mxu0 %v4792
        %4985 = vmatprep.subr.mxu0 0.0
        %4986 = vmatpush2.msra.mxu0 0.0
        %4987 = vmatprep.subr.mxu0 0.0
        %4988 = vmatpush2.msra.mxu0 0.0
        %4989 = vmatprep.subr.mxu0 0.0
        %4990 = vmatpush2.msra.mxu0 0.0
        %4991 = vmatprep.subr.mxu0 0.0
        %4992 = vmatpush2.msra.mxu0 0.0
        %4993 = vmatprep.subr.mxu0 0.0
        %4994 = vmatpush2.msra.mxu0 0.0
        %4995 = vmatprep.subr.mxu0 0.0
        %4996 = vmatpush2.msra.mxu0 0.0
        %4997 = vmatprep.subr.mxu0 0.0
        %4998 = vmatpush2.msra.mxu0 0.0
        %4999 = vmatprep.subr.mxu0 0.0
        %5000 = vmatpush2.msra.mxu0 0.0
        %5001 = vmatprep.subr.mxu0 0.0
        %5002 = vmatpush2.msra.mxu0 0.0
        %5003 = vmatprep.subr.mxu0 0.0
        %5004 = vmatpush2.msra.mxu0 0.0
        %5005 = vmatprep.subr.mxu0 0.0
        %5006 = vmatpush2.msra.mxu0 0.0
        %5007 = vmatprep.subr.mxu0 0.0
        %5008 = vmatpush2.msra.mxu0 0.0
        %5009 = vmatprep.subr.mxu0 0.0
        %5010 = vmatpush2.msra.mxu0 0.0
        %5011 = vmatprep.subr.mxu0 0.0
        %5012 = vmatpush2.msra.mxu0 0.0
        %5013 = vmatprep.subr.mxu0 0.0
        %5014 = vmatpush2.msra.mxu0 0.0
        %5015 = vmatprep.subr.mxu0 0.0
        %5016 = vmatpush2.msra.mxu0 0.0
        %5017 = vmatprep.mubr.f32.mxu0 0.0
        %5018 = vmatmul.mubr.f32.gmra.mxu0 %v4951
        %v5019 = vpop.f32.mrf.mxu0
        %v5020 = vadd.f32 %v4947, %v5019
        %v5021 = vpop.f32.mrf.mxu0
        %5022 = vdwg.mxu0
        %v5023 = vmul.f32 %v5020, 0.5
        %v5024 = vtanh.pop %v5023
        %v5025 = vmul.f32 %v1320, %v4410
        %v5026 = vmul.f32 %v1322, %v4718
        %5028 = vrot.lane.b32.xlu0 %v5026, 32
        %v5029 = vpop.permute.xlu0 %5028
        %v5031 = vadd.f32 %v5025, %v5029
        %v5032 = vmul.f32 %v1325, %v5024
        %5034 = vrot.lane.b32.xlu0 %v5032, 32
        %v5035 = vpop.permute.xlu0 %5034
        %v5037 = vadd.f32 %v5031, %v5035
        %5039 = vrot.lane.b32.xlu0 %v5037, 96
        %v5040 = vpop.permute.xlu0 %5039
        %v5041 = vsel %vm1334, %v5040, 0
        %5043 = vmatprep.subr.mxu0 0.0
        %5044 = vmatpush1.msra.mxu0 0.0
        %5045 = vmatprep.subr.mxu0 0.0
        %5046 = vmatpush1.msra.mxu0 0.0
        %5047 = vmatprep.subr.mxu0 0.0
        %5048 = vmatpush1.msra.mxu0 0.0
        %5049 = vmatprep.subr.mxu0 0.0
        %5050 = vmatpush1.msra.mxu0 0.0
        %5051 = vmatprep.subr.mxu0 0.0
        %5052 = vmatpush1.msra.mxu0 0.0
        %5053 = vmatprep.subr.mxu0 0.0
        %5054 = vmatpush1.msra.mxu0 0.0
        %5055 = vmatprep.subr.mxu0 0.0
        %5056 = vmatpush1.msra.mxu0 0.0
        %5057 = vmatprep.subr.mxu0 0.0
        %5058 = vmatpush1.msra.mxu0 0.0
        %5059 = vmatprep.subr.mxu0 0.0
        %5060 = vmatpush1.msra.mxu0 0.0
        %5061 = vmatprep.subr.mxu0 0.0
        %5062 = vmatpush1.msra.mxu0 0.0
        %5063 = vmatprep.subr.mxu0 0.0
        %5064 = vmatpush1.msra.mxu0 0.0
        %5065 = vmatprep.subr.mxu0 0.0
        %5066 = vmatpush1.msra.mxu0 0.0
        %5067 = vmatprep.subr.mxu0 0.0
        %5068 = vmatpush1.msra.mxu0 %v686
        %5069 = vmatprep.subr.mxu0 0.0
        %5070 = vmatpush1.msra.mxu0 %v685
        %5071 = vmatprep.subr.mxu0 0.0
        %5072 = vmatpush1.msra.mxu0 %v684
        %5073 = vmatprep.subr.mxu0 0.0
        %5074 = vmatpush1.msra.mxu0 %v683
        %5075 = vmatprep.subr.mxu0 0.0
        %5076 = vmatpush2.msra.mxu0 0.0
        %5077 = vmatprep.subr.mxu0 0.0
        %5078 = vmatpush2.msra.mxu0 0.0
        %5079 = vmatprep.subr.mxu0 0.0
        %5080 = vmatpush2.msra.mxu0 0.0
        %5081 = vmatprep.subr.mxu0 0.0
        %5082 = vmatpush2.msra.mxu0 0.0
        %5083 = vmatprep.subr.mxu0 0.0
        %5084 = vmatpush2.msra.mxu0 0.0
        %5085 = vmatprep.subr.mxu0 0.0
        %5086 = vmatpush2.msra.mxu0 0.0
        %5087 = vmatprep.subr.mxu0 0.0
        %5088 = vmatpush2.msra.mxu0 0.0
        %5089 = vmatprep.subr.mxu0 0.0
        %5090 = vmatpush2.msra.mxu0 0.0
        %5091 = vmatprep.subr.mxu0 0.0
        %5092 = vmatpush2.msra.mxu0 0.0
        %5093 = vmatprep.subr.mxu0 0.0
        %5094 = vmatpush2.msra.mxu0 0.0
        %5095 = vmatprep.subr.mxu0 0.0
        %5096 = vmatpush2.msra.mxu0 0.0
        %5097 = vmatprep.subr.mxu0 0.0
        %5098 = vmatpush2.msra.mxu0 0.0
        %5099 = vmatprep.subr.mxu0 0.0
        %5100 = vmatpush2.msra.mxu0 0.0
        %5101 = vmatprep.subr.mxu0 0.0
        %5102 = vmatpush2.msra.mxu0 0.0
        %5103 = vmatprep.subr.mxu0 0.0
        %5104 = vmatpush2.msra.mxu0 0.0
        %5105 = vmatprep.subr.mxu0 0.0
        %5106 = vmatpush2.msra.mxu0 0.0
        %5107 = vmatprep.mubr.f32.mxu0 0.0
        %5108 = vmatmul.mubr.f32.gmra.mxu0 %v5041
        %v5109 = vpop.f32.mrf.mxu0
        %v5110 = vadd.f32 %v1332, %v5109
        %v5111 = vpop.f32.mrf.mxu0
        %5112 = vdwg.mxu0
        %v5113 = vadd.f32 %v776, %v5110
        %v5114 = vxor.u32 %v5113, 2147483648
        %v5115 = vmul.f32 %v5114, 1.442695
        %v5116 = vpow.pop %v5115
        %v5117 = vadd.f32 %v5116, 1.0
        %v5118 = vrcp.pop %v5117
        %v5119 = vmul.f32 1.0, %v5118
        %5121 = vrot.lane.b32.xlu0 %v5110, 64
        %v5122 = vpop.permute.xlu0 %5121
        %v5124 = vmul.f32 %v5119, %v5122
        %5126 = vrot.lane.b32.xlu0 %v5124, 64
        %v5127 = vpop.permute.xlu0 %5126
        %v5129 = vadd.f32 %v776, %v5127
        %v5130 = vtanh.pop %v5129
        %v5131 = vsub.f32 1.0, %v5119
        %5133 = vrot.lane.b32.xlu0 %v5130, 96
        %v5134 = vpop.permute.xlu0 %5133
        %v5136 = vmul.f32 %v5131, %v5134
        %v5137 = vmul.f32 %v5119, %v5037
        %v5138 = vadd.f32 %v5136, %v5137
        %5140 = vrot.lane.b32.xlu0 %v5138, 96
        %v5141 = vpop.permute.xlu0 %5140
        %5143 = vmatprep.subr.mxu0 0.0
        %5144 = vmatpush1.msra.mxu0 0.0
        %5145 = vmatprep.subr.mxu0 0.0
        %5146 = vmatpush1.msra.mxu0 0.0
        %5147 = vmatprep.subr.mxu0 0.0
        %5148 = vmatpush1.msra.mxu0 0.0
        %5149 = vmatprep.subr.mxu0 0.0
        %5150 = vmatpush1.msra.mxu0 0.0
        %5151 = vmatprep.subr.mxu0 0.0
        %5152 = vmatpush1.msra.mxu0 0.0
        %5153 = vmatprep.subr.mxu0 0.0
        %5154 = vmatpush1.msra.mxu0 0.0
        %5155 = vmatprep.subr.mxu0 0.0
        %5156 = vmatpush1.msra.mxu0 0.0
        %5157 = vmatprep.subr.mxu0 0.0
        %5158 = vmatpush1.msra.mxu0 0.0
        %5159 = vmatprep.subr.mxu0 0.0
        %5160 = vmatpush1.msra.mxu0 0.0
        %5161 = vmatprep.subr.mxu0 0.0
        %5162 = vmatpush1.msra.mxu0 0.0
        %5163 = vmatprep.subr.mxu0 0.0
        %5164 = vmatpush1.msra.mxu0 0.0
        %5165 = vmatprep.subr.mxu0 0.0
        %5166 = vmatpush1.msra.mxu0 0.0
        %5167 = vmatprep.subr.mxu0 0.0
        %5168 = vmatpush1.msra.mxu0 0.0
        %5169 = vmatprep.subr.mxu0 0.0
        %5170 = vmatpush1.msra.mxu0 0.0
        %5171 = vmatprep.subr.mxu0 0.0
        %5172 = vmatpush1.msra.mxu0 0.0
        %5173 = vmatprep.subr.mxu0 0.0
        %5174 = vmatpush1.msra.mxu0 %v5141
        %5175 = vmatprep.subr.mxu0 0.0
        %5176 = vmatpush2.msra.mxu0 0.0
        %5177 = vmatprep.subr.mxu0 0.0
        %5178 = vmatpush2.msra.mxu0 0.0
        %5179 = vmatprep.subr.mxu0 0.0
        %5180 = vmatpush2.msra.mxu0 0.0
        %5181 = vmatprep.subr.mxu0 0.0
        %5182 = vmatpush2.msra.mxu0 0.0
        %5183 = vmatprep.subr.mxu0 0.0
        %5184 = vmatpush2.msra.mxu0 0.0
        %5185 = vmatprep.subr.mxu0 0.0
        %5186 = vmatpush2.msra.mxu0 0.0
        %5187 = vmatprep.subr.mxu0 0.0
        %5188 = vmatpush2.msra.mxu0 0.0
        %5189 = vmatprep.subr.mxu0 0.0
        %5190 = vmatpush2.msra.mxu0 0.0
        %5191 = vmatprep.subr.mxu0 0.0
        %5192 = vmatpush2.msra.mxu0 0.0
        %5193 = vmatprep.subr.mxu0 0.0
        %5194 = vmatpush2.msra.mxu0 0.0
        %5195 = vmatprep.subr.mxu0 0.0
        %5196 = vmatpush2.msra.mxu0 0.0
        %5197 = vmatprep.subr.mxu0 0.0
        %5198 = vmatpush2.msra.mxu0 0.0
        %5199 = vmatprep.subr.mxu0 0.0
        %5200 = vmatpush2.msra.mxu0 0.0
        %5201 = vmatprep.subr.mxu0 0.0
        %5202 = vmatpush2.msra.mxu0 0.0
        %5203 = vmatprep.subr.mxu0 0.0
        %5204 = vmatpush2.msra.mxu0 0.0
        %5205 = vmatprep.subr.mxu0 0.0
        %5206 = vmatpush2.msra.mxu0 0.0
        %5207 = vmatprep.mubr.f32.mxu0 0.0
        %5208 = vmatmul.mubr.f32.gmra.mxu0 %v1439
        %v5209 = vpop.f32.mrf.mxu0
        %v5210 = vadd.f32 0.0, %v5209
        %v5211 = vpop.f32.mrf.mxu0
        %5212 = vmatprep.mubr.f32.mxu0 0.0
        %5213 = vmatmul.mubr.f32.gmra.mxu0 %v1442
        %v5214 = vpop.f32.mrf.mxu0
        %v5215 = vadd.f32 0.0, %v5214
        %v5216 = vpop.f32.mrf.mxu0
        %5217 = vmatprep.mubr.f32.mxu0 0.0
        %5218 = vmatmul.mubr.f32.gmra.mxu0 %v1445
        %v5219 = vpop.f32.mrf.mxu0
        %v5220 = vadd.f32 0.0, %v5219
        %v5221 = vpop.f32.mrf.mxu0
        %5222 = vdwg.mxu0
        %v5224 = vsel %vm1334, %v5210, 0
        %5226 = vmatprep.subr.mxu0 0.0
        %5227 = vmatpush1.msra.mxu0 0.0
        %5228 = vmatprep.subr.mxu0 0.0
        %5229 = vmatpush1.msra.mxu0 0.0
        %5230 = vmatprep.subr.mxu0 0.0
        %5231 = vmatpush1.msra.mxu0 0.0
        %5232 = vmatprep.subr.mxu0 0.0
        %5233 = vmatpush1.msra.mxu0 0.0
        %5234 = vmatprep.subr.mxu0 0.0
        %5235 = vmatpush1.msra.mxu0 0.0
        %5236 = vmatprep.subr.mxu0 0.0
        %5237 = vmatpush1.msra.mxu0 0.0
        %5238 = vmatprep.subr.mxu0 0.0
        %5239 = vmatpush1.msra.mxu0 0.0
        %5240 = vmatprep.subr.mxu0 0.0
        %5241 = vmatpush1.msra.mxu0 0.0
        %5242 = vmatprep.subr.mxu0 0.0
        %5243 = vmatpush1.msra.mxu0 0.0
        %5244 = vmatprep.subr.mxu0 0.0
        %5245 = vmatpush1.msra.mxu0 0.0
        %5246 = vmatprep.subr.mxu0 0.0
        %5247 = vmatpush1.msra.mxu0 0.0
        %5248 = vmatprep.subr.mxu0 0.0
        %5249 = vmatpush1.msra.mxu0 0.0
        %5250 = vmatprep.subr.mxu0 0.0
        %5251 = vmatpush1.msra.mxu0 %v1530
        %5252 = vmatprep.subr.mxu0 0.0
        %5253 = vmatpush1.msra.mxu0 %v1529
        %5254 = vmatprep.subr.mxu0 0.0
        %5255 = vmatpush1.msra.mxu0 %v1528
        %5256 = vmatprep.subr.mxu0 0.0
        %5257 = vmatpush1.msra.mxu0 %v1527
        %5258 = vmatprep.subr.mxu0 0.0
        %5259 = vmatpush2.msra.mxu0 0.0
        %5260 = vmatprep.subr.mxu0 0.0
        %5261 = vmatpush2.msra.mxu0 0.0
        %5262 = vmatprep.subr.mxu0 0.0
        %5263 = vmatpush2.msra.mxu0 0.0
        %5264 = vmatprep.subr.mxu0 0.0
        %5265 = vmatpush2.msra.mxu0 0.0
        %5266 = vmatprep.subr.mxu0 0.0
        %5267 = vmatpush2.msra.mxu0 0.0
        %5268 = vmatprep.subr.mxu0 0.0
        %5269 = vmatpush2.msra.mxu0 0.0
        %5270 = vmatprep.subr.mxu0 0.0
        %5271 = vmatpush2.msra.mxu0 0.0
        %5272 = vmatprep.subr.mxu0 0.0
        %5273 = vmatpush2.msra.mxu0 0.0
        %5274 = vmatprep.subr.mxu0 0.0
        %5275 = vmatpush2.msra.mxu0 0.0
        %5276 = vmatprep.subr.mxu0 0.0
        %5277 = vmatpush2.msra.mxu0 0.0
        %5278 = vmatprep.subr.mxu0 0.0
        %5279 = vmatpush2.msra.mxu0 0.0
        %5280 = vmatprep.subr.mxu0 0.0
        %5281 = vmatpush2.msra.mxu0 0.0
        %5282 = vmatprep.subr.mxu0 0.0
        %5283 = vmatpush2.msra.mxu0 0.0
        %5284 = vmatprep.subr.mxu0 0.0
        %5285 = vmatpush2.msra.mxu0 0.0
        %5286 = vmatprep.subr.mxu0 0.0
        %5287 = vmatpush2.msra.mxu0 0.0
        %5288 = vmatprep.subr.mxu0 0.0
        %5289 = vmatpush2.msra.mxu0 0.0
        %5290 = vmatprep.mubr.f32.mxu0 0.0
        %5291 = vmatmul.mubr.f32.gmra.mxu0 %v5224
        %v5292 = vpop.f32.mrf.mxu0
        %v5293 = vadd.f32 0.0, %v5292
        %v5294 = vpop.f32.mrf.mxu0
        %5295 = vdwg.mxu0
        %v5296 = vadd.f32 %v1317, %v5293
        %v5298 = vsel %vm1334, %v5215, 0
        %5300 = vmatprep.subr.mxu0 0.0
        %5301 = vmatpush1.msra.mxu0 0.0
        %5302 = vmatprep.subr.mxu0 0.0
        %5303 = vmatpush1.msra.mxu0 0.0
        %5304 = vmatprep.subr.mxu0 0.0
        %5305 = vmatpush1.msra.mxu0 0.0
        %5306 = vmatprep.subr.mxu0 0.0
        %5307 = vmatpush1.msra.mxu0 0.0
        %5308 = vmatprep.subr.mxu0 0.0
        %5309 = vmatpush1.msra.mxu0 0.0
        %5310 = vmatprep.subr.mxu0 0.0
        %5311 = vmatpush1.msra.mxu0 0.0
        %5312 = vmatprep.subr.mxu0 0.0
        %5313 = vmatpush1.msra.mxu0 0.0
        %5314 = vmatprep.subr.mxu0 0.0
        %5315 = vmatpush1.msra.mxu0 0.0
        %5316 = vmatprep.subr.mxu0 0.0
        %5317 = vmatpush1.msra.mxu0 0.0
        %5318 = vmatprep.subr.mxu0 0.0
        %5319 = vmatpush1.msra.mxu0 0.0
        %5320 = vmatprep.subr.mxu0 0.0
        %5321 = vmatpush1.msra.mxu0 0.0
        %5322 = vmatprep.subr.mxu0 0.0
        %5323 = vmatpush1.msra.mxu0 0.0
        %5324 = vmatprep.subr.mxu0 0.0
        %5325 = vmatpush1.msra.mxu0 %v1609
        %5326 = vmatprep.subr.mxu0 0.0
        %5327 = vmatpush1.msra.mxu0 %v1608
        %5328 = vmatprep.subr.mxu0 0.0
        %5329 = vmatpush1.msra.mxu0 %v1607
        %5330 = vmatprep.subr.mxu0 0.0
        %5331 = vmatpush1.msra.mxu0 %v1606
        %5332 = vmatprep.subr.mxu0 0.0
        %5333 = vmatpush2.msra.mxu0 0.0
        %5334 = vmatprep.subr.mxu0 0.0
        %5335 = vmatpush2.msra.mxu0 0.0
        %5336 = vmatprep.subr.mxu0 0.0
        %5337 = vmatpush2.msra.mxu0 0.0
        %5338 = vmatprep.subr.mxu0 0.0
        %5339 = vmatpush2.msra.mxu0 0.0
        %5340 = vmatprep.subr.mxu0 0.0
        %5341 = vmatpush2.msra.mxu0 0.0
        %5342 = vmatprep.subr.mxu0 0.0
        %5343 = vmatpush2.msra.mxu0 0.0
        %5344 = vmatprep.subr.mxu0 0.0
        %5345 = vmatpush2.msra.mxu0 0.0
        %5346 = vmatprep.subr.mxu0 0.0
        %5347 = vmatpush2.msra.mxu0 0.0
        %5348 = vmatprep.subr.mxu0 0.0
        %5349 = vmatpush2.msra.mxu0 0.0
        %5350 = vmatprep.subr.mxu0 0.0
        %5351 = vmatpush2.msra.mxu0 0.0
        %5352 = vmatprep.subr.mxu0 0.0
        %5353 = vmatpush2.msra.mxu0 0.0
        %5354 = vmatprep.subr.mxu0 0.0
        %5355 = vmatpush2.msra.mxu0 0.0
        %5356 = vmatprep.subr.mxu0 0.0
        %5357 = vmatpush2.msra.mxu0 0.0
        %5358 = vmatprep.subr.mxu0 0.0
        %5359 = vmatpush2.msra.mxu0 0.0
        %5360 = vmatprep.subr.mxu0 0.0
        %5361 = vmatpush2.msra.mxu0 0.0
        %5362 = vmatprep.subr.mxu0 0.0
        %5363 = vmatpush2.msra.mxu0 0.0
        %5364 = vmatprep.mubr.f32.mxu0 0.0
        %5365 = vmatmul.mubr.f32.gmra.mxu0 %v5298
        %v5366 = vpop.f32.mrf.mxu0
        %v5367 = vadd.f32 0.0, %v5366
        %v5368 = vpop.f32.mrf.mxu0
        %5369 = vdwg.mxu0
        %v5370 = vadd.f32 %v5296, %v5367
        %v5372 = vsel %vm1334, %v5220, 0
        %5374 = vmatprep.subr.mxu0 0.0
        %5375 = vmatpush1.msra.mxu0 0.0
        %5376 = vmatprep.subr.mxu0 0.0
        %5377 = vmatpush1.msra.mxu0 0.0
        %5378 = vmatprep.subr.mxu0 0.0
        %5379 = vmatpush1.msra.mxu0 0.0
        %5380 = vmatprep.subr.mxu0 0.0
        %5381 = vmatpush1.msra.mxu0 0.0
        %5382 = vmatprep.subr.mxu0 0.0
        %5383 = vmatpush1.msra.mxu0 0.0
        %5384 = vmatprep.subr.mxu0 0.0
        %5385 = vmatpush1.msra.mxu0 0.0
        %5386 = vmatprep.subr.mxu0 0.0
        %5387 = vmatpush1.msra.mxu0 0.0
        %5388 = vmatprep.subr.mxu0 0.0
        %5389 = vmatpush1.msra.mxu0 0.0
        %5390 = vmatprep.subr.mxu0 0.0
        %5391 = vmatpush1.msra.mxu0 0.0
        %5392 = vmatprep.subr.mxu0 0.0
        %5393 = vmatpush1.msra.mxu0 0.0
        %5394 = vmatprep.subr.mxu0 0.0
        %5395 = vmatpush1.msra.mxu0 0.0
        %5396 = vmatprep.subr.mxu0 0.0
        %5397 = vmatpush1.msra.mxu0 0.0
        %5398 = vmatprep.subr.mxu0 0.0
        %5399 = vmatpush1.msra.mxu0 %v1688
        %5400 = vmatprep.subr.mxu0 0.0
        %5401 = vmatpush1.msra.mxu0 %v1687
        %5402 = vmatprep.subr.mxu0 0.0
        %5403 = vmatpush1.msra.mxu0 %v1686
        %5404 = vmatprep.subr.mxu0 0.0
        %5405 = vmatpush1.msra.mxu0 %v1685
        %5406 = vmatprep.subr.mxu0 0.0
        %5407 = vmatpush2.msra.mxu0 0.0
        %5408 = vmatprep.subr.mxu0 0.0
        %5409 = vmatpush2.msra.mxu0 0.0
        %5410 = vmatprep.subr.mxu0 0.0
        %5411 = vmatpush2.msra.mxu0 0.0
        %5412 = vmatprep.subr.mxu0 0.0
        %5413 = vmatpush2.msra.mxu0 0.0
        %5414 = vmatprep.subr.mxu0 0.0
        %5415 = vmatpush2.msra.mxu0 0.0
        %5416 = vmatprep.subr.mxu0 0.0
        %5417 = vmatpush2.msra.mxu0 0.0
        %5418 = vmatprep.subr.mxu0 0.0
        %5419 = vmatpush2.msra.mxu0 0.0
        %5420 = vmatprep.subr.mxu0 0.0
        %5421 = vmatpush2.msra.mxu0 0.0
        %5422 = vmatprep.subr.mxu0 0.0
        %5423 = vmatpush2.msra.mxu0 0.0
        %5424 = vmatprep.subr.mxu0 0.0
        %5425 = vmatpush2.msra.mxu0 0.0
        %5426 = vmatprep.subr.mxu0 0.0
        %5427 = vmatpush2.msra.mxu0 0.0
        %5428 = vmatprep.subr.mxu0 0.0
        %5429 = vmatpush2.msra.mxu0 0.0
        %5430 = vmatprep.subr.mxu0 0.0
        %5431 = vmatpush2.msra.mxu0 0.0
        %5432 = vmatprep.subr.mxu0 0.0
        %5433 = vmatpush2.msra.mxu0 0.0
        %5434 = vmatprep.subr.mxu0 0.0
        %5435 = vmatpush2.msra.mxu0 0.0
        %5436 = vmatprep.subr.mxu0 0.0
        %5437 = vmatpush2.msra.mxu0 0.0
        %5438 = vmatprep.mubr.f32.mxu0 0.0
        %5439 = vmatmul.mubr.f32.gmra.mxu0 %v5372
        %v5440 = vpop.f32.mrf.mxu0
        %v5441 = vadd.f32 0.0, %v5440
        %v5442 = vpop.f32.mrf.mxu0
        %5443 = vdwg.mxu0
        %v5444 = vadd.f32 %v5370, %v5441
        %v5445 = vadd.f32 %v5444, %v1767
        %v5446 = vtanh.pop %v5445
        %v5447 = vadd.f32 %v791, %v867
        %v5448 = vsel %vm1334, %v5141, 0
        %5450 = vmatprep.subr.mxu0 0.0
        %5451 = vmatpush1.msra.mxu0 0.0
        %5452 = vmatprep.subr.mxu0 0.0
        %5453 = vmatpush1.msra.mxu0 0.0
        %5454 = vmatprep.subr.mxu0 0.0
        %5455 = vmatpush1.msra.mxu0 0.0
        %5456 = vmatprep.subr.mxu0 0.0
        %5457 = vmatpush1.msra.mxu0 0.0
        %5458 = vmatprep.subr.mxu0 0.0
        %5459 = vmatpush1.msra.mxu0 0.0
        %5460 = vmatprep.subr.mxu0 0.0
        %5461 = vmatpush1.msra.mxu0 0.0
        %5462 = vmatprep.subr.mxu0 0.0
        %5463 = vmatpush1.msra.mxu0 0.0
        %5464 = vmatprep.subr.mxu0 0.0
        %5465 = vmatpush1.msra.mxu0 0.0
        %5466 = vmatprep.subr.mxu0 0.0
        %5467 = vmatpush1.msra.mxu0 0.0
        %5468 = vmatprep.subr.mxu0 0.0
        %5469 = vmatpush1.msra.mxu0 0.0
        %5470 = vmatprep.subr.mxu0 0.0
        %5471 = vmatpush1.msra.mxu0 0.0
        %5472 = vmatprep.subr.mxu0 0.0
        %5473 = vmatpush1.msra.mxu0 0.0
        %5474 = vmatprep.subr.mxu0 0.0
        %5475 = vmatpush1.msra.mxu0 %v691
        %5476 = vmatprep.subr.mxu0 0.0
        %5477 = vmatpush1.msra.mxu0 %v690
        %5478 = vmatprep.subr.mxu0 0.0
        %5479 = vmatpush1.msra.mxu0 %v689
        %5480 = vmatprep.subr.mxu0 0.0
        %5481 = vmatpush1.msra.mxu0 %v688
        %5482 = vmatprep.subr.mxu0 0.0
        %5483 = vmatpush2.msra.mxu0 0.0
        %5484 = vmatprep.subr.mxu0 0.0
        %5485 = vmatpush2.msra.mxu0 0.0
        %5486 = vmatprep.subr.mxu0 0.0
        %5487 = vmatpush2.msra.mxu0 0.0
        %5488 = vmatprep.subr.mxu0 0.0
        %5489 = vmatpush2.msra.mxu0 0.0
        %5490 = vmatprep.subr.mxu0 0.0
        %5491 = vmatpush2.msra.mxu0 0.0
        %5492 = vmatprep.subr.mxu0 0.0
        %5493 = vmatpush2.msra.mxu0 0.0
        %5494 = vmatprep.subr.mxu0 0.0
        %5495 = vmatpush2.msra.mxu0 0.0
        %5496 = vmatprep.subr.mxu0 0.0
        %5497 = vmatpush2.msra.mxu0 0.0
        %5498 = vmatprep.subr.mxu0 0.0
        %5499 = vmatpush2.msra.mxu0 0.0
        %5500 = vmatprep.subr.mxu0 0.0
        %5501 = vmatpush2.msra.mxu0 0.0
        %5502 = vmatprep.subr.mxu0 0.0
        %5503 = vmatpush2.msra.mxu0 0.0
        %5504 = vmatprep.subr.mxu0 0.0
        %5505 = vmatpush2.msra.mxu0 0.0
        %5506 = vmatprep.subr.mxu0 0.0
        %5507 = vmatpush2.msra.mxu0 0.0
        %5508 = vmatprep.subr.mxu0 0.0
        %5509 = vmatpush2.msra.mxu0 0.0
        %5510 = vmatprep.subr.mxu0 0.0
        %5511 = vmatpush2.msra.mxu0 0.0
        %5512 = vmatprep.subr.mxu0 0.0
        %5513 = vmatpush2.msra.mxu0 0.0
        %5514 = vmatprep.mubr.f32.mxu0 0.0
        %5515 = vmatmul.mubr.f32.gmra.mxu0 %v5448
        %v5516 = vpop.f32.mrf.mxu0
        %v5517 = vadd.f32 0.0, %v5516
        %v5518 = vpop.f32.mrf.mxu0
        %5519 = vdwg.mxu0
        %v5520 = vadd.f32 %v5447, %v5517
        %v5521 = vmul.f32 %v5520, %v1849
        %v5522 = vsel %vm1334, %v5521, 0.0
        %5523 = vadd.xlane.f32.xlu0 %v5522
        %v5524 = vpop.xlane.xlu0 %5523
        %v5525 = vmul.f32 %v5520, %v1858
        %v5526 = vsel %vm1334, %v5525, 0.0
        %5527 = vadd.xlane.f32.xlu0 %v5526
        %v5528 = vpop.xlane.xlu0 %5527
        %v5530 = vlaneseq
        %v5531 = vshrl.u32 %v5530, 7
        %v5532 = vsub.s32 %v1865, %v5531
        %v5533 = vrot.slane %v5528, %v5532
        %v5534 = vsel %vm1870, %v5533, %v5533
        %v5535 = vsel %vm1872, %v5533, %v5534
        %v5536 = vsel %vm1874, %v5533, %v5535
        %v5537 = vsel %vm1876, %v5533, %v5536
        %v5538 = vsel %vm1878, %v5533, %v5537
        %v5539 = vsel %vm1880, %v5533, %v5538
        %v5541 = vadd.f32 %v5524, %v5539
        %vm5542 = vcmp.gt.f32.partialorder %v5541, 0.0
        %v5543 = vmul.f32 %v5541, 0.2
        %v5544 = vsel %vm5542, %v5541, %v5543
        %v5545 = vadd.f32 %v5544, %v679
        %v5546 = vsel %vm871, %v5545, -inf
        %5547 = vmax.xlane.f32.xlu0 %v5546
        %v5548 = vpop.xlane.xlu0 %5547
        %v5549 = vsub.f32 %v5545, %v5548
        %v5550 = vmul.f32 %v5549, 1.442695
        %v5551 = vpow.pop %v5550
        %v5552 = vsel %vm871, %v5551, 0.0
        %5553 = vadd.xlane.f32.xlu0 %v5552
        %v5554 = vpop.xlane.xlu0 %5553
        %v5555 = vrcp.pop %v5554
        %v5556 = vmul.f32 %v5551, %v5555
        %v5557 = vmul.f32 %v5520, %v1906
        %5559 = vrot.lane.b32.xlu0 %v5557, 96
        %v5560 = vpop.permute.xlu0 %5559
        %v5562 = vsel %vm1334, %v5560, 0.0
        %5563 = vadd.xlane.f32.xlu0 %v5562
        %v5564 = vpop.xlane.xlu0 %5563
        %v5565 = vmul.f32 %v5520, %v1923
        %5567 = vrot.lane.b32.xlu0 %v5565, 96
        %v5568 = vpop.permute.xlu0 %5567
        %v5570 = vsel %vm1334, %v5568, 0.0
        %5571 = vadd.xlane.f32.xlu0 %v5570
        %v5572 = vpop.xlane.xlu0 %5571
        %v5574 = vlaneseq
        %v5575 = vshrl.u32 %v5574, 7
        %v5576 = vsub.s32 %v1865, %v5575
        %v5577 = vrot.slane %v5572, %v5576
        %v5578 = vsel %vm1870, %v5577, %v5577
        %v5579 = vsel %vm1872, %v5577, %v5578
        %v5580 = vsel %vm1874, %v5577, %v5579
        %v5581 = vsel %vm1876, %v5577, %v5580
        %v5582 = vsel %vm1878, %v5577, %v5581
        %v5583 = vsel %vm1880, %v5577, %v5582
        %v5585 = vadd.f32 %v5564, %v5583
        %vm5586 = vcmp.gt.f32.partialorder %v5585, 0.0
        %v5587 = vmul.f32 %v5585, 0.2
        %v5588 = vsel %vm5586, %v5585, %v5587
        %v5589 = vadd.f32 %v5588, %v679
        %v5590 = vsel %vm871, %v5589, -inf
        %5591 = vmax.xlane.f32.xlu0 %v5590
        %v5592 = vpop.xlane.xlu0 %5591
        %v5593 = vsub.f32 %v5589, %v5592
        %v5594 = vmul.f32 %v5593, 1.442695
        %v5595 = vpow.pop %v5594
        %v5596 = vsel %vm871, %v5595, 0.0
        %5597 = vadd.xlane.f32.xlu0 %v5596
        %v5598 = vpop.xlane.xlu0 %5597
        %v5599 = vrcp.pop %v5598
        %v5600 = vmul.f32 %v5595, %v5599
        %5602 = vrot.lane.b32.xlu0 %v5520, 96
        %v5603 = vpop.permute.xlu0 %5602
        %v5606 = vsel %vm871, %v5600, 0
        %5608 = vmatprep.subr.mxu0 0.0
        %5609 = vmatpush1.msra.mxu0 0.0
        %5610 = vmatprep.subr.mxu0 0.0
        %5611 = vmatpush1.msra.mxu0 0.0
        %5612 = vmatprep.subr.mxu0 0.0
        %5613 = vmatpush1.msra.mxu0 0.0
        %5614 = vmatprep.subr.mxu0 0.0
        %5615 = vmatpush1.msra.mxu0 0.0
        %5616 = vmatprep.subr.mxu0 0.0
        %5617 = vmatpush1.msra.mxu0 0.0
        %5618 = vmatprep.subr.mxu0 0.0
        %5619 = vmatpush1.msra.mxu0 0.0
        %5620 = vmatprep.subr.mxu0 0.0
        %5621 = vmatpush1.msra.mxu0 0.0
        %5622 = vmatprep.subr.mxu0 0.0
        %5623 = vmatpush1.msra.mxu0 0.0
        %5624 = vmatprep.subr.mxu0 0.0
        %5625 = vmatpush1.msra.mxu0 0.0
        %5626 = vmatprep.subr.mxu0 0.0
        %5627 = vmatpush1.msra.mxu0 0.0
        %5628 = vmatprep.subr.mxu0 0.0
        %5629 = vmatpush1.msra.mxu0 0.0
        %5630 = vmatprep.subr.mxu0 0.0
        %5631 = vmatpush1.msra.mxu0 0.0
        %5632 = vmatprep.subr.mxu0 0.0
        %5633 = vmatpush1.msra.mxu0 0.0
        %5634 = vmatprep.subr.mxu0 0.0
        %5635 = vmatpush1.msra.mxu0 0.0
        %5636 = vmatprep.subr.mxu0 0.0
        %5637 = vmatpush1.msra.mxu0 0.0
        %5638 = vmatprep.subr.mxu0 0.0
        %5639 = vmatpush1.msra.mxu0 %v5603
        %5640 = vmatprep.subr.mxu0 0.0
        %5641 = vmatpush2.msra.mxu0 0.0
        %5642 = vmatprep.subr.mxu0 0.0
        %5643 = vmatpush2.msra.mxu0 0.0
        %5644 = vmatprep.subr.mxu0 0.0
        %5645 = vmatpush2.msra.mxu0 0.0
        %5646 = vmatprep.subr.mxu0 0.0
        %5647 = vmatpush2.msra.mxu0 0.0
        %5648 = vmatprep.subr.mxu0 0.0
        %5649 = vmatpush2.msra.mxu0 0.0
        %5650 = vmatprep.subr.mxu0 0.0
        %5651 = vmatpush2.msra.mxu0 0.0
        %5652 = vmatprep.subr.mxu0 0.0
        %5653 = vmatpush2.msra.mxu0 0.0
        %5654 = vmatprep.subr.mxu0 0.0
        %5655 = vmatpush2.msra.mxu0 0.0
        %5656 = vmatprep.subr.mxu0 0.0
        %5657 = vmatpush2.msra.mxu0 0.0
        %5658 = vmatprep.subr.mxu0 0.0
        %5659 = vmatpush2.msra.mxu0 0.0
        %5660 = vmatprep.subr.mxu0 0.0
        %5661 = vmatpush2.msra.mxu0 0.0
        %5662 = vmatprep.subr.mxu0 0.0
        %5663 = vmatpush2.msra.mxu0 0.0
        %5664 = vmatprep.subr.mxu0 0.0
        %5665 = vmatpush2.msra.mxu0 0.0
        %5666 = vmatprep.subr.mxu0 0.0
        %5667 = vmatpush2.msra.mxu0 0.0
        %5668 = vmatprep.subr.mxu0 0.0
        %5669 = vmatpush2.msra.mxu0 0.0
        %5670 = vmatprep.subr.mxu0 0.0
        %5671 = vmatpush2.msra.mxu0 0.0
        %5672 = vmatprep.mubr.f32.mxu0 0.0
        %5673 = vmatmul.mubr.f32.gmra.mxu0 %v5606
        %v5674 = vpop.f32.mrf.mxu0
        %v5675 = vadd.f32 0.0, %v5674
        %v5676 = vpop.f32.mrf.mxu0
        %5677 = vdwg.mxu0
        %v5679 = vsel %vm871, %v5556, 0
        %5681 = vmatprep.subr.mxu0 0.0
        %5682 = vmatpush1.msra.mxu0 0.0
        %5683 = vmatprep.subr.mxu0 0.0
        %5684 = vmatpush1.msra.mxu0 0.0
        %5685 = vmatprep.subr.mxu0 0.0
        %5686 = vmatpush1.msra.mxu0 0.0
        %5687 = vmatprep.subr.mxu0 0.0
        %5688 = vmatpush1.msra.mxu0 0.0
        %5689 = vmatprep.subr.mxu0 0.0
        %5690 = vmatpush1.msra.mxu0 0.0
        %5691 = vmatprep.subr.mxu0 0.0
        %5692 = vmatpush1.msra.mxu0 0.0
        %5693 = vmatprep.subr.mxu0 0.0
        %5694 = vmatpush1.msra.mxu0 0.0
        %5695 = vmatprep.subr.mxu0 0.0
        %5696 = vmatpush1.msra.mxu0 0.0
        %5697 = vmatprep.subr.mxu0 0.0
        %5698 = vmatpush1.msra.mxu0 0.0
        %5699 = vmatprep.subr.mxu0 0.0
        %5700 = vmatpush1.msra.mxu0 0.0
        %5701 = vmatprep.subr.mxu0 0.0
        %5702 = vmatpush1.msra.mxu0 0.0
        %5703 = vmatprep.subr.mxu0 0.0
        %5704 = vmatpush1.msra.mxu0 0.0
        %5705 = vmatprep.subr.mxu0 0.0
        %5706 = vmatpush1.msra.mxu0 0.0
        %5707 = vmatprep.subr.mxu0 0.0
        %5708 = vmatpush1.msra.mxu0 0.0
        %5709 = vmatprep.subr.mxu0 0.0
        %5710 = vmatpush1.msra.mxu0 0.0
        %5711 = vmatprep.subr.mxu0 0.0
        %5712 = vmatpush1.msra.mxu0 %v5520
        %5713 = vmatprep.subr.mxu0 0.0
        %5714 = vmatpush2.msra.mxu0 0.0
        %5715 = vmatprep.subr.mxu0 0.0
        %5716 = vmatpush2.msra.mxu0 0.0
        %5717 = vmatprep.subr.mxu0 0.0
        %5718 = vmatpush2.msra.mxu0 0.0
        %5719 = vmatprep.subr.mxu0 0.0
        %5720 = vmatpush2.msra.mxu0 0.0
        %5721 = vmatprep.subr.mxu0 0.0
        %5722 = vmatpush2.msra.mxu0 0.0
        %5723 = vmatprep.subr.mxu0 0.0
        %5724 = vmatpush2.msra.mxu0 0.0
        %5725 = vmatprep.subr.mxu0 0.0
        %5726 = vmatpush2.msra.mxu0 0.0
        %5727 = vmatprep.subr.mxu0 0.0
        %5728 = vmatpush2.msra.mxu0 0.0
        %5729 = vmatprep.subr.mxu0 0.0
        %5730 = vmatpush2.msra.mxu0 0.0
        %5731 = vmatprep.subr.mxu0 0.0
        %5732 = vmatpush2.msra.mxu0 0.0
        %5733 = vmatprep.subr.mxu0 0.0
        %5734 = vmatpush2.msra.mxu0 0.0
        %5735 = vmatprep.subr.mxu0 0.0
        %5736 = vmatpush2.msra.mxu0 0.0
        %5737 = vmatprep.subr.mxu0 0.0
        %5738 = vmatpush2.msra.mxu0 0.0
        %5739 = vmatprep.subr.mxu0 0.0
        %5740 = vmatpush2.msra.mxu0 0.0
        %5741 = vmatprep.subr.mxu0 0.0
        %5742 = vmatpush2.msra.mxu0 0.0
        %5743 = vmatprep.subr.mxu0 0.0
        %5744 = vmatpush2.msra.mxu0 0.0
        %5745 = vmatprep.mubr.f32.mxu0 0.0
        %5746 = vmatmul.mubr.f32.gmra.mxu0 %v5679
        %v5747 = vpop.f32.mrf.mxu0
        %v5748 = vadd.f32 %v5675, %v5747
        %v5749 = vpop.f32.mrf.mxu0
        %5750 = vdwg.mxu0
        %v5751 = vmul.f32 %v5748, 0.5
        %v5752 = vtanh.pop %v5751
        %v5753 = vmul.f32 %v1320, %v5138
        %v5754 = vmul.f32 %v1322, %v5446
        %5756 = vrot.lane.b32.xlu0 %v5754, 32
        %v5757 = vpop.permute.xlu0 %5756
        %v5759 = vadd.f32 %v5753, %v5757
        %v5760 = vmul.f32 %v1325, %v5752
        %5762 = vrot.lane.b32.xlu0 %v5760, 32
        %v5763 = vpop.permute.xlu0 %5762
        %v5765 = vadd.f32 %v5759, %v5763
        %5767 = vrot.lane.b32.xlu0 %v5765, 96
        %v5768 = vpop.permute.xlu0 %5767
        %v5769 = vsel %vm1334, %v5768, 0
        %5771 = vmatprep.subr.mxu0 0.0
        %5772 = vmatpush1.msra.mxu0 0.0
        %5773 = vmatprep.subr.mxu0 0.0
        %5774 = vmatpush1.msra.mxu0 0.0
        %5775 = vmatprep.subr.mxu0 0.0
        %5776 = vmatpush1.msra.mxu0 0.0
        %5777 = vmatprep.subr.mxu0 0.0
        %5778 = vmatpush1.msra.mxu0 0.0
        %5779 = vmatprep.subr.mxu0 0.0
        %5780 = vmatpush1.msra.mxu0 0.0
        %5781 = vmatprep.subr.mxu0 0.0
        %5782 = vmatpush1.msra.mxu0 0.0
        %5783 = vmatprep.subr.mxu0 0.0
        %5784 = vmatpush1.msra.mxu0 0.0
        %5785 = vmatprep.subr.mxu0 0.0
        %5786 = vmatpush1.msra.mxu0 0.0
        %5787 = vmatprep.subr.mxu0 0.0
        %5788 = vmatpush1.msra.mxu0 0.0
        %5789 = vmatprep.subr.mxu0 0.0
        %5790 = vmatpush1.msra.mxu0 0.0
        %5791 = vmatprep.subr.mxu0 0.0
        %5792 = vmatpush1.msra.mxu0 0.0
        %5793 = vmatprep.subr.mxu0 0.0
        %5794 = vmatpush1.msra.mxu0 0.0
        %5795 = vmatprep.subr.mxu0 0.0
        %5796 = vmatpush1.msra.mxu0 %v686
        %5797 = vmatprep.subr.mxu0 0.0
        %5798 = vmatpush1.msra.mxu0 %v685
        %5799 = vmatprep.subr.mxu0 0.0
        %5800 = vmatpush1.msra.mxu0 %v684
        %5801 = vmatprep.subr.mxu0 0.0
        %5802 = vmatpush1.msra.mxu0 %v683
        %5803 = vmatprep.subr.mxu0 0.0
        %5804 = vmatpush2.msra.mxu0 0.0
        %5805 = vmatprep.subr.mxu0 0.0
        %5806 = vmatpush2.msra.mxu0 0.0
        %5807 = vmatprep.subr.mxu0 0.0
        %5808 = vmatpush2.msra.mxu0 0.0
        %5809 = vmatprep.subr.mxu0 0.0
        %5810 = vmatpush2.msra.mxu0 0.0
        %5811 = vmatprep.subr.mxu0 0.0
        %5812 = vmatpush2.msra.mxu0 0.0
        %5813 = vmatprep.subr.mxu0 0.0
        %5814 = vmatpush2.msra.mxu0 0.0
        %5815 = vmatprep.subr.mxu0 0.0
        %5816 = vmatpush2.msra.mxu0 0.0
        %5817 = vmatprep.subr.mxu0 0.0
        %5818 = vmatpush2.msra.mxu0 0.0
        %5819 = vmatprep.subr.mxu0 0.0
        %5820 = vmatpush2.msra.mxu0 0.0
        %5821 = vmatprep.subr.mxu0 0.0
        %5822 = vmatpush2.msra.mxu0 0.0
        %5823 = vmatprep.subr.mxu0 0.0
        %5824 = vmatpush2.msra.mxu0 0.0
        %5825 = vmatprep.subr.mxu0 0.0
        %5826 = vmatpush2.msra.mxu0 0.0
        %5827 = vmatprep.subr.mxu0 0.0
        %5828 = vmatpush2.msra.mxu0 0.0
        %5829 = vmatprep.subr.mxu0 0.0
        %5830 = vmatpush2.msra.mxu0 0.0
        %5831 = vmatprep.subr.mxu0 0.0
        %5832 = vmatpush2.msra.mxu0 0.0
        %5833 = vmatprep.subr.mxu0 0.0
        %5834 = vmatpush2.msra.mxu0 0.0
        %5835 = vmatprep.mubr.f32.mxu0 0.0
        %5836 = vmatmul.mubr.f32.gmra.mxu0 %v5769
        %v5837 = vpop.f32.mrf.mxu0
        %v5838 = vadd.f32 %v1332, %v5837
        %v5839 = vpop.f32.mrf.mxu0
        %5840 = vdwg.mxu0
        %v5841 = vadd.f32 %v777, %v5838
        %v5842 = vxor.u32 %v5841, 2147483648
        %v5843 = vmul.f32 %v5842, 1.442695
        %v5844 = vpow.pop %v5843
        %v5845 = vadd.f32 %v5844, 1.0
        %v5846 = vrcp.pop %v5845
        %v5847 = vmul.f32 1.0, %v5846
        %5849 = vrot.lane.b32.xlu0 %v5838, 64
        %v5850 = vpop.permute.xlu0 %5849
        %v5852 = vmul.f32 %v5847, %v5850
        %5854 = vrot.lane.b32.xlu0 %v5852, 64
        %v5855 = vpop.permute.xlu0 %5854
        %v5857 = vadd.f32 %v777, %v5855
        %v5858 = vtanh.pop %v5857
        %v5859 = vsub.f32 1.0, %v5847
        %5861 = vrot.lane.b32.xlu0 %v5858, 96
        %v5862 = vpop.permute.xlu0 %5861
        %v5864 = vmul.f32 %v5859, %v5862
        %v5865 = vmul.f32 %v5847, %v5765
        %v5866 = vadd.f32 %v5864, %v5865
        %5868 = vrot.lane.b32.xlu0 %v5866, 96
        %v5869 = vpop.permute.xlu0 %5868
        %5871 = vmatprep.subr.mxu0 0.0
        %5872 = vmatpush1.msra.mxu0 0.0
        %5873 = vmatprep.subr.mxu0 0.0
        %5874 = vmatpush1.msra.mxu0 0.0
        %5875 = vmatprep.subr.mxu0 0.0
        %5876 = vmatpush1.msra.mxu0 0.0
        %5877 = vmatprep.subr.mxu0 0.0
        %5878 = vmatpush1.msra.mxu0 0.0
        %5879 = vmatprep.subr.mxu0 0.0
        %5880 = vmatpush1.msra.mxu0 0.0
        %5881 = vmatprep.subr.mxu0 0.0
        %5882 = vmatpush1.msra.mxu0 0.0
        %5883 = vmatprep.subr.mxu0 0.0
        %5884 = vmatpush1.msra.mxu0 0.0
        %5885 = vmatprep.subr.mxu0 0.0
        %5886 = vmatpush1.msra.mxu0 0.0
        %5887 = vmatprep.subr.mxu0 0.0
        %5888 = vmatpush1.msra.mxu0 0.0
        %5889 = vmatprep.subr.mxu0 0.0
        %5890 = vmatpush1.msra.mxu0 0.0
        %5891 = vmatprep.subr.mxu0 0.0
        %5892 = vmatpush1.msra.mxu0 0.0
        %5893 = vmatprep.subr.mxu0 0.0
        %5894 = vmatpush1.msra.mxu0 0.0
        %5895 = vmatprep.subr.mxu0 0.0
        %5896 = vmatpush1.msra.mxu0 0.0
        %5897 = vmatprep.subr.mxu0 0.0
        %5898 = vmatpush1.msra.mxu0 0.0
        %5899 = vmatprep.subr.mxu0 0.0
        %5900 = vmatpush1.msra.mxu0 0.0
        %5901 = vmatprep.subr.mxu0 0.0
        %5902 = vmatpush1.msra.mxu0 %v5869
        %5903 = vmatprep.subr.mxu0 0.0
        %5904 = vmatpush2.msra.mxu0 0.0
        %5905 = vmatprep.subr.mxu0 0.0
        %5906 = vmatpush2.msra.mxu0 0.0
        %5907 = vmatprep.subr.mxu0 0.0
        %5908 = vmatpush2.msra.mxu0 0.0
        %5909 = vmatprep.subr.mxu0 0.0
        %5910 = vmatpush2.msra.mxu0 0.0
        %5911 = vmatprep.subr.mxu0 0.0
        %5912 = vmatpush2.msra.mxu0 0.0
        %5913 = vmatprep.subr.mxu0 0.0
        %5914 = vmatpush2.msra.mxu0 0.0
        %5915 = vmatprep.subr.mxu0 0.0
        %5916 = vmatpush2.msra.mxu0 0.0
        %5917 = vmatprep.subr.mxu0 0.0
        %5918 = vmatpush2.msra.mxu0 0.0
        %5919 = vmatprep.subr.mxu0 0.0
        %5920 = vmatpush2.msra.mxu0 0.0
        %5921 = vmatprep.subr.mxu0 0.0
        %5922 = vmatpush2.msra.mxu0 0.0
        %5923 = vmatprep.subr.mxu0 0.0
        %5924 = vmatpush2.msra.mxu0 0.0
        %5925 = vmatprep.subr.mxu0 0.0
        %5926 = vmatpush2.msra.mxu0 0.0
        %5927 = vmatprep.subr.mxu0 0.0
        %5928 = vmatpush2.msra.mxu0 0.0
        %5929 = vmatprep.subr.mxu0 0.0
        %5930 = vmatpush2.msra.mxu0 0.0
        %5931 = vmatprep.subr.mxu0 0.0
        %5932 = vmatpush2.msra.mxu0 0.0
        %5933 = vmatprep.subr.mxu0 0.0
        %5934 = vmatpush2.msra.mxu0 0.0
        %5935 = vmatprep.mubr.f32.mxu0 0.0
        %5936 = vmatmul.mubr.f32.gmra.mxu0 %v1439
        %v5937 = vpop.f32.mrf.mxu0
        %v5938 = vadd.f32 0.0, %v5937
        %v5939 = vpop.f32.mrf.mxu0
        %5940 = vmatprep.mubr.f32.mxu0 0.0
        %5941 = vmatmul.mubr.f32.gmra.mxu0 %v1442
        %v5942 = vpop.f32.mrf.mxu0
        %v5943 = vadd.f32 0.0, %v5942
        %v5944 = vpop.f32.mrf.mxu0
        %5945 = vmatprep.mubr.f32.mxu0 0.0
        %5946 = vmatmul.mubr.f32.gmra.mxu0 %v1445
        %v5947 = vpop.f32.mrf.mxu0
        %v5948 = vadd.f32 0.0, %v5947
        %v5949 = vpop.f32.mrf.mxu0
        %5950 = vdwg.mxu0
        %v5952 = vsel %vm1334, %v5938, 0
        %5954 = vmatprep.subr.mxu0 0.0
        %5955 = vmatpush1.msra.mxu0 0.0
        %5956 = vmatprep.subr.mxu0 0.0
        %5957 = vmatpush1.msra.mxu0 0.0
        %5958 = vmatprep.subr.mxu0 0.0
        %5959 = vmatpush1.msra.mxu0 0.0
        %5960 = vmatprep.subr.mxu0 0.0
        %5961 = vmatpush1.msra.mxu0 0.0
        %5962 = vmatprep.subr.mxu0 0.0
        %5963 = vmatpush1.msra.mxu0 0.0
        %5964 = vmatprep.subr.mxu0 0.0
        %5965 = vmatpush1.msra.mxu0 0.0
        %5966 = vmatprep.subr.mxu0 0.0
        %5967 = vmatpush1.msra.mxu0 0.0
        %5968 = vmatprep.subr.mxu0 0.0
        %5969 = vmatpush1.msra.mxu0 0.0
        %5970 = vmatprep.subr.mxu0 0.0
        %5971 = vmatpush1.msra.mxu0 0.0
        %5972 = vmatprep.subr.mxu0 0.0
        %5973 = vmatpush1.msra.mxu0 0.0
        %5974 = vmatprep.subr.mxu0 0.0
        %5975 = vmatpush1.msra.mxu0 0.0
        %5976 = vmatprep.subr.mxu0 0.0
        %5977 = vmatpush1.msra.mxu0 0.0
        %5978 = vmatprep.subr.mxu0 0.0
        %5979 = vmatpush1.msra.mxu0 %v1530
        %5980 = vmatprep.subr.mxu0 0.0
        %5981 = vmatpush1.msra.mxu0 %v1529
        %5982 = vmatprep.subr.mxu0 0.0
        %5983 = vmatpush1.msra.mxu0 %v1528
        %5984 = vmatprep.subr.mxu0 0.0
        %5985 = vmatpush1.msra.mxu0 %v1527
        %5986 = vmatprep.subr.mxu0 0.0
        %5987 = vmatpush2.msra.mxu0 0.0
        %5988 = vmatprep.subr.mxu0 0.0
        %5989 = vmatpush2.msra.mxu0 0.0
        %5990 = vmatprep.subr.mxu0 0.0
        %5991 = vmatpush2.msra.mxu0 0.0
        %5992 = vmatprep.subr.mxu0 0.0
        %5993 = vmatpush2.msra.mxu0 0.0
        %5994 = vmatprep.subr.mxu0 0.0
        %5995 = vmatpush2.msra.mxu0 0.0
        %5996 = vmatprep.subr.mxu0 0.0
        %5997 = vmatpush2.msra.mxu0 0.0
        %5998 = vmatprep.subr.mxu0 0.0
        %5999 = vmatpush2.msra.mxu0 0.0
        %6000 = vmatprep.subr.mxu0 0.0
        %6001 = vmatpush2.msra.mxu0 0.0
        %6002 = vmatprep.subr.mxu0 0.0
        %6003 = vmatpush2.msra.mxu0 0.0
        %6004 = vmatprep.subr.mxu0 0.0
        %6005 = vmatpush2.msra.mxu0 0.0
        %6006 = vmatprep.subr.mxu0 0.0
        %6007 = vmatpush2.msra.mxu0 0.0
        %6008 = vmatprep.subr.mxu0 0.0
        %6009 = vmatpush2.msra.mxu0 0.0
        %6010 = vmatprep.subr.mxu0 0.0
        %6011 = vmatpush2.msra.mxu0 0.0
        %6012 = vmatprep.subr.mxu0 0.0
        %6013 = vmatpush2.msra.mxu0 0.0
        %6014 = vmatprep.subr.mxu0 0.0
        %6015 = vmatpush2.msra.mxu0 0.0
        %6016 = vmatprep.subr.mxu0 0.0
        %6017 = vmatpush2.msra.mxu0 0.0
        %6018 = vmatprep.mubr.f32.mxu0 0.0
        %6019 = vmatmul.mubr.f32.gmra.mxu0 %v5952
        %v6020 = vpop.f32.mrf.mxu0
        %v6021 = vadd.f32 0.0, %v6020
        %v6022 = vpop.f32.mrf.mxu0
        %6023 = vdwg.mxu0
        %v6024 = vadd.f32 %v1318, %v6021
        %v6026 = vsel %vm1334, %v5943, 0
        %6028 = vmatprep.subr.mxu0 0.0
        %6029 = vmatpush1.msra.mxu0 0.0
        %6030 = vmatprep.subr.mxu0 0.0
        %6031 = vmatpush1.msra.mxu0 0.0
        %6032 = vmatprep.subr.mxu0 0.0
        %6033 = vmatpush1.msra.mxu0 0.0
        %6034 = vmatprep.subr.mxu0 0.0
        %6035 = vmatpush1.msra.mxu0 0.0
        %6036 = vmatprep.subr.mxu0 0.0
        %6037 = vmatpush1.msra.mxu0 0.0
        %6038 = vmatprep.subr.mxu0 0.0
        %6039 = vmatpush1.msra.mxu0 0.0
        %6040 = vmatprep.subr.mxu0 0.0
        %6041 = vmatpush1.msra.mxu0 0.0
        %6042 = vmatprep.subr.mxu0 0.0
        %6043 = vmatpush1.msra.mxu0 0.0
        %6044 = vmatprep.subr.mxu0 0.0
        %6045 = vmatpush1.msra.mxu0 0.0
        %6046 = vmatprep.subr.mxu0 0.0
        %6047 = vmatpush1.msra.mxu0 0.0
        %6048 = vmatprep.subr.mxu0 0.0
        %6049 = vmatpush1.msra.mxu0 0.0
        %6050 = vmatprep.subr.mxu0 0.0
        %6051 = vmatpush1.msra.mxu0 0.0
        %6052 = vmatprep.subr.mxu0 0.0
        %6053 = vmatpush1.msra.mxu0 %v1609
        %6054 = vmatprep.subr.mxu0 0.0
        %6055 = vmatpush1.msra.mxu0 %v1608
        %6056 = vmatprep.subr.mxu0 0.0
        %6057 = vmatpush1.msra.mxu0 %v1607
        %6058 = vmatprep.subr.mxu0 0.0
        %6059 = vmatpush1.msra.mxu0 %v1606
        %6060 = vmatprep.subr.mxu0 0.0
        %6061 = vmatpush2.msra.mxu0 0.0
        %6062 = vmatprep.subr.mxu0 0.0
        %6063 = vmatpush2.msra.mxu0 0.0
        %6064 = vmatprep.subr.mxu0 0.0
        %6065 = vmatpush2.msra.mxu0 0.0
        %6066 = vmatprep.subr.mxu0 0.0
        %6067 = vmatpush2.msra.mxu0 0.0
        %6068 = vmatprep.subr.mxu0 0.0
        %6069 = vmatpush2.msra.mxu0 0.0
        %6070 = vmatprep.subr.mxu0 0.0
        %6071 = vmatpush2.msra.mxu0 0.0
        %6072 = vmatprep.subr.mxu0 0.0
        %6073 = vmatpush2.msra.mxu0 0.0
        %6074 = vmatprep.subr.mxu0 0.0
        %6075 = vmatpush2.msra.mxu0 0.0
        %6076 = vmatprep.subr.mxu0 0.0
        %6077 = vmatpush2.msra.mxu0 0.0
        %6078 = vmatprep.subr.mxu0 0.0
        %6079 = vmatpush2.msra.mxu0 0.0
        %6080 = vmatprep.subr.mxu0 0.0
        %6081 = vmatpush2.msra.mxu0 0.0
        %6082 = vmatprep.subr.mxu0 0.0
        %6083 = vmatpush2.msra.mxu0 0.0
        %6084 = vmatprep.subr.mxu0 0.0
        %6085 = vmatpush2.msra.mxu0 0.0
        %6086 = vmatprep.subr.mxu0 0.0
        %6087 = vmatpush2.msra.mxu0 0.0
        %6088 = vmatprep.subr.mxu0 0.0
        %6089 = vmatpush2.msra.mxu0 0.0
        %6090 = vmatprep.subr.mxu0 0.0
        %6091 = vmatpush2.msra.mxu0 0.0
        %6092 = vmatprep.mubr.f32.mxu0 0.0
        %6093 = vmatmul.mubr.f32.gmra.mxu0 %v6026
        %v6094 = vpop.f32.mrf.mxu0
        %v6095 = vadd.f32 0.0, %v6094
        %v6096 = vpop.f32.mrf.mxu0
        %6097 = vdwg.mxu0
        %v6098 = vadd.f32 %v6024, %v6095
        %v6100 = vsel %vm1334, %v5948, 0
        %6102 = vmatprep.subr.mxu0 0.0
        %6103 = vmatpush1.msra.mxu0 0.0
        %6104 = vmatprep.subr.mxu0 0.0
        %6105 = vmatpush1.msra.mxu0 0.0
        %6106 = vmatprep.subr.mxu0 0.0
        %6107 = vmatpush1.msra.mxu0 0.0
        %6108 = vmatprep.subr.mxu0 0.0
        %6109 = vmatpush1.msra.mxu0 0.0
        %6110 = vmatprep.subr.mxu0 0.0
        %6111 = vmatpush1.msra.mxu0 0.0
        %6112 = vmatprep.subr.mxu0 0.0
        %6113 = vmatpush1.msra.mxu0 0.0
        %6114 = vmatprep.subr.mxu0 0.0
        %6115 = vmatpush1.msra.mxu0 0.0
        %6116 = vmatprep.subr.mxu0 0.0
        %6117 = vmatpush1.msra.mxu0 0.0
        %6118 = vmatprep.subr.mxu0 0.0
        %6119 = vmatpush1.msra.mxu0 0.0
        %6120 = vmatprep.subr.mxu0 0.0
        %6121 = vmatpush1.msra.mxu0 0.0
        %6122 = vmatprep.subr.mxu0 0.0
        %6123 = vmatpush1.msra.mxu0 0.0
        %6124 = vmatprep.subr.mxu0 0.0
        %6125 = vmatpush1.msra.mxu0 0.0
        %6126 = vmatprep.subr.mxu0 0.0
        %6127 = vmatpush1.msra.mxu0 %v1688
        %6128 = vmatprep.subr.mxu0 0.0
        %6129 = vmatpush1.msra.mxu0 %v1687
        %6130 = vmatprep.subr.mxu0 0.0
        %6131 = vmatpush1.msra.mxu0 %v1686
        %6132 = vmatprep.subr.mxu0 0.0
        %6133 = vmatpush1.msra.mxu0 %v1685
        %6134 = vmatprep.subr.mxu0 0.0
        %6135 = vmatpush2.msra.mxu0 0.0
        %6136 = vmatprep.subr.mxu0 0.0
        %6137 = vmatpush2.msra.mxu0 0.0
        %6138 = vmatprep.subr.mxu0 0.0
        %6139 = vmatpush2.msra.mxu0 0.0
        %6140 = vmatprep.subr.mxu0 0.0
        %6141 = vmatpush2.msra.mxu0 0.0
        %6142 = vmatprep.subr.mxu0 0.0
        %6143 = vmatpush2.msra.mxu0 0.0
        %6144 = vmatprep.subr.mxu0 0.0
        %6145 = vmatpush2.msra.mxu0 0.0
        %6146 = vmatprep.subr.mxu0 0.0
        %6147 = vmatpush2.msra.mxu0 0.0
        %6148 = vmatprep.subr.mxu0 0.0
        %6149 = vmatpush2.msra.mxu0 0.0
        %6150 = vmatprep.subr.mxu0 0.0
        %6151 = vmatpush2.msra.mxu0 0.0
        %6152 = vmatprep.subr.mxu0 0.0
        %6153 = vmatpush2.msra.mxu0 0.0
        %6154 = vmatprep.subr.mxu0 0.0
        %6155 = vmatpush2.msra.mxu0 0.0
        %6156 = vmatprep.subr.mxu0 0.0
        %6157 = vmatpush2.msra.mxu0 0.0
        %6158 = vmatprep.subr.mxu0 0.0
        %6159 = vmatpush2.msra.mxu0 0.0
        %6160 = vmatprep.subr.mxu0 0.0
        %6161 = vmatpush2.msra.mxu0 0.0
        %6162 = vmatprep.subr.mxu0 0.0
        %6163 = vmatpush2.msra.mxu0 0.0
        %6164 = vmatprep.subr.mxu0 0.0
        %6165 = vmatpush2.msra.mxu0 0.0
        %6166 = vmatprep.mubr.f32.mxu0 0.0
        %6167 = vmatmul.mubr.f32.gmra.mxu0 %v6100
        %v6168 = vpop.f32.mrf.mxu0
        %v6169 = vadd.f32 0.0, %v6168
        %v6170 = vpop.f32.mrf.mxu0
        %6171 = vdwg.mxu0
        %v6172 = vadd.f32 %v6098, %v6169
        %v6173 = vadd.f32 %v6172, %v1767
        %v6174 = vtanh.pop %v6173
        %v6175 = vadd.f32 %v792, %v867
        %v6176 = vsel %vm1334, %v5869, 0
        %6178 = vmatprep.subr.mxu0 0.0
        %6179 = vmatpush1.msra.mxu0 0.0
        %6180 = vmatprep.subr.mxu0 0.0
        %6181 = vmatpush1.msra.mxu0 0.0
        %6182 = vmatprep.subr.mxu0 0.0
        %6183 = vmatpush1.msra.mxu0 0.0
        %6184 = vmatprep.subr.mxu0 0.0
        %6185 = vmatpush1.msra.mxu0 0.0
        %6186 = vmatprep.subr.mxu0 0.0
        %6187 = vmatpush1.msra.mxu0 0.0
        %6188 = vmatprep.subr.mxu0 0.0
        %6189 = vmatpush1.msra.mxu0 0.0
        %6190 = vmatprep.subr.mxu0 0.0
        %6191 = vmatpush1.msra.mxu0 0.0
        %6192 = vmatprep.subr.mxu0 0.0
        %6193 = vmatpush1.msra.mxu0 0.0
        %6194 = vmatprep.subr.mxu0 0.0
        %6195 = vmatpush1.msra.mxu0 0.0
        %6196 = vmatprep.subr.mxu0 0.0
        %6197 = vmatpush1.msra.mxu0 0.0
        %6198 = vmatprep.subr.mxu0 0.0
        %6199 = vmatpush1.msra.mxu0 0.0
        %6200 = vmatprep.subr.mxu0 0.0
        %6201 = vmatpush1.msra.mxu0 0.0
        %6202 = vmatprep.subr.mxu0 0.0
        %6203 = vmatpush1.msra.mxu0 %v691
        %6204 = vmatprep.subr.mxu0 0.0
        %6205 = vmatpush1.msra.mxu0 %v690
        %6206 = vmatprep.subr.mxu0 0.0
        %6207 = vmatpush1.msra.mxu0 %v689
        %6208 = vmatprep.subr.mxu0 0.0
        %6209 = vmatpush1.msra.mxu0 %v688
        %6210 = vmatprep.subr.mxu0 0.0
        %6211 = vmatpush2.msra.mxu0 0.0
        %6212 = vmatprep.subr.mxu0 0.0
        %6213 = vmatpush2.msra.mxu0 0.0
        %6214 = vmatprep.subr.mxu0 0.0
        %6215 = vmatpush2.msra.mxu0 0.0
        %6216 = vmatprep.subr.mxu0 0.0
        %6217 = vmatpush2.msra.mxu0 0.0
        %6218 = vmatprep.subr.mxu0 0.0
        %6219 = vmatpush2.msra.mxu0 0.0
        %6220 = vmatprep.subr.mxu0 0.0
        %6221 = vmatpush2.msra.mxu0 0.0
        %6222 = vmatprep.subr.mxu0 0.0
        %6223 = vmatpush2.msra.mxu0 0.0
        %6224 = vmatprep.subr.mxu0 0.0
        %6225 = vmatpush2.msra.mxu0 0.0
        %6226 = vmatprep.subr.mxu0 0.0
        %6227 = vmatpush2.msra.mxu0 0.0
        %6228 = vmatprep.subr.mxu0 0.0
        %6229 = vmatpush2.msra.mxu0 0.0
        %6230 = vmatprep.subr.mxu0 0.0
        %6231 = vmatpush2.msra.mxu0 0.0
        %6232 = vmatprep.subr.mxu0 0.0
        %6233 = vmatpush2.msra.mxu0 0.0
        %6234 = vmatprep.subr.mxu0 0.0
        %6235 = vmatpush2.msra.mxu0 0.0
        %6236 = vmatprep.subr.mxu0 0.0
        %6237 = vmatpush2.msra.mxu0 0.0
        %6238 = vmatprep.subr.mxu0 0.0
        %6239 = vmatpush2.msra.mxu0 0.0
        %6240 = vmatprep.subr.mxu0 0.0
        %6241 = vmatpush2.msra.mxu0 0.0
        %6242 = vmatprep.mubr.f32.mxu0 0.0
        %6243 = vmatmul.mubr.f32.gmra.mxu0 %v6176
        %v6244 = vpop.f32.mrf.mxu0
        %v6245 = vadd.f32 0.0, %v6244
        %v6246 = vpop.f32.mrf.mxu0
        %6247 = vdwg.mxu0
        %v6248 = vadd.f32 %v6175, %v6245
        %v6249 = vmul.f32 %v6248, %v1849
        %v6250 = vsel %vm1334, %v6249, 0.0
        %6251 = vadd.xlane.f32.xlu0 %v6250
        %v6252 = vpop.xlane.xlu0 %6251
        %v6253 = vmul.f32 %v6248, %v1858
        %v6254 = vsel %vm1334, %v6253, 0.0
        %6255 = vadd.xlane.f32.xlu0 %v6254
        %v6256 = vpop.xlane.xlu0 %6255
        %v6258 = vlaneseq
        %v6259 = vshrl.u32 %v6258, 7
        %v6260 = vsub.s32 %v1865, %v6259
        %v6261 = vrot.slane %v6256, %v6260
        %v6262 = vsel %vm1870, %v6261, %v6261
        %v6263 = vsel %vm1872, %v6261, %v6262
        %v6264 = vsel %vm1874, %v6261, %v6263
        %v6265 = vsel %vm1876, %v6261, %v6264
        %v6266 = vsel %vm1878, %v6261, %v6265
        %v6267 = vsel %vm1880, %v6261, %v6266
        %v6269 = vadd.f32 %v6252, %v6267
        %vm6270 = vcmp.gt.f32.partialorder %v6269, 0.0
        %v6271 = vmul.f32 %v6269, 0.2
        %v6272 = vsel %vm6270, %v6269, %v6271
        %v6273 = vadd.f32 %v6272, %v679
        %v6274 = vsel %vm871, %v6273, -inf
        %6275 = vmax.xlane.f32.xlu0 %v6274
        %v6276 = vpop.xlane.xlu0 %6275
        %v6277 = vsub.f32 %v6273, %v6276
        %v6278 = vmul.f32 %v6277, 1.442695
        %v6279 = vpow.pop %v6278
        %v6280 = vsel %vm871, %v6279, 0.0
        %6281 = vadd.xlane.f32.xlu0 %v6280
        %v6282 = vpop.xlane.xlu0 %6281
        %v6283 = vrcp.pop %v6282
        %v6284 = vmul.f32 %v6279, %v6283
        %v6285 = vmul.f32 %v6248, %v1906
        %6287 = vrot.lane.b32.xlu0 %v6285, 96
        %v6288 = vpop.permute.xlu0 %6287
        %v6290 = vsel %vm1334, %v6288, 0.0
        %6291 = vadd.xlane.f32.xlu0 %v6290
        %v6292 = vpop.xlane.xlu0 %6291
        %v6293 = vmul.f32 %v6248, %v1923
        %6295 = vrot.lane.b32.xlu0 %v6293, 96
        %v6296 = vpop.permute.xlu0 %6295
        %v6298 = vsel %vm1334, %v6296, 0.0
        %6299 = vadd.xlane.f32.xlu0 %v6298
        %v6300 = vpop.xlane.xlu0 %6299
        %v6302 = vlaneseq
        %v6303 = vshrl.u32 %v6302, 7
        %v6304 = vsub.s32 %v1865, %v6303
        %v6305 = vrot.slane %v6300, %v6304
        %v6306 = vsel %vm1870, %v6305, %v6305
        %v6307 = vsel %vm1872, %v6305, %v6306
        %v6308 = vsel %vm1874, %v6305, %v6307
        %v6309 = vsel %vm1876, %v6305, %v6308
        %v6310 = vsel %vm1878, %v6305, %v6309
        %v6311 = vsel %vm1880, %v6305, %v6310
        %v6313 = vadd.f32 %v6292, %v6311
        %vm6314 = vcmp.gt.f32.partialorder %v6313, 0.0
        %v6315 = vmul.f32 %v6313, 0.2
        %v6316 = vsel %vm6314, %v6313, %v6315
        %v6317 = vadd.f32 %v6316, %v679
        %v6318 = vsel %vm871, %v6317, -inf
        %6319 = vmax.xlane.f32.xlu0 %v6318
        %v6320 = vpop.xlane.xlu0 %6319
        %v6321 = vsub.f32 %v6317, %v6320
        %v6322 = vmul.f32 %v6321, 1.442695
        %v6323 = vpow.pop %v6322
        %v6324 = vsel %vm871, %v6323, 0.0
        %6325 = vadd.xlane.f32.xlu0 %v6324
        %v6326 = vpop.xlane.xlu0 %6325
        %v6327 = vrcp.pop %v6326
        %v6328 = vmul.f32 %v6323, %v6327
        %6330 = vrot.lane.b32.xlu0 %v6248, 96
        %v6331 = vpop.permute.xlu0 %6330
        %v6334 = vsel %vm871, %v6328, 0
        %6336 = vmatprep.subr.mxu0 0.0
        %6337 = vmatpush1.msra.mxu0 0.0
        %6338 = vmatprep.subr.mxu0 0.0
        %6339 = vmatpush1.msra.mxu0 0.0
        %6340 = vmatprep.subr.mxu0 0.0
        %6341 = vmatpush1.msra.mxu0 0.0
        %6342 = vmatprep.subr.mxu0 0.0
        %6343 = vmatpush1.msra.mxu0 0.0
        %6344 = vmatprep.subr.mxu0 0.0
        %6345 = vmatpush1.msra.mxu0 0.0
        %6346 = vmatprep.subr.mxu0 0.0
        %6347 = vmatpush1.msra.mxu0 0.0
        %6348 = vmatprep.subr.mxu0 0.0
        %6349 = vmatpush1.msra.mxu0 0.0
        %6350 = vmatprep.subr.mxu0 0.0
        %6351 = vmatpush1.msra.mxu0 0.0
        %6352 = vmatprep.subr.mxu0 0.0
        %6353 = vmatpush1.msra.mxu0 0.0
        %6354 = vmatprep.subr.mxu0 0.0
        %6355 = vmatpush1.msra.mxu0 0.0
        %6356 = vmatprep.subr.mxu0 0.0
        %6357 = vmatpush1.msra.mxu0 0.0
        %6358 = vmatprep.subr.mxu0 0.0
        %6359 = vmatpush1.msra.mxu0 0.0
        %6360 = vmatprep.subr.mxu0 0.0
        %6361 = vmatpush1.msra.mxu0 0.0
        %6362 = vmatprep.subr.mxu0 0.0
        %6363 = vmatpush1.msra.mxu0 0.0
        %6364 = vmatprep.subr.mxu0 0.0
        %6365 = vmatpush1.msra.mxu0 0.0
        %6366 = vmatprep.subr.mxu0 0.0
        %6367 = vmatpush1.msra.mxu0 %v6331
        %6368 = vmatprep.subr.mxu0 0.0
        %6369 = vmatpush2.msra.mxu0 0.0
        %6370 = vmatprep.subr.mxu0 0.0
        %6371 = vmatpush2.msra.mxu0 0.0
        %6372 = vmatprep.subr.mxu0 0.0
        %6373 = vmatpush2.msra.mxu0 0.0
        %6374 = vmatprep.subr.mxu0 0.0
        %6375 = vmatpush2.msra.mxu0 0.0
        %6376 = vmatprep.subr.mxu0 0.0
        %6377 = vmatpush2.msra.mxu0 0.0
        %6378 = vmatprep.subr.mxu0 0.0
        %6379 = vmatpush2.msra.mxu0 0.0
        %6380 = vmatprep.subr.mxu0 0.0
        %6381 = vmatpush2.msra.mxu0 0.0
        %6382 = vmatprep.subr.mxu0 0.0
        %6383 = vmatpush2.msra.mxu0 0.0
        %6384 = vmatprep.subr.mxu0 0.0
        %6385 = vmatpush2.msra.mxu0 0.0
        %6386 = vmatprep.subr.mxu0 0.0
        %6387 = vmatpush2.msra.mxu0 0.0
        %6388 = vmatprep.subr.mxu0 0.0
        %6389 = vmatpush2.msra.mxu0 0.0
        %6390 = vmatprep.subr.mxu0 0.0
        %6391 = vmatpush2.msra.mxu0 0.0
        %6392 = vmatprep.subr.mxu0 0.0
        %6393 = vmatpush2.msra.mxu0 0.0
        %6394 = vmatprep.subr.mxu0 0.0
        %6395 = vmatpush2.msra.mxu0 0.0
        %6396 = vmatprep.subr.mxu0 0.0
        %6397 = vmatpush2.msra.mxu0 0.0
        %6398 = vmatprep.subr.mxu0 0.0
        %6399 = vmatpush2.msra.mxu0 0.0
        %6400 = vmatprep.mubr.f32.mxu0 0.0
        %6401 = vmatmul.mubr.f32.gmra.mxu0 %v6334
        %v6402 = vpop.f32.mrf.mxu0
        %v6403 = vadd.f32 0.0, %v6402
        %v6404 = vpop.f32.mrf.mxu0
        %6405 = vdwg.mxu0
        %v6407 = vsel %vm871, %v6284, 0
        %6409 = vmatprep.subr.mxu0 0.0
        %6410 = vmatpush1.msra.mxu0 0.0
        %6411 = vmatprep.subr.mxu0 0.0
        %6412 = vmatpush1.msra.mxu0 0.0
        %6413 = vmatprep.subr.mxu0 0.0
        %6414 = vmatpush1.msra.mxu0 0.0
        %6415 = vmatprep.subr.mxu0 0.0
        %6416 = vmatpush1.msra.mxu0 0.0
        %6417 = vmatprep.subr.mxu0 0.0
        %6418 = vmatpush1.msra.mxu0 0.0
        %6419 = vmatprep.subr.mxu0 0.0
        %6420 = vmatpush1.msra.mxu0 0.0
        %6421 = vmatprep.subr.mxu0 0.0
        %6422 = vmatpush1.msra.mxu0 0.0
        %6423 = vmatprep.subr.mxu0 0.0
        %6424 = vmatpush1.msra.mxu0 0.0
        %6425 = vmatprep.subr.mxu0 0.0
        %6426 = vmatpush1.msra.mxu0 0.0
        %6427 = vmatprep.subr.mxu0 0.0
        %6428 = vmatpush1.msra.mxu0 0.0
        %6429 = vmatprep.subr.mxu0 0.0
        %6430 = vmatpush1.msra.mxu0 0.0
        %6431 = vmatprep.subr.mxu0 0.0
        %6432 = vmatpush1.msra.mxu0 0.0
        %6433 = vmatprep.subr.mxu0 0.0
        %6434 = vmatpush1.msra.mxu0 0.0
        %6435 = vmatprep.subr.mxu0 0.0
        %6436 = vmatpush1.msra.mxu0 0.0
        %6437 = vmatprep.subr.mxu0 0.0
        %6438 = vmatpush1.msra.mxu0 0.0
        %6439 = vmatprep.subr.mxu0 0.0
        %6440 = vmatpush1.msra.mxu0 %v6248
        %6441 = vmatprep.subr.mxu0 0.0
        %6442 = vmatpush2.msra.mxu0 0.0
        %6443 = vmatprep.subr.mxu0 0.0
        %6444 = vmatpush2.msra.mxu0 0.0
        %6445 = vmatprep.subr.mxu0 0.0
        %6446 = vmatpush2.msra.mxu0 0.0
        %6447 = vmatprep.subr.mxu0 0.0
        %6448 = vmatpush2.msra.mxu0 0.0
        %6449 = vmatprep.subr.mxu0 0.0
        %6450 = vmatpush2.msra.mxu0 0.0
        %6451 = vmatprep.subr.mxu0 0.0
        %6452 = vmatpush2.msra.mxu0 0.0
        %6453 = vmatprep.subr.mxu0 0.0
        %6454 = vmatpush2.msra.mxu0 0.0
        %6455 = vmatprep.subr.mxu0 0.0
        %6456 = vmatpush2.msra.mxu0 0.0
        %6457 = vmatprep.subr.mxu0 0.0
        %6458 = vmatpush2.msra.mxu0 0.0
        %6459 = vmatprep.subr.mxu0 0.0
        %6460 = vmatpush2.msra.mxu0 0.0
        %6461 = vmatprep.subr.mxu0 0.0
        %6462 = vmatpush2.msra.mxu0 0.0
        %6463 = vmatprep.subr.mxu0 0.0
        %6464 = vmatpush2.msra.mxu0 0.0
        %6465 = vmatprep.subr.mxu0 0.0
        %6466 = vmatpush2.msra.mxu0 0.0
        %6467 = vmatprep.subr.mxu0 0.0
        %6468 = vmatpush2.msra.mxu0 0.0
        %6469 = vmatprep.subr.mxu0 0.0
        %6470 = vmatpush2.msra.mxu0 0.0
        %6471 = vmatprep.subr.mxu0 0.0
        %6472 = vmatpush2.msra.mxu0 0.0
        %6473 = vmatprep.mubr.f32.mxu0 0.0
        %6474 = vmatmul.mubr.f32.gmra.mxu0 %v6407
        %v6475 = vpop.f32.mrf.mxu0
        %v6476 = vadd.f32 %v6403, %v6475
        %v6477 = vpop.f32.mrf.mxu0
        %6478 = vdwg.mxu0
        %v6479 = vmul.f32 %v6476, 0.5
        %v6480 = vtanh.pop %v6479
        %v6481 = vmul.f32 %v1320, %v5866
        %v6482 = vmul.f32 %v1322, %v6174
        %6484 = vrot.lane.b32.xlu0 %v6482, 32
        %v6485 = vpop.permute.xlu0 %6484
        %v6487 = vadd.f32 %v6481, %v6485
        %v6488 = vmul.f32 %v1325, %v6480
        %6490 = vrot.lane.b32.xlu0 %v6488, 32
        %v6491 = vpop.permute.xlu0 %6490
        %v6493 = vadd.f32 %v6487, %v6491
        %6495 = vrot.lane.b32.xlu0 %v6493, 96
        %v6496 = vpop.permute.xlu0 %6495
        %v6497 = vsel %vm1334, %v6496, 0
        %6499 = vmatprep.subr.mxu0 0.0
        %6500 = vmatpush1.msra.mxu0 0.0
        %6501 = vmatprep.subr.mxu0 0.0
        %6502 = vmatpush1.msra.mxu0 0.0
        %6503 = vmatprep.subr.mxu0 0.0
        %6504 = vmatpush1.msra.mxu0 0.0
        %6505 = vmatprep.subr.mxu0 0.0
        %6506 = vmatpush1.msra.mxu0 0.0
        %6507 = vmatprep.subr.mxu0 0.0
        %6508 = vmatpush1.msra.mxu0 0.0
        %6509 = vmatprep.subr.mxu0 0.0
        %6510 = vmatpush1.msra.mxu0 0.0
        %6511 = vmatprep.subr.mxu0 0.0
        %6512 = vmatpush1.msra.mxu0 0.0
        %6513 = vmatprep.subr.mxu0 0.0
        %6514 = vmatpush1.msra.mxu0 0.0
        %6515 = vmatprep.subr.mxu0 0.0
        %6516 = vmatpush1.msra.mxu0 0.0
        %6517 = vmatprep.subr.mxu0 0.0
        %6518 = vmatpush1.msra.mxu0 0.0
        %6519 = vmatprep.subr.mxu0 0.0
        %6520 = vmatpush1.msra.mxu0 0.0
        %6521 = vmatprep.subr.mxu0 0.0
        %6522 = vmatpush1.msra.mxu0 0.0
        %6523 = vmatprep.subr.mxu0 0.0
        %6524 = vmatpush1.msra.mxu0 %v686
        %6525 = vmatprep.subr.mxu0 0.0
        %6526 = vmatpush1.msra.mxu0 %v685
        %6527 = vmatprep.subr.mxu0 0.0
        %6528 = vmatpush1.msra.mxu0 %v684
        %6529 = vmatprep.subr.mxu0 0.0
        %6530 = vmatpush1.msra.mxu0 %v683
        %6531 = vmatprep.subr.mxu0 0.0
        %6532 = vmatpush2.msra.mxu0 0.0
        %6533 = vmatprep.subr.mxu0 0.0
        %6534 = vmatpush2.msra.mxu0 0.0
        %6535 = vmatprep.subr.mxu0 0.0
        %6536 = vmatpush2.msra.mxu0 0.0
        %6537 = vmatprep.subr.mxu0 0.0
        %6538 = vmatpush2.msra.mxu0 0.0
        %6539 = vmatprep.subr.mxu0 0.0
        %6540 = vmatpush2.msra.mxu0 0.0
        %6541 = vmatprep.subr.mxu0 0.0
        %6542 = vmatpush2.msra.mxu0 0.0
        %6543 = vmatprep.subr.mxu0 0.0
        %6544 = vmatpush2.msra.mxu0 0.0
        %6545 = vmatprep.subr.mxu0 0.0
        %6546 = vmatpush2.msra.mxu0 0.0
        %6547 = vmatprep.subr.mxu0 0.0
        %6548 = vmatpush2.msra.mxu0 0.0
        %6549 = vmatprep.subr.mxu0 0.0
        %6550 = vmatpush2.msra.mxu0 0.0
        %6551 = vmatprep.subr.mxu0 0.0
        %6552 = vmatpush2.msra.mxu0 0.0
        %6553 = vmatprep.subr.mxu0 0.0
        %6554 = vmatpush2.msra.mxu0 0.0
        %6555 = vmatprep.subr.mxu0 0.0
        %6556 = vmatpush2.msra.mxu0 0.0
        %6557 = vmatprep.subr.mxu0 0.0
        %6558 = vmatpush2.msra.mxu0 0.0
        %6559 = vmatprep.subr.mxu0 0.0
        %6560 = vmatpush2.msra.mxu0 0.0
        %6561 = vmatprep.subr.mxu0 0.0
        %6562 = vmatpush2.msra.mxu0 0.0
        %6563 = vmatprep.mubr.f32.mxu0 0.0
        %6564 = vmatmul.mubr.f32.gmra.mxu0 %v6497
        %v6565 = vpop.f32.mrf.mxu0
        %v6566 = vadd.f32 %v1332, %v6565
        %v6567 = vpop.f32.mrf.mxu0
        %6568 = vdwg.mxu0
        %v6569 = vadd.f32 %v778, %v6566
        %v6570 = vxor.u32 %v6569, 2147483648
        %v6571 = vmul.f32 %v6570, 1.442695
        %v6572 = vpow.pop %v6571
        %v6573 = vadd.f32 %v6572, 1.0
        %v6574 = vrcp.pop %v6573
        %v6575 = vmul.f32 1.0, %v6574
        %6577 = vrot.lane.b32.xlu0 %v6566, 64
        %v6578 = vpop.permute.xlu0 %6577
        %v6580 = vmul.f32 %v6575, %v6578
        %6582 = vrot.lane.b32.xlu0 %v6580, 64
        %v6583 = vpop.permute.xlu0 %6582
        %v6585 = vadd.f32 %v778, %v6583
        %v6586 = vtanh.pop %v6585
        %v6587 = vsub.f32 1.0, %v6575
        %6589 = vrot.lane.b32.xlu0 %v6586, 96
        %v6590 = vpop.permute.xlu0 %6589
        %v6592 = vmul.f32 %v6587, %v6590
        %v6593 = vmul.f32 %v6575, %v6493
        %v6594 = vadd.f32 %v6592, %v6593
        %6596 = vrot.lane.b32.xlu0 %v6594, 96
        %v6597 = vpop.permute.xlu0 %6596
        %6599 = vmatprep.subr.mxu0 0.0
        %6600 = vmatpush1.msra.mxu0 0.0
        %6601 = vmatprep.subr.mxu0 0.0
        %6602 = vmatpush1.msra.mxu0 0.0
        %6603 = vmatprep.subr.mxu0 0.0
        %6604 = vmatpush1.msra.mxu0 0.0
        %6605 = vmatprep.subr.mxu0 0.0
        %6606 = vmatpush1.msra.mxu0 0.0
        %6607 = vmatprep.subr.mxu0 0.0
        %6608 = vmatpush1.msra.mxu0 0.0
        %6609 = vmatprep.subr.mxu0 0.0
        %6610 = vmatpush1.msra.mxu0 0.0
        %6611 = vmatprep.subr.mxu0 0.0
        %6612 = vmatpush1.msra.mxu0 0.0
        %6613 = vmatprep.subr.mxu0 0.0
        %6614 = vmatpush1.msra.mxu0 0.0
        %6615 = vmatprep.subr.mxu0 0.0
        %6616 = vmatpush1.msra.mxu0 0.0
        %6617 = vmatprep.subr.mxu0 0.0
        %6618 = vmatpush1.msra.mxu0 0.0
        %6619 = vmatprep.subr.mxu0 0.0
        %6620 = vmatpush1.msra.mxu0 0.0
        %6621 = vmatprep.subr.mxu0 0.0
        %6622 = vmatpush1.msra.mxu0 0.0
        %6623 = vmatprep.subr.mxu0 0.0
        %6624 = vmatpush1.msra.mxu0 0.0
        %6625 = vmatprep.subr.mxu0 0.0
        %6626 = vmatpush1.msra.mxu0 0.0
        %6627 = vmatprep.subr.mxu0 0.0
        %6628 = vmatpush1.msra.mxu0 0.0
        %6629 = vmatprep.subr.mxu0 0.0
        %6630 = vmatpush1.msra.mxu0 %v6597
        %6631 = vmatprep.subr.mxu0 0.0
        %6632 = vmatpush2.msra.mxu0 0.0
        %6633 = vmatprep.subr.mxu0 0.0
        %6634 = vmatpush2.msra.mxu0 0.0
        %6635 = vmatprep.subr.mxu0 0.0
        %6636 = vmatpush2.msra.mxu0 0.0
        %6637 = vmatprep.subr.mxu0 0.0
        %6638 = vmatpush2.msra.mxu0 0.0
        %6639 = vmatprep.subr.mxu0 0.0
        %6640 = vmatpush2.msra.mxu0 0.0
        %6641 = vmatprep.subr.mxu0 0.0
        %6642 = vmatpush2.msra.mxu0 0.0
        %6643 = vmatprep.subr.mxu0 0.0
        %6644 = vmatpush2.msra.mxu0 0.0
        %6645 = vmatprep.subr.mxu0 0.0
        %6646 = vmatpush2.msra.mxu0 0.0
        %6647 = vmatprep.subr.mxu0 0.0
        %6648 = vmatpush2.msra.mxu0 0.0
        %6649 = vmatprep.subr.mxu0 0.0
        %6650 = vmatpush2.msra.mxu0 0.0
        %6651 = vmatprep.subr.mxu0 0.0
        %6652 = vmatpush2.msra.mxu0 0.0
        %6653 = vmatprep.subr.mxu0 0.0
        %6654 = vmatpush2.msra.mxu0 0.0
        %6655 = vmatprep.subr.mxu0 0.0
        %6656 = vmatpush2.msra.mxu0 0.0
        %6657 = vmatprep.subr.mxu0 0.0
        %6658 = vmatpush2.msra.mxu0 0.0
        %6659 = vmatprep.subr.mxu0 0.0
        %6660 = vmatpush2.msra.mxu0 0.0
        %6661 = vmatprep.subr.mxu0 0.0
        %6662 = vmatpush2.msra.mxu0 0.0
        %6663 = vmatprep.mubr.f32.mxu0 0.0
        %6664 = vmatmul.mubr.f32.gmra.mxu0 %v1439
        %v6665 = vpop.f32.mrf.mxu0
        %v6666 = vadd.f32 0.0, %v6665
        %v6667 = vpop.f32.mrf.mxu0
        %6668 = vmatprep.mubr.f32.mxu0 0.0
        %6669 = vmatmul.mubr.f32.gmra.mxu0 %v1442
        %v6670 = vpop.f32.mrf.mxu0
        %v6671 = vadd.f32 0.0, %v6670
        %v6672 = vpop.f32.mrf.mxu0
        %6673 = vmatprep.mubr.f32.mxu0 0.0
        %6674 = vmatmul.mubr.f32.gmra.mxu0 %v1445
        %v6675 = vpop.f32.mrf.mxu0
        %v6676 = vadd.f32 0.0, %v6675
        %v6677 = vpop.f32.mrf.mxu0
        %6678 = vdwg.mxu0
        %v6680 = vsel %vm1334, %v6666, 0
        %6682 = vmatprep.subr.mxu0 0.0
        %6683 = vmatpush1.msra.mxu0 0.0
        %6684 = vmatprep.subr.mxu0 0.0
        %6685 = vmatpush1.msra.mxu0 0.0
        %6686 = vmatprep.subr.mxu0 0.0
        %6687 = vmatpush1.msra.mxu0 0.0
        %6688 = vmatprep.subr.mxu0 0.0
        %6689 = vmatpush1.msra.mxu0 0.0
        %6690 = vmatprep.subr.mxu0 0.0
        %6691 = vmatpush1.msra.mxu0 0.0
        %6692 = vmatprep.subr.mxu0 0.0
        %6693 = vmatpush1.msra.mxu0 0.0
        %6694 = vmatprep.subr.mxu0 0.0
        %6695 = vmatpush1.msra.mxu0 0.0
        %6696 = vmatprep.subr.mxu0 0.0
        %6697 = vmatpush1.msra.mxu0 0.0
        %6698 = vmatprep.subr.mxu0 0.0
        %6699 = vmatpush1.msra.mxu0 0.0
        %6700 = vmatprep.subr.mxu0 0.0
        %6701 = vmatpush1.msra.mxu0 0.0
        %6702 = vmatprep.subr.mxu0 0.0
        %6703 = vmatpush1.msra.mxu0 0.0
        %6704 = vmatprep.subr.mxu0 0.0
        %6705 = vmatpush1.msra.mxu0 0.0
        %6706 = vmatprep.subr.mxu0 0.0
        %6707 = vmatpush1.msra.mxu0 %v1530
        %6708 = vmatprep.subr.mxu0 0.0
        %6709 = vmatpush1.msra.mxu0 %v1529
        %6710 = vmatprep.subr.mxu0 0.0
        %6711 = vmatpush1.msra.mxu0 %v1528
        %6712 = vmatprep.subr.mxu0 0.0
        %6713 = vmatpush1.msra.mxu0 %v1527
        %6714 = vmatprep.subr.mxu0 0.0
        %6715 = vmatpush2.msra.mxu0 0.0
        %6716 = vmatprep.subr.mxu0 0.0
        %6717 = vmatpush2.msra.mxu0 0.0
        %6718 = vmatprep.subr.mxu0 0.0
        %6719 = vmatpush2.msra.mxu0 0.0
        %6720 = vmatprep.subr.mxu0 0.0
        %6721 = vmatpush2.msra.mxu0 0.0
        %6722 = vmatprep.subr.mxu0 0.0
        %6723 = vmatpush2.msra.mxu0 0.0
        %6724 = vmatprep.subr.mxu0 0.0
        %6725 = vmatpush2.msra.mxu0 0.0
        %6726 = vmatprep.subr.mxu0 0.0
        %6727 = vmatpush2.msra.mxu0 0.0
        %6728 = vmatprep.subr.mxu0 0.0
        %6729 = vmatpush2.msra.mxu0 0.0
        %6730 = vmatprep.subr.mxu0 0.0
        %6731 = vmatpush2.msra.mxu0 0.0
        %6732 = vmatprep.subr.mxu0 0.0
        %6733 = vmatpush2.msra.mxu0 0.0
        %6734 = vmatprep.subr.mxu0 0.0
        %6735 = vmatpush2.msra.mxu0 0.0
        %6736 = vmatprep.subr.mxu0 0.0
        %6737 = vmatpush2.msra.mxu0 0.0
        %6738 = vmatprep.subr.mxu0 0.0
        %6739 = vmatpush2.msra.mxu0 0.0
        %6740 = vmatprep.subr.mxu0 0.0
        %6741 = vmatpush2.msra.mxu0 0.0
        %6742 = vmatprep.subr.mxu0 0.0
        %6743 = vmatpush2.msra.mxu0 0.0
        %6744 = vmatprep.subr.mxu0 0.0
        %6745 = vmatpush2.msra.mxu0 0.0
        %6746 = vmatprep.mubr.f32.mxu0 0.0
        %6747 = vmatmul.mubr.f32.gmra.mxu0 %v6680
        %v6748 = vpop.f32.mrf.mxu0
        %v6749 = vadd.f32 0.0, %v6748
        %v6750 = vpop.f32.mrf.mxu0
        %6751 = vdwg.mxu0
        %v6752 = vadd.f32 %v1319, %v6749
        %v6754 = vsel %vm1334, %v6671, 0
        %6756 = vmatprep.subr.mxu0 0.0
        %6757 = vmatpush1.msra.mxu0 0.0
        %6758 = vmatprep.subr.mxu0 0.0
        %6759 = vmatpush1.msra.mxu0 0.0
        %6760 = vmatprep.subr.mxu0 0.0
        %6761 = vmatpush1.msra.mxu0 0.0
        %6762 = vmatprep.subr.mxu0 0.0
        %6763 = vmatpush1.msra.mxu0 0.0
        %6764 = vmatprep.subr.mxu0 0.0
        %6765 = vmatpush1.msra.mxu0 0.0
        %6766 = vmatprep.subr.mxu0 0.0
        %6767 = vmatpush1.msra.mxu0 0.0
        %6768 = vmatprep.subr.mxu0 0.0
        %6769 = vmatpush1.msra.mxu0 0.0
        %6770 = vmatprep.subr.mxu0 0.0
        %6771 = vmatpush1.msra.mxu0 0.0
        %6772 = vmatprep.subr.mxu0 0.0
        %6773 = vmatpush1.msra.mxu0 0.0
        %6774 = vmatprep.subr.mxu0 0.0
        %6775 = vmatpush1.msra.mxu0 0.0
        %6776 = vmatprep.subr.mxu0 0.0
        %6777 = vmatpush1.msra.mxu0 0.0
        %6778 = vmatprep.subr.mxu0 0.0
        %6779 = vmatpush1.msra.mxu0 0.0
        %6780 = vmatprep.subr.mxu0 0.0
        %6781 = vmatpush1.msra.mxu0 %v1609
        %6782 = vmatprep.subr.mxu0 0.0
        %6783 = vmatpush1.msra.mxu0 %v1608
        %6784 = vmatprep.subr.mxu0 0.0
        %6785 = vmatpush1.msra.mxu0 %v1607
        %6786 = vmatprep.subr.mxu0 0.0
        %6787 = vmatpush1.msra.mxu0 %v1606
        %6788 = vmatprep.subr.mxu0 0.0
        %6789 = vmatpush2.msra.mxu0 0.0
        %6790 = vmatprep.subr.mxu0 0.0
        %6791 = vmatpush2.msra.mxu0 0.0
        %6792 = vmatprep.subr.mxu0 0.0
        %6793 = vmatpush2.msra.mxu0 0.0
        %6794 = vmatprep.subr.mxu0 0.0
        %6795 = vmatpush2.msra.mxu0 0.0
        %6796 = vmatprep.subr.mxu0 0.0
        %6797 = vmatpush2.msra.mxu0 0.0
        %6798 = vmatprep.subr.mxu0 0.0
        %6799 = vmatpush2.msra.mxu0 0.0
        %6800 = vmatprep.subr.mxu0 0.0
        %6801 = vmatpush2.msra.mxu0 0.0
        %6802 = vmatprep.subr.mxu0 0.0
        %6803 = vmatpush2.msra.mxu0 0.0
        %6804 = vmatprep.subr.mxu0 0.0
        %6805 = vmatpush2.msra.mxu0 0.0
        %6806 = vmatprep.subr.mxu0 0.0
        %6807 = vmatpush2.msra.mxu0 0.0
        %6808 = vmatprep.subr.mxu0 0.0
        %6809 = vmatpush2.msra.mxu0 0.0
        %6810 = vmatprep.subr.mxu0 0.0
        %6811 = vmatpush2.msra.mxu0 0.0
        %6812 = vmatprep.subr.mxu0 0.0
        %6813 = vmatpush2.msra.mxu0 0.0
        %6814 = vmatprep.subr.mxu0 0.0
        %6815 = vmatpush2.msra.mxu0 0.0
        %6816 = vmatprep.subr.mxu0 0.0
        %6817 = vmatpush2.msra.mxu0 0.0
        %6818 = vmatprep.subr.mxu0 0.0
        %6819 = vmatpush2.msra.mxu0 0.0
        %6820 = vmatprep.mubr.f32.mxu0 0.0
        %6821 = vmatmul.mubr.f32.gmra.mxu0 %v6754
        %v6822 = vpop.f32.mrf.mxu0
        %v6823 = vadd.f32 0.0, %v6822
        %v6824 = vpop.f32.mrf.mxu0
        %6825 = vdwg.mxu0
        %v6826 = vadd.f32 %v6752, %v6823
        %v6828 = vsel %vm1334, %v6676, 0
        %6830 = vmatprep.subr.mxu0 0.0
        %6831 = vmatpush1.msra.mxu0 0.0
        %6832 = vmatprep.subr.mxu0 0.0
        %6833 = vmatpush1.msra.mxu0 0.0
        %6834 = vmatprep.subr.mxu0 0.0
        %6835 = vmatpush1.msra.mxu0 0.0
        %6836 = vmatprep.subr.mxu0 0.0
        %6837 = vmatpush1.msra.mxu0 0.0
        %6838 = vmatprep.subr.mxu0 0.0
        %6839 = vmatpush1.msra.mxu0 0.0
        %6840 = vmatprep.subr.mxu0 0.0
        %6841 = vmatpush1.msra.mxu0 0.0
        %6842 = vmatprep.subr.mxu0 0.0
        %6843 = vmatpush1.msra.mxu0 0.0
        %6844 = vmatprep.subr.mxu0 0.0
        %6845 = vmatpush1.msra.mxu0 0.0
        %6846 = vmatprep.subr.mxu0 0.0
        %6847 = vmatpush1.msra.mxu0 0.0
        %6848 = vmatprep.subr.mxu0 0.0
        %6849 = vmatpush1.msra.mxu0 0.0
        %6850 = vmatprep.subr.mxu0 0.0
        %6851 = vmatpush1.msra.mxu0 0.0
        %6852 = vmatprep.subr.mxu0 0.0
        %6853 = vmatpush1.msra.mxu0 0.0
        %6854 = vmatprep.subr.mxu0 0.0
        %6855 = vmatpush1.msra.mxu0 %v1688
        %6856 = vmatprep.subr.mxu0 0.0
        %6857 = vmatpush1.msra.mxu0 %v1687
        %6858 = vmatprep.subr.mxu0 0.0
        %6859 = vmatpush1.msra.mxu0 %v1686
        %6860 = vmatprep.subr.mxu0 0.0
        %6861 = vmatpush1.msra.mxu0 %v1685
        %6862 = vmatprep.subr.mxu0 0.0
        %6863 = vmatpush2.msra.mxu0 0.0
        %6864 = vmatprep.subr.mxu0 0.0
        %6865 = vmatpush2.msra.mxu0 0.0
        %6866 = vmatprep.subr.mxu0 0.0
        %6867 = vmatpush2.msra.mxu0 0.0
        %6868 = vmatprep.subr.mxu0 0.0
        %6869 = vmatpush2.msra.mxu0 0.0
        %6870 = vmatprep.subr.mxu0 0.0
        %6871 = vmatpush2.msra.mxu0 0.0
        %6872 = vmatprep.subr.mxu0 0.0
        %6873 = vmatpush2.msra.mxu0 0.0
        %6874 = vmatprep.subr.mxu0 0.0
        %6875 = vmatpush2.msra.mxu0 0.0
        %6876 = vmatprep.subr.mxu0 0.0
        %6877 = vmatpush2.msra.mxu0 0.0
        %6878 = vmatprep.subr.mxu0 0.0
        %6879 = vmatpush2.msra.mxu0 0.0
        %6880 = vmatprep.subr.mxu0 0.0
        %6881 = vmatpush2.msra.mxu0 0.0
        %6882 = vmatprep.subr.mxu0 0.0
        %6883 = vmatpush2.msra.mxu0 0.0
        %6884 = vmatprep.subr.mxu0 0.0
        %6885 = vmatpush2.msra.mxu0 0.0
        %6886 = vmatprep.subr.mxu0 0.0
        %6887 = vmatpush2.msra.mxu0 0.0
        %6888 = vmatprep.subr.mxu0 0.0
        %6889 = vmatpush2.msra.mxu0 0.0
        %6890 = vmatprep.subr.mxu0 0.0
        %6891 = vmatpush2.msra.mxu0 0.0
        %6892 = vmatprep.subr.mxu0 0.0
        %6893 = vmatpush2.msra.mxu0 0.0
        %6894 = vmatprep.mubr.f32.mxu0 0.0
        %6895 = vmatmul.mubr.f32.gmra.mxu0 %v6828
        %v6896 = vpop.f32.mrf.mxu0
        %v6897 = vadd.f32 0.0, %v6896
        %v6898 = vpop.f32.mrf.mxu0
        %6899 = vdwg.mxu0
        %v6900 = vadd.f32 %v6826, %v6897
        %v6901 = vadd.f32 %v6900, %v1767
        %v6902 = vtanh.pop %v6901
        %v6903 = vadd.f32 %v793, %v867
        %v6904 = vsel %vm1334, %v6597, 0
        %6906 = vmatprep.subr.mxu0 0.0
        %6907 = vmatpush1.msra.mxu0 0.0
        %6908 = vmatprep.subr.mxu0 0.0
        %6909 = vmatpush1.msra.mxu0 0.0
        %6910 = vmatprep.subr.mxu0 0.0
        %6911 = vmatpush1.msra.mxu0 0.0
        %6912 = vmatprep.subr.mxu0 0.0
        %6913 = vmatpush1.msra.mxu0 0.0
        %6914 = vmatprep.subr.mxu0 0.0
        %6915 = vmatpush1.msra.mxu0 0.0
        %6916 = vmatprep.subr.mxu0 0.0
        %6917 = vmatpush1.msra.mxu0 0.0
        %6918 = vmatprep.subr.mxu0 0.0
        %6919 = vmatpush1.msra.mxu0 0.0
        %6920 = vmatprep.subr.mxu0 0.0
        %6921 = vmatpush1.msra.mxu0 0.0
        %6922 = vmatprep.subr.mxu0 0.0
        %6923 = vmatpush1.msra.mxu0 0.0
        %6924 = vmatprep.subr.mxu0 0.0
        %6925 = vmatpush1.msra.mxu0 0.0
        %6926 = vmatprep.subr.mxu0 0.0
        %6927 = vmatpush1.msra.mxu0 0.0
        %6928 = vmatprep.subr.mxu0 0.0
        %6929 = vmatpush1.msra.mxu0 0.0
        %6930 = vmatprep.subr.mxu0 0.0
        %6931 = vmatpush1.msra.mxu0 %v691
        %6932 = vmatprep.subr.mxu0 0.0
        %6933 = vmatpush1.msra.mxu0 %v690
        %6934 = vmatprep.subr.mxu0 0.0
        %6935 = vmatpush1.msra.mxu0 %v689
        %6936 = vmatprep.subr.mxu0 0.0
        %6937 = vmatpush1.msra.mxu0 %v688
        %6938 = vmatprep.subr.mxu0 0.0
        %6939 = vmatpush2.msra.mxu0 0.0
        %6940 = vmatprep.subr.mxu0 0.0
        %6941 = vmatpush2.msra.mxu0 0.0
        %6942 = vmatprep.subr.mxu0 0.0
        %6943 = vmatpush2.msra.mxu0 0.0
        %6944 = vmatprep.subr.mxu0 0.0
        %6945 = vmatpush2.msra.mxu0 0.0
        %6946 = vmatprep.subr.mxu0 0.0
        %6947 = vmatpush2.msra.mxu0 0.0
        %6948 = vmatprep.subr.mxu0 0.0
        %6949 = vmatpush2.msra.mxu0 0.0
        %6950 = vmatprep.subr.mxu0 0.0
        %6951 = vmatpush2.msra.mxu0 0.0
        %6952 = vmatprep.subr.mxu0 0.0
        %6953 = vmatpush2.msra.mxu0 0.0
        %6954 = vmatprep.subr.mxu0 0.0
        %6955 = vmatpush2.msra.mxu0 0.0
        %6956 = vmatprep.subr.mxu0 0.0
        %6957 = vmatpush2.msra.mxu0 0.0
        %6958 = vmatprep.subr.mxu0 0.0
        %6959 = vmatpush2.msra.mxu0 0.0
        %6960 = vmatprep.subr.mxu0 0.0
        %6961 = vmatpush2.msra.mxu0 0.0
        %6962 = vmatprep.subr.mxu0 0.0
        %6963 = vmatpush2.msra.mxu0 0.0
        %6964 = vmatprep.subr.mxu0 0.0
        %6965 = vmatpush2.msra.mxu0 0.0
        %6966 = vmatprep.subr.mxu0 0.0
        %6967 = vmatpush2.msra.mxu0 0.0
        %6968 = vmatprep.subr.mxu0 0.0
        %6969 = vmatpush2.msra.mxu0 0.0
        %6970 = vmatprep.mubr.f32.mxu0 0.0
        %6971 = vmatmul.mubr.f32.gmra.mxu0 %v6904
        %v6972 = vpop.f32.mrf.mxu0
        %v6973 = vadd.f32 0.0, %v6972
        %v6974 = vpop.f32.mrf.mxu0
        %6975 = vdwg.mxu0
        %v6976 = vadd.f32 %v6903, %v6973
        %v6977 = vmul.f32 %v6976, %v1849
        %v6978 = vsel %vm1334, %v6977, 0.0
        %6979 = vadd.xlane.f32.xlu0 %v6978
        %v6980 = vpop.xlane.xlu0 %6979
        %v6981 = vmul.f32 %v6976, %v1858
        %v6982 = vsel %vm1334, %v6981, 0.0
        %6983 = vadd.xlane.f32.xlu0 %v6982
        %v6984 = vpop.xlane.xlu0 %6983
        %v6986 = vlaneseq
        %v6987 = vshrl.u32 %v6986, 7
        %v6988 = vsub.s32 %v1865, %v6987
        %v6989 = vrot.slane %v6984, %v6988
        %v6990 = vsel %vm1870, %v6989, %v6989
        %v6991 = vsel %vm1872, %v6989, %v6990
        %v6992 = vsel %vm1874, %v6989, %v6991
        %v6993 = vsel %vm1876, %v6989, %v6992
        %v6994 = vsel %vm1878, %v6989, %v6993
        %v6995 = vsel %vm1880, %v6989, %v6994
        %v6997 = vadd.f32 %v6980, %v6995
        %vm6998 = vcmp.gt.f32.partialorder %v6997, 0.0
        %v6999 = vmul.f32 %v6997, 0.2
        %v7000 = vsel %vm6998, %v6997, %v6999
        %v7001 = vadd.f32 %v7000, %v679
        %v7002 = vsel %vm871, %v7001, -inf
        %7003 = vmax.xlane.f32.xlu0 %v7002
        %v7004 = vpop.xlane.xlu0 %7003
        %v7005 = vsub.f32 %v7001, %v7004
        %v7006 = vmul.f32 %v7005, 1.442695
        %v7007 = vpow.pop %v7006
        %v7008 = vsel %vm871, %v7007, 0.0
        %7009 = vadd.xlane.f32.xlu0 %v7008
        %v7010 = vpop.xlane.xlu0 %7009
        %v7011 = vrcp.pop %v7010
        %v7012 = vmul.f32 %v7007, %v7011
        %v7013 = vmul.f32 %v6976, %v1906
        %7015 = vrot.lane.b32.xlu0 %v7013, 96
        %v7016 = vpop.permute.xlu0 %7015
        %v7018 = vsel %vm1334, %v7016, 0.0
        %7019 = vadd.xlane.f32.xlu0 %v7018
        %v7020 = vpop.xlane.xlu0 %7019
        %v7021 = vmul.f32 %v6976, %v1923
        %7023 = vrot.lane.b32.xlu0 %v7021, 96
        %v7024 = vpop.permute.xlu0 %7023
        %v7026 = vsel %vm1334, %v7024, 0.0
        %7027 = vadd.xlane.f32.xlu0 %v7026
        %v7028 = vpop.xlane.xlu0 %7027
        %v7030 = vlaneseq
        %v7031 = vshrl.u32 %v7030, 7
        %v7032 = vsub.s32 %v1865, %v7031
        %v7033 = vrot.slane %v7028, %v7032
        %v7034 = vsel %vm1870, %v7033, %v7033
        %v7035 = vsel %vm1872, %v7033, %v7034
        %v7036 = vsel %vm1874, %v7033, %v7035
        %v7037 = vsel %vm1876, %v7033, %v7036
        %v7038 = vsel %vm1878, %v7033, %v7037
        %v7039 = vsel %vm1880, %v7033, %v7038
        %v7041 = vadd.f32 %v7020, %v7039
        %vm7042 = vcmp.gt.f32.partialorder %v7041, 0.0
        %v7043 = vmul.f32 %v7041, 0.2
        %v7044 = vsel %vm7042, %v7041, %v7043
        %v7045 = vadd.f32 %v7044, %v679
        %v7046 = vsel %vm871, %v7045, -inf
        %7047 = vmax.xlane.f32.xlu0 %v7046
        %v7048 = vpop.xlane.xlu0 %7047
        %v7049 = vsub.f32 %v7045, %v7048
        %v7050 = vmul.f32 %v7049, 1.442695
        %v7051 = vpow.pop %v7050
        %v7052 = vsel %vm871, %v7051, 0.0
        %7053 = vadd.xlane.f32.xlu0 %v7052
        %v7054 = vpop.xlane.xlu0 %7053
        %v7055 = vrcp.pop %v7054
        %v7056 = vmul.f32 %v7051, %v7055
        %7058 = vrot.lane.b32.xlu0 %v6976, 96
        %v7059 = vpop.permute.xlu0 %7058
        %v7062 = vsel %vm871, %v7056, 0
        %7064 = vmatprep.subr.mxu0 0.0
        %7065 = vmatpush1.msra.mxu0 0.0
        %7066 = vmatprep.subr.mxu0 0.0
        %7067 = vmatpush1.msra.mxu0 0.0
        %7068 = vmatprep.subr.mxu0 0.0
        %7069 = vmatpush1.msra.mxu0 0.0
        %7070 = vmatprep.subr.mxu0 0.0
        %7071 = vmatpush1.msra.mxu0 0.0
        %7072 = vmatprep.subr.mxu0 0.0
        %7073 = vmatpush1.msra.mxu0 0.0
        %7074 = vmatprep.subr.mxu0 0.0
        %7075 = vmatpush1.msra.mxu0 0.0
        %7076 = vmatprep.subr.mxu0 0.0
        %7077 = vmatpush1.msra.mxu0 0.0
        %7078 = vmatprep.subr.mxu0 0.0
        %7079 = vmatpush1.msra.mxu0 0.0
        %7080 = vmatprep.subr.mxu0 0.0
        %7081 = vmatpush1.msra.mxu0 0.0
        %7082 = vmatprep.subr.mxu0 0.0
        %7083 = vmatpush1.msra.mxu0 0.0
        %7084 = vmatprep.subr.mxu0 0.0
        %7085 = vmatpush1.msra.mxu0 0.0
        %7086 = vmatprep.subr.mxu0 0.0
        %7087 = vmatpush1.msra.mxu0 0.0
        %7088 = vmatprep.subr.mxu0 0.0
        %7089 = vmatpush1.msra.mxu0 0.0
        %7090 = vmatprep.subr.mxu0 0.0
        %7091 = vmatpush1.msra.mxu0 0.0
        %7092 = vmatprep.subr.mxu0 0.0
        %7093 = vmatpush1.msra.mxu0 0.0
        %7094 = vmatprep.subr.mxu0 0.0
        %7095 = vmatpush1.msra.mxu0 %v7059
        %7096 = vmatprep.subr.mxu0 0.0
        %7097 = vmatpush2.msra.mxu0 0.0
        %7098 = vmatprep.subr.mxu0 0.0
        %7099 = vmatpush2.msra.mxu0 0.0
        %7100 = vmatprep.subr.mxu0 0.0
        %7101 = vmatpush2.msra.mxu0 0.0
        %7102 = vmatprep.subr.mxu0 0.0
        %7103 = vmatpush2.msra.mxu0 0.0
        %7104 = vmatprep.subr.mxu0 0.0
        %7105 = vmatpush2.msra.mxu0 0.0
        %7106 = vmatprep.subr.mxu0 0.0
        %7107 = vmatpush2.msra.mxu0 0.0
        %7108 = vmatprep.subr.mxu0 0.0
        %7109 = vmatpush2.msra.mxu0 0.0
        %7110 = vmatprep.subr.mxu0 0.0
        %7111 = vmatpush2.msra.mxu0 0.0
        %7112 = vmatprep.subr.mxu0 0.0
        %7113 = vmatpush2.msra.mxu0 0.0
        %7114 = vmatprep.subr.mxu0 0.0
        %7115 = vmatpush2.msra.mxu0 0.0
        %7116 = vmatprep.subr.mxu0 0.0
        %7117 = vmatpush2.msra.mxu0 0.0
        %7118 = vmatprep.subr.mxu0 0.0
        %7119 = vmatpush2.msra.mxu0 0.0
        %7120 = vmatprep.subr.mxu0 0.0
        %7121 = vmatpush2.msra.mxu0 0.0
        %7122 = vmatprep.subr.mxu0 0.0
        %7123 = vmatpush2.msra.mxu0 0.0
        %7124 = vmatprep.subr.mxu0 0.0
        %7125 = vmatpush2.msra.mxu0 0.0
        %7126 = vmatprep.subr.mxu0 0.0
        %7127 = vmatpush2.msra.mxu0 0.0
        %7128 = vmatprep.mubr.f32.mxu0 0.0
        %7129 = vmatmul.mubr.f32.gmra.mxu0 %v7062
        %v7130 = vpop.f32.mrf.mxu0
        %v7131 = vadd.f32 0.0, %v7130
        %v7132 = vpop.f32.mrf.mxu0
        %7133 = vdwg.mxu0
        %v7135 = vsel %vm871, %v7012, 0
        %7137 = vmatprep.subr.mxu0 0.0
        %7138 = vmatpush1.msra.mxu0 0.0
        %7139 = vmatprep.subr.mxu0 0.0
        %7140 = vmatpush1.msra.mxu0 0.0
        %7141 = vmatprep.subr.mxu0 0.0
        %7142 = vmatpush1.msra.mxu0 0.0
        %7143 = vmatprep.subr.mxu0 0.0
        %7144 = vmatpush1.msra.mxu0 0.0
        %7145 = vmatprep.subr.mxu0 0.0
        %7146 = vmatpush1.msra.mxu0 0.0
        %7147 = vmatprep.subr.mxu0 0.0
        %7148 = vmatpush1.msra.mxu0 0.0
        %7149 = vmatprep.subr.mxu0 0.0
        %7150 = vmatpush1.msra.mxu0 0.0
        %7151 = vmatprep.subr.mxu0 0.0
        %7152 = vmatpush1.msra.mxu0 0.0
        %7153 = vmatprep.subr.mxu0 0.0
        %7154 = vmatpush1.msra.mxu0 0.0
        %7155 = vmatprep.subr.mxu0 0.0
        %7156 = vmatpush1.msra.mxu0 0.0
        %7157 = vmatprep.subr.mxu0 0.0
        %7158 = vmatpush1.msra.mxu0 0.0
        %7159 = vmatprep.subr.mxu0 0.0
        %7160 = vmatpush1.msra.mxu0 0.0
        %7161 = vmatprep.subr.mxu0 0.0
        %7162 = vmatpush1.msra.mxu0 0.0
        %7163 = vmatprep.subr.mxu0 0.0
        %7164 = vmatpush1.msra.mxu0 0.0
        %7165 = vmatprep.subr.mxu0 0.0
        %7166 = vmatpush1.msra.mxu0 0.0
        %7167 = vmatprep.subr.mxu0 0.0
        %7168 = vmatpush1.msra.mxu0 %v6976
        %7169 = vmatprep.subr.mxu0 0.0
        %7170 = vmatpush2.msra.mxu0 0.0
        %7171 = vmatprep.subr.mxu0 0.0
        %7172 = vmatpush2.msra.mxu0 0.0
        %7173 = vmatprep.subr.mxu0 0.0
        %7174 = vmatpush2.msra.mxu0 0.0
        %7175 = vmatprep.subr.mxu0 0.0
        %7176 = vmatpush2.msra.mxu0 0.0
        %7177 = vmatprep.subr.mxu0 0.0
        %7178 = vmatpush2.msra.mxu0 0.0
        %7179 = vmatprep.subr.mxu0 0.0
        %7180 = vmatpush2.msra.mxu0 0.0
        %7181 = vmatprep.subr.mxu0 0.0
        %7182 = vmatpush2.msra.mxu0 0.0
        %7183 = vmatprep.subr.mxu0 0.0
        %7184 = vmatpush2.msra.mxu0 0.0
        %7185 = vmatprep.subr.mxu0 0.0
        %7186 = vmatpush2.msra.mxu0 0.0
        %7187 = vmatprep.subr.mxu0 0.0
        %7188 = vmatpush2.msra.mxu0 0.0
        %7189 = vmatprep.subr.mxu0 0.0
        %7190 = vmatpush2.msra.mxu0 0.0
        %7191 = vmatprep.subr.mxu0 0.0
        %7192 = vmatpush2.msra.mxu0 0.0
        %7193 = vmatprep.subr.mxu0 0.0
        %7194 = vmatpush2.msra.mxu0 0.0
        %7195 = vmatprep.subr.mxu0 0.0
        %7196 = vmatpush2.msra.mxu0 0.0
        %7197 = vmatprep.subr.mxu0 0.0
        %7198 = vmatpush2.msra.mxu0 0.0
        %7199 = vmatprep.subr.mxu0 0.0
        %7200 = vmatpush2.msra.mxu0 0.0
        %7201 = vmatprep.mubr.f32.mxu0 0.0
        %7202 = vmatmul.mubr.f32.gmra.mxu0 %v7135
        %v7203 = vpop.f32.mrf.mxu0
        %v7204 = vadd.f32 %v7131, %v7203
        %v7205 = vpop.f32.mrf.mxu0
        %7206 = vdwg.mxu0
        %v7207 = vmul.f32 %v7204, 0.5
        %v7208 = vtanh.pop %v7207
        %7209 = vst.msk [vmem:[%s651] sm:$0xff] %vm1334, %v6597
        %7210 = vst.msk [vmem:[%s658] sm:$0xff] %vm1334, %v6902
        %7211 = vst.msk [vmem:[%s665] sm:$0xff] %vm1334, %v7208
        %s7212 = sand.u32 %s435, 1
        %s7213 = scalar_lea.sflag [#allocation3], %s7212
        %s7214 = sand.u32 %s435, 1
        %s7215 = smul.addr %s7214, 8
        %s7216 = scalar_lea.vmem [#allocation5], %s7215
        %s7217 = sand.u32 %s39, 1
        %s7218 = scalar_lea.sflag [#allocation7], %s7217
        %s7219 = sand.u32 %s461, 1
        %s7220 = smul.addr %s7219, 8
        %s7221 = scalar_lea.vmem [#allocation6], %s7220
        %s7222 = sand.u32 %s39, 1
        %s7223 = scalar_lea.sflag [#allocation7], %s7222
        %s7224 = sand.u32 %s487, 1
        %s7225 = smul.addr %s7224, 8
        %s7226 = scalar_lea.vmem [#allocation8], %s7225
        // Predicated region
        $region97: #{mvcvtn1_forward.1} parent=91 // pred_check
          %p7227 = pneg %p445
        $region98: #{mvcvtn1_forward.1} parent=91 // pred_check_branch
          %7229 = sbr.rel (%p7227) target = $region100
        $region99: #{mvcvtn1_forward.1} parent=91 // pred_region
          %s7231 = ssub.s32 128, 128
          %7232 = vsyncadd %s7213, %s7231
          %s7233 = smul.addr %s39, 128
          %s7234 = scalar_lea.hbm %s18, %s7233
          %s7236 = sshll.u32 %s7216, 4
          %s7237 = int_to_ptr.vmem [resolvable:$true] %s7236
          %7239 = dma.vmem_to_hbm [thread:$0]  %s7237, 128, %s7234, %s7213
        $region100: #{mvcvtn1_forward.1} parent=91 // pred_fallthru
          _
        // Predicated region
        $region101: #{mvcvtn1_forward.1} parent=91 // pred_check
          %p7240 = pneg %p471
        $region102: #{mvcvtn1_forward.1} parent=91 // pred_check_branch
          %7242 = sbr.rel (%p7240) target = $region104
        $region103: #{mvcvtn1_forward.1} parent=91 // pred_region
          %s7244 = ssub.s32 128, 128
          %7245 = vsyncadd %s7218, %s7244
          %s7246 = smul.addr %s39, 128
          %s7247 = scalar_lea.hbm %s19, %s7246
          %s7249 = sshll.u32 %s7221, 4
          %s7250 = int_to_ptr.vmem [resolvable:$true] %s7249
          %7252 = dma.vmem_to_hbm [thread:$0]  %s7250, 128, %s7247, %s7218
        $region104: #{mvcvtn1_forward.1} parent=91 // pred_fallthru
          _
        // Predicated region
        $region105: #{mvcvtn1_forward.1} parent=91 // pred_check
          %p7253 = pneg %p497
        $region106: #{mvcvtn1_forward.1} parent=91 // pred_check_branch
          %7255 = sbr.rel (%p7253) target = $region108
        $region107: #{mvcvtn1_forward.1} parent=91 // pred_region
          %s7257 = ssub.s32 128, 128
          %7258 = vsyncadd %s7223, %s7257
          %s7259 = smul.addr %s39, 128
          %s7260 = scalar_lea.hbm %s20, %s7259
          %s7262 = sshll.u32 %s7226, 4
          %s7263 = int_to_ptr.vmem [resolvable:$true] %s7262
          %7265 = dma.vmem_to_hbm [thread:$0]  %s7263, 128, %s7260, %s7223
        $region108: #{mvcvtn1_forward.1} parent=91 // pred_fallthru
          _
      $region92: #{mvcvtn1_forward.1} parent=5 // pred_fallthru
        _
      %p7266 = scmp.le.s32.totalorder 2, %s34
      // Predicated region
      $region109: #{mvcvtn1_forward.1} parent=5 // pred_check
        %p7267 = pneg %p7266
      $region110: #{mvcvtn1_forward.1} parent=5 // pred_check_branch
        %7269 = sbr.rel (%p7267) target = $region112
      $region111: #{mvcvtn1_forward.1} parent=5 // pred_region
        %s7270 = ssub.s32 %s34, 2
        // Predicated region
        $region113: #{mvcvtn1_forward.1} parent=111 // pred_check
          %p7271 = pneg %p451
        $region114: #{mvcvtn1_forward.1} parent=111 // pred_check_branch
          %7273 = sbr.rel (%p7271) target = $region116
        $region115: #{mvcvtn1_forward.1} parent=111 // pred_region
          %s7274 = sand.u32 %s436, 1
          %s7275 = scalar_lea.sflag [#allocation3], %s7274
          %s7276 = sand.u32 %s436, 1
          %s7277 = smul.addr %s7276, 8
          %s7278 = scalar_lea.vmem [#allocation5], %s7277
          %7279 = dma.done %s7275, 128
        $region116: #{mvcvtn1_forward.1} parent=111 // pred_fallthru
          _
        // Predicated region
        $region117: #{mvcvtn1_forward.1} parent=111 // pred_check
          %p7280 = pneg %p477
        $region118: #{mvcvtn1_forward.1} parent=111 // pred_check_branch
          %7282 = sbr.rel (%p7280) target = $region120
        $region119: #{mvcvtn1_forward.1} parent=111 // pred_region
          %s7283 = sand.u32 %s40, 1
          %s7284 = scalar_lea.sflag [#allocation7], %s7283
          %s7285 = sand.u32 %s462, 1
          %s7286 = smul.addr %s7285, 8
          %s7287 = scalar_lea.vmem [#allocation6], %s7286
          %7288 = dma.done %s7284, 128
        $region120: #{mvcvtn1_forward.1} parent=111 // pred_fallthru
          _
        // Predicated region
        $region121: #{mvcvtn1_forward.1} parent=111 // pred_check
          %p7289 = pneg %p503
        $region122: #{mvcvtn1_forward.1} parent=111 // pred_check_branch
          %7291 = sbr.rel (%p7289) target = $region124
        $region123: #{mvcvtn1_forward.1} parent=111 // pred_region
          %s7292 = sand.u32 %s40, 1
          %s7293 = scalar_lea.sflag [#allocation7], %s7292
          %s7294 = sand.u32 %s488, 1
          %s7295 = smul.addr %s7294, 8
          %s7296 = scalar_lea.vmem [#allocation8], %s7295
          %7297 = dma.done %s7293, 128
        $region124: #{mvcvtn1_forward.1} parent=111 // pred_fallthru
          _
      $region112: #{mvcvtn1_forward.1} parent=5 // pred_fallthru
        _
    $region6: #{mvcvtn1_forward.1} parent=1 // loop_footer
      %s38 = sadd.s32 1, %s34
    $region7: #{mvcvtn1_forward.1} parent=1 // loop_footer_branch
      %33 = sbr.rel target = $region3
    $region8: #{mvcvtn1_forward.1} parent=1 // loop_exit
      _
    %7298 = vsyncpa [#allocation3], 1
    %s7299 = scalar_lea.sflag [#allocation3], 1
    %7300 = vsyncpa %s7299, 1
    %7301 = vsyncpa [#allocation7], 1
    %s7302 = scalar_lea.sflag [#allocation7], 1
    %7303 = vsyncpa %s7302, 1
    %7304 = vsyncpa [#allocation4], 1
    %s7305 = scalar_lea.sflag [#allocation4], 1
    %7306 = vsyncpa %s7305, 1

</llo_original>
